<compile_context>
chip_gen: v6e
topology: v6e:2x2x1
jax: 0.10.0
libtpu: 0.0.40
codegen_flags: <defaults>
</compile_context>

<pallas_src>
import jax
import jax.numpy as jnp
from jax.experimental import pallas as pl
from jax.experimental.pallas import tpu as pltpu


# --------------------------------------------------------------------------
# helpers
# --------------------------------------------------------------------------
def _pick_tile(b, cap, multiple_of=1):
    """Largest batch tile <= cap dividing b (multiple of `multiple_of` unless
    it equals b, which is always legal as a BlockSpec full-dim block)."""
    if b <= cap:
        return b
    for t in range(cap, 0, -1):
        if b % t == 0 and t % multiple_of == 0:
            return t
    return b


def _im2col_pooled(x_nhwc):
    """(B,H,W,C) -> (4, B, H2*W2, 9*C).

    Leading axis = 2x2 pooling-window offset (a,b); last axis = the 9 3x3-conv
    taps (kh-major) x C channels, sampled at the stride-2 positions the
    maxpool needs.  Pure data movement (glue); all MACs stay in the kernel."""
    B, H, W, C = x_nhwc.shape
    H2, W2 = H // 2, W // 2
    xp = jnp.pad(x_nhwc, ((0, 0), (1, 1), (1, 1), (0, 0)))
    cols = []
    for a in range(2):
        for b in range(2):
            taps = [xp[:, a + kh: a + kh + 2 * H2: 2,
                       b + kw: b + kw + 2 * W2: 2, :]
                    for kh in range(3) for kw in range(3)]
            cols.append(jnp.concatenate(taps, axis=-1))     # (B,H2,W2,9C)
    return jnp.stack(cols, axis=0).reshape(4, B, H2 * W2, 9 * C)


def _conv_im2col_weight(w_oihw, n_pad=128):
    """torch OIHW (Cout,Cin,3,3) -> bf16 (9*Cin, n_pad) im2col weight."""
    w = jnp.transpose(w_oihw, (2, 3, 1, 0)).astype(jnp.float32)   # HWIO
    kh, kw, ci, co = w.shape
    w = w.reshape(kh * kw * ci, co)
    return jnp.pad(w, ((0, 0), (0, n_pad - co))).astype(jnp.bfloat16)


def _bn_fold(conv_b, gamma, beta, mean, var, n_pad=128, eps=1e-5):
    """Fold eval-mode BatchNorm (+conv bias) into per-channel scale/bias,
    zero-padded to n_pad lanes (padded channels stay exactly 0 post-ReLU)."""
    s = gamma / jnp.sqrt(var + eps)
    bias = s * (conv_b - mean) + beta
    pad = n_pad - s.shape[0]
    s = jnp.pad(s, (0, pad)).reshape(1, n_pad).astype(jnp.float32)
    bias = jnp.pad(bias, (0, pad)).reshape(1, n_pad).astype(jnp.float32)
    return s, bias


# --------------------------------------------------------------------------
# Kernel 1: fused conv3x3 + BN + ReLU + maxpool2x2  (one matmul per step)
# --------------------------------------------------------------------------
def _conv_kernel(xcol_ref, w_ref, scale_ref, bias_ref, out_ref):
    P, TB, HW, K = xcol_ref.shape                # (4, TB, H2*W2, 9*Cin)
    NP = w_ref.shape[-1]                         # 128 (lane-dense)
    # One big MXU matmul: M = 4*TB*H2*W2, K = 9*Cin, N = 128.
    lhs = xcol_ref[...].reshape(P * TB * HW, K).astype(jnp.bfloat16)
    acc = jnp.dot(lhs, w_ref[...], preferred_element_type=jnp.float32)
    # BN + ReLU in f32 (scale/bias loaded once), then max over the 4 pooling
    # offsets living in the M dimension.
    y = jnp.maximum(acc * scale_ref[...] + bias_ref[...], 0.0)
    y = y.reshape(P, TB * HW, NP)
    out_ref[...] = jnp.maximum(jnp.maximum(y[0], y[1]),
                               jnp.maximum(y[2], y[3]))


def conv_bn_relu_pool(x_nhwc, w_col, scale, bias, *, tile_b=4):
    """x_nhwc: (B,H,W,Cin) f32 -> (B*H2*W2, 128) f32 lane-dense pooled output
    (first Cout lanes are real channels, rest are zero)."""
    B, H, W, C = x_nhwc.shape
    H2, W2 = H // 2, W // 2
    HW = H2 * W2
    K, NP = w_col.shape
    xcol = _im2col_pooled(x_nhwc)                       # (4, B, HW, 9C)
    TB = _pick_tile(B, tile_b)
    return pl.pallas_call(
        _conv_kernel,
        out_shape=jax.ShapeDtypeStruct((B * HW, NP), jnp.float32),
        grid=(B // TB,),
        in_specs=[
            pl.BlockSpec((4, TB, HW, K), lambda i: (0, i, 0, 0)),
            pl.BlockSpec((K, NP), lambda i: (0, 0)),        # resident weight
            pl.BlockSpec((1, NP), lambda i: (0, 0)),        # resident scale
            pl.BlockSpec((1, NP), lambda i: (0, 0)),        # resident bias
        ],
        out_specs=pl.BlockSpec((TB * HW, NP), lambda i: (i, 0)),
        compiler_params=pltpu.CompilerParams(
            dimension_semantics=("parallel",)),
    )(xcol, w_col, scale, bias)


# --------------------------------------------------------------------------
# Kernel 2: fused MLP head  fc1->ReLU->fc2->ReLU->fc3->ReLU->fc4
# --------------------------------------------------------------------------
def _mlp_kernel(x_ref, w1_ref, b1_ref, w2_ref, b2_ref, w3_ref, b3_ref,
                w4_ref, b4_ref, out_ref):
    def dense(h, w_ref, b_ref):
        return jnp.dot(h.astype(jnp.bfloat16), w_ref[...],
                       preferred_element_type=jnp.float32) + b_ref[...]

    h = jnp.maximum(dense(x_ref[...], w1_ref, b1_ref), 0.0)
    # TODO(synk): dropout(p=0.25) -> eval-mode identity; fc1 applied once.
    h = jnp.maximum(dense(h, w2_ref, b2_ref), 0.0)
    h = jnp.maximum(dense(h, w3_ref, b3_ref), 0.0)
    out_ref[...] = dense(h, w4_ref, b4_ref)


def mlp_head(x_flat, w1, b1, w2, b2, w3, b3, w4, b4, *, tile_b=64):
    B, F = x_flat.shape
    TB = _pick_tile(B, tile_b, multiple_of=8)

    def resident(shape):
        return pl.BlockSpec(shape, lambda i: (0, 0))

    return pl.pallas_call(
        _mlp_kernel,
        out_shape=jax.ShapeDtypeStruct((B, 128), jnp.float32),
        grid=(B // TB,),
        in_specs=[
            pl.BlockSpec((TB, F), lambda i: (i, 0)),
            resident(w1.shape), resident((1, 128)),
            resident((128, 128)), resident((1, 128)),
            resident((128, 128)), resident((1, 128)),
            resident((128, 128)), resident((1, 128)),
        ],
        out_specs=pl.BlockSpec((TB, 128), lambda i: (i, 0)),
        compiler_params=pltpu.CompilerParams(
            dimension_semantics=("parallel",)),
    )(x_flat, w1, b1, w2, b2, w3, b3, w4, b4)


# --------------------------------------------------------------------------
# Full forward (glue + kernels)
# --------------------------------------------------------------------------
def cifar10_forward(x_nchw, p):
    x = jnp.transpose(x_nchw, (0, 2, 3, 1)).astype(jnp.float32)   # NCHW->NHWC
    B, H, W, _ = x.shape
    H2, W2 = H // 2, W // 2
    c1 = p["conv1_w"].shape[0]
    c2 = p["conv2_w"].shape[0]
    n1 = p["fc1_w"].shape[0]
    n_cls = p["fc4_w"].shape[0]

    # ---- block 1: conv1 + bn1 + relu + pool ----
    w1c = _conv_im2col_weight(p["conv1_w"])
    s1, bb1 = _bn_fold(p["conv1_b"], p["bn1_gamma"], p["bn1_beta"],
                       p["bn1_mean"], p["bn1_var"])
    y1 = conv_bn_relu_pool(x, w1c, s1, bb1)            # (B*H2*W2, 128)

    # ---- block 2: conv2 + bn2 + relu + pool ----
    x2 = y1[:, :c1].reshape(B, H2, W2, c1)
    w2c = _conv_im2col_weight(p["conv2_w"])
    s2, bb2 = _bn_fold(p["conv2_b"], p["bn2_gamma"], p["bn2_beta"],
                       p["bn2_mean"], p["bn2_var"])
    y2 = conv_bn_relu_pool(x2, w2c, s2, bb2)           # (B*hw, 128), hw=64

    # ---- MLP head: consume conv2's lane-dense output directly ----
    hw = (H // 4) * (W // 4)                           # 64
    x_flat = y2.reshape(B, hw * 128)                   # free (contiguous)

    # fc1: permute torch's NCHW-flat input order (c*hw + s) to the kernel's
    # (s*128 + c) order, padding the 64 dead lanes with zero rows.
    w1t = p["fc1_w"].astype(jnp.float32).T.reshape(c2, hw, n1)   # (c, s, out)
    w1t = jnp.transpose(w1t, (1, 0, 2))                          # (s, c, out)
    w1_eff = jnp.zeros((hw, 128, n1), jnp.float32).at[:, :c2, :].set(w1t)
    w1_eff = w1_eff.reshape(hw * 128, n1).astype(jnp.bfloat16)
    b1 = p["fc1_b"].reshape(1, n1).astype(jnp.float32)

    def fc_pad(w, b):                                  # torch (out, in) -> padded
        wo, wi = w.shape
        wt = jnp.zeros((128, 128), jnp.float32).at[:wi, :wo].set(
            w.astype(jnp.float32).T)
        bt = jnp.zeros((1, 128), jnp.float32).at[0, :wo].set(b)
        return wt.astype(jnp.bfloat16), bt

    w2_eff, b2 = fc_pad(p["fc2_w"], p["fc2_b"])
    w3_eff, b3 = fc_pad(p["fc3_w"], p["fc3_b"])
    w4_eff, b4 = fc_pad(p["fc4_w"], p["fc4_b"])

    out = mlp_head(x_flat, w1_eff, b1, w2_eff, b2, w3_eff, b3, w4_eff, b4)
    return out[:, :n_cls]


# --------------------------------------------------------------------------
# Pure-JAX reference (f32) for correctness checking
# --------------------------------------------------------------------------
def reference_forward(x_nchw, p, eps=1e-5):
    hp = jax.lax.Precision.HIGHEST

    def block(x, w, cb, g, b, m, v):
        y = jax.lax.conv_general_dilated(
            x, w, (1, 1), "SAME",
            dimension_numbers=("NCHW", "OIHW", "NCHW"), precision=hp)
        y = y + cb[None, :, None, None]
        y = (y - m[None, :, None, None]) / jnp.sqrt(v[None, :, None, None] + eps)
        y = y * g[None, :, None, None] + b[None, :, None, None]
        y = jnp.maximum(y, 0.0)
        B_, C, H, W = y.shape
        return y.reshape(B_, C, H // 2, 2, W // 2, 2).max(axis=(3, 5))

    x = block(x_nchw.astype(jnp.float32), p["conv1_w"], p["conv1_b"],
              p["bn1_gamma"], p["bn1_beta"], p["bn1_mean"], p["bn1_var"])
    x = block(x, p["conv2_w"], p["conv2_b"],
              p["bn2_gamma"], p["bn2_beta"], p["bn2_mean"], p["bn2_var"])
    x = x.reshape(x.shape[0], -1)

    def lin(h, w, b):
        return jnp.dot(h, w.T, precision=hp) + b

    h = jnp.maximum(lin(x, p["fc1_w"], p["fc1_b"]), 0.0)
    h = jnp.maximum(lin(h, p["fc2_w"], p["fc2_b"]), 0.0)
    h = jnp.maximum(lin(h, p["fc3_w"], p["fc3_b"]), 0.0)
    return lin(h, p["fc4_w"], p["fc4_b"])


# --------------------------------------------------------------------------
# Deterministic parameter construction (shapes from CIFAR10Model.__init__)
# --------------------------------------------------------------------------
def make_params(key, input_size=32, output_size=10):
    ks = jax.random.split(key, 24)

    def rn(k, shape, scale=0.05):
        return (scale * jax.random.normal(k, shape)).astype(jnp.float32)

    c1, c2 = input_size, 2 * input_size
    return {
        "conv1_w": rn(ks[0], (c1, 3, 3, 3)),            # torch OIHW
        "conv1_b": rn(ks[1], (c1,)),
        "bn1_gamma": 1.0 + rn(ks[2], (c1,)),
        "bn1_beta": rn(ks[3], (c1,)),
        "bn1_mean": rn(ks[4], (c1,)),
        "bn1_var": 1.0 + jnp.abs(rn(ks[5], (c1,))),
        "conv2_w": rn(ks[6], (c2, c1, 3, 3)),
        "conv2_b": rn(ks[7], (c2,)),
        "bn2_gamma": 1.0 + rn(ks[8], (c2,)),
        "bn2_beta": rn(ks[9], (c2,)),
        "bn2_mean": rn(ks[10], (c2,)),
        "bn2_var": 1.0 + jnp.abs(rn(ks[11], (c2,))),
        "fc1_w": rn(ks[12], (128, c2 * 8 * 8)),          # torch (out, in)
        "fc1_b": rn(ks[13], (128,)),
        "fc2_w": rn(ks[14], (64, 128)),
        "fc2_b": rn(ks[15], (64,)),
        "fc3_w": rn(ks[16], (32, 64)),
        "fc3_b": rn(ks[17], (32,)),
        "fc4_w": rn(ks[18], (output_size, 32)),
        "fc4_b": rn(ks[19], (output_size,)),
    }


if __name__ == "__main__":
    key = jax.random.PRNGKey(0)
    kx, kp = jax.random.split(key)

    B = 2
    # spatial 32x32 / 3 channels fixed by fc1's in_features = 2*32*8*8
    x = jax.random.normal(kx, (B, 3, 32, 32), dtype=jnp.float32)
    params = make_params(kp, input_size=32, output_size=10)

    out = jax.jit(cifar10_forward)(x, params)
    out = jax.block_until_ready(out)

    assert out.shape == (B, 10), out.shape
    assert bool(jnp.all(jnp.isfinite(out)))

    # validate against a pure-JAX f32 reference (bf16 weights in the kernels
    # introduce ~1e-3 level deviations; tolerance is generous)
    ref = reference_forward(x, params)
    assert bool(jnp.allclose(out, ref, atol=2e-2, rtol=2e-2)), \
        float(jnp.max(jnp.abs(out - ref)))

    print("KERNEL_OK")
</pallas_src>

<mosaic_0001>
module attributes {stable_mosaic.version = 11 : i64} {
  func.func @_conv_kernel(%arg0: i32, %arg1: memref<4x2x256x27xf32, #tpu.memory_space<vmem>>, %arg2: memref<27x128xbf16, #tpu.memory_space<vmem>>, %arg3: memref<1x128xf32, #tpu.memory_space<vmem>>, %arg4: memref<1x128xf32, #tpu.memory_space<vmem>>, %arg5: memref<512x128xf32, #tpu.memory_space<vmem>>) attributes {dimension_semantics = [#tpu.dimension_semantics<parallel>], iteration_bounds = array<i64: 1>, scalar_prefetch = 0 : i64, scratch_operands = 0 : i64, tpu.core_type = #tpu.core_type<tc>, window_params = [{transform_indices = @transform_0, window_bounds = array<i64: 4, 2, 256, 27>}, {pipeline_mode = #tpu.pipeline_mode<synchronous>, transform_indices = @transform_1, window_bounds = array<i64: 27, 128>}, {pipeline_mode = #tpu.pipeline_mode<synchronous>, transform_indices = @transform_2, window_bounds = array<i64: 1, 128>}, {pipeline_mode = #tpu.pipeline_mode<synchronous>, transform_indices = @transform_3, window_bounds = array<i64: 1, 128>}, {transform_indices = @transform_4, window_bounds = array<i64: 512, 128>}]} {
    %c0 = arith.constant 0 : index
    %c0_0 = arith.constant 0 : index
    %c0_1 = arith.constant 0 : index
    %c0_2 = arith.constant 0 : index
    %0 = vector.load %arg1[%c0, %c0_0, %c0_1, %c0_2] : memref<4x2x256x27xf32, #tpu.memory_space<vmem>>, vector<4x2x256x27xf32>
    %1 = vector.shape_cast %0 : vector<4x2x256x27xf32> to vector<2048x27xf32>
    %2 = arith.truncf %1 : vector<2048x27xf32> to vector<2048x27xbf16>
    %c0_3 = arith.constant 0 : index
    %c0_4 = arith.constant 0 : index
    %3 = vector.load %arg2[%c0_3, %c0_4] : memref<27x128xbf16, #tpu.memory_space<vmem>>, vector<27x128xbf16>
    %cst = arith.constant dense<0.000000e+00> : vector<2048x128xf32>
    %4 = tpu.matmul %2, %3, %cst {dimension_numbers = #tpu.dot_dimension_numbers<[1], [0], [0], [1], [0, 0, 1, 1], [], []>} : vector<2048x27xbf16>, vector<27x128xbf16>, vector<2048x128xf32> -> vector<2048x128xf32>
    %c0_5 = arith.constant 0 : index
    %c0_6 = arith.constant 0 : index
    %5 = vector.load %arg3[%c0_5, %c0_6] : memref<1x128xf32, #tpu.memory_space<vmem>>, vector<1x128xf32>
    %6 = vector.broadcast %5 : vector<1x128xf32> to vector<2048x128xf32>
    %7 = arith.mulf %4, %6 : vector<2048x128xf32>
    %c0_7 = arith.constant 0 : index
    %c0_8 = arith.constant 0 : index
    %8 = vector.load %arg4[%c0_7, %c0_8] : memref<1x128xf32, #tpu.memory_space<vmem>>, vector<1x128xf32>
    %9 = vector.broadcast %8 : vector<1x128xf32> to vector<2048x128xf32>
    %10 = arith.addf %7, %9 : vector<2048x128xf32>
    %cst_9 = arith.constant 0.000000e+00 : f32
    %11 = vector.broadcast %cst_9 : f32 to vector<2048x128xf32>
    %12 = arith.maximumf %10, %11 : vector<2048x128xf32>
    %13 = vector.shape_cast %12 : vector<2048x128xf32> to vector<4x512x128xf32>
    %14 = vector.extract_strided_slice %13 {offsets = [0, 0, 0], sizes = [1, 512, 128], strides = [1, 1, 1]} : vector<4x512x128xf32> to vector<1x512x128xf32>
    %15 = vector.shape_cast %14 : vector<1x512x128xf32> to vector<512x128xf32>
    %16 = vector.extract_strided_slice %13 {offsets = [1, 0, 0], sizes = [1, 512, 128], strides = [1, 1, 1]} : vector<4x512x128xf32> to vector<1x512x128xf32>
    %17 = vector.shape_cast %16 : vector<1x512x128xf32> to vector<512x128xf32>
    %18 = arith.maximumf %15, %17 : vector<512x128xf32>
    %19 = vector.extract_strided_slice %13 {offsets = [2, 0, 0], sizes = [1, 512, 128], strides = [1, 1, 1]} : vector<4x512x128xf32> to vector<1x512x128xf32>
    %20 = vector.shape_cast %19 : vector<1x512x128xf32> to vector<512x128xf32>
    %21 = vector.extract_strided_slice %13 {offsets = [3, 0, 0], sizes = [1, 512, 128], strides = [1, 1, 1]} : vector<4x512x128xf32> to vector<1x512x128xf32>
    %22 = vector.shape_cast %21 : vector<1x512x128xf32> to vector<512x128xf32>
    %23 = arith.maximumf %20, %22 : vector<512x128xf32>
    %24 = arith.maximumf %18, %23 : vector<512x128xf32>
    %c0_10 = arith.constant 0 : index
    %c0_11 = arith.constant 0 : index
    %25 = vector.load %arg5[%c0_10, %c0_11] : memref<512x128xf32, #tpu.memory_space<vmem>>, vector<512x128xf32>
    tpu.vector_store %arg5[%c0_10, %c0_11], %24 {strides = array<i32>} : memref<512x128xf32, #tpu.memory_space<vmem>>, vector<512x128xf32>,
    return
  }
  func.func @transform_0(%arg0: i32) -> (i32, i32, i32, i32) {
    %c0_i32 = arith.constant 0 : i32
    %c0_i32_0 = arith.constant 0 : i32
    %c0_i32_1 = arith.constant 0 : i32
    %c0_i32_2 = arith.constant 0 : i32
    return %c0_i32, %arg0, %c0_i32_0, %c0_i32_1 : i32, i32, i32, i32
  }
  func.func @transform_1(%arg0: i32) -> (i32, i32) {
    %c0_i32 = arith.constant 0 : i32
    %c0_i32_0 = arith.constant 0 : i32
    %c0_i32_1 = arith.constant 0 : i32
    return %c0_i32, %c0_i32_0 : i32, i32
  }
  func.func @transform_2(%arg0: i32) -> (i32, i32) {
    %c0_i32 = arith.constant 0 : i32
    %c0_i32_0 = arith.constant 0 : i32
    %c0_i32_1 = arith.constant 0 : i32
    return %c0_i32, %c0_i32_0 : i32, i32
  }
  func.func @transform_3(%arg0: i32) -> (i32, i32) {
    %c0_i32 = arith.constant 0 : i32
    %c0_i32_0 = arith.constant 0 : i32
    %c0_i32_1 = arith.constant 0 : i32
    return %c0_i32, %c0_i32_0 : i32, i32
  }
  func.func @transform_4(%arg0: i32) -> (i32, i32) {
    %c0_i32 = arith.constant 0 : i32
    %c0_i32_0 = arith.constant 0 : i32
    return %arg0, %c0_i32 : i32, i32
  }
}

module attributes {stable_mosaic.version = 11 : i64} {
  func.func @_conv_kernel(%arg0: i32, %arg1: memref<4x2x64x288xf32, #tpu.memory_space<vmem>>, %arg2: memref<288x128xbf16, #tpu.memory_space<vmem>>, %arg3: memref<1x128xf32, #tpu.memory_space<vmem>>, %arg4: memref<1x128xf32, #tpu.memory_space<vmem>>, %arg5: memref<128x128xf32, #tpu.memory_space<vmem>>) attributes {dimension_semantics = [#tpu.dimension_semantics<parallel>], iteration_bounds = array<i64: 1>, scalar_prefetch = 0 : i64, scratch_operands = 0 : i64, tpu.core_type = #tpu.core_type<tc>, window_params = [{transform_indices = @transform_0, window_bounds = array<i64: 4, 2, 64, 288>}, {pipeline_mode = #tpu.pipeline_mode<synchronous>, transform_indices = @transform_1, window_bounds = array<i64: 288, 128>}, {pipeline_mode = #tpu.pipeline_mode<synchronous>, transform_indices = @transform_2, window_bounds = array<i64: 1, 128>}, {pipeline_mode = #tpu.pipeline_mode<synchronous>, transform_indices = @transform_3, window_bounds = array<i64: 1, 128>}, {transform_indices = @transform_4, window_bounds = array<i64: 128, 128>}]} {
    %c0 = arith.constant 0 : index
    %c0_0 = arith.constant 0 : index
    %c0_1 = arith.constant 0 : index
    %c0_2 = arith.constant 0 : index
    %0 = vector.load %arg1[%c0, %c0_0, %c0_1, %c0_2] : memref<4x2x64x288xf32, #tpu.memory_space<vmem>>, vector<4x2x64x288xf32>
    %1 = vector.shape_cast %0 : vector<4x2x64x288xf32> to vector<512x288xf32>
    %2 = arith.truncf %1 : vector<512x288xf32> to vector<512x288xbf16>
    %c0_3 = arith.constant 0 : index
    %c0_4 = arith.constant 0 : index
    %3 = vector.load %arg2[%c0_3, %c0_4] : memref<288x128xbf16, #tpu.memory_space<vmem>>, vector<288x128xbf16>
    %cst = arith.constant dense<0.000000e+00> : vector<512x128xf32>
    %4 = tpu.matmul %2, %3, %cst {dimension_numbers = #tpu.dot_dimension_numbers<[1], [0], [0], [1], [0, 0, 1, 1], [], []>} : vector<512x288xbf16>, vector<288x128xbf16>, vector<512x128xf32> -> vector<512x128xf32>
    %c0_5 = arith.constant 0 : index
    %c0_6 = arith.constant 0 : index
    %5 = vector.load %arg3[%c0_5, %c0_6] : memref<1x128xf32, #tpu.memory_space<vmem>>, vector<1x128xf32>
    %6 = vector.broadcast %5 : vector<1x128xf32> to vector<512x128xf32>
    %7 = arith.mulf %4, %6 : vector<512x128xf32>
    %c0_7 = arith.constant 0 : index
    %c0_8 = arith.constant 0 : index
    %8 = vector.load %arg4[%c0_7, %c0_8] : memref<1x128xf32, #tpu.memory_space<vmem>>, vector<1x128xf32>
    %9 = vector.broadcast %8 : vector<1x128xf32> to vector<512x128xf32>
    %10 = arith.addf %7, %9 : vector<512x128xf32>
    %cst_9 = arith.constant 0.000000e+00 : f32
    %11 = vector.broadcast %cst_9 : f32 to vector<512x128xf32>
    %12 = arith.maximumf %10, %11 : vector<512x128xf32>
    %13 = vector.shape_cast %12 : vector<512x128xf32> to vector<4x128x128xf32>
    %14 = vector.extract_strided_slice %13 {offsets = [0, 0, 0], sizes = [1, 128, 128], strides = [1, 1, 1]} : vector<4x128x128xf32> to vector<1x128x128xf32>
    %15 = vector.shape_cast %14 : vector<1x128x128xf32> to vector<128x128xf32>
    %16 = vector.extract_strided_slice %13 {offsets = [1, 0, 0], sizes = [1, 128, 128], strides = [1, 1, 1]} : vector<4x128x128xf32> to vector<1x128x128xf32>
    %17 = vector.shape_cast %16 : vector<1x128x128xf32> to vector<128x128xf32>
    %18 = arith.maximumf %15, %17 : vector<128x128xf32>
    %19 = vector.extract_strided_slice %13 {offsets = [2, 0, 0], sizes = [1, 128, 128], strides = [1, 1, 1]} : vector<4x128x128xf32> to vector<1x128x128xf32>
    %20 = vector.shape_cast %19 : vector<1x128x128xf32> to vector<128x128xf32>
    %21 = vector.extract_strided_slice %13 {offsets = [3, 0, 0], sizes = [1, 128, 128], strides = [1, 1, 1]} : vector<4x128x128xf32> to vector<1x128x128xf32>
    %22 = vector.shape_cast %21 : vector<1x128x128xf32> to vector<128x128xf32>
    %23 = arith.maximumf %20, %22 : vector<128x128xf32>
    %24 = arith.maximumf %18, %23 : vector<128x128xf32>
    %c0_10 = arith.constant 0 : index
    %c0_11 = arith.constant 0 : index
    %25 = vector.load %arg5[%c0_10, %c0_11] : memref<128x128xf32, #tpu.memory_space<vmem>>, vector<128x128xf32>
    tpu.vector_store %arg5[%c0_10, %c0_11], %24 {strides = array<i32>} : memref<128x128xf32, #tpu.memory_space<vmem>>, vector<128x128xf32>,
    return
  }
  func.func @transform_0(%arg0: i32) -> (i32, i32, i32, i32) {
    %c0_i32 = arith.constant 0 : i32
    %c0_i32_0 = arith.constant 0 : i32
    %c0_i32_1 = arith.constant 0 : i32
    %c0_i32_2 = arith.constant 0 : i32
    return %c0_i32, %arg0, %c0_i32_0, %c0_i32_1 : i32, i32, i32, i32
  }
  func.func @transform_1(%arg0: i32) -> (i32, i32) {
    %c0_i32 = arith.constant 0 : i32
    %c0_i32_0 = arith.constant 0 : i32
    %c0_i32_1 = arith.constant 0 : i32
    return %c0_i32, %c0_i32_0 : i32, i32
  }
  func.func @transform_2(%arg0: i32) -> (i32, i32) {
    %c0_i32 = arith.constant 0 : i32
    %c0_i32_0 = arith.constant 0 : i32
    %c0_i32_1 = arith.constant 0 : i32
    return %c0_i32, %c0_i32_0 : i32, i32
  }
  func.func @transform_3(%arg0: i32) -> (i32, i32) {
    %c0_i32 = arith.constant 0 : i32
    %c0_i32_0 = arith.constant 0 : i32
    %c0_i32_1 = arith.constant 0 : i32
    return %c0_i32, %c0_i32_0 : i32, i32
  }
  func.func @transform_4(%arg0: i32) -> (i32, i32) {
    %c0_i32 = arith.constant 0 : i32
    %c0_i32_0 = arith.constant 0 : i32
    return %arg0, %c0_i32 : i32, i32
  }
}

module attributes {stable_mosaic.version = 11 : i64} {
  func.func @_mlp_kernel(%arg0: i32, %arg1: memref<2x8192xf32, #tpu.memory_space<vmem>>, %arg2: memref<8192x128xbf16, #tpu.memory_space<vmem>>, %arg3: memref<1x128xf32, #tpu.memory_space<vmem>>, %arg4: memref<128x128xbf16, #tpu.memory_space<vmem>>, %arg5: memref<1x128xf32, #tpu.memory_space<vmem>>, %arg6: memref<128x128xbf16, #tpu.memory_space<vmem>>, %arg7: memref<1x128xf32, #tpu.memory_space<vmem>>, %arg8: memref<128x128xbf16, #tpu.memory_space<vmem>>, %arg9: memref<1x128xf32, #tpu.memory_space<vmem>>, %arg10: memref<2x128xf32, #tpu.memory_space<vmem>>) attributes {dimension_semantics = [#tpu.dimension_semantics<parallel>], iteration_bounds = array<i64: 1>, scalar_prefetch = 0 : i64, scratch_operands = 0 : i64, tpu.core_type = #tpu.core_type<tc>, window_params = [{transform_indices = @transform_0, window_bounds = array<i64: 2, 8192>}, {pipeline_mode = #tpu.pipeline_mode<synchronous>, transform_indices = @transform_1, window_bounds = array<i64: 8192, 128>}, {pipeline_mode = #tpu.pipeline_mode<synchronous>, transform_indices = @transform_2, window_bounds = array<i64: 1, 128>}, {pipeline_mode = #tpu.pipeline_mode<synchronous>, transform_indices = @transform_3, window_bounds = array<i64: 128, 128>}, {pipeline_mode = #tpu.pipeline_mode<synchronous>, transform_indices = @transform_4, window_bounds = array<i64: 1, 128>}, {pipeline_mode = #tpu.pipeline_mode<synchronous>, transform_indices = @transform_5, window_bounds = array<i64: 128, 128>}, {pipeline_mode = #tpu.pipeline_mode<synchronous>, transform_indices = @transform_6, window_bounds = array<i64: 1, 128>}, {pipeline_mode = #tpu.pipeline_mode<synchronous>, transform_indices = @transform_7, window_bounds = array<i64: 128, 128>}, {pipeline_mode = #tpu.pipeline_mode<synchronous>, transform_indices = @transform_8, window_bounds = array<i64: 1, 128>}, {transform_indices = @transform_9, window_bounds = array<i64: 2, 128>}]} {
    %c0 = arith.constant 0 : index
    %c0_0 = arith.constant 0 : index
    %0 = vector.load %arg1[%c0, %c0_0] : memref<2x8192xf32, #tpu.memory_space<vmem>>, vector<2x8192xf32>
    %1 = arith.truncf %0 : vector<2x8192xf32> to vector<2x8192xbf16>
    %c0_1 = arith.constant 0 : index
    %c0_2 = arith.constant 0 : index
    %2 = vector.load %arg2[%c0_1, %c0_2] : memref<8192x128xbf16, #tpu.memory_space<vmem>>, vector<8192x128xbf16>
    %cst = arith.constant dense<0.000000e+00> : vector<2x128xf32>
    %3 = tpu.matmul %1, %2, %cst {dimension_numbers = #tpu.dot_dimension_numbers<[1], [0], [0], [1], [0, 0, 1, 1], [], []>} : vector<2x8192xbf16>, vector<8192x128xbf16>, vector<2x128xf32> -> vector<2x128xf32>
    %c0_3 = arith.constant 0 : index
    %c0_4 = arith.constant 0 : index
    %4 = vector.load %arg3[%c0_3, %c0_4] : memref<1x128xf32, #tpu.memory_space<vmem>>, vector<1x128xf32>
    %5 = vector.broadcast %4 : vector<1x128xf32> to vector<2x128xf32>
    %6 = arith.addf %3, %5 : vector<2x128xf32>
    %cst_5 = arith.constant 0.000000e+00 : f32
    %7 = vector.broadcast %cst_5 : f32 to vector<2x128xf32>
    %8 = arith.maximumf %6, %7 : vector<2x128xf32>
    %9 = arith.truncf %8 : vector<2x128xf32> to vector<2x128xbf16>
    %c0_6 = arith.constant 0 : index
    %c0_7 = arith.constant 0 : index
    %10 = vector.load %arg4[%c0_6, %c0_7] : memref<128x128xbf16, #tpu.memory_space<vmem>>, vector<128x128xbf16>
    %cst_8 = arith.constant dense<0.000000e+00> : vector<2x128xf32>
    %11 = tpu.matmul %9, %10, %cst_8 {dimension_numbers = #tpu.dot_dimension_numbers<[1], [0], [0], [1], [0, 0, 1, 1], [], []>} : vector<2x128xbf16>, vector<128x128xbf16>, vector<2x128xf32> -> vector<2x128xf32>
    %c0_9 = arith.constant 0 : index
    %c0_10 = arith.constant 0 : index
    %12 = vector.load %arg5[%c0_9, %c0_10] : memref<1x128xf32, #tpu.memory_space<vmem>>, vector<1x128xf32>
    %13 = vector.broadcast %12 : vector<1x128xf32> to vector<2x128xf32>
    %14 = arith.addf %11, %13 : vector<2x128xf32>
    %cst_11 = arith.constant 0.000000e+00 : f32
    %15 = vector.broadcast %cst_11 : f32 to vector<2x128xf32>
    %16 = arith.maximumf %14, %15 : vector<2x128xf32>
    %17 = arith.truncf %16 : vector<2x128xf32> to vector<2x128xbf16>
    %c0_12 = arith.constant 0 : index
    %c0_13 = arith.constant 0 : index
    %18 = vector.load %arg6[%c0_12, %c0_13] : memref<128x128xbf16, #tpu.memory_space<vmem>>, vector<128x128xbf16>
    %cst_14 = arith.constant dense<0.000000e+00> : vector<2x128xf32>
    %19 = tpu.matmul %17, %18, %cst_14 {dimension_numbers = #tpu.dot_dimension_numbers<[1], [0], [0], [1], [0, 0, 1, 1], [], []>} : vector<2x128xbf16>, vector<128x128xbf16>, vector<2x128xf32> -> vector<2x128xf32>
    %c0_15 = arith.constant 0 : index
    %c0_16 = arith.constant 0 : index
    %20 = vector.load %arg7[%c0_15, %c0_16] : memref<1x128xf32, #tpu.memory_space<vmem>>, vector<1x128xf32>
    %21 = vector.broadcast %20 : vector<1x128xf32> to vector<2x128xf32>
    %22 = arith.addf %19, %21 : vector<2x128xf32>
    %cst_17 = arith.constant 0.000000e+00 : f32
    %23 = vector.broadcast %cst_17 : f32 to vector<2x128xf32>
    %24 = arith.maximumf %22, %23 : vector<2x128xf32>
    %25 = arith.truncf %24 : vector<2x128xf32> to vector<2x128xbf16>
    %c0_18 = arith.constant 0 : index
    %c0_19 = arith.constant 0 : index
    %26 = vector.load %arg8[%c0_18, %c0_19] : memref<128x128xbf16, #tpu.memory_space<vmem>>, vector<128x128xbf16>
    %cst_20 = arith.constant dense<0.000000e+00> : vector<2x128xf32>
    %27 = tpu.matmul %25, %26, %cst_20 {dimension_numbers = #tpu.dot_dimension_numbers<[1], [0], [0], [1], [0, 0, 1, 1], [], []>} : vector<2x128xbf16>, vector<128x128xbf16>, vector<2x128xf32> -> vector<2x128xf32>
    %c0_21 = arith.constant 0 : index
    %c0_22 = arith.constant 0 : index
    %28 = vector.load %arg9[%c0_21, %c0_22] : memref<1x128xf32, #tpu.memory_space<vmem>>, vector<1x128xf32>
    %29 = vector.broadcast %28 : vector<1x128xf32> to vector<2x128xf32>
    %30 = arith.addf %27, %29 : vector<2x128xf32>
    %c0_23 = arith.constant 0 : index
    %c0_24 = arith.constant 0 : index
    %31 = vector.load %arg10[%c0_23, %c0_24] : memref<2x128xf32, #tpu.memory_space<vmem>>, vector<2x128xf32>
    tpu.vector_store %arg10[%c0_23, %c0_24], %30 {strides = array<i32>} : memref<2x128xf32, #tpu.memory_space<vmem>>, vector<2x128xf32>,
    return
  }
  func.func @transform_0(%arg0: i32) -> (i32, i32) {
    %c0_i32 = arith.constant 0 : i32
    %c0_i32_0 = arith.constant 0 : i32
    return %arg0, %c0_i32 : i32, i32
  }
  func.func @transform_1(%arg0: i32) -> (i32, i32) {
    %c0_i32 = arith.constant 0 : i32
    %c0_i32_0 = arith.constant 0 : i32
    %c0_i32_1 = arith.constant 0 : i32
    return %c0_i32, %c0_i32_0 : i32, i32
  }
  func.func @transform_2(%arg0: i32) -> (i32, i32) {
    %c0_i32 = arith.constant 0 : i32
    %c0_i32_0 = arith.constant 0 : i32
    %c0_i32_1 = arith.constant 0 : i32
    return %c0_i32, %c0_i32_0 : i32, i32
  }
  func.func @transform_3(%arg0: i32) -> (i32, i32) {
    %c0_i32 = arith.constant 0 : i32
    %c0_i32_0 = arith.constant 0 : i32
    %c0_i32_1 = arith.constant 0 : i32
    return %c0_i32, %c0_i32_0 : i32, i32
  }
  func.func @transform_4(%arg0: i32) -> (i32, i32) {
    %c0_i32 = arith.constant 0 : i32
    %c0_i32_0 = arith.constant 0 : i32
    %c0_i32_1 = arith.constant 0 : i32
    return %c0_i32, %c0_i32_0 : i32, i32
  }
  func.func @transform_5(%arg0: i32) -> (i32, i32) {
    %c0_i32 = arith.constant 0 : i32
    %c0_i32_0 = arith.constant 0 : i32
    %c0_i32_1 = arith.constant 0 : i32
    return %c0_i32, %c0_i32_0 : i32, i32
  }
  func.func @transform_6(%arg0: i32) -> (i32, i32) {
    %c0_i32 = arith.constant 0 : i32
    %c0_i32_0 = arith.constant 0 : i32
    %c0_i32_1 = arith.constant 0 : i32
    return %c0_i32, %c0_i32_0 : i32, i32
  }
  func.func @transform_7(%arg0: i32) -> (i32, i32) {
    %c0_i32 = arith.constant 0 : i32
    %c0_i32_0 = arith.constant 0 : i32
    %c0_i32_1 = arith.constant 0 : i32
    return %c0_i32, %c0_i32_0 : i32, i32
  }
  func.func @transform_8(%arg0: i32) -> (i32, i32) {
    %c0_i32 = arith.constant 0 : i32
    %c0_i32_0 = arith.constant 0 : i32
    %c0_i32_1 = arith.constant 0 : i32
    return %c0_i32, %c0_i32_0 : i32, i32
  }
  func.func @transform_9(%arg0: i32) -> (i32, i32) {
    %c0_i32 = arith.constant 0 : i32
    %c0_i32_0 = arith.constant 0 : i32
    return %arg0, %c0_i32 : i32, i32
  }
}

</mosaic_0001>

<llo_original>
// kernel: cifar10_forward.3
$region0: #{cifar10_forward.3}
  #allocation0 [shape = 'u32[]', space=smem, size = 0x4, offset = 0x4, fixed_abs, tag = 'smem constant byte address 0x4 - core index']
  #allocation1 [shape = 'u32[144,128]{1,0:T(1,128)}', space=vmem, size = 0x12000, scoped, tag = 'internal scratch']
  %s0 = inlined_call_operand.vmem [shape: f32[4,2,256,27], index: 0, kind: input, shape index: {}]
  %s1 = inlined_call_operand.vmem [shape: bf16[27,128], index: 1, kind: input, shape index: {}]
  %s2 = inlined_call_operand.vmem [shape: f32[1,128], index: 2, kind: input, shape index: {}]
  %s3 = inlined_call_operand.vmem [shape: f32[1,128], index: 3, kind: input, shape index: {}]
  %s4 = inlined_call_operand.vmem [shape: f32[512,128], index: 4, kind: output, shape index: {}]
  %s5 = sld [smem:[#allocation0]]
  $region26: #{cifar10_forward.3} parent=0
    _
  %s7 = ssub.s32 1, %s5
  %s8 = scalar_select 0, %s7, %s5
  // Predicated region
  $region2: #{cifar10_forward.3} parent=0 // pred_check
    _
  $region3: #{cifar10_forward.3} parent=0 // pred_check_branch
    %10 = sbr.rel (0) target = $region5
  $region4: #{cifar10_forward.3} parent=0 // pred_region
    _
  $region5: #{cifar10_forward.3} parent=0 // pred_fallthru
    _
  // Predicated region
  $region6: #{cifar10_forward.3} parent=0 // pred_check
    _
  $region7: #{cifar10_forward.3} parent=0 // pred_check_branch
    %12 = sbr.rel (0) target = $region9
  $region8: #{cifar10_forward.3} parent=0 // pred_region
    _
  $region9: #{cifar10_forward.3} parent=0 // pred_fallthru
    _
  // Predicated region
  $region10: #{cifar10_forward.3} parent=0 // pred_check
    _
  $region11: #{cifar10_forward.3} parent=0 // pred_check_branch
    %14 = sbr.rel (0) target = $region13
  $region12: #{cifar10_forward.3} parent=0 // pred_region
    _
  $region13: #{cifar10_forward.3} parent=0 // pred_fallthru
    _
  // Predicated region
  $region14: #{cifar10_forward.3} parent=0 // pred_check
    _
  $region15: #{cifar10_forward.3} parent=0 // pred_check_branch
    %16 = sbr.rel (0) target = $region17
  $region16: #{cifar10_forward.3} parent=0 // pred_region
    _
  $region17: #{cifar10_forward.3} parent=0 // pred_fallthru
    _
  %v18 = vld [vmem:[%s0] sm:$0xff]
  %v19 = vld [vmem:[%s0 + $0x8] sm:$0xff]
  %v20 = vld [vmem:[%s0 + $0x10] sm:$0xff]
  %v21 = vld [vmem:[%s0 + $0x18] sm:$0xff]
  %v22 = vld [vmem:[%s0 + $0x20] sm:$0xff]
  %v23 = vld [vmem:[%s0 + $0x28] sm:$0xff]
  %v24 = vld [vmem:[%s0 + $0x30] sm:$0xff]
  %v25 = vld [vmem:[%s0 + $0x38] sm:$0xff]
  %v26 = vld [vmem:[%s0 + $0x40] sm:$0xff]
  %v27 = vld [vmem:[%s0 + $0x48] sm:$0xff]
  %v28 = vld [vmem:[%s0 + $0x50] sm:$0xff]
  %v29 = vld [vmem:[%s0 + $0x58] sm:$0xff]
  %v30 = vld [vmem:[%s0 + $0x60] sm:$0xff]
  %v31 = vld [vmem:[%s0 + $0x68] sm:$0xff]
  %v32 = vld [vmem:[%s0 + $0x70] sm:$0xff]
  %v33 = vld [vmem:[%s0 + $0x78] sm:$0xff]
  %v34 = vld [vmem:[%s0 + $0x80] sm:$0xff]
  %v35 = vld [vmem:[%s0 + $0x88] sm:$0xff]
  %v36 = vld [vmem:[%s0 + $0x90] sm:$0xff]
  %v37 = vld [vmem:[%s0 + $0x98] sm:$0xff]
  %v38 = vld [vmem:[%s0 + $0xa0] sm:$0xff]
  %v39 = vld [vmem:[%s0 + $0xa8] sm:$0xff]
  %v40 = vld [vmem:[%s0 + $0xb0] sm:$0xff]
  %v41 = vld [vmem:[%s0 + $0xb8] sm:$0xff]
  %v42 = vld [vmem:[%s0 + $0xc0] sm:$0xff]
  %v43 = vld [vmem:[%s0 + $0xc8] sm:$0xff]
  %v44 = vld [vmem:[%s0 + $0xd0] sm:$0xff]
  %v45 = vld [vmem:[%s0 + $0xd8] sm:$0xff]
  %v46 = vld [vmem:[%s0 + $0xe0] sm:$0xff]
  %v47 = vld [vmem:[%s0 + $0xe8] sm:$0xff]
  %v48 = vld [vmem:[%s0 + $0xf0] sm:$0xff]
  %v49 = vld [vmem:[%s0 + $0xf8] sm:$0xff]
  %v50 = vld [vmem:[%s0 + $0x100] sm:$0xff]
  %v51 = vld [vmem:[%s0 + $0x108] sm:$0xff]
  %v52 = vld [vmem:[%s0 + $0x110] sm:$0xff]
  %v53 = vld [vmem:[%s0 + $0x118] sm:$0xff]
  %v54 = vld [vmem:[%s0 + $0x120] sm:$0xff]
  %v55 = vld [vmem:[%s0 + $0x128] sm:$0xff]
  %v56 = vld [vmem:[%s0 + $0x130] sm:$0xff]
  %v57 = vld [vmem:[%s0 + $0x138] sm:$0xff]
  %v58 = vld [vmem:[%s0 + $0x140] sm:$0xff]
  %v59 = vld [vmem:[%s0 + $0x148] sm:$0xff]
  %v60 = vld [vmem:[%s0 + $0x150] sm:$0xff]
  %v61 = vld [vmem:[%s0 + $0x158] sm:$0xff]
  %v62 = vld [vmem:[%s0 + $0x160] sm:$0xff]
  %v63 = vld [vmem:[%s0 + $0x168] sm:$0xff]
  %v64 = vld [vmem:[%s0 + $0x170] sm:$0xff]
  %v65 = vld [vmem:[%s0 + $0x178] sm:$0xff]
  %v66 = vld [vmem:[%s0 + $0x180] sm:$0xff]
  %v67 = vld [vmem:[%s0 + $0x188] sm:$0xff]
  %v68 = vld [vmem:[%s0 + $0x190] sm:$0xff]
  %v69 = vld [vmem:[%s0 + $0x198] sm:$0xff]
  %v70 = vld [vmem:[%s0 + $0x1a0] sm:$0xff]
  %v71 = vld [vmem:[%s0 + $0x1a8] sm:$0xff]
  %v72 = vld [vmem:[%s0 + $0x1b0] sm:$0xff]
  %v73 = vld [vmem:[%s0 + $0x1b8] sm:$0xff]
  %v74 = vld [vmem:[%s0 + $0x1c0] sm:$0xff]
  %v75 = vld [vmem:[%s0 + $0x1c8] sm:$0xff]
  %v76 = vld [vmem:[%s0 + $0x1d0] sm:$0xff]
  %v77 = vld [vmem:[%s0 + $0x1d8] sm:$0xff]
  %v78 = vld [vmem:[%s0 + $0x1e0] sm:$0xff]
  %v79 = vld [vmem:[%s0 + $0x1e8] sm:$0xff]
  %v80 = vld [vmem:[%s0 + $0x1f0] sm:$0xff]
  %v81 = vld [vmem:[%s0 + $0x1f8] sm:$0xff]
  %v82 = vld [vmem:[%s0 + $0x200] sm:$0xff]
  %v83 = vld [vmem:[%s0 + $0x208] sm:$0xff]
  %v84 = vld [vmem:[%s0 + $0x210] sm:$0xff]
  %v85 = vld [vmem:[%s0 + $0x218] sm:$0xff]
  %v86 = vld [vmem:[%s0 + $0x220] sm:$0xff]
  %v87 = vld [vmem:[%s0 + $0x228] sm:$0xff]
  %v88 = vld [vmem:[%s0 + $0x230] sm:$0xff]
  %v89 = vld [vmem:[%s0 + $0x238] sm:$0xff]
  %v90 = vld [vmem:[%s0 + $0x240] sm:$0xff]
  %v91 = vld [vmem:[%s0 + $0x248] sm:$0xff]
  %v92 = vld [vmem:[%s0 + $0x250] sm:$0xff]
  %v93 = vld [vmem:[%s0 + $0x258] sm:$0xff]
  %v94 = vld [vmem:[%s0 + $0x260] sm:$0xff]
  %v95 = vld [vmem:[%s0 + $0x268] sm:$0xff]
  %v96 = vld [vmem:[%s0 + $0x270] sm:$0xff]
  %v97 = vld [vmem:[%s0 + $0x278] sm:$0xff]
  %v98 = vld [vmem:[%s0 + $0x280] sm:$0xff]
  %v99 = vld [vmem:[%s0 + $0x288] sm:$0xff]
  %v100 = vld [vmem:[%s0 + $0x290] sm:$0xff]
  %v101 = vld [vmem:[%s0 + $0x298] sm:$0xff]
  %v102 = vld [vmem:[%s0 + $0x2a0] sm:$0xff]
  %v103 = vld [vmem:[%s0 + $0x2a8] sm:$0xff]
  %v104 = vld [vmem:[%s0 + $0x2b0] sm:$0xff]
  %v105 = vld [vmem:[%s0 + $0x2b8] sm:$0xff]
  %v106 = vld [vmem:[%s0 + $0x2c0] sm:$0xff]
  %v107 = vld [vmem:[%s0 + $0x2c8] sm:$0xff]
  %v108 = vld [vmem:[%s0 + $0x2d0] sm:$0xff]
  %v109 = vld [vmem:[%s0 + $0x2d8] sm:$0xff]
  %v110 = vld [vmem:[%s0 + $0x2e0] sm:$0xff]
  %v111 = vld [vmem:[%s0 + $0x2e8] sm:$0xff]
  %v112 = vld [vmem:[%s0 + $0x2f0] sm:$0xff]
  %v113 = vld [vmem:[%s0 + $0x2f8] sm:$0xff]
  %v114 = vld [vmem:[%s0 + $0x300] sm:$0xff]
  %v115 = vld [vmem:[%s0 + $0x308] sm:$0xff]
  %v116 = vld [vmem:[%s0 + $0x310] sm:$0xff]
  %v117 = vld [vmem:[%s0 + $0x318] sm:$0xff]
  %v118 = vld [vmem:[%s0 + $0x320] sm:$0xff]
  %v119 = vld [vmem:[%s0 + $0x328] sm:$0xff]
  %v120 = vld [vmem:[%s0 + $0x330] sm:$0xff]
  %v121 = vld [vmem:[%s0 + $0x338] sm:$0xff]
  %v122 = vld [vmem:[%s0 + $0x340] sm:$0xff]
  %v123 = vld [vmem:[%s0 + $0x348] sm:$0xff]
  %v124 = vld [vmem:[%s0 + $0x350] sm:$0xff]
  %v125 = vld [vmem:[%s0 + $0x358] sm:$0xff]
  %v126 = vld [vmem:[%s0 + $0x360] sm:$0xff]
  %v127 = vld [vmem:[%s0 + $0x368] sm:$0xff]
  %v128 = vld [vmem:[%s0 + $0x370] sm:$0xff]
  %v129 = vld [vmem:[%s0 + $0x378] sm:$0xff]
  %v130 = vld [vmem:[%s0 + $0x380] sm:$0xff]
  %v131 = vld [vmem:[%s0 + $0x388] sm:$0xff]
  %v132 = vld [vmem:[%s0 + $0x390] sm:$0xff]
  %v133 = vld [vmem:[%s0 + $0x398] sm:$0xff]
  %v134 = vld [vmem:[%s0 + $0x3a0] sm:$0xff]
  %v135 = vld [vmem:[%s0 + $0x3a8] sm:$0xff]
  %v136 = vld [vmem:[%s0 + $0x3b0] sm:$0xff]
  %v137 = vld [vmem:[%s0 + $0x3b8] sm:$0xff]
  %v138 = vld [vmem:[%s0 + $0x3c0] sm:$0xff]
  %v139 = vld [vmem:[%s0 + $0x3c8] sm:$0xff]
  %v140 = vld [vmem:[%s0 + $0x3d0] sm:$0xff]
  %v141 = vld [vmem:[%s0 + $0x3d8] sm:$0xff]
  %v142 = vld [vmem:[%s0 + $0x3e0] sm:$0xff]
  %v143 = vld [vmem:[%s0 + $0x3e8] sm:$0xff]
  %v144 = vld [vmem:[%s0 + $0x3f0] sm:$0xff]
  %v145 = vld [vmem:[%s0 + $0x3f8] sm:$0xff]
  %v146 = vld [vmem:[%s0 + $0x400] sm:$0xff]
  %v147 = vld [vmem:[%s0 + $0x408] sm:$0xff]
  %v148 = vld [vmem:[%s0 + $0x410] sm:$0xff]
  %v149 = vld [vmem:[%s0 + $0x418] sm:$0xff]
  %v150 = vld [vmem:[%s0 + $0x420] sm:$0xff]
  %v151 = vld [vmem:[%s0 + $0x428] sm:$0xff]
  %v152 = vld [vmem:[%s0 + $0x430] sm:$0xff]
  %v153 = vld [vmem:[%s0 + $0x438] sm:$0xff]
  %v154 = vld [vmem:[%s0 + $0x440] sm:$0xff]
  %v155 = vld [vmem:[%s0 + $0x448] sm:$0xff]
  %v156 = vld [vmem:[%s0 + $0x450] sm:$0xff]
  %v157 = vld [vmem:[%s0 + $0x458] sm:$0xff]
  %v158 = vld [vmem:[%s0 + $0x460] sm:$0xff]
  %v159 = vld [vmem:[%s0 + $0x468] sm:$0xff]
  %v160 = vld [vmem:[%s0 + $0x470] sm:$0xff]
  %v161 = vld [vmem:[%s0 + $0x478] sm:$0xff]
  %v162 = vld [vmem:[%s0 + $0x480] sm:$0xff]
  %v163 = vld [vmem:[%s0 + $0x488] sm:$0xff]
  %v164 = vld [vmem:[%s0 + $0x490] sm:$0xff]
  %v165 = vld [vmem:[%s0 + $0x498] sm:$0xff]
  %v166 = vld [vmem:[%s0 + $0x4a0] sm:$0xff]
  %v167 = vld [vmem:[%s0 + $0x4a8] sm:$0xff]
  %v168 = vld [vmem:[%s0 + $0x4b0] sm:$0xff]
  %v169 = vld [vmem:[%s0 + $0x4b8] sm:$0xff]
  %v170 = vld [vmem:[%s0 + $0x4c0] sm:$0xff]
  %v171 = vld [vmem:[%s0 + $0x4c8] sm:$0xff]
  %v172 = vld [vmem:[%s0 + $0x4d0] sm:$0xff]
  %v173 = vld [vmem:[%s0 + $0x4d8] sm:$0xff]
  %v174 = vld [vmem:[%s0 + $0x4e0] sm:$0xff]
  %v175 = vld [vmem:[%s0 + $0x4e8] sm:$0xff]
  %v176 = vld [vmem:[%s0 + $0x4f0] sm:$0xff]
  %v177 = vld [vmem:[%s0 + $0x4f8] sm:$0xff]
  %v178 = vld [vmem:[%s0 + $0x500] sm:$0xff]
  %v179 = vld [vmem:[%s0 + $0x508] sm:$0xff]
  %v180 = vld [vmem:[%s0 + $0x510] sm:$0xff]
  %v181 = vld [vmem:[%s0 + $0x518] sm:$0xff]
  %v182 = vld [vmem:[%s0 + $0x520] sm:$0xff]
  %v183 = vld [vmem:[%s0 + $0x528] sm:$0xff]
  %v184 = vld [vmem:[%s0 + $0x530] sm:$0xff]
  %v185 = vld [vmem:[%s0 + $0x538] sm:$0xff]
  %v186 = vld [vmem:[%s0 + $0x540] sm:$0xff]
  %v187 = vld [vmem:[%s0 + $0x548] sm:$0xff]
  %v188 = vld [vmem:[%s0 + $0x550] sm:$0xff]
  %v189 = vld [vmem:[%s0 + $0x558] sm:$0xff]
  %v190 = vld [vmem:[%s0 + $0x560] sm:$0xff]
  %v191 = vld [vmem:[%s0 + $0x568] sm:$0xff]
  %v192 = vld [vmem:[%s0 + $0x570] sm:$0xff]
  %v193 = vld [vmem:[%s0 + $0x578] sm:$0xff]
  %v194 = vld [vmem:[%s0 + $0x580] sm:$0xff]
  %v195 = vld [vmem:[%s0 + $0x588] sm:$0xff]
  %v196 = vld [vmem:[%s0 + $0x590] sm:$0xff]
  %v197 = vld [vmem:[%s0 + $0x598] sm:$0xff]
  %v198 = vld [vmem:[%s0 + $0x5a0] sm:$0xff]
  %v199 = vld [vmem:[%s0 + $0x5a8] sm:$0xff]
  %v200 = vld [vmem:[%s0 + $0x5b0] sm:$0xff]
  %v201 = vld [vmem:[%s0 + $0x5b8] sm:$0xff]
  %v202 = vld [vmem:[%s0 + $0x5c0] sm:$0xff]
  %v203 = vld [vmem:[%s0 + $0x5c8] sm:$0xff]
  %v204 = vld [vmem:[%s0 + $0x5d0] sm:$0xff]
  %v205 = vld [vmem:[%s0 + $0x5d8] sm:$0xff]
  %v206 = vld [vmem:[%s0 + $0x5e0] sm:$0xff]
  %v207 = vld [vmem:[%s0 + $0x5e8] sm:$0xff]
  %v208 = vld [vmem:[%s0 + $0x5f0] sm:$0xff]
  %v209 = vld [vmem:[%s0 + $0x5f8] sm:$0xff]
  %v210 = vld [vmem:[%s0 + $0x600] sm:$0xff]
  %v211 = vld [vmem:[%s0 + $0x608] sm:$0xff]
  %v212 = vld [vmem:[%s0 + $0x610] sm:$0xff]
  %v213 = vld [vmem:[%s0 + $0x618] sm:$0xff]
  %v214 = vld [vmem:[%s0 + $0x620] sm:$0xff]
  %v215 = vld [vmem:[%s0 + $0x628] sm:$0xff]
  %v216 = vld [vmem:[%s0 + $0x630] sm:$0xff]
  %v217 = vld [vmem:[%s0 + $0x638] sm:$0xff]
  %v218 = vld [vmem:[%s0 + $0x640] sm:$0xff]
  %v219 = vld [vmem:[%s0 + $0x648] sm:$0xff]
  %v220 = vld [vmem:[%s0 + $0x650] sm:$0xff]
  %v221 = vld [vmem:[%s0 + $0x658] sm:$0xff]
  %v222 = vld [vmem:[%s0 + $0x660] sm:$0xff]
  %v223 = vld [vmem:[%s0 + $0x668] sm:$0xff]
  %v224 = vld [vmem:[%s0 + $0x670] sm:$0xff]
  %v225 = vld [vmem:[%s0 + $0x678] sm:$0xff]
  %v226 = vld [vmem:[%s0 + $0x680] sm:$0xff]
  %v227 = vld [vmem:[%s0 + $0x688] sm:$0xff]
  %v228 = vld [vmem:[%s0 + $0x690] sm:$0xff]
  %v229 = vld [vmem:[%s0 + $0x698] sm:$0xff]
  %v230 = vld [vmem:[%s0 + $0x6a0] sm:$0xff]
  %v231 = vld [vmem:[%s0 + $0x6a8] sm:$0xff]
  %v232 = vld [vmem:[%s0 + $0x6b0] sm:$0xff]
  %v233 = vld [vmem:[%s0 + $0x6b8] sm:$0xff]
  %v234 = vld [vmem:[%s0 + $0x6c0] sm:$0xff]
  %v235 = vld [vmem:[%s0 + $0x6c8] sm:$0xff]
  %v236 = vld [vmem:[%s0 + $0x6d0] sm:$0xff]
  %v237 = vld [vmem:[%s0 + $0x6d8] sm:$0xff]
  %v238 = vld [vmem:[%s0 + $0x6e0] sm:$0xff]
  %v239 = vld [vmem:[%s0 + $0x6e8] sm:$0xff]
  %v240 = vld [vmem:[%s0 + $0x6f0] sm:$0xff]
  %v241 = vld [vmem:[%s0 + $0x6f8] sm:$0xff]
  %v242 = vld [vmem:[%s0 + $0x700] sm:$0xff]
  %v243 = vld [vmem:[%s0 + $0x708] sm:$0xff]
  %v244 = vld [vmem:[%s0 + $0x710] sm:$0xff]
  %v245 = vld [vmem:[%s0 + $0x718] sm:$0xff]
  %v246 = vld [vmem:[%s0 + $0x720] sm:$0xff]
  %v247 = vld [vmem:[%s0 + $0x728] sm:$0xff]
  %v248 = vld [vmem:[%s0 + $0x730] sm:$0xff]
  %v249 = vld [vmem:[%s0 + $0x738] sm:$0xff]
  %v250 = vld [vmem:[%s0 + $0x740] sm:$0xff]
  %v251 = vld [vmem:[%s0 + $0x748] sm:$0xff]
  %v252 = vld [vmem:[%s0 + $0x750] sm:$0xff]
  %v253 = vld [vmem:[%s0 + $0x758] sm:$0xff]
  %v254 = vld [vmem:[%s0 + $0x760] sm:$0xff]
  %v255 = vld [vmem:[%s0 + $0x768] sm:$0xff]
  %v256 = vld [vmem:[%s0 + $0x770] sm:$0xff]
  %v257 = vld [vmem:[%s0 + $0x778] sm:$0xff]
  %v258 = vld [vmem:[%s0 + $0x780] sm:$0xff]
  %v259 = vld [vmem:[%s0 + $0x788] sm:$0xff]
  %v260 = vld [vmem:[%s0 + $0x790] sm:$0xff]
  %v261 = vld [vmem:[%s0 + $0x798] sm:$0xff]
  %v262 = vld [vmem:[%s0 + $0x7a0] sm:$0xff]
  %v263 = vld [vmem:[%s0 + $0x7a8] sm:$0xff]
  %v264 = vld [vmem:[%s0 + $0x7b0] sm:$0xff]
  %v265 = vld [vmem:[%s0 + $0x7b8] sm:$0xff]
  %v266 = vld [vmem:[%s0 + $0x7c0] sm:$0xff]
  %v267 = vld [vmem:[%s0 + $0x7c8] sm:$0xff]
  %v268 = vld [vmem:[%s0 + $0x7d0] sm:$0xff]
  %v269 = vld [vmem:[%s0 + $0x7d8] sm:$0xff]
  %v270 = vld [vmem:[%s0 + $0x7e0] sm:$0xff]
  %v271 = vld [vmem:[%s0 + $0x7e8] sm:$0xff]
  %v272 = vld [vmem:[%s0 + $0x7f0] sm:$0xff]
  %v273 = vld [vmem:[%s0 + $0x7f8] sm:$0xff]
  %v274 = vpack.c.bf16 %v19, %v18
  %v275 = vpack.c.bf16 %v21, %v20
  %v276 = vpack.c.bf16 %v23, %v22
  %v277 = vpack.c.bf16 %v25, %v24
  %v278 = vpack.c.bf16 %v27, %v26
  %v279 = vpack.c.bf16 %v29, %v28
  %v280 = vpack.c.bf16 %v31, %v30
  %v281 = vpack.c.bf16 %v33, %v32
  %v282 = vpack.c.bf16 %v35, %v34
  %v283 = vpack.c.bf16 %v37, %v36
  %v284 = vpack.c.bf16 %v39, %v38
  %v285 = vpack.c.bf16 %v41, %v40
  %v286 = vpack.c.bf16 %v43, %v42
  %v287 = vpack.c.bf16 %v45, %v44
  %v288 = vpack.c.bf16 %v47, %v46
  %v289 = vpack.c.bf16 %v49, %v48
  %v290 = vpack.c.bf16 %v51, %v50
  %v291 = vpack.c.bf16 %v53, %v52
  %v292 = vpack.c.bf16 %v55, %v54
  %v293 = vpack.c.bf16 %v57, %v56
  %v294 = vpack.c.bf16 %v59, %v58
  %v295 = vpack.c.bf16 %v61, %v60
  %v296 = vpack.c.bf16 %v63, %v62
  %v297 = vpack.c.bf16 %v65, %v64
  %v298 = vpack.c.bf16 %v67, %v66
  %v299 = vpack.c.bf16 %v69, %v68
  %v300 = vpack.c.bf16 %v71, %v70
  %v301 = vpack.c.bf16 %v73, %v72
  %v302 = vpack.c.bf16 %v75, %v74
  %v303 = vpack.c.bf16 %v77, %v76
  %v304 = vpack.c.bf16 %v79, %v78
  %v305 = vpack.c.bf16 %v81, %v80
  %v306 = vpack.c.bf16 %v83, %v82
  %v307 = vpack.c.bf16 %v85, %v84
  %v308 = vpack.c.bf16 %v87, %v86
  %v309 = vpack.c.bf16 %v89, %v88
  %v310 = vpack.c.bf16 %v91, %v90
  %v311 = vpack.c.bf16 %v93, %v92
  %v312 = vpack.c.bf16 %v95, %v94
  %v313 = vpack.c.bf16 %v97, %v96
  %v314 = vpack.c.bf16 %v99, %v98
  %v315 = vpack.c.bf16 %v101, %v100
  %v316 = vpack.c.bf16 %v103, %v102
  %v317 = vpack.c.bf16 %v105, %v104
  %v318 = vpack.c.bf16 %v107, %v106
  %v319 = vpack.c.bf16 %v109, %v108
  %v320 = vpack.c.bf16 %v111, %v110
  %v321 = vpack.c.bf16 %v113, %v112
  %v322 = vpack.c.bf16 %v115, %v114
  %v323 = vpack.c.bf16 %v117, %v116
  %v324 = vpack.c.bf16 %v119, %v118
  %v325 = vpack.c.bf16 %v121, %v120
  %v326 = vpack.c.bf16 %v123, %v122
  %v327 = vpack.c.bf16 %v125, %v124
  %v328 = vpack.c.bf16 %v127, %v126
  %v329 = vpack.c.bf16 %v129, %v128
  %v330 = vpack.c.bf16 %v131, %v130
  %v331 = vpack.c.bf16 %v133, %v132
  %v332 = vpack.c.bf16 %v135, %v134
  %v333 = vpack.c.bf16 %v137, %v136
  %v334 = vpack.c.bf16 %v139, %v138
  %v335 = vpack.c.bf16 %v141, %v140
  %v336 = vpack.c.bf16 %v143, %v142
  %v337 = vpack.c.bf16 %v145, %v144
  %v338 = vpack.c.bf16 %v147, %v146
  %v339 = vpack.c.bf16 %v149, %v148
  %v340 = vpack.c.bf16 %v151, %v150
  %v341 = vpack.c.bf16 %v153, %v152
  %v342 = vpack.c.bf16 %v155, %v154
  %v343 = vpack.c.bf16 %v157, %v156
  %v344 = vpack.c.bf16 %v159, %v158
  %v345 = vpack.c.bf16 %v161, %v160
  %v346 = vpack.c.bf16 %v163, %v162
  %v347 = vpack.c.bf16 %v165, %v164
  %v348 = vpack.c.bf16 %v167, %v166
  %v349 = vpack.c.bf16 %v169, %v168
  %v350 = vpack.c.bf16 %v171, %v170
  %v351 = vpack.c.bf16 %v173, %v172
  %v352 = vpack.c.bf16 %v175, %v174
  %v353 = vpack.c.bf16 %v177, %v176
  %v354 = vpack.c.bf16 %v179, %v178
  %v355 = vpack.c.bf16 %v181, %v180
  %v356 = vpack.c.bf16 %v183, %v182
  %v357 = vpack.c.bf16 %v185, %v184
  %v358 = vpack.c.bf16 %v187, %v186
  %v359 = vpack.c.bf16 %v189, %v188
  %v360 = vpack.c.bf16 %v191, %v190
  %v361 = vpack.c.bf16 %v193, %v192
  %v362 = vpack.c.bf16 %v195, %v194
  %v363 = vpack.c.bf16 %v197, %v196
  %v364 = vpack.c.bf16 %v199, %v198
  %v365 = vpack.c.bf16 %v201, %v200
  %v366 = vpack.c.bf16 %v203, %v202
  %v367 = vpack.c.bf16 %v205, %v204
  %v368 = vpack.c.bf16 %v207, %v206
  %v369 = vpack.c.bf16 %v209, %v208
  %v370 = vpack.c.bf16 %v211, %v210
  %v371 = vpack.c.bf16 %v213, %v212
  %v372 = vpack.c.bf16 %v215, %v214
  %v373 = vpack.c.bf16 %v217, %v216
  %v374 = vpack.c.bf16 %v219, %v218
  %v375 = vpack.c.bf16 %v221, %v220
  %v376 = vpack.c.bf16 %v223, %v222
  %v377 = vpack.c.bf16 %v225, %v224
  %v378 = vpack.c.bf16 %v227, %v226
  %v379 = vpack.c.bf16 %v229, %v228
  %v380 = vpack.c.bf16 %v231, %v230
  %v381 = vpack.c.bf16 %v233, %v232
  %v382 = vpack.c.bf16 %v235, %v234
  %v383 = vpack.c.bf16 %v237, %v236
  %v384 = vpack.c.bf16 %v239, %v238
  %v385 = vpack.c.bf16 %v241, %v240
  %v386 = vpack.c.bf16 %v243, %v242
  %v387 = vpack.c.bf16 %v245, %v244
  %v388 = vpack.c.bf16 %v247, %v246
  %v389 = vpack.c.bf16 %v249, %v248
  %v390 = vpack.c.bf16 %v251, %v250
  %v391 = vpack.c.bf16 %v253, %v252
  %v392 = vpack.c.bf16 %v255, %v254
  %v393 = vpack.c.bf16 %v257, %v256
  %v394 = vpack.c.bf16 %v259, %v258
  %v395 = vpack.c.bf16 %v261, %v260
  %v396 = vpack.c.bf16 %v263, %v262
  %v397 = vpack.c.bf16 %v265, %v264
  %v398 = vpack.c.bf16 %v267, %v266
  %v399 = vpack.c.bf16 %v269, %v268
  %v400 = vpack.c.bf16 %v271, %v270
  %v401 = vpack.c.bf16 %v273, %v272
  %v402 = vld [vmem:[%s1] sm:$0xf]
  %v403 = vld [vmem:[%s1 + $0x4] sm:$0xf]
  %v404 = vld [vmem:[%s1 + $0x8] sm:$0xf]
  %v405 = vld [vmem:[%s1 + $0xc] sm:$0x3]
  %v410 = vunpack.c.l.b16 %v402
  %v411 = vunpack.c.l.b16 %v403
  %v412 = vunpack.c.l.b16 %v404
  %v413 = vunpack.c.l.b16 %v405
  %v414 = vpack.c.b16 %v411, %v410
  %v415 = vpack.c.b16 %v413, %v412
  %vm417 = vcmask 220160
  %v419 = vsel %vm417, %v274, 0
  %v422 = vsel %vm417, %v275, 0
  %v425 = vsel %vm417, %v276, 0
  %v428 = vsel %vm417, %v277, 0
  %v431 = vsel %vm417, %v278, 0
  %v434 = vsel %vm417, %v279, 0
  %v437 = vsel %vm417, %v280, 0
  %v440 = vsel %vm417, %v281, 0
  %v443 = vsel %vm417, %v282, 0
  %v446 = vsel %vm417, %v283, 0
  %v449 = vsel %vm417, %v284, 0
  %v452 = vsel %vm417, %v285, 0
  %v455 = vsel %vm417, %v286, 0
  %v458 = vsel %vm417, %v287, 0
  %v461 = vsel %vm417, %v288, 0
  %v464 = vsel %vm417, %v289, 0
  %v467 = vsel %vm417, %v290, 0
  %v470 = vsel %vm417, %v291, 0
  %v473 = vsel %vm417, %v292, 0
  %v476 = vsel %vm417, %v293, 0
  %v479 = vsel %vm417, %v294, 0
  %v482 = vsel %vm417, %v295, 0
  %v485 = vsel %vm417, %v296, 0
  %v488 = vsel %vm417, %v297, 0
  %v491 = vsel %vm417, %v298, 0
  %v494 = vsel %vm417, %v299, 0
  %v497 = vsel %vm417, %v300, 0
  %v500 = vsel %vm417, %v301, 0
  %v503 = vsel %vm417, %v302, 0
  %v506 = vsel %vm417, %v303, 0
  %v509 = vsel %vm417, %v304, 0
  %v512 = vsel %vm417, %v305, 0
  %v515 = vsel %vm417, %v306, 0
  %v518 = vsel %vm417, %v307, 0
  %v521 = vsel %vm417, %v308, 0
  %v524 = vsel %vm417, %v309, 0
  %v527 = vsel %vm417, %v310, 0
  %v530 = vsel %vm417, %v311, 0
  %v533 = vsel %vm417, %v312, 0
  %v536 = vsel %vm417, %v313, 0
  %v539 = vsel %vm417, %v314, 0
  %v542 = vsel %vm417, %v315, 0
  %v545 = vsel %vm417, %v316, 0
  %v548 = vsel %vm417, %v317, 0
  %v551 = vsel %vm417, %v318, 0
  %v554 = vsel %vm417, %v319, 0
  %v557 = vsel %vm417, %v320, 0
  %v560 = vsel %vm417, %v321, 0
  %v563 = vsel %vm417, %v322, 0
  %v566 = vsel %vm417, %v323, 0
  %v569 = vsel %vm417, %v324, 0
  %v572 = vsel %vm417, %v325, 0
  %v575 = vsel %vm417, %v326, 0
  %v578 = vsel %vm417, %v327, 0
  %v581 = vsel %vm417, %v328, 0
  %v584 = vsel %vm417, %v329, 0
  %v587 = vsel %vm417, %v330, 0
  %v590 = vsel %vm417, %v331, 0
  %v593 = vsel %vm417, %v332, 0
  %v596 = vsel %vm417, %v333, 0
  %v599 = vsel %vm417, %v334, 0
  %v602 = vsel %vm417, %v335, 0
  %v605 = vsel %vm417, %v336, 0
  %v608 = vsel %vm417, %v337, 0
  %v611 = vsel %vm417, %v338, 0
  %v614 = vsel %vm417, %v339, 0
  %v617 = vsel %vm417, %v340, 0
  %v620 = vsel %vm417, %v341, 0
  %v623 = vsel %vm417, %v342, 0
  %v626 = vsel %vm417, %v343, 0
  %v629 = vsel %vm417, %v344, 0
  %v632 = vsel %vm417, %v345, 0
  %v635 = vsel %vm417, %v346, 0
  %v638 = vsel %vm417, %v347, 0
  %v641 = vsel %vm417, %v348, 0
  %v644 = vsel %vm417, %v349, 0
  %v647 = vsel %vm417, %v350, 0
  %v650 = vsel %vm417, %v351, 0
  %v653 = vsel %vm417, %v352, 0
  %v656 = vsel %vm417, %v353, 0
  %v659 = vsel %vm417, %v354, 0
  %v662 = vsel %vm417, %v355, 0
  %v665 = vsel %vm417, %v356, 0
  %v668 = vsel %vm417, %v357, 0
  %v671 = vsel %vm417, %v358, 0
  %v674 = vsel %vm417, %v359, 0
  %v677 = vsel %vm417, %v360, 0
  %v680 = vsel %vm417, %v361, 0
  %v683 = vsel %vm417, %v362, 0
  %v686 = vsel %vm417, %v363, 0
  %v689 = vsel %vm417, %v364, 0
  %v692 = vsel %vm417, %v365, 0
  %v695 = vsel %vm417, %v366, 0
  %v698 = vsel %vm417, %v367, 0
  %v701 = vsel %vm417, %v368, 0
  %v704 = vsel %vm417, %v369, 0
  %v707 = vsel %vm417, %v370, 0
  %v710 = vsel %vm417, %v371, 0
  %v713 = vsel %vm417, %v372, 0
  %v716 = vsel %vm417, %v373, 0
  %v719 = vsel %vm417, %v374, 0
  %v722 = vsel %vm417, %v375, 0
  %v725 = vsel %vm417, %v376, 0
  %v728 = vsel %vm417, %v377, 0
  %v731 = vsel %vm417, %v378, 0
  %v734 = vsel %vm417, %v379, 0
  %v737 = vsel %vm417, %v380, 0
  %v740 = vsel %vm417, %v381, 0
  %v743 = vsel %vm417, %v382, 0
  %v746 = vsel %vm417, %v383, 0
  %v749 = vsel %vm417, %v384, 0
  %v752 = vsel %vm417, %v385, 0
  %v755 = vsel %vm417, %v386, 0
  %v758 = vsel %vm417, %v387, 0
  %v761 = vsel %vm417, %v388, 0
  %v764 = vsel %vm417, %v389, 0
  %v767 = vsel %vm417, %v390, 0
  %v770 = vsel %vm417, %v391, 0
  %v773 = vsel %vm417, %v392, 0
  %v776 = vsel %vm417, %v393, 0
  %v779 = vsel %vm417, %v394, 0
  %v782 = vsel %vm417, %v395, 0
  %v785 = vsel %vm417, %v396, 0
  %v788 = vsel %vm417, %v397, 0
  %v791 = vsel %vm417, %v398, 0
  %v794 = vsel %vm417, %v399, 0
  %v797 = vsel %vm417, %v400, 0
  %v800 = vsel %vm417, %v401, 0
  %vm802 = vcmask 1044480
  %vm803 = vcmask 1045504
  %v804 = vsel %vm802, 4294967295, 65535
  %v805 = vsel %vm803, %v804, 0
  %v807 = vand.u32 %v415, %v805
  %809 = vmatprep.subr.bf16.mxu0 0
  %810 = vmatpush1.bf16.msra.mxu0 0
  %811 = vmatprep.subr.bf16.mxu0 0
  %812 = vmatpush1.bf16.msra.mxu0 0
  %813 = vmatprep.subr.bf16.mxu0 0
  %814 = vmatpush1.bf16.msra.mxu0 0
  %815 = vmatprep.subr.bf16.mxu0 0
  %816 = vmatpush1.bf16.msra.mxu0 0
  %817 = vmatprep.subr.bf16.mxu0 0
  %818 = vmatpush1.bf16.msra.mxu0 0
  %819 = vmatprep.subr.bf16.mxu0 0
  %820 = vmatpush1.bf16.msra.mxu0 0
  %821 = vmatprep.subr.bf16.mxu0 0
  %822 = vmatpush1.bf16.msra.mxu0 %v807
  %823 = vmatprep.subr.bf16.mxu0 0
  %824 = vmatpush1.bf16.msra.mxu0 %v414
  %825 = vmatprep.subr.bf16.mxu0 0
  %826 = vmatpush2.bf16.msra.mxu0 0
  %827 = vmatprep.subr.bf16.mxu0 0
  %828 = vmatpush2.bf16.msra.mxu0 0
  %829 = vmatprep.subr.bf16.mxu0 0
  %830 = vmatpush2.bf16.msra.mxu0 0
  %831 = vmatprep.subr.bf16.mxu0 0
  %832 = vmatpush2.bf16.msra.mxu0 0
  %833 = vmatprep.subr.bf16.mxu0 0
  %834 = vmatpush2.bf16.msra.mxu0 0
  %835 = vmatprep.subr.bf16.mxu0 0
  %836 = vmatpush2.bf16.msra.mxu0 0
  %837 = vmatprep.subr.bf16.mxu0 0
  %838 = vmatpush2.bf16.msra.mxu0 0
  %839 = vmatprep.subr.bf16.mxu0 0
  %840 = vmatpush2.bf16.msra.mxu0 0
  %841 = vmatprep.mubr.bf16.mxu0 0
  %842 = vmatmul.mubr.bf16.gmra.mxu0 %v419
  %v843 = vpop.f32.mrf.mxu0
  %v844 = vadd.f32 0.0, %v843
  %v845 = vpop.f32.mrf.mxu0
  %v846 = vpop.f32.mrf.mxu0
  %v847 = vadd.f32 0.0, %v846
  %v848 = vpop.f32.mrf.mxu0
  %849 = vmatprep.mubr.bf16.mxu0 0
  %850 = vmatmul.mubr.bf16.gmra.mxu0 %v422
  %v851 = vpop.f32.mrf.mxu0
  %v852 = vadd.f32 0.0, %v851
  %v853 = vpop.f32.mrf.mxu0
  %v854 = vpop.f32.mrf.mxu0
  %v855 = vadd.f32 0.0, %v854
  %v856 = vpop.f32.mrf.mxu0
  %857 = vmatprep.mubr.bf16.mxu0 0
  %858 = vmatmul.mubr.bf16.gmra.mxu0 %v425
  %v859 = vpop.f32.mrf.mxu0
  %v860 = vadd.f32 0.0, %v859
  %v861 = vpop.f32.mrf.mxu0
  %v862 = vpop.f32.mrf.mxu0
  %v863 = vadd.f32 0.0, %v862
  %v864 = vpop.f32.mrf.mxu0
  %865 = vmatprep.mubr.bf16.mxu0 0
  %866 = vmatmul.mubr.bf16.gmra.mxu0 %v428
  %v867 = vpop.f32.mrf.mxu0
  %v868 = vadd.f32 0.0, %v867
  %v869 = vpop.f32.mrf.mxu0
  %v870 = vpop.f32.mrf.mxu0
  %v871 = vadd.f32 0.0, %v870
  %v872 = vpop.f32.mrf.mxu0
  %873 = vmatprep.mubr.bf16.mxu0 0
  %874 = vmatmul.mubr.bf16.gmra.mxu0 %v431
  %v875 = vpop.f32.mrf.mxu0
  %v876 = vadd.f32 0.0, %v875
  %v877 = vpop.f32.mrf.mxu0
  %v878 = vpop.f32.mrf.mxu0
  %v879 = vadd.f32 0.0, %v878
  %v880 = vpop.f32.mrf.mxu0
  %881 = vmatprep.mubr.bf16.mxu0 0
  %882 = vmatmul.mubr.bf16.gmra.mxu0 %v434
  %v883 = vpop.f32.mrf.mxu0
  %v884 = vadd.f32 0.0, %v883
  %v885 = vpop.f32.mrf.mxu0
  %v886 = vpop.f32.mrf.mxu0
  %v887 = vadd.f32 0.0, %v886
  %v888 = vpop.f32.mrf.mxu0
  %889 = vmatprep.mubr.bf16.mxu0 0
  %890 = vmatmul.mubr.bf16.gmra.mxu0 %v437
  %v891 = vpop.f32.mrf.mxu0
  %v892 = vadd.f32 0.0, %v891
  %v893 = vpop.f32.mrf.mxu0
  %v894 = vpop.f32.mrf.mxu0
  %v895 = vadd.f32 0.0, %v894
  %v896 = vpop.f32.mrf.mxu0
  %897 = vmatprep.mubr.bf16.mxu0 0
  %898 = vmatmul.mubr.bf16.gmra.mxu0 %v440
  %v899 = vpop.f32.mrf.mxu0
  %v900 = vadd.f32 0.0, %v899
  %v901 = vpop.f32.mrf.mxu0
  %v902 = vpop.f32.mrf.mxu0
  %v903 = vadd.f32 0.0, %v902
  %v904 = vpop.f32.mrf.mxu0
  %905 = vmatprep.mubr.bf16.mxu0 0
  %906 = vmatmul.mubr.bf16.gmra.mxu0 %v443
  %v907 = vpop.f32.mrf.mxu0
  %v908 = vadd.f32 0.0, %v907
  %v909 = vpop.f32.mrf.mxu0
  %v910 = vpop.f32.mrf.mxu0
  %v911 = vadd.f32 0.0, %v910
  %v912 = vpop.f32.mrf.mxu0
  %913 = vmatprep.mubr.bf16.mxu0 0
  %914 = vmatmul.mubr.bf16.gmra.mxu0 %v446
  %v915 = vpop.f32.mrf.mxu0
  %v916 = vadd.f32 0.0, %v915
  %v917 = vpop.f32.mrf.mxu0
  %v918 = vpop.f32.mrf.mxu0
  %v919 = vadd.f32 0.0, %v918
  %v920 = vpop.f32.mrf.mxu0
  %921 = vmatprep.mubr.bf16.mxu0 0
  %922 = vmatmul.mubr.bf16.gmra.mxu0 %v449
  %v923 = vpop.f32.mrf.mxu0
  %v924 = vadd.f32 0.0, %v923
  %v925 = vpop.f32.mrf.mxu0
  %v926 = vpop.f32.mrf.mxu0
  %v927 = vadd.f32 0.0, %v926
  %v928 = vpop.f32.mrf.mxu0
  %929 = vmatprep.mubr.bf16.mxu0 0
  %930 = vmatmul.mubr.bf16.gmra.mxu0 %v452
  %v931 = vpop.f32.mrf.mxu0
  %v932 = vadd.f32 0.0, %v931
  %v933 = vpop.f32.mrf.mxu0
  %v934 = vpop.f32.mrf.mxu0
  %v935 = vadd.f32 0.0, %v934
  %v936 = vpop.f32.mrf.mxu0
  %937 = vmatprep.mubr.bf16.mxu0 0
  %938 = vmatmul.mubr.bf16.gmra.mxu0 %v455
  %v939 = vpop.f32.mrf.mxu0
  %v940 = vadd.f32 0.0, %v939
  %v941 = vpop.f32.mrf.mxu0
  %v942 = vpop.f32.mrf.mxu0
  %v943 = vadd.f32 0.0, %v942
  %v944 = vpop.f32.mrf.mxu0
  %945 = vmatprep.mubr.bf16.mxu0 0
  %946 = vmatmul.mubr.bf16.gmra.mxu0 %v458
  %v947 = vpop.f32.mrf.mxu0
  %v948 = vadd.f32 0.0, %v947
  %v949 = vpop.f32.mrf.mxu0
  %v950 = vpop.f32.mrf.mxu0
  %v951 = vadd.f32 0.0, %v950
  %v952 = vpop.f32.mrf.mxu0
  %953 = vmatprep.mubr.bf16.mxu0 0
  %954 = vmatmul.mubr.bf16.gmra.mxu0 %v461
  %v955 = vpop.f32.mrf.mxu0
  %v956 = vadd.f32 0.0, %v955
  %v957 = vpop.f32.mrf.mxu0
  %v958 = vpop.f32.mrf.mxu0
  %v959 = vadd.f32 0.0, %v958
  %v960 = vpop.f32.mrf.mxu0
  %961 = vmatprep.mubr.bf16.mxu0 0
  %962 = vmatmul.mubr.bf16.gmra.mxu0 %v464
  %v963 = vpop.f32.mrf.mxu0
  %v964 = vadd.f32 0.0, %v963
  %v965 = vpop.f32.mrf.mxu0
  %v966 = vpop.f32.mrf.mxu0
  %v967 = vadd.f32 0.0, %v966
  %v968 = vpop.f32.mrf.mxu0
  %969 = vmatprep.mubr.bf16.mxu0 0
  %970 = vmatmul.mubr.bf16.gmra.mxu0 %v467
  %v971 = vpop.f32.mrf.mxu0
  %v972 = vadd.f32 0.0, %v971
  %v973 = vpop.f32.mrf.mxu0
  %v974 = vpop.f32.mrf.mxu0
  %v975 = vadd.f32 0.0, %v974
  %v976 = vpop.f32.mrf.mxu0
  %977 = vmatprep.mubr.bf16.mxu0 0
  %978 = vmatmul.mubr.bf16.gmra.mxu0 %v470
  %v979 = vpop.f32.mrf.mxu0
  %v980 = vadd.f32 0.0, %v979
  %v981 = vpop.f32.mrf.mxu0
  %v982 = vpop.f32.mrf.mxu0
  %v983 = vadd.f32 0.0, %v982
  %v984 = vpop.f32.mrf.mxu0
  %985 = vmatprep.mubr.bf16.mxu0 0
  %986 = vmatmul.mubr.bf16.gmra.mxu0 %v473
  %v987 = vpop.f32.mrf.mxu0
  %v988 = vadd.f32 0.0, %v987
  %v989 = vpop.f32.mrf.mxu0
  %v990 = vpop.f32.mrf.mxu0
  %v991 = vadd.f32 0.0, %v990
  %v992 = vpop.f32.mrf.mxu0
  %993 = vmatprep.mubr.bf16.mxu0 0
  %994 = vmatmul.mubr.bf16.gmra.mxu0 %v476
  %v995 = vpop.f32.mrf.mxu0
  %v996 = vadd.f32 0.0, %v995
  %v997 = vpop.f32.mrf.mxu0
  %v998 = vpop.f32.mrf.mxu0
  %v999 = vadd.f32 0.0, %v998
  %v1000 = vpop.f32.mrf.mxu0
  %1001 = vmatprep.mubr.bf16.mxu0 0
  %1002 = vmatmul.mubr.bf16.gmra.mxu0 %v479
  %v1003 = vpop.f32.mrf.mxu0
  %v1004 = vadd.f32 0.0, %v1003
  %v1005 = vpop.f32.mrf.mxu0
  %v1006 = vpop.f32.mrf.mxu0
  %v1007 = vadd.f32 0.0, %v1006
  %v1008 = vpop.f32.mrf.mxu0
  %1009 = vmatprep.mubr.bf16.mxu0 0
  %1010 = vmatmul.mubr.bf16.gmra.mxu0 %v482
  %v1011 = vpop.f32.mrf.mxu0
  %v1012 = vadd.f32 0.0, %v1011
  %v1013 = vpop.f32.mrf.mxu0
  %v1014 = vpop.f32.mrf.mxu0
  %v1015 = vadd.f32 0.0, %v1014
  %v1016 = vpop.f32.mrf.mxu0
  %1017 = vmatprep.mubr.bf16.mxu0 0
  %1018 = vmatmul.mubr.bf16.gmra.mxu0 %v485
  %v1019 = vpop.f32.mrf.mxu0
  %v1020 = vadd.f32 0.0, %v1019
  %v1021 = vpop.f32.mrf.mxu0
  %v1022 = vpop.f32.mrf.mxu0
  %v1023 = vadd.f32 0.0, %v1022
  %v1024 = vpop.f32.mrf.mxu0
  %1025 = vmatprep.mubr.bf16.mxu0 0
  %1026 = vmatmul.mubr.bf16.gmra.mxu0 %v488
  %v1027 = vpop.f32.mrf.mxu0
  %v1028 = vadd.f32 0.0, %v1027
  %v1029 = vpop.f32.mrf.mxu0
  %v1030 = vpop.f32.mrf.mxu0
  %v1031 = vadd.f32 0.0, %v1030
  %v1032 = vpop.f32.mrf.mxu0
  %1033 = vmatprep.mubr.bf16.mxu0 0
  %1034 = vmatmul.mubr.bf16.gmra.mxu0 %v491
  %v1035 = vpop.f32.mrf.mxu0
  %v1036 = vadd.f32 0.0, %v1035
  %v1037 = vpop.f32.mrf.mxu0
  %v1038 = vpop.f32.mrf.mxu0
  %v1039 = vadd.f32 0.0, %v1038
  %v1040 = vpop.f32.mrf.mxu0
  %1041 = vmatprep.mubr.bf16.mxu0 0
  %1042 = vmatmul.mubr.bf16.gmra.mxu0 %v494
  %v1043 = vpop.f32.mrf.mxu0
  %v1044 = vadd.f32 0.0, %v1043
  %v1045 = vpop.f32.mrf.mxu0
  %v1046 = vpop.f32.mrf.mxu0
  %v1047 = vadd.f32 0.0, %v1046
  %v1048 = vpop.f32.mrf.mxu0
  %1049 = vmatprep.mubr.bf16.mxu0 0
  %1050 = vmatmul.mubr.bf16.gmra.mxu0 %v497
  %v1051 = vpop.f32.mrf.mxu0
  %v1052 = vadd.f32 0.0, %v1051
  %v1053 = vpop.f32.mrf.mxu0
  %v1054 = vpop.f32.mrf.mxu0
  %v1055 = vadd.f32 0.0, %v1054
  %v1056 = vpop.f32.mrf.mxu0
  %1057 = vmatprep.mubr.bf16.mxu0 0
  %1058 = vmatmul.mubr.bf16.gmra.mxu0 %v500
  %v1059 = vpop.f32.mrf.mxu0
  %v1060 = vadd.f32 0.0, %v1059
  %v1061 = vpop.f32.mrf.mxu0
  %v1062 = vpop.f32.mrf.mxu0
  %v1063 = vadd.f32 0.0, %v1062
  %v1064 = vpop.f32.mrf.mxu0
  %1065 = vmatprep.mubr.bf16.mxu0 0
  %1066 = vmatmul.mubr.bf16.gmra.mxu0 %v503
  %v1067 = vpop.f32.mrf.mxu0
  %v1068 = vadd.f32 0.0, %v1067
  %v1069 = vpop.f32.mrf.mxu0
  %v1070 = vpop.f32.mrf.mxu0
  %v1071 = vadd.f32 0.0, %v1070
  %v1072 = vpop.f32.mrf.mxu0
  %1073 = vmatprep.mubr.bf16.mxu0 0
  %1074 = vmatmul.mubr.bf16.gmra.mxu0 %v506
  %v1075 = vpop.f32.mrf.mxu0
  %v1076 = vadd.f32 0.0, %v1075
  %v1077 = vpop.f32.mrf.mxu0
  %v1078 = vpop.f32.mrf.mxu0
  %v1079 = vadd.f32 0.0, %v1078
  %v1080 = vpop.f32.mrf.mxu0
  %1081 = vmatprep.mubr.bf16.mxu0 0
  %1082 = vmatmul.mubr.bf16.gmra.mxu0 %v509
  %v1083 = vpop.f32.mrf.mxu0
  %v1084 = vadd.f32 0.0, %v1083
  %v1085 = vpop.f32.mrf.mxu0
  %v1086 = vpop.f32.mrf.mxu0
  %v1087 = vadd.f32 0.0, %v1086
  %v1088 = vpop.f32.mrf.mxu0
  %1089 = vmatprep.mubr.bf16.mxu0 0
  %1090 = vmatmul.mubr.bf16.gmra.mxu0 %v512
  %v1091 = vpop.f32.mrf.mxu0
  %v1092 = vadd.f32 0.0, %v1091
  %v1093 = vpop.f32.mrf.mxu0
  %v1094 = vpop.f32.mrf.mxu0
  %v1095 = vadd.f32 0.0, %v1094
  %v1096 = vpop.f32.mrf.mxu0
  %1097 = vmatprep.mubr.bf16.mxu0 0
  %1098 = vmatmul.mubr.bf16.gmra.mxu0 %v515
  %v1099 = vpop.f32.mrf.mxu0
  %v1100 = vadd.f32 0.0, %v1099
  %v1101 = vpop.f32.mrf.mxu0
  %v1102 = vpop.f32.mrf.mxu0
  %v1103 = vadd.f32 0.0, %v1102
  %v1104 = vpop.f32.mrf.mxu0
  %1105 = vmatprep.mubr.bf16.mxu0 0
  %1106 = vmatmul.mubr.bf16.gmra.mxu0 %v518
  %v1107 = vpop.f32.mrf.mxu0
  %v1108 = vadd.f32 0.0, %v1107
  %v1109 = vpop.f32.mrf.mxu0
  %v1110 = vpop.f32.mrf.mxu0
  %v1111 = vadd.f32 0.0, %v1110
  %v1112 = vpop.f32.mrf.mxu0
  %1113 = vmatprep.mubr.bf16.mxu0 0
  %1114 = vmatmul.mubr.bf16.gmra.mxu0 %v521
  %v1115 = vpop.f32.mrf.mxu0
  %v1116 = vadd.f32 0.0, %v1115
  %v1117 = vpop.f32.mrf.mxu0
  %v1118 = vpop.f32.mrf.mxu0
  %v1119 = vadd.f32 0.0, %v1118
  %v1120 = vpop.f32.mrf.mxu0
  %1121 = vmatprep.mubr.bf16.mxu0 0
  %1122 = vmatmul.mubr.bf16.gmra.mxu0 %v524
  %v1123 = vpop.f32.mrf.mxu0
  %v1124 = vadd.f32 0.0, %v1123
  %v1125 = vpop.f32.mrf.mxu0
  %v1126 = vpop.f32.mrf.mxu0
  %v1127 = vadd.f32 0.0, %v1126
  %v1128 = vpop.f32.mrf.mxu0
  %1129 = vmatprep.mubr.bf16.mxu0 0
  %1130 = vmatmul.mubr.bf16.gmra.mxu0 %v527
  %v1131 = vpop.f32.mrf.mxu0
  %v1132 = vadd.f32 0.0, %v1131
  %v1133 = vpop.f32.mrf.mxu0
  %v1134 = vpop.f32.mrf.mxu0
  %v1135 = vadd.f32 0.0, %v1134
  %v1136 = vpop.f32.mrf.mxu0
  %1137 = vmatprep.mubr.bf16.mxu0 0
  %1138 = vmatmul.mubr.bf16.gmra.mxu0 %v530
  %v1139 = vpop.f32.mrf.mxu0
  %v1140 = vadd.f32 0.0, %v1139
  %v1141 = vpop.f32.mrf.mxu0
  %v1142 = vpop.f32.mrf.mxu0
  %v1143 = vadd.f32 0.0, %v1142
  %v1144 = vpop.f32.mrf.mxu0
  %1145 = vmatprep.mubr.bf16.mxu0 0
  %1146 = vmatmul.mubr.bf16.gmra.mxu0 %v533
  %v1147 = vpop.f32.mrf.mxu0
  %v1148 = vadd.f32 0.0, %v1147
  %v1149 = vpop.f32.mrf.mxu0
  %v1150 = vpop.f32.mrf.mxu0
  %v1151 = vadd.f32 0.0, %v1150
  %v1152 = vpop.f32.mrf.mxu0
  %1153 = vmatprep.mubr.bf16.mxu0 0
  %1154 = vmatmul.mubr.bf16.gmra.mxu0 %v536
  %v1155 = vpop.f32.mrf.mxu0
  %v1156 = vadd.f32 0.0, %v1155
  %v1157 = vpop.f32.mrf.mxu0
  %v1158 = vpop.f32.mrf.mxu0
  %v1159 = vadd.f32 0.0, %v1158
  %v1160 = vpop.f32.mrf.mxu0
  %1161 = vmatprep.mubr.bf16.mxu0 0
  %1162 = vmatmul.mubr.bf16.gmra.mxu0 %v539
  %v1163 = vpop.f32.mrf.mxu0
  %v1164 = vadd.f32 0.0, %v1163
  %v1165 = vpop.f32.mrf.mxu0
  %v1166 = vpop.f32.mrf.mxu0
  %v1167 = vadd.f32 0.0, %v1166
  %v1168 = vpop.f32.mrf.mxu0
  %1169 = vmatprep.mubr.bf16.mxu0 0
  %1170 = vmatmul.mubr.bf16.gmra.mxu0 %v542
  %v1171 = vpop.f32.mrf.mxu0
  %v1172 = vadd.f32 0.0, %v1171
  %v1173 = vpop.f32.mrf.mxu0
  %v1174 = vpop.f32.mrf.mxu0
  %v1175 = vadd.f32 0.0, %v1174
  %v1176 = vpop.f32.mrf.mxu0
  %1177 = vmatprep.mubr.bf16.mxu0 0
  %1178 = vmatmul.mubr.bf16.gmra.mxu0 %v545
  %v1179 = vpop.f32.mrf.mxu0
  %v1180 = vadd.f32 0.0, %v1179
  %v1181 = vpop.f32.mrf.mxu0
  %v1182 = vpop.f32.mrf.mxu0
  %v1183 = vadd.f32 0.0, %v1182
  %v1184 = vpop.f32.mrf.mxu0
  %1185 = vmatprep.mubr.bf16.mxu0 0
  %1186 = vmatmul.mubr.bf16.gmra.mxu0 %v548
  %v1187 = vpop.f32.mrf.mxu0
  %v1188 = vadd.f32 0.0, %v1187
  %v1189 = vpop.f32.mrf.mxu0
  %v1190 = vpop.f32.mrf.mxu0
  %v1191 = vadd.f32 0.0, %v1190
  %v1192 = vpop.f32.mrf.mxu0
  %1193 = vmatprep.mubr.bf16.mxu0 0
  %1194 = vmatmul.mubr.bf16.gmra.mxu0 %v551
  %v1195 = vpop.f32.mrf.mxu0
  %v1196 = vadd.f32 0.0, %v1195
  %v1197 = vpop.f32.mrf.mxu0
  %v1198 = vpop.f32.mrf.mxu0
  %v1199 = vadd.f32 0.0, %v1198
  %v1200 = vpop.f32.mrf.mxu0
  %1201 = vmatprep.mubr.bf16.mxu0 0
  %1202 = vmatmul.mubr.bf16.gmra.mxu0 %v554
  %v1203 = vpop.f32.mrf.mxu0
  %v1204 = vadd.f32 0.0, %v1203
  %v1205 = vpop.f32.mrf.mxu0
  %v1206 = vpop.f32.mrf.mxu0
  %v1207 = vadd.f32 0.0, %v1206
  %v1208 = vpop.f32.mrf.mxu0
  %1209 = vmatprep.mubr.bf16.mxu0 0
  %1210 = vmatmul.mubr.bf16.gmra.mxu0 %v557
  %v1211 = vpop.f32.mrf.mxu0
  %v1212 = vadd.f32 0.0, %v1211
  %v1213 = vpop.f32.mrf.mxu0
  %v1214 = vpop.f32.mrf.mxu0
  %v1215 = vadd.f32 0.0, %v1214
  %v1216 = vpop.f32.mrf.mxu0
  %1217 = vmatprep.mubr.bf16.mxu0 0
  %1218 = vmatmul.mubr.bf16.gmra.mxu0 %v560
  %v1219 = vpop.f32.mrf.mxu0
  %v1220 = vadd.f32 0.0, %v1219
  %v1221 = vpop.f32.mrf.mxu0
  %v1222 = vpop.f32.mrf.mxu0
  %v1223 = vadd.f32 0.0, %v1222
  %v1224 = vpop.f32.mrf.mxu0
  %1225 = vmatprep.mubr.bf16.mxu0 0
  %1226 = vmatmul.mubr.bf16.gmra.mxu0 %v563
  %v1227 = vpop.f32.mrf.mxu0
  %v1228 = vadd.f32 0.0, %v1227
  %v1229 = vpop.f32.mrf.mxu0
  %v1230 = vpop.f32.mrf.mxu0
  %v1231 = vadd.f32 0.0, %v1230
  %v1232 = vpop.f32.mrf.mxu0
  %1233 = vmatprep.mubr.bf16.mxu0 0
  %1234 = vmatmul.mubr.bf16.gmra.mxu0 %v566
  %v1235 = vpop.f32.mrf.mxu0
  %v1236 = vadd.f32 0.0, %v1235
  %v1237 = vpop.f32.mrf.mxu0
  %v1238 = vpop.f32.mrf.mxu0
  %v1239 = vadd.f32 0.0, %v1238
  %v1240 = vpop.f32.mrf.mxu0
  %1241 = vmatprep.mubr.bf16.mxu0 0
  %1242 = vmatmul.mubr.bf16.gmra.mxu0 %v569
  %v1243 = vpop.f32.mrf.mxu0
  %v1244 = vadd.f32 0.0, %v1243
  %v1245 = vpop.f32.mrf.mxu0
  %v1246 = vpop.f32.mrf.mxu0
  %v1247 = vadd.f32 0.0, %v1246
  %v1248 = vpop.f32.mrf.mxu0
  %1249 = vmatprep.mubr.bf16.mxu0 0
  %1250 = vmatmul.mubr.bf16.gmra.mxu0 %v572
  %v1251 = vpop.f32.mrf.mxu0
  %v1252 = vadd.f32 0.0, %v1251
  %v1253 = vpop.f32.mrf.mxu0
  %v1254 = vpop.f32.mrf.mxu0
  %v1255 = vadd.f32 0.0, %v1254
  %v1256 = vpop.f32.mrf.mxu0
  %1257 = vmatprep.mubr.bf16.mxu0 0
  %1258 = vmatmul.mubr.bf16.gmra.mxu0 %v575
  %v1259 = vpop.f32.mrf.mxu0
  %v1260 = vadd.f32 0.0, %v1259
  %v1261 = vpop.f32.mrf.mxu0
  %v1262 = vpop.f32.mrf.mxu0
  %v1263 = vadd.f32 0.0, %v1262
  %v1264 = vpop.f32.mrf.mxu0
  %1265 = vmatprep.mubr.bf16.mxu0 0
  %1266 = vmatmul.mubr.bf16.gmra.mxu0 %v578
  %v1267 = vpop.f32.mrf.mxu0
  %v1268 = vadd.f32 0.0, %v1267
  %v1269 = vpop.f32.mrf.mxu0
  %v1270 = vpop.f32.mrf.mxu0
  %v1271 = vadd.f32 0.0, %v1270
  %v1272 = vpop.f32.mrf.mxu0
  %1273 = vmatprep.mubr.bf16.mxu0 0
  %1274 = vmatmul.mubr.bf16.gmra.mxu0 %v581
  %v1275 = vpop.f32.mrf.mxu0
  %v1276 = vadd.f32 0.0, %v1275
  %v1277 = vpop.f32.mrf.mxu0
  %v1278 = vpop.f32.mrf.mxu0
  %v1279 = vadd.f32 0.0, %v1278
  %v1280 = vpop.f32.mrf.mxu0
  %1281 = vmatprep.mubr.bf16.mxu0 0
  %1282 = vmatmul.mubr.bf16.gmra.mxu0 %v584
  %v1283 = vpop.f32.mrf.mxu0
  %v1284 = vadd.f32 0.0, %v1283
  %v1285 = vpop.f32.mrf.mxu0
  %v1286 = vpop.f32.mrf.mxu0
  %v1287 = vadd.f32 0.0, %v1286
  %v1288 = vpop.f32.mrf.mxu0
  %1289 = vmatprep.mubr.bf16.mxu0 0
  %1290 = vmatmul.mubr.bf16.gmra.mxu0 %v587
  %v1291 = vpop.f32.mrf.mxu0
  %v1292 = vadd.f32 0.0, %v1291
  %v1293 = vpop.f32.mrf.mxu0
  %v1294 = vpop.f32.mrf.mxu0
  %v1295 = vadd.f32 0.0, %v1294
  %v1296 = vpop.f32.mrf.mxu0
  %1297 = vmatprep.mubr.bf16.mxu0 0
  %1298 = vmatmul.mubr.bf16.gmra.mxu0 %v590
  %v1299 = vpop.f32.mrf.mxu0
  %v1300 = vadd.f32 0.0, %v1299
  %v1301 = vpop.f32.mrf.mxu0
  %v1302 = vpop.f32.mrf.mxu0
  %v1303 = vadd.f32 0.0, %v1302
  %v1304 = vpop.f32.mrf.mxu0
  %1305 = vmatprep.mubr.bf16.mxu0 0
  %1306 = vmatmul.mubr.bf16.gmra.mxu0 %v593
  %v1307 = vpop.f32.mrf.mxu0
  %v1308 = vadd.f32 0.0, %v1307
  %v1309 = vpop.f32.mrf.mxu0
  %v1310 = vpop.f32.mrf.mxu0
  %v1311 = vadd.f32 0.0, %v1310
  %v1312 = vpop.f32.mrf.mxu0
  %1313 = vmatprep.mubr.bf16.mxu0 0
  %1314 = vmatmul.mubr.bf16.gmra.mxu0 %v596
  %v1315 = vpop.f32.mrf.mxu0
  %v1316 = vadd.f32 0.0, %v1315
  %v1317 = vpop.f32.mrf.mxu0
  %v1318 = vpop.f32.mrf.mxu0
  %v1319 = vadd.f32 0.0, %v1318
  %v1320 = vpop.f32.mrf.mxu0
  %1321 = vmatprep.mubr.bf16.mxu0 0
  %1322 = vmatmul.mubr.bf16.gmra.mxu0 %v599
  %v1323 = vpop.f32.mrf.mxu0
  %v1324 = vadd.f32 0.0, %v1323
  %v1325 = vpop.f32.mrf.mxu0
  %v1326 = vpop.f32.mrf.mxu0
  %v1327 = vadd.f32 0.0, %v1326
  %v1328 = vpop.f32.mrf.mxu0
  %1329 = vmatprep.mubr.bf16.mxu0 0
  %1330 = vmatmul.mubr.bf16.gmra.mxu0 %v602
  %v1331 = vpop.f32.mrf.mxu0
  %v1332 = vadd.f32 0.0, %v1331
  %v1333 = vpop.f32.mrf.mxu0
  %v1334 = vpop.f32.mrf.mxu0
  %v1335 = vadd.f32 0.0, %v1334
  %v1336 = vpop.f32.mrf.mxu0
  %1337 = vmatprep.mubr.bf16.mxu0 0
  %1338 = vmatmul.mubr.bf16.gmra.mxu0 %v605
  %v1339 = vpop.f32.mrf.mxu0
  %v1340 = vadd.f32 0.0, %v1339
  %v1341 = vpop.f32.mrf.mxu0
  %v1342 = vpop.f32.mrf.mxu0
  %v1343 = vadd.f32 0.0, %v1342
  %v1344 = vpop.f32.mrf.mxu0
  %1345 = vmatprep.mubr.bf16.mxu0 0
  %1346 = vmatmul.mubr.bf16.gmra.mxu0 %v608
  %v1347 = vpop.f32.mrf.mxu0
  %v1348 = vadd.f32 0.0, %v1347
  %v1349 = vpop.f32.mrf.mxu0
  %v1350 = vpop.f32.mrf.mxu0
  %v1351 = vadd.f32 0.0, %v1350
  %v1352 = vpop.f32.mrf.mxu0
  %1353 = vmatprep.mubr.bf16.mxu0 0
  %1354 = vmatmul.mubr.bf16.gmra.mxu0 %v611
  %v1355 = vpop.f32.mrf.mxu0
  %v1356 = vadd.f32 0.0, %v1355
  %v1357 = vpop.f32.mrf.mxu0
  %v1358 = vpop.f32.mrf.mxu0
  %v1359 = vadd.f32 0.0, %v1358
  %v1360 = vpop.f32.mrf.mxu0
  %1361 = vmatprep.mubr.bf16.mxu0 0
  %1362 = vmatmul.mubr.bf16.gmra.mxu0 %v614
  %v1363 = vpop.f32.mrf.mxu0
  %v1364 = vadd.f32 0.0, %v1363
  %v1365 = vpop.f32.mrf.mxu0
  %v1366 = vpop.f32.mrf.mxu0
  %v1367 = vadd.f32 0.0, %v1366
  %v1368 = vpop.f32.mrf.mxu0
  %1369 = vmatprep.mubr.bf16.mxu0 0
  %1370 = vmatmul.mubr.bf16.gmra.mxu0 %v617
  %v1371 = vpop.f32.mrf.mxu0
  %v1372 = vadd.f32 0.0, %v1371
  %v1373 = vpop.f32.mrf.mxu0
  %v1374 = vpop.f32.mrf.mxu0
  %v1375 = vadd.f32 0.0, %v1374
  %v1376 = vpop.f32.mrf.mxu0
  %1377 = vmatprep.mubr.bf16.mxu0 0
  %1378 = vmatmul.mubr.bf16.gmra.mxu0 %v620
  %v1379 = vpop.f32.mrf.mxu0
  %v1380 = vadd.f32 0.0, %v1379
  %v1381 = vpop.f32.mrf.mxu0
  %v1382 = vpop.f32.mrf.mxu0
  %v1383 = vadd.f32 0.0, %v1382
  %v1384 = vpop.f32.mrf.mxu0
  %1385 = vmatprep.mubr.bf16.mxu0 0
  %1386 = vmatmul.mubr.bf16.gmra.mxu0 %v623
  %v1387 = vpop.f32.mrf.mxu0
  %v1388 = vadd.f32 0.0, %v1387
  %v1389 = vpop.f32.mrf.mxu0
  %v1390 = vpop.f32.mrf.mxu0
  %v1391 = vadd.f32 0.0, %v1390
  %v1392 = vpop.f32.mrf.mxu0
  %1393 = vmatprep.mubr.bf16.mxu0 0
  %1394 = vmatmul.mubr.bf16.gmra.mxu0 %v626
  %v1395 = vpop.f32.mrf.mxu0
  %v1396 = vadd.f32 0.0, %v1395
  %v1397 = vpop.f32.mrf.mxu0
  %v1398 = vpop.f32.mrf.mxu0
  %v1399 = vadd.f32 0.0, %v1398
  %v1400 = vpop.f32.mrf.mxu0
  %1401 = vmatprep.mubr.bf16.mxu0 0
  %1402 = vmatmul.mubr.bf16.gmra.mxu0 %v629
  %v1403 = vpop.f32.mrf.mxu0
  %v1404 = vadd.f32 0.0, %v1403
  %v1405 = vpop.f32.mrf.mxu0
  %v1406 = vpop.f32.mrf.mxu0
  %v1407 = vadd.f32 0.0, %v1406
  %v1408 = vpop.f32.mrf.mxu0
  %1409 = vmatprep.mubr.bf16.mxu0 0
  %1410 = vmatmul.mubr.bf16.gmra.mxu0 %v632
  %v1411 = vpop.f32.mrf.mxu0
  %v1412 = vadd.f32 0.0, %v1411
  %v1413 = vpop.f32.mrf.mxu0
  %v1414 = vpop.f32.mrf.mxu0
  %v1415 = vadd.f32 0.0, %v1414
  %v1416 = vpop.f32.mrf.mxu0
  %1417 = vmatprep.mubr.bf16.mxu0 0
  %1418 = vmatmul.mubr.bf16.gmra.mxu0 %v635
  %v1419 = vpop.f32.mrf.mxu0
  %v1420 = vadd.f32 0.0, %v1419
  %v1421 = vpop.f32.mrf.mxu0
  %v1422 = vpop.f32.mrf.mxu0
  %v1423 = vadd.f32 0.0, %v1422
  %v1424 = vpop.f32.mrf.mxu0
  %1425 = vmatprep.mubr.bf16.mxu0 0
  %1426 = vmatmul.mubr.bf16.gmra.mxu0 %v638
  %v1427 = vpop.f32.mrf.mxu0
  %v1428 = vadd.f32 0.0, %v1427
  %v1429 = vpop.f32.mrf.mxu0
  %v1430 = vpop.f32.mrf.mxu0
  %v1431 = vadd.f32 0.0, %v1430
  %v1432 = vpop.f32.mrf.mxu0
  %1433 = vmatprep.mubr.bf16.mxu0 0
  %1434 = vmatmul.mubr.bf16.gmra.mxu0 %v641
  %v1435 = vpop.f32.mrf.mxu0
  %v1436 = vadd.f32 0.0, %v1435
  %v1437 = vpop.f32.mrf.mxu0
  %v1438 = vpop.f32.mrf.mxu0
  %v1439 = vadd.f32 0.0, %v1438
  %v1440 = vpop.f32.mrf.mxu0
  %1441 = vmatprep.mubr.bf16.mxu0 0
  %1442 = vmatmul.mubr.bf16.gmra.mxu0 %v644
  %v1443 = vpop.f32.mrf.mxu0
  %v1444 = vadd.f32 0.0, %v1443
  %v1445 = vpop.f32.mrf.mxu0
  %v1446 = vpop.f32.mrf.mxu0
  %v1447 = vadd.f32 0.0, %v1446
  %v1448 = vpop.f32.mrf.mxu0
  %1449 = vmatprep.mubr.bf16.mxu0 0
  %1450 = vmatmul.mubr.bf16.gmra.mxu0 %v647
  %v1451 = vpop.f32.mrf.mxu0
  %v1452 = vadd.f32 0.0, %v1451
  %v1453 = vpop.f32.mrf.mxu0
  %v1454 = vpop.f32.mrf.mxu0
  %v1455 = vadd.f32 0.0, %v1454
  %v1456 = vpop.f32.mrf.mxu0
  %1457 = vmatprep.mubr.bf16.mxu0 0
  %1458 = vmatmul.mubr.bf16.gmra.mxu0 %v650
  %v1459 = vpop.f32.mrf.mxu0
  %v1460 = vadd.f32 0.0, %v1459
  %v1461 = vpop.f32.mrf.mxu0
  %v1462 = vpop.f32.mrf.mxu0
  %v1463 = vadd.f32 0.0, %v1462
  %v1464 = vpop.f32.mrf.mxu0
  %1465 = vmatprep.mubr.bf16.mxu0 0
  %1466 = vmatmul.mubr.bf16.gmra.mxu0 %v653
  %v1467 = vpop.f32.mrf.mxu0
  %v1468 = vadd.f32 0.0, %v1467
  %v1469 = vpop.f32.mrf.mxu0
  %v1470 = vpop.f32.mrf.mxu0
  %v1471 = vadd.f32 0.0, %v1470
  %v1472 = vpop.f32.mrf.mxu0
  %1473 = vmatprep.mubr.bf16.mxu0 0
  %1474 = vmatmul.mubr.bf16.gmra.mxu0 %v656
  %v1475 = vpop.f32.mrf.mxu0
  %v1476 = vadd.f32 0.0, %v1475
  %v1477 = vpop.f32.mrf.mxu0
  %v1478 = vpop.f32.mrf.mxu0
  %v1479 = vadd.f32 0.0, %v1478
  %v1480 = vpop.f32.mrf.mxu0
  %1481 = vmatprep.mubr.bf16.mxu0 0
  %1482 = vmatmul.mubr.bf16.gmra.mxu0 %v659
  %v1483 = vpop.f32.mrf.mxu0
  %v1484 = vadd.f32 0.0, %v1483
  %v1485 = vpop.f32.mrf.mxu0
  %v1486 = vpop.f32.mrf.mxu0
  %v1487 = vadd.f32 0.0, %v1486
  %v1488 = vpop.f32.mrf.mxu0
  %1489 = vmatprep.mubr.bf16.mxu0 0
  %1490 = vmatmul.mubr.bf16.gmra.mxu0 %v662
  %v1491 = vpop.f32.mrf.mxu0
  %v1492 = vadd.f32 0.0, %v1491
  %v1493 = vpop.f32.mrf.mxu0
  %v1494 = vpop.f32.mrf.mxu0
  %v1495 = vadd.f32 0.0, %v1494
  %v1496 = vpop.f32.mrf.mxu0
  %1497 = vmatprep.mubr.bf16.mxu0 0
  %1498 = vmatmul.mubr.bf16.gmra.mxu0 %v665
  %v1499 = vpop.f32.mrf.mxu0
  %v1500 = vadd.f32 0.0, %v1499
  %v1501 = vpop.f32.mrf.mxu0
  %v1502 = vpop.f32.mrf.mxu0
  %v1503 = vadd.f32 0.0, %v1502
  %v1504 = vpop.f32.mrf.mxu0
  %1505 = vmatprep.mubr.bf16.mxu0 0
  %1506 = vmatmul.mubr.bf16.gmra.mxu0 %v668
  %v1507 = vpop.f32.mrf.mxu0
  %v1508 = vadd.f32 0.0, %v1507
  %v1509 = vpop.f32.mrf.mxu0
  %v1510 = vpop.f32.mrf.mxu0
  %v1511 = vadd.f32 0.0, %v1510
  %v1512 = vpop.f32.mrf.mxu0
  %1513 = vmatprep.mubr.bf16.mxu0 0
  %1514 = vmatmul.mubr.bf16.gmra.mxu0 %v671
  %v1515 = vpop.f32.mrf.mxu0
  %v1516 = vadd.f32 0.0, %v1515
  %v1517 = vpop.f32.mrf.mxu0
  %v1518 = vpop.f32.mrf.mxu0
  %v1519 = vadd.f32 0.0, %v1518
  %v1520 = vpop.f32.mrf.mxu0
  %1521 = vmatprep.mubr.bf16.mxu0 0
  %1522 = vmatmul.mubr.bf16.gmra.mxu0 %v674
  %v1523 = vpop.f32.mrf.mxu0
  %v1524 = vadd.f32 0.0, %v1523
  %v1525 = vpop.f32.mrf.mxu0
  %v1526 = vpop.f32.mrf.mxu0
  %v1527 = vadd.f32 0.0, %v1526
  %v1528 = vpop.f32.mrf.mxu0
  %1529 = vmatprep.mubr.bf16.mxu0 0
  %1530 = vmatmul.mubr.bf16.gmra.mxu0 %v677
  %v1531 = vpop.f32.mrf.mxu0
  %v1532 = vadd.f32 0.0, %v1531
  %v1533 = vpop.f32.mrf.mxu0
  %v1534 = vpop.f32.mrf.mxu0
  %v1535 = vadd.f32 0.0, %v1534
  %v1536 = vpop.f32.mrf.mxu0
  %1537 = vmatprep.mubr.bf16.mxu0 0
  %1538 = vmatmul.mubr.bf16.gmra.mxu0 %v680
  %v1539 = vpop.f32.mrf.mxu0
  %v1540 = vadd.f32 0.0, %v1539
  %v1541 = vpop.f32.mrf.mxu0
  %v1542 = vpop.f32.mrf.mxu0
  %v1543 = vadd.f32 0.0, %v1542
  %v1544 = vpop.f32.mrf.mxu0
  %1545 = vmatprep.mubr.bf16.mxu0 0
  %1546 = vmatmul.mubr.bf16.gmra.mxu0 %v683
  %v1547 = vpop.f32.mrf.mxu0
  %v1548 = vadd.f32 0.0, %v1547
  %v1549 = vpop.f32.mrf.mxu0
  %v1550 = vpop.f32.mrf.mxu0
  %v1551 = vadd.f32 0.0, %v1550
  %v1552 = vpop.f32.mrf.mxu0
  %1553 = vmatprep.mubr.bf16.mxu0 0
  %1554 = vmatmul.mubr.bf16.gmra.mxu0 %v686
  %v1555 = vpop.f32.mrf.mxu0
  %v1556 = vadd.f32 0.0, %v1555
  %v1557 = vpop.f32.mrf.mxu0
  %v1558 = vpop.f32.mrf.mxu0
  %v1559 = vadd.f32 0.0, %v1558
  %v1560 = vpop.f32.mrf.mxu0
  %1561 = vmatprep.mubr.bf16.mxu0 0
  %1562 = vmatmul.mubr.bf16.gmra.mxu0 %v689
  %v1563 = vpop.f32.mrf.mxu0
  %v1564 = vadd.f32 0.0, %v1563
  %v1565 = vpop.f32.mrf.mxu0
  %v1566 = vpop.f32.mrf.mxu0
  %v1567 = vadd.f32 0.0, %v1566
  %v1568 = vpop.f32.mrf.mxu0
  %1569 = vmatprep.mubr.bf16.mxu0 0
  %1570 = vmatmul.mubr.bf16.gmra.mxu0 %v692
  %v1571 = vpop.f32.mrf.mxu0
  %v1572 = vadd.f32 0.0, %v1571
  %v1573 = vpop.f32.mrf.mxu0
  %v1574 = vpop.f32.mrf.mxu0
  %v1575 = vadd.f32 0.0, %v1574
  %v1576 = vpop.f32.mrf.mxu0
  %1577 = vmatprep.mubr.bf16.mxu0 0
  %1578 = vmatmul.mubr.bf16.gmra.mxu0 %v695
  %v1579 = vpop.f32.mrf.mxu0
  %v1580 = vadd.f32 0.0, %v1579
  %v1581 = vpop.f32.mrf.mxu0
  %v1582 = vpop.f32.mrf.mxu0
  %v1583 = vadd.f32 0.0, %v1582
  %v1584 = vpop.f32.mrf.mxu0
  %1585 = vmatprep.mubr.bf16.mxu0 0
  %1586 = vmatmul.mubr.bf16.gmra.mxu0 %v698
  %v1587 = vpop.f32.mrf.mxu0
  %v1588 = vadd.f32 0.0, %v1587
  %v1589 = vpop.f32.mrf.mxu0
  %v1590 = vpop.f32.mrf.mxu0
  %v1591 = vadd.f32 0.0, %v1590
  %v1592 = vpop.f32.mrf.mxu0
  %1593 = vmatprep.mubr.bf16.mxu0 0
  %1594 = vmatmul.mubr.bf16.gmra.mxu0 %v701
  %v1595 = vpop.f32.mrf.mxu0
  %v1596 = vadd.f32 0.0, %v1595
  %v1597 = vpop.f32.mrf.mxu0
  %v1598 = vpop.f32.mrf.mxu0
  %v1599 = vadd.f32 0.0, %v1598
  %v1600 = vpop.f32.mrf.mxu0
  %1601 = vmatprep.mubr.bf16.mxu0 0
  %1602 = vmatmul.mubr.bf16.gmra.mxu0 %v704
  %v1603 = vpop.f32.mrf.mxu0
  %v1604 = vadd.f32 0.0, %v1603
  %v1605 = vpop.f32.mrf.mxu0
  %v1606 = vpop.f32.mrf.mxu0
  %v1607 = vadd.f32 0.0, %v1606
  %v1608 = vpop.f32.mrf.mxu0
  %1609 = vmatprep.mubr.bf16.mxu0 0
  %1610 = vmatmul.mubr.bf16.gmra.mxu0 %v707
  %v1611 = vpop.f32.mrf.mxu0
  %v1612 = vadd.f32 0.0, %v1611
  %v1613 = vpop.f32.mrf.mxu0
  %v1614 = vpop.f32.mrf.mxu0
  %v1615 = vadd.f32 0.0, %v1614
  %v1616 = vpop.f32.mrf.mxu0
  %1617 = vmatprep.mubr.bf16.mxu0 0
  %1618 = vmatmul.mubr.bf16.gmra.mxu0 %v710
  %v1619 = vpop.f32.mrf.mxu0
  %v1620 = vadd.f32 0.0, %v1619
  %v1621 = vpop.f32.mrf.mxu0
  %v1622 = vpop.f32.mrf.mxu0
  %v1623 = vadd.f32 0.0, %v1622
  %v1624 = vpop.f32.mrf.mxu0
  %1625 = vmatprep.mubr.bf16.mxu0 0
  %1626 = vmatmul.mubr.bf16.gmra.mxu0 %v713
  %v1627 = vpop.f32.mrf.mxu0
  %v1628 = vadd.f32 0.0, %v1627
  %v1629 = vpop.f32.mrf.mxu0
  %v1630 = vpop.f32.mrf.mxu0
  %v1631 = vadd.f32 0.0, %v1630
  %v1632 = vpop.f32.mrf.mxu0
  %1633 = vmatprep.mubr.bf16.mxu0 0
  %1634 = vmatmul.mubr.bf16.gmra.mxu0 %v716
  %v1635 = vpop.f32.mrf.mxu0
  %v1636 = vadd.f32 0.0, %v1635
  %v1637 = vpop.f32.mrf.mxu0
  %v1638 = vpop.f32.mrf.mxu0
  %v1639 = vadd.f32 0.0, %v1638
  %v1640 = vpop.f32.mrf.mxu0
  %1641 = vmatprep.mubr.bf16.mxu0 0
  %1642 = vmatmul.mubr.bf16.gmra.mxu0 %v719
  %v1643 = vpop.f32.mrf.mxu0
  %v1644 = vadd.f32 0.0, %v1643
  %v1645 = vpop.f32.mrf.mxu0
  %v1646 = vpop.f32.mrf.mxu0
  %v1647 = vadd.f32 0.0, %v1646
  %v1648 = vpop.f32.mrf.mxu0
  %1649 = vmatprep.mubr.bf16.mxu0 0
  %1650 = vmatmul.mubr.bf16.gmra.mxu0 %v722
  %v1651 = vpop.f32.mrf.mxu0
  %v1652 = vadd.f32 0.0, %v1651
  %v1653 = vpop.f32.mrf.mxu0
  %v1654 = vpop.f32.mrf.mxu0
  %v1655 = vadd.f32 0.0, %v1654
  %v1656 = vpop.f32.mrf.mxu0
  %1657 = vmatprep.mubr.bf16.mxu0 0
  %1658 = vmatmul.mubr.bf16.gmra.mxu0 %v725
  %v1659 = vpop.f32.mrf.mxu0
  %v1660 = vadd.f32 0.0, %v1659
  %v1661 = vpop.f32.mrf.mxu0
  %v1662 = vpop.f32.mrf.mxu0
  %v1663 = vadd.f32 0.0, %v1662
  %v1664 = vpop.f32.mrf.mxu0
  %1665 = vmatprep.mubr.bf16.mxu0 0
  %1666 = vmatmul.mubr.bf16.gmra.mxu0 %v728
  %v1667 = vpop.f32.mrf.mxu0
  %v1668 = vadd.f32 0.0, %v1667
  %v1669 = vpop.f32.mrf.mxu0
  %v1670 = vpop.f32.mrf.mxu0
  %v1671 = vadd.f32 0.0, %v1670
  %v1672 = vpop.f32.mrf.mxu0
  %1673 = vmatprep.mubr.bf16.mxu0 0
  %1674 = vmatmul.mubr.bf16.gmra.mxu0 %v731
  %v1675 = vpop.f32.mrf.mxu0
  %v1676 = vadd.f32 0.0, %v1675
  %v1677 = vpop.f32.mrf.mxu0
  %v1678 = vpop.f32.mrf.mxu0
  %v1679 = vadd.f32 0.0, %v1678
  %v1680 = vpop.f32.mrf.mxu0
  %1681 = vmatprep.mubr.bf16.mxu0 0
  %1682 = vmatmul.mubr.bf16.gmra.mxu0 %v734
  %v1683 = vpop.f32.mrf.mxu0
  %v1684 = vadd.f32 0.0, %v1683
  %v1685 = vpop.f32.mrf.mxu0
  %v1686 = vpop.f32.mrf.mxu0
  %v1687 = vadd.f32 0.0, %v1686
  %v1688 = vpop.f32.mrf.mxu0
  %1689 = vmatprep.mubr.bf16.mxu0 0
  %1690 = vmatmul.mubr.bf16.gmra.mxu0 %v737
  %v1691 = vpop.f32.mrf.mxu0
  %v1692 = vadd.f32 0.0, %v1691
  %v1693 = vpop.f32.mrf.mxu0
  %v1694 = vpop.f32.mrf.mxu0
  %v1695 = vadd.f32 0.0, %v1694
  %v1696 = vpop.f32.mrf.mxu0
  %1697 = vmatprep.mubr.bf16.mxu0 0
  %1698 = vmatmul.mubr.bf16.gmra.mxu0 %v740
  %v1699 = vpop.f32.mrf.mxu0
  %v1700 = vadd.f32 0.0, %v1699
  %v1701 = vpop.f32.mrf.mxu0
  %v1702 = vpop.f32.mrf.mxu0
  %v1703 = vadd.f32 0.0, %v1702
  %v1704 = vpop.f32.mrf.mxu0
  %1705 = vmatprep.mubr.bf16.mxu0 0
  %1706 = vmatmul.mubr.bf16.gmra.mxu0 %v743
  %v1707 = vpop.f32.mrf.mxu0
  %v1708 = vadd.f32 0.0, %v1707
  %v1709 = vpop.f32.mrf.mxu0
  %v1710 = vpop.f32.mrf.mxu0
  %v1711 = vadd.f32 0.0, %v1710
  %v1712 = vpop.f32.mrf.mxu0
  %1713 = vmatprep.mubr.bf16.mxu0 0
  %1714 = vmatmul.mubr.bf16.gmra.mxu0 %v746
  %v1715 = vpop.f32.mrf.mxu0
  %v1716 = vadd.f32 0.0, %v1715
  %v1717 = vpop.f32.mrf.mxu0
  %v1718 = vpop.f32.mrf.mxu0
  %v1719 = vadd.f32 0.0, %v1718
  %v1720 = vpop.f32.mrf.mxu0
  %1721 = vmatprep.mubr.bf16.mxu0 0
  %1722 = vmatmul.mubr.bf16.gmra.mxu0 %v749
  %v1723 = vpop.f32.mrf.mxu0
  %v1724 = vadd.f32 0.0, %v1723
  %v1725 = vpop.f32.mrf.mxu0
  %v1726 = vpop.f32.mrf.mxu0
  %v1727 = vadd.f32 0.0, %v1726
  %v1728 = vpop.f32.mrf.mxu0
  %1729 = vmatprep.mubr.bf16.mxu0 0
  %1730 = vmatmul.mubr.bf16.gmra.mxu0 %v752
  %v1731 = vpop.f32.mrf.mxu0
  %v1732 = vadd.f32 0.0, %v1731
  %v1733 = vpop.f32.mrf.mxu0
  %v1734 = vpop.f32.mrf.mxu0
  %v1735 = vadd.f32 0.0, %v1734
  %v1736 = vpop.f32.mrf.mxu0
  %1737 = vmatprep.mubr.bf16.mxu0 0
  %1738 = vmatmul.mubr.bf16.gmra.mxu0 %v755
  %v1739 = vpop.f32.mrf.mxu0
  %v1740 = vadd.f32 0.0, %v1739
  %v1741 = vpop.f32.mrf.mxu0
  %v1742 = vpop.f32.mrf.mxu0
  %v1743 = vadd.f32 0.0, %v1742
  %v1744 = vpop.f32.mrf.mxu0
  %1745 = vmatprep.mubr.bf16.mxu0 0
  %1746 = vmatmul.mubr.bf16.gmra.mxu0 %v758
  %v1747 = vpop.f32.mrf.mxu0
  %v1748 = vadd.f32 0.0, %v1747
  %v1749 = vpop.f32.mrf.mxu0
  %v1750 = vpop.f32.mrf.mxu0
  %v1751 = vadd.f32 0.0, %v1750
  %v1752 = vpop.f32.mrf.mxu0
  %1753 = vmatprep.mubr.bf16.mxu0 0
  %1754 = vmatmul.mubr.bf16.gmra.mxu0 %v761
  %v1755 = vpop.f32.mrf.mxu0
  %v1756 = vadd.f32 0.0, %v1755
  %v1757 = vpop.f32.mrf.mxu0
  %v1758 = vpop.f32.mrf.mxu0
  %v1759 = vadd.f32 0.0, %v1758
  %v1760 = vpop.f32.mrf.mxu0
  %1761 = vmatprep.mubr.bf16.mxu0 0
  %1762 = vmatmul.mubr.bf16.gmra.mxu0 %v764
  %v1763 = vpop.f32.mrf.mxu0
  %v1764 = vadd.f32 0.0, %v1763
  %v1765 = vpop.f32.mrf.mxu0
  %v1766 = vpop.f32.mrf.mxu0
  %v1767 = vadd.f32 0.0, %v1766
  %v1768 = vpop.f32.mrf.mxu0
  %1769 = vmatprep.mubr.bf16.mxu0 0
  %1770 = vmatmul.mubr.bf16.gmra.mxu0 %v767
  %v1771 = vpop.f32.mrf.mxu0
  %v1772 = vadd.f32 0.0, %v1771
  %v1773 = vpop.f32.mrf.mxu0
  %v1774 = vpop.f32.mrf.mxu0
  %v1775 = vadd.f32 0.0, %v1774
  %v1776 = vpop.f32.mrf.mxu0
  %1777 = vmatprep.mubr.bf16.mxu0 0
  %1778 = vmatmul.mubr.bf16.gmra.mxu0 %v770
  %v1779 = vpop.f32.mrf.mxu0
  %v1780 = vadd.f32 0.0, %v1779
  %v1781 = vpop.f32.mrf.mxu0
  %v1782 = vpop.f32.mrf.mxu0
  %v1783 = vadd.f32 0.0, %v1782
  %v1784 = vpop.f32.mrf.mxu0
  %1785 = vmatprep.mubr.bf16.mxu0 0
  %1786 = vmatmul.mubr.bf16.gmra.mxu0 %v773
  %v1787 = vpop.f32.mrf.mxu0
  %v1788 = vadd.f32 0.0, %v1787
  %v1789 = vpop.f32.mrf.mxu0
  %v1790 = vpop.f32.mrf.mxu0
  %v1791 = vadd.f32 0.0, %v1790
  %v1792 = vpop.f32.mrf.mxu0
  %1793 = vmatprep.mubr.bf16.mxu0 0
  %1794 = vmatmul.mubr.bf16.gmra.mxu0 %v776
  %v1795 = vpop.f32.mrf.mxu0
  %v1796 = vadd.f32 0.0, %v1795
  %v1797 = vpop.f32.mrf.mxu0
  %v1798 = vpop.f32.mrf.mxu0
  %v1799 = vadd.f32 0.0, %v1798
  %v1800 = vpop.f32.mrf.mxu0
  %1801 = vmatprep.mubr.bf16.mxu0 0
  %1802 = vmatmul.mubr.bf16.gmra.mxu0 %v779
  %v1803 = vpop.f32.mrf.mxu0
  %v1804 = vadd.f32 0.0, %v1803
  %v1805 = vpop.f32.mrf.mxu0
  %v1806 = vpop.f32.mrf.mxu0
  %v1807 = vadd.f32 0.0, %v1806
  %v1808 = vpop.f32.mrf.mxu0
  %1809 = vmatprep.mubr.bf16.mxu0 0
  %1810 = vmatmul.mubr.bf16.gmra.mxu0 %v782
  %v1811 = vpop.f32.mrf.mxu0
  %v1812 = vadd.f32 0.0, %v1811
  %v1813 = vpop.f32.mrf.mxu0
  %v1814 = vpop.f32.mrf.mxu0
  %v1815 = vadd.f32 0.0, %v1814
  %v1816 = vpop.f32.mrf.mxu0
  %1817 = vmatprep.mubr.bf16.mxu0 0
  %1818 = vmatmul.mubr.bf16.gmra.mxu0 %v785
  %v1819 = vpop.f32.mrf.mxu0
  %v1820 = vadd.f32 0.0, %v1819
  %v1821 = vpop.f32.mrf.mxu0
  %v1822 = vpop.f32.mrf.mxu0
  %v1823 = vadd.f32 0.0, %v1822
  %v1824 = vpop.f32.mrf.mxu0
  %1825 = vmatprep.mubr.bf16.mxu0 0
  %1826 = vmatmul.mubr.bf16.gmra.mxu0 %v788
  %v1827 = vpop.f32.mrf.mxu0
  %v1828 = vadd.f32 0.0, %v1827
  %v1829 = vpop.f32.mrf.mxu0
  %v1830 = vpop.f32.mrf.mxu0
  %v1831 = vadd.f32 0.0, %v1830
  %v1832 = vpop.f32.mrf.mxu0
  %1833 = vmatprep.mubr.bf16.mxu0 0
  %1834 = vmatmul.mubr.bf16.gmra.mxu0 %v791
  %v1835 = vpop.f32.mrf.mxu0
  %v1836 = vadd.f32 0.0, %v1835
  %v1837 = vpop.f32.mrf.mxu0
  %v1838 = vpop.f32.mrf.mxu0
  %v1839 = vadd.f32 0.0, %v1838
  %v1840 = vpop.f32.mrf.mxu0
  %1841 = vmatprep.mubr.bf16.mxu0 0
  %1842 = vmatmul.mubr.bf16.gmra.mxu0 %v794
  %v1843 = vpop.f32.mrf.mxu0
  %v1844 = vadd.f32 0.0, %v1843
  %v1845 = vpop.f32.mrf.mxu0
  %v1846 = vpop.f32.mrf.mxu0
  %v1847 = vadd.f32 0.0, %v1846
  %v1848 = vpop.f32.mrf.mxu0
  %1849 = vmatprep.mubr.bf16.mxu0 0
  %1850 = vmatmul.mubr.bf16.gmra.mxu0 %v797
  %v1851 = vpop.f32.mrf.mxu0
  %v1852 = vadd.f32 0.0, %v1851
  %v1853 = vpop.f32.mrf.mxu0
  %v1854 = vpop.f32.mrf.mxu0
  %v1855 = vadd.f32 0.0, %v1854
  %v1856 = vpop.f32.mrf.mxu0
  %1857 = vmatprep.mubr.bf16.mxu0 0
  %1858 = vmatmul.mubr.bf16.gmra.mxu0 %v800
  %v1859 = vpop.f32.mrf.mxu0
  %v1860 = vadd.f32 0.0, %v1859
  %v1861 = vpop.f32.mrf.mxu0
  %v1862 = vpop.f32.mrf.mxu0
  %v1863 = vadd.f32 0.0, %v1862
  %v1864 = vpop.f32.mrf.mxu0
  %1865 = vdwg.mxu0
  %v1866 = vld [vmem:[%s2] sm:$0x1]
  %v1868 = vlaneseq
  %v1869 = vshrl.u32 %v1868, 7
  %v1870 = vsub.s32 0, %v1869
  %v1871 = vrot.slane %v1866, %v1870
  %v1873 = vmul.f32 %v844, %v1871
  %v1874 = vmul.f32 %v847, %v1871
  %v1875 = vmul.f32 %v852, %v1871
  %v1876 = vmul.f32 %v855, %v1871
  %v1877 = vmul.f32 %v860, %v1871
  %v1878 = vmul.f32 %v863, %v1871
  %v1879 = vmul.f32 %v868, %v1871
  %v1880 = vmul.f32 %v871, %v1871
  %v1881 = vmul.f32 %v876, %v1871
  %v1882 = vmul.f32 %v879, %v1871
  %v1883 = vmul.f32 %v884, %v1871
  %v1884 = vmul.f32 %v887, %v1871
  %v1885 = vmul.f32 %v892, %v1871
  %v1886 = vmul.f32 %v895, %v1871
  %v1887 = vmul.f32 %v900, %v1871
  %v1888 = vmul.f32 %v903, %v1871
  %v1889 = vmul.f32 %v908, %v1871
  %v1890 = vmul.f32 %v911, %v1871
  %v1891 = vmul.f32 %v916, %v1871
  %v1892 = vmul.f32 %v919, %v1871
  %v1893 = vmul.f32 %v924, %v1871
  %v1894 = vmul.f32 %v927, %v1871
  %v1895 = vmul.f32 %v932, %v1871
  %v1896 = vmul.f32 %v935, %v1871
  %v1897 = vmul.f32 %v940, %v1871
  %v1898 = vmul.f32 %v943, %v1871
  %v1899 = vmul.f32 %v948, %v1871
  %v1900 = vmul.f32 %v951, %v1871
  %v1901 = vmul.f32 %v956, %v1871
  %v1902 = vmul.f32 %v959, %v1871
  %v1903 = vmul.f32 %v964, %v1871
  %v1904 = vmul.f32 %v967, %v1871
  %v1905 = vmul.f32 %v972, %v1871
  %v1906 = vmul.f32 %v975, %v1871
  %v1907 = vmul.f32 %v980, %v1871
  %v1908 = vmul.f32 %v983, %v1871
  %v1909 = vmul.f32 %v988, %v1871
  %v1910 = vmul.f32 %v991, %v1871
  %v1911 = vmul.f32 %v996, %v1871
  %v1912 = vmul.f32 %v999, %v1871
  %v1913 = vmul.f32 %v1004, %v1871
  %v1914 = vmul.f32 %v1007, %v1871
  %v1915 = vmul.f32 %v1012, %v1871
  %v1916 = vmul.f32 %v1015, %v1871
  %v1917 = vmul.f32 %v1020, %v1871
  %v1918 = vmul.f32 %v1023, %v1871
  %v1919 = vmul.f32 %v1028, %v1871
  %v1920 = vmul.f32 %v1031, %v1871
  %v1921 = vmul.f32 %v1036, %v1871
  %v1922 = vmul.f32 %v1039, %v1871
  %v1923 = vmul.f32 %v1044, %v1871
  %v1924 = vmul.f32 %v1047, %v1871
  %v1925 = vmul.f32 %v1052, %v1871
  %v1926 = vmul.f32 %v1055, %v1871
  %v1927 = vmul.f32 %v1060, %v1871
  %v1928 = vmul.f32 %v1063, %v1871
  %v1929 = vmul.f32 %v1068, %v1871
  %v1930 = vmul.f32 %v1071, %v1871
  %v1931 = vmul.f32 %v1076, %v1871
  %v1932 = vmul.f32 %v1079, %v1871
  %v1933 = vmul.f32 %v1084, %v1871
  %v1934 = vmul.f32 %v1087, %v1871
  %v1935 = vmul.f32 %v1092, %v1871
  %v1936 = vmul.f32 %v1095, %v1871
  %v1937 = vmul.f32 %v1100, %v1871
  %v1938 = vmul.f32 %v1103, %v1871
  %v1939 = vmul.f32 %v1108, %v1871
  %v1940 = vmul.f32 %v1111, %v1871
  %v1941 = vmul.f32 %v1116, %v1871
  %v1942 = vmul.f32 %v1119, %v1871
  %v1943 = vmul.f32 %v1124, %v1871
  %v1944 = vmul.f32 %v1127, %v1871
  %v1945 = vmul.f32 %v1132, %v1871
  %v1946 = vmul.f32 %v1135, %v1871
  %v1947 = vmul.f32 %v1140, %v1871
  %v1948 = vmul.f32 %v1143, %v1871
  %v1949 = vmul.f32 %v1148, %v1871
  %v1950 = vmul.f32 %v1151, %v1871
  %v1951 = vmul.f32 %v1156, %v1871
  %v1952 = vmul.f32 %v1159, %v1871
  %v1953 = vmul.f32 %v1164, %v1871
  %v1954 = vmul.f32 %v1167, %v1871
  %v1955 = vmul.f32 %v1172, %v1871
  %v1956 = vmul.f32 %v1175, %v1871
  %v1957 = vmul.f32 %v1180, %v1871
  %v1958 = vmul.f32 %v1183, %v1871
  %v1959 = vmul.f32 %v1188, %v1871
  %v1960 = vmul.f32 %v1191, %v1871
  %v1961 = vmul.f32 %v1196, %v1871
  %v1962 = vmul.f32 %v1199, %v1871
  %v1963 = vmul.f32 %v1204, %v1871
  %v1964 = vmul.f32 %v1207, %v1871
  %v1965 = vmul.f32 %v1212, %v1871
  %v1966 = vmul.f32 %v1215, %v1871
  %v1967 = vmul.f32 %v1220, %v1871
  %v1968 = vmul.f32 %v1223, %v1871
  %v1969 = vmul.f32 %v1228, %v1871
  %v1970 = vmul.f32 %v1231, %v1871
  %v1971 = vmul.f32 %v1236, %v1871
  %v1972 = vmul.f32 %v1239, %v1871
  %v1973 = vmul.f32 %v1244, %v1871
  %v1974 = vmul.f32 %v1247, %v1871
  %v1975 = vmul.f32 %v1252, %v1871
  %v1976 = vmul.f32 %v1255, %v1871
  %v1977 = vmul.f32 %v1260, %v1871
  %v1978 = vmul.f32 %v1263, %v1871
  %v1979 = vmul.f32 %v1268, %v1871
  %v1980 = vmul.f32 %v1271, %v1871
  %v1981 = vmul.f32 %v1276, %v1871
  %v1982 = vmul.f32 %v1279, %v1871
  %v1983 = vmul.f32 %v1284, %v1871
  %v1984 = vmul.f32 %v1287, %v1871
  %v1985 = vmul.f32 %v1292, %v1871
  %v1986 = vmul.f32 %v1295, %v1871
  %v1987 = vmul.f32 %v1300, %v1871
  %v1988 = vmul.f32 %v1303, %v1871
  %v1989 = vmul.f32 %v1308, %v1871
  %v1990 = vmul.f32 %v1311, %v1871
  %v1991 = vmul.f32 %v1316, %v1871
  %v1992 = vmul.f32 %v1319, %v1871
  %v1993 = vmul.f32 %v1324, %v1871
  %v1994 = vmul.f32 %v1327, %v1871
  %v1995 = vmul.f32 %v1332, %v1871
  %v1996 = vmul.f32 %v1335, %v1871
  %v1997 = vmul.f32 %v1340, %v1871
  %v1998 = vmul.f32 %v1343, %v1871
  %v1999 = vmul.f32 %v1348, %v1871
  %v2000 = vmul.f32 %v1351, %v1871
  %v2001 = vmul.f32 %v1356, %v1871
  %v2002 = vmul.f32 %v1359, %v1871
  %v2003 = vmul.f32 %v1364, %v1871
  %v2004 = vmul.f32 %v1367, %v1871
  %v2005 = vmul.f32 %v1372, %v1871
  %v2006 = vmul.f32 %v1375, %v1871
  %v2007 = vmul.f32 %v1380, %v1871
  %v2008 = vmul.f32 %v1383, %v1871
  %v2009 = vmul.f32 %v1388, %v1871
  %v2010 = vmul.f32 %v1391, %v1871
  %v2011 = vmul.f32 %v1396, %v1871
  %v2012 = vmul.f32 %v1399, %v1871
  %v2013 = vmul.f32 %v1404, %v1871
  %v2014 = vmul.f32 %v1407, %v1871
  %v2015 = vmul.f32 %v1412, %v1871
  %v2016 = vmul.f32 %v1415, %v1871
  %v2017 = vmul.f32 %v1420, %v1871
  %v2018 = vmul.f32 %v1423, %v1871
  %v2019 = vmul.f32 %v1428, %v1871
  %v2020 = vmul.f32 %v1431, %v1871
  %v2021 = vmul.f32 %v1436, %v1871
  %v2022 = vmul.f32 %v1439, %v1871
  %v2023 = vmul.f32 %v1444, %v1871
  %v2024 = vmul.f32 %v1447, %v1871
  %v2025 = vmul.f32 %v1452, %v1871
  %v2026 = vmul.f32 %v1455, %v1871
  %v2027 = vmul.f32 %v1460, %v1871
  %v2028 = vmul.f32 %v1463, %v1871
  %v2029 = vmul.f32 %v1468, %v1871
  %v2030 = vmul.f32 %v1471, %v1871
  %v2031 = vmul.f32 %v1476, %v1871
  %v2032 = vmul.f32 %v1479, %v1871
  %v2033 = vmul.f32 %v1484, %v1871
  %v2034 = vmul.f32 %v1487, %v1871
  %v2035 = vmul.f32 %v1492, %v1871
  %v2036 = vmul.f32 %v1495, %v1871
  %v2037 = vmul.f32 %v1500, %v1871
  %v2038 = vmul.f32 %v1503, %v1871
  %v2039 = vmul.f32 %v1508, %v1871
  %v2040 = vmul.f32 %v1511, %v1871
  %v2041 = vmul.f32 %v1516, %v1871
  %v2042 = vmul.f32 %v1519, %v1871
  %v2043 = vmul.f32 %v1524, %v1871
  %v2044 = vmul.f32 %v1527, %v1871
  %v2045 = vmul.f32 %v1532, %v1871
  %v2046 = vmul.f32 %v1535, %v1871
  %v2047 = vmul.f32 %v1540, %v1871
  %v2048 = vmul.f32 %v1543, %v1871
  %v2049 = vmul.f32 %v1548, %v1871
  %v2050 = vmul.f32 %v1551, %v1871
  %v2051 = vmul.f32 %v1556, %v1871
  %v2052 = vmul.f32 %v1559, %v1871
  %v2053 = vmul.f32 %v1564, %v1871
  %v2054 = vmul.f32 %v1567, %v1871
  %v2055 = vmul.f32 %v1572, %v1871
  %v2056 = vmul.f32 %v1575, %v1871
  %v2057 = vmul.f32 %v1580, %v1871
  %v2058 = vmul.f32 %v1583, %v1871
  %v2059 = vmul.f32 %v1588, %v1871
  %v2060 = vmul.f32 %v1591, %v1871
  %v2061 = vmul.f32 %v1596, %v1871
  %v2062 = vmul.f32 %v1599, %v1871
  %v2063 = vmul.f32 %v1604, %v1871
  %v2064 = vmul.f32 %v1607, %v1871
  %v2065 = vmul.f32 %v1612, %v1871
  %v2066 = vmul.f32 %v1615, %v1871
  %v2067 = vmul.f32 %v1620, %v1871
  %v2068 = vmul.f32 %v1623, %v1871
  %v2069 = vmul.f32 %v1628, %v1871
  %v2070 = vmul.f32 %v1631, %v1871
  %v2071 = vmul.f32 %v1636, %v1871
  %v2072 = vmul.f32 %v1639, %v1871
  %v2073 = vmul.f32 %v1644, %v1871
  %v2074 = vmul.f32 %v1647, %v1871
  %v2075 = vmul.f32 %v1652, %v1871
  %v2076 = vmul.f32 %v1655, %v1871
  %v2077 = vmul.f32 %v1660, %v1871
  %v2078 = vmul.f32 %v1663, %v1871
  %v2079 = vmul.f32 %v1668, %v1871
  %v2080 = vmul.f32 %v1671, %v1871
  %v2081 = vmul.f32 %v1676, %v1871
  %v2082 = vmul.f32 %v1679, %v1871
  %v2083 = vmul.f32 %v1684, %v1871
  %v2084 = vmul.f32 %v1687, %v1871
  %v2085 = vmul.f32 %v1692, %v1871
  %v2086 = vmul.f32 %v1695, %v1871
  %v2087 = vmul.f32 %v1700, %v1871
  %v2088 = vmul.f32 %v1703, %v1871
  %v2089 = vmul.f32 %v1708, %v1871
  %v2090 = vmul.f32 %v1711, %v1871
  %v2091 = vmul.f32 %v1716, %v1871
  %v2092 = vmul.f32 %v1719, %v1871
  %v2093 = vmul.f32 %v1724, %v1871
  %v2094 = vmul.f32 %v1727, %v1871
  %v2095 = vmul.f32 %v1732, %v1871
  %v2096 = vmul.f32 %v1735, %v1871
  %v2097 = vmul.f32 %v1740, %v1871
  %v2098 = vmul.f32 %v1743, %v1871
  %v2099 = vmul.f32 %v1748, %v1871
  %v2100 = vmul.f32 %v1751, %v1871
  %v2101 = vmul.f32 %v1756, %v1871
  %v2102 = vmul.f32 %v1759, %v1871
  %v2103 = vmul.f32 %v1764, %v1871
  %v2104 = vmul.f32 %v1767, %v1871
  %v2105 = vmul.f32 %v1772, %v1871
  %v2106 = vmul.f32 %v1775, %v1871
  %v2107 = vmul.f32 %v1780, %v1871
  %v2108 = vmul.f32 %v1783, %v1871
  %v2109 = vmul.f32 %v1788, %v1871
  %v2110 = vmul.f32 %v1791, %v1871
  %v2111 = vmul.f32 %v1796, %v1871
  %v2112 = vmul.f32 %v1799, %v1871
  %v2113 = vmul.f32 %v1804, %v1871
  %v2114 = vmul.f32 %v1807, %v1871
  %v2115 = vmul.f32 %v1812, %v1871
  %v2116 = vmul.f32 %v1815, %v1871
  %v2117 = vmul.f32 %v1820, %v1871
  %v2118 = vmul.f32 %v1823, %v1871
  %v2119 = vmul.f32 %v1828, %v1871
  %v2120 = vmul.f32 %v1831, %v1871
  %v2121 = vmul.f32 %v1836, %v1871
  %v2122 = vmul.f32 %v1839, %v1871
  %v2123 = vmul.f32 %v1844, %v1871
  %v2124 = vmul.f32 %v1847, %v1871
  %v2125 = vmul.f32 %v1852, %v1871
  %v2126 = vmul.f32 %v1855, %v1871
  %v2127 = vmul.f32 %v1860, %v1871
  %v2128 = vmul.f32 %v1863, %v1871
  %v2129 = vld [vmem:[%s3] sm:$0x1]
  %v2131 = vlaneseq
  %v2132 = vshrl.u32 %v2131, 7
  %v2133 = vsub.s32 0, %v2132
  %v2134 = vrot.slane %v2129, %v2133
  %v2136 = vadd.f32 %v1873, %v2134
  %v2137 = vadd.f32 %v1874, %v2134
  %v2138 = vadd.f32 %v1875, %v2134
  %v2139 = vadd.f32 %v1876, %v2134
  %v2140 = vadd.f32 %v1877, %v2134
  %v2141 = vadd.f32 %v1878, %v2134
  %v2142 = vadd.f32 %v1879, %v2134
  %v2143 = vadd.f32 %v1880, %v2134
  %v2144 = vadd.f32 %v1881, %v2134
  %v2145 = vadd.f32 %v1882, %v2134
  %v2146 = vadd.f32 %v1883, %v2134
  %v2147 = vadd.f32 %v1884, %v2134
  %v2148 = vadd.f32 %v1885, %v2134
  %v2149 = vadd.f32 %v1886, %v2134
  %v2150 = vadd.f32 %v1887, %v2134
  %v2151 = vadd.f32 %v1888, %v2134
  %v2152 = vadd.f32 %v1889, %v2134
  %v2153 = vadd.f32 %v1890, %v2134
  %v2154 = vadd.f32 %v1891, %v2134
  %v2155 = vadd.f32 %v1892, %v2134
  %v2156 = vadd.f32 %v1893, %v2134
  %v2157 = vadd.f32 %v1894, %v2134
  %v2158 = vadd.f32 %v1895, %v2134
  %v2159 = vadd.f32 %v1896, %v2134
  %v2160 = vadd.f32 %v1897, %v2134
  %v2161 = vadd.f32 %v1898, %v2134
  %v2162 = vadd.f32 %v1899, %v2134
  %v2163 = vadd.f32 %v1900, %v2134
  %v2164 = vadd.f32 %v1901, %v2134
  %v2165 = vadd.f32 %v1902, %v2134
  %v2166 = vadd.f32 %v1903, %v2134
  %v2167 = vadd.f32 %v1904, %v2134
  %v2168 = vadd.f32 %v1905, %v2134
  %v2169 = vadd.f32 %v1906, %v2134
  %v2170 = vadd.f32 %v1907, %v2134
  %v2171 = vadd.f32 %v1908, %v2134
  %v2172 = vadd.f32 %v1909, %v2134
  %v2173 = vadd.f32 %v1910, %v2134
  %v2174 = vadd.f32 %v1911, %v2134
  %v2175 = vadd.f32 %v1912, %v2134
  %v2176 = vadd.f32 %v1913, %v2134
  %v2177 = vadd.f32 %v1914, %v2134
  %v2178 = vadd.f32 %v1915, %v2134
  %v2179 = vadd.f32 %v1916, %v2134
  %v2180 = vadd.f32 %v1917, %v2134
  %v2181 = vadd.f32 %v1918, %v2134
  %v2182 = vadd.f32 %v1919, %v2134
  %v2183 = vadd.f32 %v1920, %v2134
  %v2184 = vadd.f32 %v1921, %v2134
  %v2185 = vadd.f32 %v1922, %v2134
  %v2186 = vadd.f32 %v1923, %v2134
  %v2187 = vadd.f32 %v1924, %v2134
  %v2188 = vadd.f32 %v1925, %v2134
  %v2189 = vadd.f32 %v1926, %v2134
  %v2190 = vadd.f32 %v1927, %v2134
  %v2191 = vadd.f32 %v1928, %v2134
  %v2192 = vadd.f32 %v1929, %v2134
  %v2193 = vadd.f32 %v1930, %v2134
  %v2194 = vadd.f32 %v1931, %v2134
  %v2195 = vadd.f32 %v1932, %v2134
  %v2196 = vadd.f32 %v1933, %v2134
  %v2197 = vadd.f32 %v1934, %v2134
  %v2198 = vadd.f32 %v1935, %v2134
  %v2199 = vadd.f32 %v1936, %v2134
  %v2200 = vadd.f32 %v1937, %v2134
  %v2201 = vadd.f32 %v1938, %v2134
  %v2202 = vadd.f32 %v1939, %v2134
  %v2203 = vadd.f32 %v1940, %v2134
  %v2204 = vadd.f32 %v1941, %v2134
  %v2205 = vadd.f32 %v1942, %v2134
  %v2206 = vadd.f32 %v1943, %v2134
  %v2207 = vadd.f32 %v1944, %v2134
  %v2208 = vadd.f32 %v1945, %v2134
  %v2209 = vadd.f32 %v1946, %v2134
  %v2210 = vadd.f32 %v1947, %v2134
  %v2211 = vadd.f32 %v1948, %v2134
  %v2212 = vadd.f32 %v1949, %v2134
  %v2213 = vadd.f32 %v1950, %v2134
  %v2214 = vadd.f32 %v1951, %v2134
  %v2215 = vadd.f32 %v1952, %v2134
  %v2216 = vadd.f32 %v1953, %v2134
  %v2217 = vadd.f32 %v1954, %v2134
  %v2218 = vadd.f32 %v1955, %v2134
  %v2219 = vadd.f32 %v1956, %v2134
  %v2220 = vadd.f32 %v1957, %v2134
  %v2221 = vadd.f32 %v1958, %v2134
  %v2222 = vadd.f32 %v1959, %v2134
  %v2223 = vadd.f32 %v1960, %v2134
  %v2224 = vadd.f32 %v1961, %v2134
  %v2225 = vadd.f32 %v1962, %v2134
  %v2226 = vadd.f32 %v1963, %v2134
  %v2227 = vadd.f32 %v1964, %v2134
  %v2228 = vadd.f32 %v1965, %v2134
  %v2229 = vadd.f32 %v1966, %v2134
  %v2230 = vadd.f32 %v1967, %v2134
  %v2231 = vadd.f32 %v1968, %v2134
  %v2232 = vadd.f32 %v1969, %v2134
  %v2233 = vadd.f32 %v1970, %v2134
  %v2234 = vadd.f32 %v1971, %v2134
  %v2235 = vadd.f32 %v1972, %v2134
  %v2236 = vadd.f32 %v1973, %v2134
  %v2237 = vadd.f32 %v1974, %v2134
  %v2238 = vadd.f32 %v1975, %v2134
  %v2239 = vadd.f32 %v1976, %v2134
  %v2240 = vadd.f32 %v1977, %v2134
  %v2241 = vadd.f32 %v1978, %v2134
  %v2242 = vadd.f32 %v1979, %v2134
  %v2243 = vadd.f32 %v1980, %v2134
  %v2244 = vadd.f32 %v1981, %v2134
  %v2245 = vadd.f32 %v1982, %v2134
  %v2246 = vadd.f32 %v1983, %v2134
  %v2247 = vadd.f32 %v1984, %v2134
  %v2248 = vadd.f32 %v1985, %v2134
  %v2249 = vadd.f32 %v1986, %v2134
  %v2250 = vadd.f32 %v1987, %v2134
  %v2251 = vadd.f32 %v1988, %v2134
  %v2252 = vadd.f32 %v1989, %v2134
  %v2253 = vadd.f32 %v1990, %v2134
  %v2254 = vadd.f32 %v1991, %v2134
  %v2255 = vadd.f32 %v1992, %v2134
  %v2256 = vadd.f32 %v1993, %v2134
  %v2257 = vadd.f32 %v1994, %v2134
  %v2258 = vadd.f32 %v1995, %v2134
  %v2259 = vadd.f32 %v1996, %v2134
  %v2260 = vadd.f32 %v1997, %v2134
  %v2261 = vadd.f32 %v1998, %v2134
  %v2262 = vadd.f32 %v1999, %v2134
  %v2263 = vadd.f32 %v2000, %v2134
  %v2264 = vadd.f32 %v2001, %v2134
  %v2265 = vadd.f32 %v2002, %v2134
  %v2266 = vadd.f32 %v2003, %v2134
  %v2267 = vadd.f32 %v2004, %v2134
  %v2268 = vadd.f32 %v2005, %v2134
  %v2269 = vadd.f32 %v2006, %v2134
  %v2270 = vadd.f32 %v2007, %v2134
  %v2271 = vadd.f32 %v2008, %v2134
  %v2272 = vadd.f32 %v2009, %v2134
  %v2273 = vadd.f32 %v2010, %v2134
  %v2274 = vadd.f32 %v2011, %v2134
  %v2275 = vadd.f32 %v2012, %v2134
  %v2276 = vadd.f32 %v2013, %v2134
  %v2277 = vadd.f32 %v2014, %v2134
  %v2278 = vadd.f32 %v2015, %v2134
  %v2279 = vadd.f32 %v2016, %v2134
  %v2280 = vadd.f32 %v2017, %v2134
  %v2281 = vadd.f32 %v2018, %v2134
  %v2282 = vadd.f32 %v2019, %v2134
  %v2283 = vadd.f32 %v2020, %v2134
  %v2284 = vadd.f32 %v2021, %v2134
  %v2285 = vadd.f32 %v2022, %v2134
  %v2286 = vadd.f32 %v2023, %v2134
  %v2287 = vadd.f32 %v2024, %v2134
  %v2288 = vadd.f32 %v2025, %v2134
  %v2289 = vadd.f32 %v2026, %v2134
  %v2290 = vadd.f32 %v2027, %v2134
  %v2291 = vadd.f32 %v2028, %v2134
  %v2292 = vadd.f32 %v2029, %v2134
  %v2293 = vadd.f32 %v2030, %v2134
  %v2294 = vadd.f32 %v2031, %v2134
  %v2295 = vadd.f32 %v2032, %v2134
  %v2296 = vadd.f32 %v2033, %v2134
  %v2297 = vadd.f32 %v2034, %v2134
  %v2298 = vadd.f32 %v2035, %v2134
  %v2299 = vadd.f32 %v2036, %v2134
  %v2300 = vadd.f32 %v2037, %v2134
  %v2301 = vadd.f32 %v2038, %v2134
  %v2302 = vadd.f32 %v2039, %v2134
  %v2303 = vadd.f32 %v2040, %v2134
  %v2304 = vadd.f32 %v2041, %v2134
  %v2305 = vadd.f32 %v2042, %v2134
  %v2306 = vadd.f32 %v2043, %v2134
  %v2307 = vadd.f32 %v2044, %v2134
  %v2308 = vadd.f32 %v2045, %v2134
  %v2309 = vadd.f32 %v2046, %v2134
  %v2310 = vadd.f32 %v2047, %v2134
  %v2311 = vadd.f32 %v2048, %v2134
  %v2312 = vadd.f32 %v2049, %v2134
  %v2313 = vadd.f32 %v2050, %v2134
  %v2314 = vadd.f32 %v2051, %v2134
  %v2315 = vadd.f32 %v2052, %v2134
  %v2316 = vadd.f32 %v2053, %v2134
  %v2317 = vadd.f32 %v2054, %v2134
  %v2318 = vadd.f32 %v2055, %v2134
  %v2319 = vadd.f32 %v2056, %v2134
  %v2320 = vadd.f32 %v2057, %v2134
  %v2321 = vadd.f32 %v2058, %v2134
  %v2322 = vadd.f32 %v2059, %v2134
  %v2323 = vadd.f32 %v2060, %v2134
  %v2324 = vadd.f32 %v2061, %v2134
  %v2325 = vadd.f32 %v2062, %v2134
  %v2326 = vadd.f32 %v2063, %v2134
  %v2327 = vadd.f32 %v2064, %v2134
  %v2328 = vadd.f32 %v2065, %v2134
  %v2329 = vadd.f32 %v2066, %v2134
  %v2330 = vadd.f32 %v2067, %v2134
  %v2331 = vadd.f32 %v2068, %v2134
  %v2332 = vadd.f32 %v2069, %v2134
  %v2333 = vadd.f32 %v2070, %v2134
  %v2334 = vadd.f32 %v2071, %v2134
  %v2335 = vadd.f32 %v2072, %v2134
  %v2336 = vadd.f32 %v2073, %v2134
  %v2337 = vadd.f32 %v2074, %v2134
  %v2338 = vadd.f32 %v2075, %v2134
  %v2339 = vadd.f32 %v2076, %v2134
  %v2340 = vadd.f32 %v2077, %v2134
  %v2341 = vadd.f32 %v2078, %v2134
  %v2342 = vadd.f32 %v2079, %v2134
  %v2343 = vadd.f32 %v2080, %v2134
  %v2344 = vadd.f32 %v2081, %v2134
  %v2345 = vadd.f32 %v2082, %v2134
  %v2346 = vadd.f32 %v2083, %v2134
  %v2347 = vadd.f32 %v2084, %v2134
  %v2348 = vadd.f32 %v2085, %v2134
  %v2349 = vadd.f32 %v2086, %v2134
  %v2350 = vadd.f32 %v2087, %v2134
  %v2351 = vadd.f32 %v2088, %v2134
  %v2352 = vadd.f32 %v2089, %v2134
  %v2353 = vadd.f32 %v2090, %v2134
  %v2354 = vadd.f32 %v2091, %v2134
  %v2355 = vadd.f32 %v2092, %v2134
  %v2356 = vadd.f32 %v2093, %v2134
  %v2357 = vadd.f32 %v2094, %v2134
  %v2358 = vadd.f32 %v2095, %v2134
  %v2359 = vadd.f32 %v2096, %v2134
  %v2360 = vadd.f32 %v2097, %v2134
  %v2361 = vadd.f32 %v2098, %v2134
  %v2362 = vadd.f32 %v2099, %v2134
  %v2363 = vadd.f32 %v2100, %v2134
  %v2364 = vadd.f32 %v2101, %v2134
  %v2365 = vadd.f32 %v2102, %v2134
  %v2366 = vadd.f32 %v2103, %v2134
  %v2367 = vadd.f32 %v2104, %v2134
  %v2368 = vadd.f32 %v2105, %v2134
  %v2369 = vadd.f32 %v2106, %v2134
  %v2370 = vadd.f32 %v2107, %v2134
  %v2371 = vadd.f32 %v2108, %v2134
  %v2372 = vadd.f32 %v2109, %v2134
  %v2373 = vadd.f32 %v2110, %v2134
  %v2374 = vadd.f32 %v2111, %v2134
  %v2375 = vadd.f32 %v2112, %v2134
  %v2376 = vadd.f32 %v2113, %v2134
  %v2377 = vadd.f32 %v2114, %v2134
  %v2378 = vadd.f32 %v2115, %v2134
  %v2379 = vadd.f32 %v2116, %v2134
  %v2380 = vadd.f32 %v2117, %v2134
  %v2381 = vadd.f32 %v2118, %v2134
  %v2382 = vadd.f32 %v2119, %v2134
  %v2383 = vadd.f32 %v2120, %v2134
  %v2384 = vadd.f32 %v2121, %v2134
  %v2385 = vadd.f32 %v2122, %v2134
  %v2386 = vadd.f32 %v2123, %v2134
  %v2387 = vadd.f32 %v2124, %v2134
  %v2388 = vadd.f32 %v2125, %v2134
  %v2389 = vadd.f32 %v2126, %v2134
  %v2390 = vadd.f32 %v2127, %v2134
  %v2391 = vadd.f32 %v2128, %v2134
  %v2392 = vmax.f32 %v2136, 0.0
  %v2393 = vmax.f32 %v2137, 0.0
  %v2394 = vmax.f32 %v2138, 0.0
  %v2395 = vmax.f32 %v2139, 0.0
  %v2396 = vmax.f32 %v2140, 0.0
  %v2397 = vmax.f32 %v2141, 0.0
  %v2398 = vmax.f32 %v2142, 0.0
  %v2399 = vmax.f32 %v2143, 0.0
  %v2400 = vmax.f32 %v2144, 0.0
  %v2401 = vmax.f32 %v2145, 0.0
  %v2402 = vmax.f32 %v2146, 0.0
  %v2403 = vmax.f32 %v2147, 0.0
  %v2404 = vmax.f32 %v2148, 0.0
  %v2405 = vmax.f32 %v2149, 0.0
  %v2406 = vmax.f32 %v2150, 0.0
  %v2407 = vmax.f32 %v2151, 0.0
  %v2408 = vmax.f32 %v2152, 0.0
  %v2409 = vmax.f32 %v2153, 0.0
  %v2410 = vmax.f32 %v2154, 0.0
  %v2411 = vmax.f32 %v2155, 0.0
  %v2412 = vmax.f32 %v2156, 0.0
  %v2413 = vmax.f32 %v2157, 0.0
  %v2414 = vmax.f32 %v2158, 0.0
  %v2415 = vmax.f32 %v2159, 0.0
  %v2416 = vmax.f32 %v2160, 0.0
  %v2417 = vmax.f32 %v2161, 0.0
  %v2418 = vmax.f32 %v2162, 0.0
  %v2419 = vmax.f32 %v2163, 0.0
  %v2420 = vmax.f32 %v2164, 0.0
  %v2421 = vmax.f32 %v2165, 0.0
  %v2422 = vmax.f32 %v2166, 0.0
  %v2423 = vmax.f32 %v2167, 0.0
  %v2424 = vmax.f32 %v2168, 0.0
  %v2425 = vmax.f32 %v2169, 0.0
  %v2426 = vmax.f32 %v2170, 0.0
  %v2427 = vmax.f32 %v2171, 0.0
  %v2428 = vmax.f32 %v2172, 0.0
  %v2429 = vmax.f32 %v2173, 0.0
  %v2430 = vmax.f32 %v2174, 0.0
  %v2431 = vmax.f32 %v2175, 0.0
  %v2432 = vmax.f32 %v2176, 0.0
  %v2433 = vmax.f32 %v2177, 0.0
  %v2434 = vmax.f32 %v2178, 0.0
  %v2435 = vmax.f32 %v2179, 0.0
  %v2436 = vmax.f32 %v2180, 0.0
  %v2437 = vmax.f32 %v2181, 0.0
  %v2438 = vmax.f32 %v2182, 0.0
  %v2439 = vmax.f32 %v2183, 0.0
  %v2440 = vmax.f32 %v2184, 0.0
  %v2441 = vmax.f32 %v2185, 0.0
  %v2442 = vmax.f32 %v2186, 0.0
  %v2443 = vmax.f32 %v2187, 0.0
  %v2444 = vmax.f32 %v2188, 0.0
  %v2445 = vmax.f32 %v2189, 0.0
  %v2446 = vmax.f32 %v2190, 0.0
  %v2447 = vmax.f32 %v2191, 0.0
  %v2448 = vmax.f32 %v2192, 0.0
  %v2449 = vmax.f32 %v2193, 0.0
  %v2450 = vmax.f32 %v2194, 0.0
  %v2451 = vmax.f32 %v2195, 0.0
  %v2452 = vmax.f32 %v2196, 0.0
  %v2453 = vmax.f32 %v2197, 0.0
  %v2454 = vmax.f32 %v2198, 0.0
  %v2455 = vmax.f32 %v2199, 0.0
  %v2456 = vmax.f32 %v2200, 0.0
  %v2457 = vmax.f32 %v2201, 0.0
  %v2458 = vmax.f32 %v2202, 0.0
  %v2459 = vmax.f32 %v2203, 0.0
  %v2460 = vmax.f32 %v2204, 0.0
  %v2461 = vmax.f32 %v2205, 0.0
  %v2462 = vmax.f32 %v2206, 0.0
  %v2463 = vmax.f32 %v2207, 0.0
  %v2464 = vmax.f32 %v2208, 0.0
  %v2465 = vmax.f32 %v2209, 0.0
  %v2466 = vmax.f32 %v2210, 0.0
  %v2467 = vmax.f32 %v2211, 0.0
  %v2468 = vmax.f32 %v2212, 0.0
  %v2469 = vmax.f32 %v2213, 0.0
  %v2470 = vmax.f32 %v2214, 0.0
  %v2471 = vmax.f32 %v2215, 0.0
  %v2472 = vmax.f32 %v2216, 0.0
  %v2473 = vmax.f32 %v2217, 0.0
  %v2474 = vmax.f32 %v2218, 0.0
  %v2475 = vmax.f32 %v2219, 0.0
  %v2476 = vmax.f32 %v2220, 0.0
  %v2477 = vmax.f32 %v2221, 0.0
  %v2478 = vmax.f32 %v2222, 0.0
  %v2479 = vmax.f32 %v2223, 0.0
  %v2480 = vmax.f32 %v2224, 0.0
  %v2481 = vmax.f32 %v2225, 0.0
  %v2482 = vmax.f32 %v2226, 0.0
  %v2483 = vmax.f32 %v2227, 0.0
  %v2484 = vmax.f32 %v2228, 0.0
  %v2485 = vmax.f32 %v2229, 0.0
  %v2486 = vmax.f32 %v2230, 0.0
  %v2487 = vmax.f32 %v2231, 0.0
  %v2488 = vmax.f32 %v2232, 0.0
  %v2489 = vmax.f32 %v2233, 0.0
  %v2490 = vmax.f32 %v2234, 0.0
  %v2491 = vmax.f32 %v2235, 0.0
  %v2492 = vmax.f32 %v2236, 0.0
  %v2493 = vmax.f32 %v2237, 0.0
  %v2494 = vmax.f32 %v2238, 0.0
  %v2495 = vmax.f32 %v2239, 0.0
  %v2496 = vmax.f32 %v2240, 0.0
  %v2497 = vmax.f32 %v2241, 0.0
  %v2498 = vmax.f32 %v2242, 0.0
  %v2499 = vmax.f32 %v2243, 0.0
  %v2500 = vmax.f32 %v2244, 0.0
  %v2501 = vmax.f32 %v2245, 0.0
  %v2502 = vmax.f32 %v2246, 0.0
  %v2503 = vmax.f32 %v2247, 0.0
  %v2504 = vmax.f32 %v2248, 0.0
  %v2505 = vmax.f32 %v2249, 0.0
  %v2506 = vmax.f32 %v2250, 0.0
  %v2507 = vmax.f32 %v2251, 0.0
  %v2508 = vmax.f32 %v2252, 0.0
  %v2509 = vmax.f32 %v2253, 0.0
  %v2510 = vmax.f32 %v2254, 0.0
  %v2511 = vmax.f32 %v2255, 0.0
  %v2512 = vmax.f32 %v2256, 0.0
  %v2513 = vmax.f32 %v2257, 0.0
  %v2514 = vmax.f32 %v2258, 0.0
  %v2515 = vmax.f32 %v2259, 0.0
  %v2516 = vmax.f32 %v2260, 0.0
  %v2517 = vmax.f32 %v2261, 0.0
  %v2518 = vmax.f32 %v2262, 0.0
  %v2519 = vmax.f32 %v2263, 0.0
  %v2520 = vmax.f32 %v2264, 0.0
  %v2521 = vmax.f32 %v2265, 0.0
  %v2522 = vmax.f32 %v2266, 0.0
  %v2523 = vmax.f32 %v2267, 0.0
  %v2524 = vmax.f32 %v2268, 0.0
  %v2525 = vmax.f32 %v2269, 0.0
  %v2526 = vmax.f32 %v2270, 0.0
  %v2527 = vmax.f32 %v2271, 0.0
  %v2528 = vmax.f32 %v2272, 0.0
  %v2529 = vmax.f32 %v2273, 0.0
  %v2530 = vmax.f32 %v2274, 0.0
  %v2531 = vmax.f32 %v2275, 0.0
  %v2532 = vmax.f32 %v2276, 0.0
  %v2533 = vmax.f32 %v2277, 0.0
  %v2534 = vmax.f32 %v2278, 0.0
  %v2535 = vmax.f32 %v2279, 0.0
  %v2536 = vmax.f32 %v2280, 0.0
  %v2537 = vmax.f32 %v2281, 0.0
  %v2538 = vmax.f32 %v2282, 0.0
  %v2539 = vmax.f32 %v2283, 0.0
  %v2540 = vmax.f32 %v2284, 0.0
  %v2541 = vmax.f32 %v2285, 0.0
  %v2542 = vmax.f32 %v2286, 0.0
  %v2543 = vmax.f32 %v2287, 0.0
  %v2544 = vmax.f32 %v2288, 0.0
  %v2545 = vmax.f32 %v2289, 0.0
  %v2546 = vmax.f32 %v2290, 0.0
  %v2547 = vmax.f32 %v2291, 0.0
  %v2548 = vmax.f32 %v2292, 0.0
  %v2549 = vmax.f32 %v2293, 0.0
  %v2550 = vmax.f32 %v2294, 0.0
  %v2551 = vmax.f32 %v2295, 0.0
  %v2552 = vmax.f32 %v2296, 0.0
  %v2553 = vmax.f32 %v2297, 0.0
  %v2554 = vmax.f32 %v2298, 0.0
  %v2555 = vmax.f32 %v2299, 0.0
  %v2556 = vmax.f32 %v2300, 0.0
  %v2557 = vmax.f32 %v2301, 0.0
  %v2558 = vmax.f32 %v2302, 0.0
  %v2559 = vmax.f32 %v2303, 0.0
  %v2560 = vmax.f32 %v2304, 0.0
  %v2561 = vmax.f32 %v2305, 0.0
  %v2562 = vmax.f32 %v2306, 0.0
  %v2563 = vmax.f32 %v2307, 0.0
  %v2564 = vmax.f32 %v2308, 0.0
  %v2565 = vmax.f32 %v2309, 0.0
  %v2566 = vmax.f32 %v2310, 0.0
  %v2567 = vmax.f32 %v2311, 0.0
  %v2568 = vmax.f32 %v2312, 0.0
  %v2569 = vmax.f32 %v2313, 0.0
  %v2570 = vmax.f32 %v2314, 0.0
  %v2571 = vmax.f32 %v2315, 0.0
  %v2572 = vmax.f32 %v2316, 0.0
  %v2573 = vmax.f32 %v2317, 0.0
  %v2574 = vmax.f32 %v2318, 0.0
  %v2575 = vmax.f32 %v2319, 0.0
  %v2576 = vmax.f32 %v2320, 0.0
  %v2577 = vmax.f32 %v2321, 0.0
  %v2578 = vmax.f32 %v2322, 0.0
  %v2579 = vmax.f32 %v2323, 0.0
  %v2580 = vmax.f32 %v2324, 0.0
  %v2581 = vmax.f32 %v2325, 0.0
  %v2582 = vmax.f32 %v2326, 0.0
  %v2583 = vmax.f32 %v2327, 0.0
  %v2584 = vmax.f32 %v2328, 0.0
  %v2585 = vmax.f32 %v2329, 0.0
  %v2586 = vmax.f32 %v2330, 0.0
  %v2587 = vmax.f32 %v2331, 0.0
  %v2588 = vmax.f32 %v2332, 0.0
  %v2589 = vmax.f32 %v2333, 0.0
  %v2590 = vmax.f32 %v2334, 0.0
  %v2591 = vmax.f32 %v2335, 0.0
  %v2592 = vmax.f32 %v2336, 0.0
  %v2593 = vmax.f32 %v2337, 0.0
  %v2594 = vmax.f32 %v2338, 0.0
  %v2595 = vmax.f32 %v2339, 0.0
  %v2596 = vmax.f32 %v2340, 0.0
  %v2597 = vmax.f32 %v2341, 0.0
  %v2598 = vmax.f32 %v2342, 0.0
  %v2599 = vmax.f32 %v2343, 0.0
  %v2600 = vmax.f32 %v2344, 0.0
  %v2601 = vmax.f32 %v2345, 0.0
  %v2602 = vmax.f32 %v2346, 0.0
  %v2603 = vmax.f32 %v2347, 0.0
  %v2604 = vmax.f32 %v2348, 0.0
  %v2605 = vmax.f32 %v2349, 0.0
  %v2606 = vmax.f32 %v2350, 0.0
  %v2607 = vmax.f32 %v2351, 0.0
  %v2608 = vmax.f32 %v2352, 0.0
  %v2609 = vmax.f32 %v2353, 0.0
  %v2610 = vmax.f32 %v2354, 0.0
  %v2611 = vmax.f32 %v2355, 0.0
  %v2612 = vmax.f32 %v2356, 0.0
  %v2613 = vmax.f32 %v2357, 0.0
  %v2614 = vmax.f32 %v2358, 0.0
  %v2615 = vmax.f32 %v2359, 0.0
  %v2616 = vmax.f32 %v2360, 0.0
  %v2617 = vmax.f32 %v2361, 0.0
  %v2618 = vmax.f32 %v2362, 0.0
  %v2619 = vmax.f32 %v2363, 0.0
  %v2620 = vmax.f32 %v2364, 0.0
  %v2621 = vmax.f32 %v2365, 0.0
  %v2622 = vmax.f32 %v2366, 0.0
  %v2623 = vmax.f32 %v2367, 0.0
  %v2624 = vmax.f32 %v2368, 0.0
  %v2625 = vmax.f32 %v2369, 0.0
  %v2626 = vmax.f32 %v2370, 0.0
  %v2627 = vmax.f32 %v2371, 0.0
  %v2628 = vmax.f32 %v2372, 0.0
  %v2629 = vmax.f32 %v2373, 0.0
  %v2630 = vmax.f32 %v2374, 0.0
  %v2631 = vmax.f32 %v2375, 0.0
  %v2632 = vmax.f32 %v2376, 0.0
  %v2633 = vmax.f32 %v2377, 0.0
  %v2634 = vmax.f32 %v2378, 0.0
  %v2635 = vmax.f32 %v2379, 0.0
  %v2636 = vmax.f32 %v2380, 0.0
  %v2637 = vmax.f32 %v2381, 0.0
  %v2638 = vmax.f32 %v2382, 0.0
  %v2639 = vmax.f32 %v2383, 0.0
  %v2640 = vmax.f32 %v2384, 0.0
  %v2641 = vmax.f32 %v2385, 0.0
  %v2642 = vmax.f32 %v2386, 0.0
  %v2643 = vmax.f32 %v2387, 0.0
  %v2644 = vmax.f32 %v2388, 0.0
  %v2645 = vmax.f32 %v2389, 0.0
  %v2646 = vmax.f32 %v2390, 0.0
  %v2647 = vmax.f32 %v2391, 0.0
  %v2648 = vmax.f32 %v2392, %v2456
  %v2649 = vmax.f32 %v2393, %v2457
  %v2650 = vmax.f32 %v2394, %v2458
  %v2651 = vmax.f32 %v2395, %v2459
  %v2652 = vmax.f32 %v2396, %v2460
  %v2653 = vmax.f32 %v2397, %v2461
  %v2654 = vmax.f32 %v2398, %v2462
  %v2655 = vmax.f32 %v2399, %v2463
  %v2656 = vmax.f32 %v2400, %v2464
  %v2657 = vmax.f32 %v2401, %v2465
  %v2658 = vmax.f32 %v2402, %v2466
  %v2659 = vmax.f32 %v2403, %v2467
  %v2660 = vmax.f32 %v2404, %v2468
  %v2661 = vmax.f32 %v2405, %v2469
  %v2662 = vmax.f32 %v2406, %v2470
  %v2663 = vmax.f32 %v2407, %v2471
  %v2664 = vmax.f32 %v2408, %v2472
  %v2665 = vmax.f32 %v2409, %v2473
  %v2666 = vmax.f32 %v2410, %v2474
  %v2667 = vmax.f32 %v2411, %v2475
  %v2668 = vmax.f32 %v2412, %v2476
  %v2669 = vmax.f32 %v2413, %v2477
  %v2670 = vmax.f32 %v2414, %v2478
  %v2671 = vmax.f32 %v2415, %v2479
  %v2672 = vmax.f32 %v2416, %v2480
  %v2673 = vmax.f32 %v2417, %v2481
  %v2674 = vmax.f32 %v2418, %v2482
  %v2675 = vmax.f32 %v2419, %v2483
  %v2676 = vmax.f32 %v2420, %v2484
  %v2677 = vmax.f32 %v2421, %v2485
  %v2678 = vmax.f32 %v2422, %v2486
  %v2679 = vmax.f32 %v2423, %v2487
  %v2680 = vmax.f32 %v2424, %v2488
  %v2681 = vmax.f32 %v2425, %v2489
  %v2682 = vmax.f32 %v2426, %v2490
  %v2683 = vmax.f32 %v2427, %v2491
  %v2684 = vmax.f32 %v2428, %v2492
  %v2685 = vmax.f32 %v2429, %v2493
  %v2686 = vmax.f32 %v2430, %v2494
  %v2687 = vmax.f32 %v2431, %v2495
  %v2688 = vmax.f32 %v2432, %v2496
  %v2689 = vmax.f32 %v2433, %v2497
  %v2690 = vmax.f32 %v2434, %v2498
  %v2691 = vmax.f32 %v2435, %v2499
  %v2692 = vmax.f32 %v2436, %v2500
  %v2693 = vmax.f32 %v2437, %v2501
  %v2694 = vmax.f32 %v2438, %v2502
  %v2695 = vmax.f32 %v2439, %v2503
  %v2696 = vmax.f32 %v2440, %v2504
  %v2697 = vmax.f32 %v2441, %v2505
  %v2698 = vmax.f32 %v2442, %v2506
  %v2699 = vmax.f32 %v2443, %v2507
  %v2700 = vmax.f32 %v2444, %v2508
  %v2701 = vmax.f32 %v2445, %v2509
  %v2702 = vmax.f32 %v2446, %v2510
  %v2703 = vmax.f32 %v2447, %v2511
  %v2704 = vmax.f32 %v2448, %v2512
  %v2705 = vmax.f32 %v2449, %v2513
  %v2706 = vmax.f32 %v2450, %v2514
  %v2707 = vmax.f32 %v2451, %v2515
  %v2708 = vmax.f32 %v2452, %v2516
  %v2709 = vmax.f32 %v2453, %v2517
  %v2710 = vmax.f32 %v2454, %v2518
  %v2711 = vmax.f32 %v2455, %v2519
  %v2712 = vmax.f32 %v2520, %v2584
  %v2713 = vmax.f32 %v2521, %v2585
  %v2714 = vmax.f32 %v2522, %v2586
  %v2715 = vmax.f32 %v2523, %v2587
  %v2716 = vmax.f32 %v2524, %v2588
  %v2717 = vmax.f32 %v2525, %v2589
  %v2718 = vmax.f32 %v2526, %v2590
  %v2719 = vmax.f32 %v2527, %v2591
  %v2720 = vmax.f32 %v2528, %v2592
  %v2721 = vmax.f32 %v2529, %v2593
  %v2722 = vmax.f32 %v2530, %v2594
  %v2723 = vmax.f32 %v2531, %v2595
  %v2724 = vmax.f32 %v2532, %v2596
  %v2725 = vmax.f32 %v2533, %v2597
  %v2726 = vmax.f32 %v2534, %v2598
  %v2727 = vmax.f32 %v2535, %v2599
  %v2728 = vmax.f32 %v2536, %v2600
  %v2729 = vmax.f32 %v2537, %v2601
  %v2730 = vmax.f32 %v2538, %v2602
  %v2731 = vmax.f32 %v2539, %v2603
  %v2732 = vmax.f32 %v2540, %v2604
  %v2733 = vmax.f32 %v2541, %v2605
  %v2734 = vmax.f32 %v2542, %v2606
  %v2735 = vmax.f32 %v2543, %v2607
  %v2736 = vmax.f32 %v2544, %v2608
  %v2737 = vmax.f32 %v2545, %v2609
  %v2738 = vmax.f32 %v2546, %v2610
  %v2739 = vmax.f32 %v2547, %v2611
  %v2740 = vmax.f32 %v2548, %v2612
  %v2741 = vmax.f32 %v2549, %v2613
  %v2742 = vmax.f32 %v2550, %v2614
  %v2743 = vmax.f32 %v2551, %v2615
  %v2744 = vmax.f32 %v2552, %v2616
  %v2745 = vmax.f32 %v2553, %v2617
  %v2746 = vmax.f32 %v2554, %v2618
  %v2747 = vmax.f32 %v2555, %v2619
  %v2748 = vmax.f32 %v2556, %v2620
  %v2749 = vmax.f32 %v2557, %v2621
  %v2750 = vmax.f32 %v2558, %v2622
  %v2751 = vmax.f32 %v2559, %v2623
  %v2752 = vmax.f32 %v2560, %v2624
  %v2753 = vmax.f32 %v2561, %v2625
  %v2754 = vmax.f32 %v2562, %v2626
  %v2755 = vmax.f32 %v2563, %v2627
  %v2756 = vmax.f32 %v2564, %v2628
  %v2757 = vmax.f32 %v2565, %v2629
  %v2758 = vmax.f32 %v2566, %v2630
  %v2759 = vmax.f32 %v2567, %v2631
  %v2760 = vmax.f32 %v2568, %v2632
  %v2761 = vmax.f32 %v2569, %v2633
  %v2762 = vmax.f32 %v2570, %v2634
  %v2763 = vmax.f32 %v2571, %v2635
  %v2764 = vmax.f32 %v2572, %v2636
  %v2765 = vmax.f32 %v2573, %v2637
  %v2766 = vmax.f32 %v2574, %v2638
  %v2767 = vmax.f32 %v2575, %v2639
  %v2768 = vmax.f32 %v2576, %v2640
  %v2769 = vmax.f32 %v2577, %v2641
  %v2770 = vmax.f32 %v2578, %v2642
  %v2771 = vmax.f32 %v2579, %v2643
  %v2772 = vmax.f32 %v2580, %v2644
  %v2773 = vmax.f32 %v2581, %v2645
  %v2774 = vmax.f32 %v2582, %v2646
  %v2775 = vmax.f32 %v2583, %v2647
  %v2776 = vmax.f32 %v2648, %v2712
  %v2777 = vmax.f32 %v2649, %v2713
  %v2778 = vmax.f32 %v2650, %v2714
  %v2779 = vmax.f32 %v2651, %v2715
  %v2780 = vmax.f32 %v2652, %v2716
  %v2781 = vmax.f32 %v2653, %v2717
  %v2782 = vmax.f32 %v2654, %v2718
  %v2783 = vmax.f32 %v2655, %v2719
  %v2784 = vmax.f32 %v2656, %v2720
  %v2785 = vmax.f32 %v2657, %v2721
  %v2786 = vmax.f32 %v2658, %v2722
  %v2787 = vmax.f32 %v2659, %v2723
  %v2788 = vmax.f32 %v2660, %v2724
  %v2789 = vmax.f32 %v2661, %v2725
  %v2790 = vmax.f32 %v2662, %v2726
  %v2791 = vmax.f32 %v2663, %v2727
  %v2792 = vmax.f32 %v2664, %v2728
  %v2793 = vmax.f32 %v2665, %v2729
  %v2794 = vmax.f32 %v2666, %v2730
  %v2795 = vmax.f32 %v2667, %v2731
  %v2796 = vmax.f32 %v2668, %v2732
  %v2797 = vmax.f32 %v2669, %v2733
  %v2798 = vmax.f32 %v2670, %v2734
  %v2799 = vmax.f32 %v2671, %v2735
  %v2800 = vmax.f32 %v2672, %v2736
  %v2801 = vmax.f32 %v2673, %v2737
  %v2802 = vmax.f32 %v2674, %v2738
  %v2803 = vmax.f32 %v2675, %v2739
  %v2804 = vmax.f32 %v2676, %v2740
  %v2805 = vmax.f32 %v2677, %v2741
  %v2806 = vmax.f32 %v2678, %v2742
  %v2807 = vmax.f32 %v2679, %v2743
  %v2808 = vmax.f32 %v2680, %v2744
  %v2809 = vmax.f32 %v2681, %v2745
  %v2810 = vmax.f32 %v2682, %v2746
  %v2811 = vmax.f32 %v2683, %v2747
  %v2812 = vmax.f32 %v2684, %v2748
  %v2813 = vmax.f32 %v2685, %v2749
  %v2814 = vmax.f32 %v2686, %v2750
  %v2815 = vmax.f32 %v2687, %v2751
  %v2816 = vmax.f32 %v2688, %v2752
  %v2817 = vmax.f32 %v2689, %v2753
  %v2818 = vmax.f32 %v2690, %v2754
  %v2819 = vmax.f32 %v2691, %v2755
  %v2820 = vmax.f32 %v2692, %v2756
  %v2821 = vmax.f32 %v2693, %v2757
  %v2822 = vmax.f32 %v2694, %v2758
  %v2823 = vmax.f32 %v2695, %v2759
  %v2824 = vmax.f32 %v2696, %v2760
  %v2825 = vmax.f32 %v2697, %v2761
  %v2826 = vmax.f32 %v2698, %v2762
  %v2827 = vmax.f32 %v2699, %v2763
  %v2828 = vmax.f32 %v2700, %v2764
  %v2829 = vmax.f32 %v2701, %v2765
  %v2830 = vmax.f32 %v2702, %v2766
  %v2831 = vmax.f32 %v2703, %v2767
  %v2832 = vmax.f32 %v2704, %v2768
  %v2833 = vmax.f32 %v2705, %v2769
  %v2834 = vmax.f32 %v2706, %v2770
  %v2835 = vmax.f32 %v2707, %v2771
  %v2836 = vmax.f32 %v2708, %v2772
  %v2837 = vmax.f32 %v2709, %v2773
  %v2838 = vmax.f32 %v2710, %v2774
  %v2839 = vmax.f32 %v2711, %v2775
  %2840 = vst [vmem:[%s4] sm:$0xff] %v2776
  %2841 = vst [vmem:[%s4 + $0x8] sm:$0xff] %v2777
  %2842 = vst [vmem:[%s4 + $0x10] sm:$0xff] %v2778
  %2843 = vst [vmem:[%s4 + $0x18] sm:$0xff] %v2779
  %2844 = vst [vmem:[%s4 + $0x20] sm:$0xff] %v2780
  %2845 = vst [vmem:[%s4 + $0x28] sm:$0xff] %v2781
  %2846 = vst [vmem:[%s4 + $0x30] sm:$0xff] %v2782
  %2847 = vst [vmem:[%s4 + $0x38] sm:$0xff] %v2783
  %2848 = vst [vmem:[%s4 + $0x40] sm:$0xff] %v2784
  %2849 = vst [vmem:[%s4 + $0x48] sm:$0xff] %v2785
  %2850 = vst [vmem:[%s4 + $0x50] sm:$0xff] %v2786
  %2851 = vst [vmem:[%s4 + $0x58] sm:$0xff] %v2787
  %2852 = vst [vmem:[%s4 + $0x60] sm:$0xff] %v2788
  %2853 = vst [vmem:[%s4 + $0x68] sm:$0xff] %v2789
  %2854 = vst [vmem:[%s4 + $0x70] sm:$0xff] %v2790
  %2855 = vst [vmem:[%s4 + $0x78] sm:$0xff] %v2791
  %2856 = vst [vmem:[%s4 + $0x80] sm:$0xff] %v2792
  %2857 = vst [vmem:[%s4 + $0x88] sm:$0xff] %v2793
  %2858 = vst [vmem:[%s4 + $0x90] sm:$0xff] %v2794
  %2859 = vst [vmem:[%s4 + $0x98] sm:$0xff] %v2795
  %2860 = vst [vmem:[%s4 + $0xa0] sm:$0xff] %v2796
  %2861 = vst [vmem:[%s4 + $0xa8] sm:$0xff] %v2797
  %2862 = vst [vmem:[%s4 + $0xb0] sm:$0xff] %v2798
  %2863 = vst [vmem:[%s4 + $0xb8] sm:$0xff] %v2799
  %2864 = vst [vmem:[%s4 + $0xc0] sm:$0xff] %v2800
  %2865 = vst [vmem:[%s4 + $0xc8] sm:$0xff] %v2801
  %2866 = vst [vmem:[%s4 + $0xd0] sm:$0xff] %v2802
  %2867 = vst [vmem:[%s4 + $0xd8] sm:$0xff] %v2803
  %2868 = vst [vmem:[%s4 + $0xe0] sm:$0xff] %v2804
  %2869 = vst [vmem:[%s4 + $0xe8] sm:$0xff] %v2805
  %2870 = vst [vmem:[%s4 + $0xf0] sm:$0xff] %v2806
  %2871 = vst [vmem:[%s4 + $0xf8] sm:$0xff] %v2807
  %2872 = vst [vmem:[%s4 + $0x100] sm:$0xff] %v2808
  %2873 = vst [vmem:[%s4 + $0x108] sm:$0xff] %v2809
  %2874 = vst [vmem:[%s4 + $0x110] sm:$0xff] %v2810
  %2875 = vst [vmem:[%s4 + $0x118] sm:$0xff] %v2811
  %2876 = vst [vmem:[%s4 + $0x120] sm:$0xff] %v2812
  %2877 = vst [vmem:[%s4 + $0x128] sm:$0xff] %v2813
  %2878 = vst [vmem:[%s4 + $0x130] sm:$0xff] %v2814
  %2879 = vst [vmem:[%s4 + $0x138] sm:$0xff] %v2815
  %2880 = vst [vmem:[%s4 + $0x140] sm:$0xff] %v2816
  %2881 = vst [vmem:[%s4 + $0x148] sm:$0xff] %v2817
  %2882 = vst [vmem:[%s4 + $0x150] sm:$0xff] %v2818
  %2883 = vst [vmem:[%s4 + $0x158] sm:$0xff] %v2819
  %2884 = vst [vmem:[%s4 + $0x160] sm:$0xff] %v2820
  %2885 = vst [vmem:[%s4 + $0x168] sm:$0xff] %v2821
  %2886 = vst [vmem:[%s4 + $0x170] sm:$0xff] %v2822
  %2887 = vst [vmem:[%s4 + $0x178] sm:$0xff] %v2823
  %2888 = vst [vmem:[%s4 + $0x180] sm:$0xff] %v2824
  %2889 = vst [vmem:[%s4 + $0x188] sm:$0xff] %v2825
  %2890 = vst [vmem:[%s4 + $0x190] sm:$0xff] %v2826
  %2891 = vst [vmem:[%s4 + $0x198] sm:$0xff] %v2827
  %2892 = vst [vmem:[%s4 + $0x1a0] sm:$0xff] %v2828
  %2893 = vst [vmem:[%s4 + $0x1a8] sm:$0xff] %v2829
  %2894 = vst [vmem:[%s4 + $0x1b0] sm:$0xff] %v2830
  %2895 = vst [vmem:[%s4 + $0x1b8] sm:$0xff] %v2831
  %2896 = vst [vmem:[%s4 + $0x1c0] sm:$0xff] %v2832
  %2897 = vst [vmem:[%s4 + $0x1c8] sm:$0xff] %v2833
  %2898 = vst [vmem:[%s4 + $0x1d0] sm:$0xff] %v2834
  %2899 = vst [vmem:[%s4 + $0x1d8] sm:$0xff] %v2835
  %2900 = vst [vmem:[%s4 + $0x1e0] sm:$0xff] %v2836
  %2901 = vst [vmem:[%s4 + $0x1e8] sm:$0xff] %v2837
  %2902 = vst [vmem:[%s4 + $0x1f0] sm:$0xff] %v2838
  %2903 = vst [vmem:[%s4 + $0x1f8] sm:$0xff] %v2839
  // Predicated region
  $region18: #{cifar10_forward.3} parent=0 // pred_check
    _
  $region19: #{cifar10_forward.3} parent=0 // pred_check_branch
    %2905 = sbr.rel (0) target = $region21
  $region20: #{cifar10_forward.3} parent=0 // pred_region
    _
  $region21: #{cifar10_forward.3} parent=0 // pred_fallthru
    _
  // Predicated region
  $region22: #{cifar10_forward.3} parent=0 // pred_check
    _
  $region23: #{cifar10_forward.3} parent=0 // pred_check_branch
    %2907 = sbr.rel (0) target = $region25
  $region24: #{cifar10_forward.3} parent=0 // pred_region
    _
  $region25: #{cifar10_forward.3} parent=0 // pred_fallthru
    _

// kernel: cifar10_forward.4
$region0: #{cifar10_forward.4}
  #allocation0 [shape = 'u32[]', space=smem, size = 0x4, offset = 0x4, fixed_abs, tag = 'smem constant byte address 0x4 - core index']
  #allocation1 [shape = 'u32[144,128]{1,0:T(1,128)}', space=vmem, size = 0x12000, scoped, tag = 'internal scratch']
  %s0 = inlined_call_operand.vmem [shape: f32[4,2,64,288], index: 0, kind: input, shape index: {}]
  %s1 = inlined_call_operand.vmem [shape: bf16[288,128], index: 1, kind: input, shape index: {}]
  %s2 = inlined_call_operand.vmem [shape: f32[1,128], index: 2, kind: input, shape index: {}]
  %s3 = inlined_call_operand.vmem [shape: f32[1,128], index: 3, kind: input, shape index: {}]
  %s4 = inlined_call_operand.vmem [shape: f32[128,128], index: 4, kind: output, shape index: {}]
  %s5 = sld [smem:[#allocation0]]
  $region26: #{cifar10_forward.4} parent=0
    _
  %s7 = ssub.s32 1, %s5
  %s8 = scalar_select 0, %s7, %s5
  // Predicated region
  $region2: #{cifar10_forward.4} parent=0 // pred_check
    _
  $region3: #{cifar10_forward.4} parent=0 // pred_check_branch
    %10 = sbr.rel (0) target = $region5
  $region4: #{cifar10_forward.4} parent=0 // pred_region
    _
  $region5: #{cifar10_forward.4} parent=0 // pred_fallthru
    _
  // Predicated region
  $region6: #{cifar10_forward.4} parent=0 // pred_check
    _
  $region7: #{cifar10_forward.4} parent=0 // pred_check_branch
    %12 = sbr.rel (0) target = $region9
  $region8: #{cifar10_forward.4} parent=0 // pred_region
    _
  $region9: #{cifar10_forward.4} parent=0 // pred_fallthru
    _
  // Predicated region
  $region10: #{cifar10_forward.4} parent=0 // pred_check
    _
  $region11: #{cifar10_forward.4} parent=0 // pred_check_branch
    %14 = sbr.rel (0) target = $region13
  $region12: #{cifar10_forward.4} parent=0 // pred_region
    _
  $region13: #{cifar10_forward.4} parent=0 // pred_fallthru
    _
  // Predicated region
  $region14: #{cifar10_forward.4} parent=0 // pred_check
    _
  $region15: #{cifar10_forward.4} parent=0 // pred_check_branch
    %16 = sbr.rel (0) target = $region17
  $region16: #{cifar10_forward.4} parent=0 // pred_region
    _
  $region17: #{cifar10_forward.4} parent=0 // pred_fallthru
    _
  %v18 = vld [vmem:[%s0] sm:$0xff]
  %v19 = vld [vmem:[%s0 + $0x8] sm:$0xff]
  %v20 = vld [vmem:[%s0 + $0x10] sm:$0xff]
  %v21 = vld [vmem:[%s0 + $0x18] sm:$0xff]
  %v22 = vld [vmem:[%s0 + $0x20] sm:$0xff]
  %v23 = vld [vmem:[%s0 + $0x28] sm:$0xff]
  %v24 = vld [vmem:[%s0 + $0x30] sm:$0xff]
  %v25 = vld [vmem:[%s0 + $0x38] sm:$0xff]
  %v26 = vld [vmem:[%s0 + $0x40] sm:$0xff]
  %v27 = vld [vmem:[%s0 + $0x48] sm:$0xff]
  %v28 = vld [vmem:[%s0 + $0x50] sm:$0xff]
  %v29 = vld [vmem:[%s0 + $0x58] sm:$0xff]
  %v30 = vld [vmem:[%s0 + $0x60] sm:$0xff]
  %v31 = vld [vmem:[%s0 + $0x68] sm:$0xff]
  %v32 = vld [vmem:[%s0 + $0x70] sm:$0xff]
  %v33 = vld [vmem:[%s0 + $0x78] sm:$0xff]
  %v34 = vld [vmem:[%s0 + $0x80] sm:$0xff]
  %v35 = vld [vmem:[%s0 + $0x88] sm:$0xff]
  %v36 = vld [vmem:[%s0 + $0x90] sm:$0xff]
  %v37 = vld [vmem:[%s0 + $0x98] sm:$0xff]
  %v38 = vld [vmem:[%s0 + $0xa0] sm:$0xff]
  %v39 = vld [vmem:[%s0 + $0xa8] sm:$0xff]
  %v40 = vld [vmem:[%s0 + $0xb0] sm:$0xff]
  %v41 = vld [vmem:[%s0 + $0xb8] sm:$0xff]
  %v42 = vld [vmem:[%s0 + $0xc0] sm:$0xff]
  %v43 = vld [vmem:[%s0 + $0xc8] sm:$0xff]
  %v44 = vld [vmem:[%s0 + $0xd0] sm:$0xff]
  %v45 = vld [vmem:[%s0 + $0xd8] sm:$0xff]
  %v46 = vld [vmem:[%s0 + $0xe0] sm:$0xff]
  %v47 = vld [vmem:[%s0 + $0xe8] sm:$0xff]
  %v48 = vld [vmem:[%s0 + $0xf0] sm:$0xff]
  %v49 = vld [vmem:[%s0 + $0xf8] sm:$0xff]
  %v50 = vld [vmem:[%s0 + $0x100] sm:$0xff]
  %v51 = vld [vmem:[%s0 + $0x108] sm:$0xff]
  %v52 = vld [vmem:[%s0 + $0x110] sm:$0xff]
  %v53 = vld [vmem:[%s0 + $0x118] sm:$0xff]
  %v54 = vld [vmem:[%s0 + $0x120] sm:$0xff]
  %v55 = vld [vmem:[%s0 + $0x128] sm:$0xff]
  %v56 = vld [vmem:[%s0 + $0x130] sm:$0xff]
  %v57 = vld [vmem:[%s0 + $0x138] sm:$0xff]
  %v58 = vld [vmem:[%s0 + $0x140] sm:$0xff]
  %v59 = vld [vmem:[%s0 + $0x148] sm:$0xff]
  %v60 = vld [vmem:[%s0 + $0x150] sm:$0xff]
  %v61 = vld [vmem:[%s0 + $0x158] sm:$0xff]
  %v62 = vld [vmem:[%s0 + $0x160] sm:$0xff]
  %v63 = vld [vmem:[%s0 + $0x168] sm:$0xff]
  %v64 = vld [vmem:[%s0 + $0x170] sm:$0xff]
  %v65 = vld [vmem:[%s0 + $0x178] sm:$0xff]
  %v66 = vld [vmem:[%s0 + $0x180] sm:$0xff]
  %v67 = vld [vmem:[%s0 + $0x188] sm:$0xff]
  %v68 = vld [vmem:[%s0 + $0x190] sm:$0xff]
  %v69 = vld [vmem:[%s0 + $0x198] sm:$0xff]
  %v70 = vld [vmem:[%s0 + $0x1a0] sm:$0xff]
  %v71 = vld [vmem:[%s0 + $0x1a8] sm:$0xff]
  %v72 = vld [vmem:[%s0 + $0x1b0] sm:$0xff]
  %v73 = vld [vmem:[%s0 + $0x1b8] sm:$0xff]
  %v74 = vld [vmem:[%s0 + $0x1c0] sm:$0xff]
  %v75 = vld [vmem:[%s0 + $0x1c8] sm:$0xff]
  %v76 = vld [vmem:[%s0 + $0x1d0] sm:$0xff]
  %v77 = vld [vmem:[%s0 + $0x1d8] sm:$0xff]
  %v78 = vld [vmem:[%s0 + $0x1e0] sm:$0xff]
  %v79 = vld [vmem:[%s0 + $0x1e8] sm:$0xff]
  %v80 = vld [vmem:[%s0 + $0x1f0] sm:$0xff]
  %v81 = vld [vmem:[%s0 + $0x1f8] sm:$0xff]
  %v82 = vld [vmem:[%s0 + $0x200] sm:$0xff]
  %v83 = vld [vmem:[%s0 + $0x208] sm:$0xff]
  %v84 = vld [vmem:[%s0 + $0x210] sm:$0xff]
  %v85 = vld [vmem:[%s0 + $0x218] sm:$0xff]
  %v86 = vld [vmem:[%s0 + $0x220] sm:$0xff]
  %v87 = vld [vmem:[%s0 + $0x228] sm:$0xff]
  %v88 = vld [vmem:[%s0 + $0x230] sm:$0xff]
  %v89 = vld [vmem:[%s0 + $0x238] sm:$0xff]
  %v90 = vld [vmem:[%s0 + $0x240] sm:$0xff]
  %v91 = vld [vmem:[%s0 + $0x248] sm:$0xff]
  %v92 = vld [vmem:[%s0 + $0x250] sm:$0xff]
  %v93 = vld [vmem:[%s0 + $0x258] sm:$0xff]
  %v94 = vld [vmem:[%s0 + $0x260] sm:$0xff]
  %v95 = vld [vmem:[%s0 + $0x268] sm:$0xff]
  %v96 = vld [vmem:[%s0 + $0x270] sm:$0xff]
  %v97 = vld [vmem:[%s0 + $0x278] sm:$0xff]
  %v98 = vld [vmem:[%s0 + $0x280] sm:$0xff]
  %v99 = vld [vmem:[%s0 + $0x288] sm:$0xff]
  %v100 = vld [vmem:[%s0 + $0x290] sm:$0xff]
  %v101 = vld [vmem:[%s0 + $0x298] sm:$0xff]
  %v102 = vld [vmem:[%s0 + $0x2a0] sm:$0xff]
  %v103 = vld [vmem:[%s0 + $0x2a8] sm:$0xff]
  %v104 = vld [vmem:[%s0 + $0x2b0] sm:$0xff]
  %v105 = vld [vmem:[%s0 + $0x2b8] sm:$0xff]
  %v106 = vld [vmem:[%s0 + $0x2c0] sm:$0xff]
  %v107 = vld [vmem:[%s0 + $0x2c8] sm:$0xff]
  %v108 = vld [vmem:[%s0 + $0x2d0] sm:$0xff]
  %v109 = vld [vmem:[%s0 + $0x2d8] sm:$0xff]
  %v110 = vld [vmem:[%s0 + $0x2e0] sm:$0xff]
  %v111 = vld [vmem:[%s0 + $0x2e8] sm:$0xff]
  %v112 = vld [vmem:[%s0 + $0x2f0] sm:$0xff]
  %v113 = vld [vmem:[%s0 + $0x2f8] sm:$0xff]
  %v114 = vld [vmem:[%s0 + $0x300] sm:$0xff]
  %v115 = vld [vmem:[%s0 + $0x308] sm:$0xff]
  %v116 = vld [vmem:[%s0 + $0x310] sm:$0xff]
  %v117 = vld [vmem:[%s0 + $0x318] sm:$0xff]
  %v118 = vld [vmem:[%s0 + $0x320] sm:$0xff]
  %v119 = vld [vmem:[%s0 + $0x328] sm:$0xff]
  %v120 = vld [vmem:[%s0 + $0x330] sm:$0xff]
  %v121 = vld [vmem:[%s0 + $0x338] sm:$0xff]
  %v122 = vld [vmem:[%s0 + $0x340] sm:$0xff]
  %v123 = vld [vmem:[%s0 + $0x348] sm:$0xff]
  %v124 = vld [vmem:[%s0 + $0x350] sm:$0xff]
  %v125 = vld [vmem:[%s0 + $0x358] sm:$0xff]
  %v126 = vld [vmem:[%s0 + $0x360] sm:$0xff]
  %v127 = vld [vmem:[%s0 + $0x368] sm:$0xff]
  %v128 = vld [vmem:[%s0 + $0x370] sm:$0xff]
  %v129 = vld [vmem:[%s0 + $0x378] sm:$0xff]
  %v130 = vld [vmem:[%s0 + $0x380] sm:$0xff]
  %v131 = vld [vmem:[%s0 + $0x388] sm:$0xff]
  %v132 = vld [vmem:[%s0 + $0x390] sm:$0xff]
  %v133 = vld [vmem:[%s0 + $0x398] sm:$0xff]
  %v134 = vld [vmem:[%s0 + $0x3a0] sm:$0xff]
  %v135 = vld [vmem:[%s0 + $0x3a8] sm:$0xff]
  %v136 = vld [vmem:[%s0 + $0x3b0] sm:$0xff]
  %v137 = vld [vmem:[%s0 + $0x3b8] sm:$0xff]
  %v138 = vld [vmem:[%s0 + $0x3c0] sm:$0xff]
  %v139 = vld [vmem:[%s0 + $0x3c8] sm:$0xff]
  %v140 = vld [vmem:[%s0 + $0x3d0] sm:$0xff]
  %v141 = vld [vmem:[%s0 + $0x3d8] sm:$0xff]
  %v142 = vld [vmem:[%s0 + $0x3e0] sm:$0xff]
  %v143 = vld [vmem:[%s0 + $0x3e8] sm:$0xff]
  %v144 = vld [vmem:[%s0 + $0x3f0] sm:$0xff]
  %v145 = vld [vmem:[%s0 + $0x3f8] sm:$0xff]
  %v146 = vld [vmem:[%s0 + $0x400] sm:$0xff]
  %v147 = vld [vmem:[%s0 + $0x408] sm:$0xff]
  %v148 = vld [vmem:[%s0 + $0x410] sm:$0xff]
  %v149 = vld [vmem:[%s0 + $0x418] sm:$0xff]
  %v150 = vld [vmem:[%s0 + $0x420] sm:$0xff]
  %v151 = vld [vmem:[%s0 + $0x428] sm:$0xff]
  %v152 = vld [vmem:[%s0 + $0x430] sm:$0xff]
  %v153 = vld [vmem:[%s0 + $0x438] sm:$0xff]
  %v154 = vld [vmem:[%s0 + $0x440] sm:$0xff]
  %v155 = vld [vmem:[%s0 + $0x448] sm:$0xff]
  %v156 = vld [vmem:[%s0 + $0x450] sm:$0xff]
  %v157 = vld [vmem:[%s0 + $0x458] sm:$0xff]
  %v158 = vld [vmem:[%s0 + $0x460] sm:$0xff]
  %v159 = vld [vmem:[%s0 + $0x468] sm:$0xff]
  %v160 = vld [vmem:[%s0 + $0x470] sm:$0xff]
  %v161 = vld [vmem:[%s0 + $0x478] sm:$0xff]
  %v162 = vld [vmem:[%s0 + $0x480] sm:$0xff]
  %v163 = vld [vmem:[%s0 + $0x488] sm:$0xff]
  %v164 = vld [vmem:[%s0 + $0x490] sm:$0xff]
  %v165 = vld [vmem:[%s0 + $0x498] sm:$0xff]
  %v166 = vld [vmem:[%s0 + $0x4a0] sm:$0xff]
  %v167 = vld [vmem:[%s0 + $0x4a8] sm:$0xff]
  %v168 = vld [vmem:[%s0 + $0x4b0] sm:$0xff]
  %v169 = vld [vmem:[%s0 + $0x4b8] sm:$0xff]
  %v170 = vld [vmem:[%s0 + $0x4c0] sm:$0xff]
  %v171 = vld [vmem:[%s0 + $0x4c8] sm:$0xff]
  %v172 = vld [vmem:[%s0 + $0x4d0] sm:$0xff]
  %v173 = vld [vmem:[%s0 + $0x4d8] sm:$0xff]
  %v174 = vld [vmem:[%s0 + $0x4e0] sm:$0xff]
  %v175 = vld [vmem:[%s0 + $0x4e8] sm:$0xff]
  %v176 = vld [vmem:[%s0 + $0x4f0] sm:$0xff]
  %v177 = vld [vmem:[%s0 + $0x4f8] sm:$0xff]
  %v178 = vld [vmem:[%s0 + $0x500] sm:$0xff]
  %v179 = vld [vmem:[%s0 + $0x508] sm:$0xff]
  %v180 = vld [vmem:[%s0 + $0x510] sm:$0xff]
  %v181 = vld [vmem:[%s0 + $0x518] sm:$0xff]
  %v182 = vld [vmem:[%s0 + $0x520] sm:$0xff]
  %v183 = vld [vmem:[%s0 + $0x528] sm:$0xff]
  %v184 = vld [vmem:[%s0 + $0x530] sm:$0xff]
  %v185 = vld [vmem:[%s0 + $0x538] sm:$0xff]
  %v186 = vld [vmem:[%s0 + $0x540] sm:$0xff]
  %v187 = vld [vmem:[%s0 + $0x548] sm:$0xff]
  %v188 = vld [vmem:[%s0 + $0x550] sm:$0xff]
  %v189 = vld [vmem:[%s0 + $0x558] sm:$0xff]
  %v190 = vld [vmem:[%s0 + $0x560] sm:$0xff]
  %v191 = vld [vmem:[%s0 + $0x568] sm:$0xff]
  %v192 = vld [vmem:[%s0 + $0x570] sm:$0xff]
  %v193 = vld [vmem:[%s0 + $0x578] sm:$0xff]
  %v194 = vld [vmem:[%s0 + $0x580] sm:$0xff]
  %v195 = vld [vmem:[%s0 + $0x588] sm:$0xff]
  %v196 = vld [vmem:[%s0 + $0x590] sm:$0xff]
  %v197 = vld [vmem:[%s0 + $0x598] sm:$0xff]
  %v198 = vld [vmem:[%s0 + $0x5a0] sm:$0xff]
  %v199 = vld [vmem:[%s0 + $0x5a8] sm:$0xff]
  %v200 = vld [vmem:[%s0 + $0x5b0] sm:$0xff]
  %v201 = vld [vmem:[%s0 + $0x5b8] sm:$0xff]
  %v202 = vld [vmem:[%s0 + $0x5c0] sm:$0xff]
  %v203 = vld [vmem:[%s0 + $0x5c8] sm:$0xff]
  %v204 = vld [vmem:[%s0 + $0x5d0] sm:$0xff]
  %v205 = vld [vmem:[%s0 + $0x5d8] sm:$0xff]
  %v206 = vld [vmem:[%s0 + $0x5e0] sm:$0xff]
  %v207 = vld [vmem:[%s0 + $0x5e8] sm:$0xff]
  %v208 = vld [vmem:[%s0 + $0x5f0] sm:$0xff]
  %v209 = vld [vmem:[%s0 + $0x5f8] sm:$0xff]
  %v210 = vpack.c.bf16 %v21, %v18
  %v211 = vpack.c.bf16 %v22, %v19
  %v212 = vpack.c.bf16 %v23, %v20
  %v213 = vpack.c.bf16 %v27, %v24
  %v214 = vpack.c.bf16 %v28, %v25
  %v215 = vpack.c.bf16 %v29, %v26
  %v216 = vpack.c.bf16 %v33, %v30
  %v217 = vpack.c.bf16 %v34, %v31
  %v218 = vpack.c.bf16 %v35, %v32
  %v219 = vpack.c.bf16 %v39, %v36
  %v220 = vpack.c.bf16 %v40, %v37
  %v221 = vpack.c.bf16 %v41, %v38
  %v222 = vpack.c.bf16 %v45, %v42
  %v223 = vpack.c.bf16 %v46, %v43
  %v224 = vpack.c.bf16 %v47, %v44
  %v225 = vpack.c.bf16 %v51, %v48
  %v226 = vpack.c.bf16 %v52, %v49
  %v227 = vpack.c.bf16 %v53, %v50
  %v228 = vpack.c.bf16 %v57, %v54
  %v229 = vpack.c.bf16 %v58, %v55
  %v230 = vpack.c.bf16 %v59, %v56
  %v231 = vpack.c.bf16 %v63, %v60
  %v232 = vpack.c.bf16 %v64, %v61
  %v233 = vpack.c.bf16 %v65, %v62
  %v234 = vpack.c.bf16 %v69, %v66
  %v235 = vpack.c.bf16 %v70, %v67
  %v236 = vpack.c.bf16 %v71, %v68
  %v237 = vpack.c.bf16 %v75, %v72
  %v238 = vpack.c.bf16 %v76, %v73
  %v239 = vpack.c.bf16 %v77, %v74
  %v240 = vpack.c.bf16 %v81, %v78
  %v241 = vpack.c.bf16 %v82, %v79
  %v242 = vpack.c.bf16 %v83, %v80
  %v243 = vpack.c.bf16 %v87, %v84
  %v244 = vpack.c.bf16 %v88, %v85
  %v245 = vpack.c.bf16 %v89, %v86
  %v246 = vpack.c.bf16 %v93, %v90
  %v247 = vpack.c.bf16 %v94, %v91
  %v248 = vpack.c.bf16 %v95, %v92
  %v249 = vpack.c.bf16 %v99, %v96
  %v250 = vpack.c.bf16 %v100, %v97
  %v251 = vpack.c.bf16 %v101, %v98
  %v252 = vpack.c.bf16 %v105, %v102
  %v253 = vpack.c.bf16 %v106, %v103
  %v254 = vpack.c.bf16 %v107, %v104
  %v255 = vpack.c.bf16 %v111, %v108
  %v256 = vpack.c.bf16 %v112, %v109
  %v257 = vpack.c.bf16 %v113, %v110
  %v258 = vpack.c.bf16 %v117, %v114
  %v259 = vpack.c.bf16 %v118, %v115
  %v260 = vpack.c.bf16 %v119, %v116
  %v261 = vpack.c.bf16 %v123, %v120
  %v262 = vpack.c.bf16 %v124, %v121
  %v263 = vpack.c.bf16 %v125, %v122
  %v264 = vpack.c.bf16 %v129, %v126
  %v265 = vpack.c.bf16 %v130, %v127
  %v266 = vpack.c.bf16 %v131, %v128
  %v267 = vpack.c.bf16 %v135, %v132
  %v268 = vpack.c.bf16 %v136, %v133
  %v269 = vpack.c.bf16 %v137, %v134
  %v270 = vpack.c.bf16 %v141, %v138
  %v271 = vpack.c.bf16 %v142, %v139
  %v272 = vpack.c.bf16 %v143, %v140
  %v273 = vpack.c.bf16 %v147, %v144
  %v274 = vpack.c.bf16 %v148, %v145
  %v275 = vpack.c.bf16 %v149, %v146
  %v276 = vpack.c.bf16 %v153, %v150
  %v277 = vpack.c.bf16 %v154, %v151
  %v278 = vpack.c.bf16 %v155, %v152
  %v279 = vpack.c.bf16 %v159, %v156
  %v280 = vpack.c.bf16 %v160, %v157
  %v281 = vpack.c.bf16 %v161, %v158
  %v282 = vpack.c.bf16 %v165, %v162
  %v283 = vpack.c.bf16 %v166, %v163
  %v284 = vpack.c.bf16 %v167, %v164
  %v285 = vpack.c.bf16 %v171, %v168
  %v286 = vpack.c.bf16 %v172, %v169
  %v287 = vpack.c.bf16 %v173, %v170
  %v288 = vpack.c.bf16 %v177, %v174
  %v289 = vpack.c.bf16 %v178, %v175
  %v290 = vpack.c.bf16 %v179, %v176
  %v291 = vpack.c.bf16 %v183, %v180
  %v292 = vpack.c.bf16 %v184, %v181
  %v293 = vpack.c.bf16 %v185, %v182
  %v294 = vpack.c.bf16 %v189, %v186
  %v295 = vpack.c.bf16 %v190, %v187
  %v296 = vpack.c.bf16 %v191, %v188
  %v297 = vpack.c.bf16 %v195, %v192
  %v298 = vpack.c.bf16 %v196, %v193
  %v299 = vpack.c.bf16 %v197, %v194
  %v300 = vpack.c.bf16 %v201, %v198
  %v301 = vpack.c.bf16 %v202, %v199
  %v302 = vpack.c.bf16 %v203, %v200
  %v303 = vpack.c.bf16 %v207, %v204
  %v304 = vpack.c.bf16 %v208, %v205
  %v305 = vpack.c.bf16 %v209, %v206
  %v306 = vld [vmem:[%s1] sm:$0xf]
  %v307 = vld [vmem:[%s1 + $0x4] sm:$0xf]
  %v308 = vld [vmem:[%s1 + $0x8] sm:$0xf]
  %v309 = vld [vmem:[%s1 + $0xc] sm:$0xf]
  %v310 = vld [vmem:[%s1 + $0x10] sm:$0xf]
  %v311 = vld [vmem:[%s1 + $0x14] sm:$0xf]
  %v312 = vld [vmem:[%s1 + $0x18] sm:$0xf]
  %v313 = vld [vmem:[%s1 + $0x1c] sm:$0xf]
  %v314 = vld [vmem:[%s1 + $0x20] sm:$0xf]
  %v315 = vld [vmem:[%s1 + $0x24] sm:$0xf]
  %v316 = vld [vmem:[%s1 + $0x28] sm:$0xf]
  %v317 = vld [vmem:[%s1 + $0x2c] sm:$0xf]
  %v318 = vld [vmem:[%s1 + $0x30] sm:$0xf]
  %v319 = vld [vmem:[%s1 + $0x34] sm:$0xf]
  %v320 = vld [vmem:[%s1 + $0x38] sm:$0xf]
  %v321 = vld [vmem:[%s1 + $0x3c] sm:$0xf]
  %v322 = vld [vmem:[%s1 + $0x40] sm:$0xf]
  %v323 = vld [vmem:[%s1 + $0x44] sm:$0xf]
  %v324 = vld [vmem:[%s1 + $0x48] sm:$0xf]
  %v325 = vld [vmem:[%s1 + $0x4c] sm:$0xf]
  %v326 = vld [vmem:[%s1 + $0x50] sm:$0xf]
  %v327 = vld [vmem:[%s1 + $0x54] sm:$0xf]
  %v328 = vld [vmem:[%s1 + $0x58] sm:$0xf]
  %v329 = vld [vmem:[%s1 + $0x5c] sm:$0xf]
  %v330 = vld [vmem:[%s1 + $0x60] sm:$0xf]
  %v331 = vld [vmem:[%s1 + $0x64] sm:$0xf]
  %v332 = vld [vmem:[%s1 + $0x68] sm:$0xf]
  %v333 = vld [vmem:[%s1 + $0x6c] sm:$0xf]
  %v334 = vld [vmem:[%s1 + $0x70] sm:$0xf]
  %v335 = vld [vmem:[%s1 + $0x74] sm:$0xf]
  %v336 = vld [vmem:[%s1 + $0x78] sm:$0xf]
  %v337 = vld [vmem:[%s1 + $0x7c] sm:$0xf]
  %v338 = vld [vmem:[%s1 + $0x80] sm:$0xf]
  %v339 = vld [vmem:[%s1 + $0x84] sm:$0xf]
  %v340 = vld [vmem:[%s1 + $0x88] sm:$0xf]
  %v341 = vld [vmem:[%s1 + $0x8c] sm:$0xf]
  %v378 = vunpack.c.l.b16 %v306
  %v379 = vunpack.c.l.b16 %v307
  %v380 = vunpack.c.l.b16 %v308
  %v381 = vunpack.c.l.b16 %v309
  %v382 = vunpack.c.l.b16 %v310
  %v383 = vunpack.c.l.b16 %v311
  %v384 = vunpack.c.l.b16 %v312
  %v385 = vunpack.c.l.b16 %v313
  %v386 = vunpack.c.l.b16 %v314
  %v387 = vunpack.c.l.b16 %v315
  %v388 = vunpack.c.l.b16 %v316
  %v389 = vunpack.c.l.b16 %v317
  %v390 = vunpack.c.l.b16 %v318
  %v391 = vunpack.c.l.b16 %v319
  %v392 = vunpack.c.l.b16 %v320
  %v393 = vunpack.c.l.b16 %v321
  %v394 = vunpack.c.l.b16 %v322
  %v395 = vunpack.c.l.b16 %v323
  %v396 = vunpack.c.l.b16 %v324
  %v397 = vunpack.c.l.b16 %v325
  %v398 = vunpack.c.l.b16 %v326
  %v399 = vunpack.c.l.b16 %v327
  %v400 = vunpack.c.l.b16 %v328
  %v401 = vunpack.c.l.b16 %v329
  %v402 = vunpack.c.l.b16 %v330
  %v403 = vunpack.c.l.b16 %v331
  %v404 = vunpack.c.l.b16 %v332
  %v405 = vunpack.c.l.b16 %v333
  %v406 = vunpack.c.l.b16 %v334
  %v407 = vunpack.c.l.b16 %v335
  %v408 = vunpack.c.l.b16 %v336
  %v409 = vunpack.c.l.b16 %v337
  %v410 = vunpack.c.l.b16 %v338
  %v411 = vunpack.c.l.b16 %v339
  %v412 = vunpack.c.l.b16 %v340
  %v413 = vunpack.c.l.b16 %v341
  %v414 = vpack.c.b16 %v379, %v378
  %v415 = vpack.c.b16 %v381, %v380
  %v416 = vpack.c.b16 %v383, %v382
  %v417 = vpack.c.b16 %v385, %v384
  %v418 = vpack.c.b16 %v387, %v386
  %v419 = vpack.c.b16 %v389, %v388
  %v420 = vpack.c.b16 %v391, %v390
  %v421 = vpack.c.b16 %v393, %v392
  %v422 = vpack.c.b16 %v395, %v394
  %v423 = vpack.c.b16 %v397, %v396
  %v424 = vpack.c.b16 %v399, %v398
  %v425 = vpack.c.b16 %v401, %v400
  %v426 = vpack.c.b16 %v403, %v402
  %v427 = vpack.c.b16 %v405, %v404
  %v428 = vpack.c.b16 %v407, %v406
  %v429 = vpack.c.b16 %v409, %v408
  %v430 = vpack.c.b16 %v411, %v410
  %v431 = vpack.c.b16 %v413, %v412
  %vm450 = vcmask 261120
  %v452 = vsel %vm450, %v212, 0
  %v455 = vsel %vm450, %v215, 0
  %v458 = vsel %vm450, %v218, 0
  %v461 = vsel %vm450, %v221, 0
  %v464 = vsel %vm450, %v224, 0
  %v467 = vsel %vm450, %v227, 0
  %v470 = vsel %vm450, %v230, 0
  %v473 = vsel %vm450, %v233, 0
  %v476 = vsel %vm450, %v236, 0
  %v479 = vsel %vm450, %v239, 0
  %v482 = vsel %vm450, %v242, 0
  %v485 = vsel %vm450, %v245, 0
  %v488 = vsel %vm450, %v248, 0
  %v491 = vsel %vm450, %v251, 0
  %v494 = vsel %vm450, %v254, 0
  %v497 = vsel %vm450, %v257, 0
  %v500 = vsel %vm450, %v260, 0
  %v503 = vsel %vm450, %v263, 0
  %v506 = vsel %vm450, %v266, 0
  %v509 = vsel %vm450, %v269, 0
  %v512 = vsel %vm450, %v272, 0
  %v515 = vsel %vm450, %v275, 0
  %v518 = vsel %vm450, %v278, 0
  %v521 = vsel %vm450, %v281, 0
  %v524 = vsel %vm450, %v284, 0
  %v527 = vsel %vm450, %v287, 0
  %v530 = vsel %vm450, %v290, 0
  %v533 = vsel %vm450, %v293, 0
  %v536 = vsel %vm450, %v296, 0
  %v539 = vsel %vm450, %v299, 0
  %v542 = vsel %vm450, %v302, 0
  %v545 = vsel %vm450, %v305, 0
  %547 = vmatprep.subr.bf16.mxu0 0
  %548 = vmatpush1.bf16.msra.mxu0 %v421
  %549 = vmatprep.subr.bf16.mxu0 0
  %550 = vmatpush1.bf16.msra.mxu0 %v420
  %551 = vmatprep.subr.bf16.mxu0 0
  %552 = vmatpush1.bf16.msra.mxu0 %v419
  %553 = vmatprep.subr.bf16.mxu0 0
  %554 = vmatpush1.bf16.msra.mxu0 %v418
  %555 = vmatprep.subr.bf16.mxu0 0
  %556 = vmatpush1.bf16.msra.mxu0 %v417
  %557 = vmatprep.subr.bf16.mxu0 0
  %558 = vmatpush1.bf16.msra.mxu0 %v416
  %559 = vmatprep.subr.bf16.mxu0 0
  %560 = vmatpush1.bf16.msra.mxu0 %v415
  %561 = vmatprep.subr.bf16.mxu0 0
  %562 = vmatpush1.bf16.msra.mxu0 %v414
  %563 = vmatprep.subr.bf16.mxu0 0
  %564 = vmatpush2.bf16.msra.mxu0 %v429
  %565 = vmatprep.subr.bf16.mxu0 0
  %566 = vmatpush2.bf16.msra.mxu0 %v428
  %567 = vmatprep.subr.bf16.mxu0 0
  %568 = vmatpush2.bf16.msra.mxu0 %v427
  %569 = vmatprep.subr.bf16.mxu0 0
  %570 = vmatpush2.bf16.msra.mxu0 %v426
  %571 = vmatprep.subr.bf16.mxu0 0
  %572 = vmatpush2.bf16.msra.mxu0 %v425
  %573 = vmatprep.subr.bf16.mxu0 0
  %574 = vmatpush2.bf16.msra.mxu0 %v424
  %575 = vmatprep.subr.bf16.mxu0 0
  %576 = vmatpush2.bf16.msra.mxu0 %v423
  %577 = vmatprep.subr.bf16.mxu0 0
  %578 = vmatpush2.bf16.msra.mxu0 %v422
  %579 = vmatprep.mubr.bf16.mxu0 %v211
  %580 = vmatmul.mubr.bf16.gmra.mxu0 %v210
  %v581 = vpop.f32.mrf.mxu0
  %v582 = vadd.f32 0.0, %v581
  %v583 = vpop.f32.mrf.mxu0
  %v584 = vpop.f32.mrf.mxu0
  %v585 = vadd.f32 0.0, %v584
  %v586 = vpop.f32.mrf.mxu0
  %587 = vmatprep.mubr.bf16.mxu0 %v214
  %588 = vmatmul.mubr.bf16.gmra.mxu0 %v213
  %v589 = vpop.f32.mrf.mxu0
  %v590 = vadd.f32 0.0, %v589
  %v591 = vpop.f32.mrf.mxu0
  %v592 = vpop.f32.mrf.mxu0
  %v593 = vadd.f32 0.0, %v592
  %v594 = vpop.f32.mrf.mxu0
  %595 = vmatprep.mubr.bf16.mxu0 %v217
  %596 = vmatmul.mubr.bf16.gmra.mxu0 %v216
  %v597 = vpop.f32.mrf.mxu0
  %v598 = vadd.f32 0.0, %v597
  %v599 = vpop.f32.mrf.mxu0
  %v600 = vpop.f32.mrf.mxu0
  %v601 = vadd.f32 0.0, %v600
  %v602 = vpop.f32.mrf.mxu0
  %603 = vmatprep.mubr.bf16.mxu0 %v220
  %604 = vmatmul.mubr.bf16.gmra.mxu0 %v219
  %v605 = vpop.f32.mrf.mxu0
  %v606 = vadd.f32 0.0, %v605
  %v607 = vpop.f32.mrf.mxu0
  %v608 = vpop.f32.mrf.mxu0
  %v609 = vadd.f32 0.0, %v608
  %v610 = vpop.f32.mrf.mxu0
  %611 = vmatprep.mubr.bf16.mxu0 %v223
  %612 = vmatmul.mubr.bf16.gmra.mxu0 %v222
  %v613 = vpop.f32.mrf.mxu0
  %v614 = vadd.f32 0.0, %v613
  %v615 = vpop.f32.mrf.mxu0
  %v616 = vpop.f32.mrf.mxu0
  %v617 = vadd.f32 0.0, %v616
  %v618 = vpop.f32.mrf.mxu0
  %619 = vmatprep.mubr.bf16.mxu0 %v226
  %620 = vmatmul.mubr.bf16.gmra.mxu0 %v225
  %v621 = vpop.f32.mrf.mxu0
  %v622 = vadd.f32 0.0, %v621
  %v623 = vpop.f32.mrf.mxu0
  %v624 = vpop.f32.mrf.mxu0
  %v625 = vadd.f32 0.0, %v624
  %v626 = vpop.f32.mrf.mxu0
  %627 = vmatprep.mubr.bf16.mxu0 %v229
  %628 = vmatmul.mubr.bf16.gmra.mxu0 %v228
  %v629 = vpop.f32.mrf.mxu0
  %v630 = vadd.f32 0.0, %v629
  %v631 = vpop.f32.mrf.mxu0
  %v632 = vpop.f32.mrf.mxu0
  %v633 = vadd.f32 0.0, %v632
  %v634 = vpop.f32.mrf.mxu0
  %635 = vmatprep.mubr.bf16.mxu0 %v232
  %636 = vmatmul.mubr.bf16.gmra.mxu0 %v231
  %v637 = vpop.f32.mrf.mxu0
  %v638 = vadd.f32 0.0, %v637
  %v639 = vpop.f32.mrf.mxu0
  %v640 = vpop.f32.mrf.mxu0
  %v641 = vadd.f32 0.0, %v640
  %v642 = vpop.f32.mrf.mxu0
  %643 = vmatprep.mubr.bf16.mxu0 %v235
  %644 = vmatmul.mubr.bf16.gmra.mxu0 %v234
  %v645 = vpop.f32.mrf.mxu0
  %v646 = vadd.f32 0.0, %v645
  %v647 = vpop.f32.mrf.mxu0
  %v648 = vpop.f32.mrf.mxu0
  %v649 = vadd.f32 0.0, %v648
  %v650 = vpop.f32.mrf.mxu0
  %651 = vmatprep.mubr.bf16.mxu0 %v238
  %652 = vmatmul.mubr.bf16.gmra.mxu0 %v237
  %v653 = vpop.f32.mrf.mxu0
  %v654 = vadd.f32 0.0, %v653
  %v655 = vpop.f32.mrf.mxu0
  %v656 = vpop.f32.mrf.mxu0
  %v657 = vadd.f32 0.0, %v656
  %v658 = vpop.f32.mrf.mxu0
  %659 = vmatprep.mubr.bf16.mxu0 %v241
  %660 = vmatmul.mubr.bf16.gmra.mxu0 %v240
  %v661 = vpop.f32.mrf.mxu0
  %v662 = vadd.f32 0.0, %v661
  %v663 = vpop.f32.mrf.mxu0
  %v664 = vpop.f32.mrf.mxu0
  %v665 = vadd.f32 0.0, %v664
  %v666 = vpop.f32.mrf.mxu0
  %667 = vmatprep.mubr.bf16.mxu0 %v244
  %668 = vmatmul.mubr.bf16.gmra.mxu0 %v243
  %v669 = vpop.f32.mrf.mxu0
  %v670 = vadd.f32 0.0, %v669
  %v671 = vpop.f32.mrf.mxu0
  %v672 = vpop.f32.mrf.mxu0
  %v673 = vadd.f32 0.0, %v672
  %v674 = vpop.f32.mrf.mxu0
  %675 = vmatprep.mubr.bf16.mxu0 %v247
  %676 = vmatmul.mubr.bf16.gmra.mxu0 %v246
  %v677 = vpop.f32.mrf.mxu0
  %v678 = vadd.f32 0.0, %v677
  %v679 = vpop.f32.mrf.mxu0
  %v680 = vpop.f32.mrf.mxu0
  %v681 = vadd.f32 0.0, %v680
  %v682 = vpop.f32.mrf.mxu0
  %683 = vmatprep.mubr.bf16.mxu0 %v250
  %684 = vmatmul.mubr.bf16.gmra.mxu0 %v249
  %v685 = vpop.f32.mrf.mxu0
  %v686 = vadd.f32 0.0, %v685
  %v687 = vpop.f32.mrf.mxu0
  %v688 = vpop.f32.mrf.mxu0
  %v689 = vadd.f32 0.0, %v688
  %v690 = vpop.f32.mrf.mxu0
  %691 = vmatprep.mubr.bf16.mxu0 %v253
  %692 = vmatmul.mubr.bf16.gmra.mxu0 %v252
  %v693 = vpop.f32.mrf.mxu0
  %v694 = vadd.f32 0.0, %v693
  %v695 = vpop.f32.mrf.mxu0
  %v696 = vpop.f32.mrf.mxu0
  %v697 = vadd.f32 0.0, %v696
  %v698 = vpop.f32.mrf.mxu0
  %699 = vmatprep.mubr.bf16.mxu0 %v256
  %700 = vmatmul.mubr.bf16.gmra.mxu0 %v255
  %v701 = vpop.f32.mrf.mxu0
  %v702 = vadd.f32 0.0, %v701
  %v703 = vpop.f32.mrf.mxu0
  %v704 = vpop.f32.mrf.mxu0
  %v705 = vadd.f32 0.0, %v704
  %v706 = vpop.f32.mrf.mxu0
  %707 = vmatprep.mubr.bf16.mxu0 %v259
  %708 = vmatmul.mubr.bf16.gmra.mxu0 %v258
  %v709 = vpop.f32.mrf.mxu0
  %v710 = vadd.f32 0.0, %v709
  %v711 = vpop.f32.mrf.mxu0
  %v712 = vpop.f32.mrf.mxu0
  %v713 = vadd.f32 0.0, %v712
  %v714 = vpop.f32.mrf.mxu0
  %715 = vmatprep.mubr.bf16.mxu0 %v262
  %716 = vmatmul.mubr.bf16.gmra.mxu0 %v261
  %v717 = vpop.f32.mrf.mxu0
  %v718 = vadd.f32 0.0, %v717
  %v719 = vpop.f32.mrf.mxu0
  %v720 = vpop.f32.mrf.mxu0
  %v721 = vadd.f32 0.0, %v720
  %v722 = vpop.f32.mrf.mxu0
  %723 = vmatprep.mubr.bf16.mxu0 %v265
  %724 = vmatmul.mubr.bf16.gmra.mxu0 %v264
  %v725 = vpop.f32.mrf.mxu0
  %v726 = vadd.f32 0.0, %v725
  %v727 = vpop.f32.mrf.mxu0
  %v728 = vpop.f32.mrf.mxu0
  %v729 = vadd.f32 0.0, %v728
  %v730 = vpop.f32.mrf.mxu0
  %731 = vmatprep.mubr.bf16.mxu0 %v268
  %732 = vmatmul.mubr.bf16.gmra.mxu0 %v267
  %v733 = vpop.f32.mrf.mxu0
  %v734 = vadd.f32 0.0, %v733
  %v735 = vpop.f32.mrf.mxu0
  %v736 = vpop.f32.mrf.mxu0
  %v737 = vadd.f32 0.0, %v736
  %v738 = vpop.f32.mrf.mxu0
  %739 = vmatprep.mubr.bf16.mxu0 %v271
  %740 = vmatmul.mubr.bf16.gmra.mxu0 %v270
  %v741 = vpop.f32.mrf.mxu0
  %v742 = vadd.f32 0.0, %v741
  %v743 = vpop.f32.mrf.mxu0
  %v744 = vpop.f32.mrf.mxu0
  %v745 = vadd.f32 0.0, %v744
  %v746 = vpop.f32.mrf.mxu0
  %747 = vmatprep.mubr.bf16.mxu0 %v274
  %748 = vmatmul.mubr.bf16.gmra.mxu0 %v273
  %v749 = vpop.f32.mrf.mxu0
  %v750 = vadd.f32 0.0, %v749
  %v751 = vpop.f32.mrf.mxu0
  %v752 = vpop.f32.mrf.mxu0
  %v753 = vadd.f32 0.0, %v752
  %v754 = vpop.f32.mrf.mxu0
  %755 = vmatprep.mubr.bf16.mxu0 %v277
  %756 = vmatmul.mubr.bf16.gmra.mxu0 %v276
  %v757 = vpop.f32.mrf.mxu0
  %v758 = vadd.f32 0.0, %v757
  %v759 = vpop.f32.mrf.mxu0
  %v760 = vpop.f32.mrf.mxu0
  %v761 = vadd.f32 0.0, %v760
  %v762 = vpop.f32.mrf.mxu0
  %763 = vmatprep.mubr.bf16.mxu0 %v280
  %764 = vmatmul.mubr.bf16.gmra.mxu0 %v279
  %v765 = vpop.f32.mrf.mxu0
  %v766 = vadd.f32 0.0, %v765
  %v767 = vpop.f32.mrf.mxu0
  %v768 = vpop.f32.mrf.mxu0
  %v769 = vadd.f32 0.0, %v768
  %v770 = vpop.f32.mrf.mxu0
  %771 = vmatprep.mubr.bf16.mxu0 %v283
  %772 = vmatmul.mubr.bf16.gmra.mxu0 %v282
  %v773 = vpop.f32.mrf.mxu0
  %v774 = vadd.f32 0.0, %v773
  %v775 = vpop.f32.mrf.mxu0
  %v776 = vpop.f32.mrf.mxu0
  %v777 = vadd.f32 0.0, %v776
  %v778 = vpop.f32.mrf.mxu0
  %779 = vmatprep.mubr.bf16.mxu0 %v286
  %780 = vmatmul.mubr.bf16.gmra.mxu0 %v285
  %v781 = vpop.f32.mrf.mxu0
  %v782 = vadd.f32 0.0, %v781
  %v783 = vpop.f32.mrf.mxu0
  %v784 = vpop.f32.mrf.mxu0
  %v785 = vadd.f32 0.0, %v784
  %v786 = vpop.f32.mrf.mxu0
  %787 = vmatprep.mubr.bf16.mxu0 %v289
  %788 = vmatmul.mubr.bf16.gmra.mxu0 %v288
  %v789 = vpop.f32.mrf.mxu0
  %v790 = vadd.f32 0.0, %v789
  %v791 = vpop.f32.mrf.mxu0
  %v792 = vpop.f32.mrf.mxu0
  %v793 = vadd.f32 0.0, %v792
  %v794 = vpop.f32.mrf.mxu0
  %795 = vmatprep.mubr.bf16.mxu0 %v292
  %796 = vmatmul.mubr.bf16.gmra.mxu0 %v291
  %v797 = vpop.f32.mrf.mxu0
  %v798 = vadd.f32 0.0, %v797
  %v799 = vpop.f32.mrf.mxu0
  %v800 = vpop.f32.mrf.mxu0
  %v801 = vadd.f32 0.0, %v800
  %v802 = vpop.f32.mrf.mxu0
  %803 = vmatprep.mubr.bf16.mxu0 %v295
  %804 = vmatmul.mubr.bf16.gmra.mxu0 %v294
  %v805 = vpop.f32.mrf.mxu0
  %v806 = vadd.f32 0.0, %v805
  %v807 = vpop.f32.mrf.mxu0
  %v808 = vpop.f32.mrf.mxu0
  %v809 = vadd.f32 0.0, %v808
  %v810 = vpop.f32.mrf.mxu0
  %811 = vmatprep.mubr.bf16.mxu0 %v298
  %812 = vmatmul.mubr.bf16.gmra.mxu0 %v297
  %v813 = vpop.f32.mrf.mxu0
  %v814 = vadd.f32 0.0, %v813
  %v815 = vpop.f32.mrf.mxu0
  %v816 = vpop.f32.mrf.mxu0
  %v817 = vadd.f32 0.0, %v816
  %v818 = vpop.f32.mrf.mxu0
  %819 = vmatprep.mubr.bf16.mxu0 %v301
  %820 = vmatmul.mubr.bf16.gmra.mxu0 %v300
  %v821 = vpop.f32.mrf.mxu0
  %v822 = vadd.f32 0.0, %v821
  %v823 = vpop.f32.mrf.mxu0
  %v824 = vpop.f32.mrf.mxu0
  %v825 = vadd.f32 0.0, %v824
  %v826 = vpop.f32.mrf.mxu0
  %827 = vmatprep.mubr.bf16.mxu0 %v304
  %828 = vmatmul.mubr.bf16.gmra.mxu0 %v303
  %v829 = vpop.f32.mrf.mxu0
  %v830 = vadd.f32 0.0, %v829
  %v831 = vpop.f32.mrf.mxu0
  %v832 = vpop.f32.mrf.mxu0
  %v833 = vadd.f32 0.0, %v832
  %v834 = vpop.f32.mrf.mxu0
  %835 = vdwg.mxu0
  %836 = vmatprep.subr.bf16.mxu0 0
  %837 = vmatpush1.bf16.msra.mxu0 0
  %838 = vmatprep.subr.bf16.mxu0 0
  %839 = vmatpush1.bf16.msra.mxu0 0
  %840 = vmatprep.subr.bf16.mxu0 0
  %841 = vmatpush1.bf16.msra.mxu0 0
  %842 = vmatprep.subr.bf16.mxu0 0
  %843 = vmatpush1.bf16.msra.mxu0 0
  %844 = vmatprep.subr.bf16.mxu0 0
  %845 = vmatpush1.bf16.msra.mxu0 0
  %846 = vmatprep.subr.bf16.mxu0 0
  %847 = vmatpush1.bf16.msra.mxu0 0
  %848 = vmatprep.subr.bf16.mxu0 0
  %849 = vmatpush1.bf16.msra.mxu0 %v431
  %850 = vmatprep.subr.bf16.mxu0 0
  %851 = vmatpush1.bf16.msra.mxu0 %v430
  %852 = vmatprep.subr.bf16.mxu0 0
  %853 = vmatpush2.bf16.msra.mxu0 0
  %854 = vmatprep.subr.bf16.mxu0 0
  %855 = vmatpush2.bf16.msra.mxu0 0
  %856 = vmatprep.subr.bf16.mxu0 0
  %857 = vmatpush2.bf16.msra.mxu0 0
  %858 = vmatprep.subr.bf16.mxu0 0
  %859 = vmatpush2.bf16.msra.mxu0 0
  %860 = vmatprep.subr.bf16.mxu0 0
  %861 = vmatpush2.bf16.msra.mxu0 0
  %862 = vmatprep.subr.bf16.mxu0 0
  %863 = vmatpush2.bf16.msra.mxu0 0
  %864 = vmatprep.subr.bf16.mxu0 0
  %865 = vmatpush2.bf16.msra.mxu0 0
  %866 = vmatprep.subr.bf16.mxu0 0
  %867 = vmatpush2.bf16.msra.mxu0 0
  %868 = vmatprep.mubr.bf16.mxu0 0
  %869 = vmatmul.mubr.bf16.gmra.mxu0 %v452
  %v870 = vpop.f32.mrf.mxu0
  %v871 = vadd.f32 %v582, %v870
  %v872 = vpop.f32.mrf.mxu0
  %v873 = vpop.f32.mrf.mxu0
  %v874 = vadd.f32 %v585, %v873
  %v875 = vpop.f32.mrf.mxu0
  %876 = vmatprep.mubr.bf16.mxu0 0
  %877 = vmatmul.mubr.bf16.gmra.mxu0 %v455
  %v878 = vpop.f32.mrf.mxu0
  %v879 = vadd.f32 %v590, %v878
  %v880 = vpop.f32.mrf.mxu0
  %v881 = vpop.f32.mrf.mxu0
  %v882 = vadd.f32 %v593, %v881
  %v883 = vpop.f32.mrf.mxu0
  %884 = vmatprep.mubr.bf16.mxu0 0
  %885 = vmatmul.mubr.bf16.gmra.mxu0 %v458
  %v886 = vpop.f32.mrf.mxu0
  %v887 = vadd.f32 %v598, %v886
  %v888 = vpop.f32.mrf.mxu0
  %v889 = vpop.f32.mrf.mxu0
  %v890 = vadd.f32 %v601, %v889
  %v891 = vpop.f32.mrf.mxu0
  %892 = vmatprep.mubr.bf16.mxu0 0
  %893 = vmatmul.mubr.bf16.gmra.mxu0 %v461
  %v894 = vpop.f32.mrf.mxu0
  %v895 = vadd.f32 %v606, %v894
  %v896 = vpop.f32.mrf.mxu0
  %v897 = vpop.f32.mrf.mxu0
  %v898 = vadd.f32 %v609, %v897
  %v899 = vpop.f32.mrf.mxu0
  %900 = vmatprep.mubr.bf16.mxu0 0
  %901 = vmatmul.mubr.bf16.gmra.mxu0 %v464
  %v902 = vpop.f32.mrf.mxu0
  %v903 = vadd.f32 %v614, %v902
  %v904 = vpop.f32.mrf.mxu0
  %v905 = vpop.f32.mrf.mxu0
  %v906 = vadd.f32 %v617, %v905
  %v907 = vpop.f32.mrf.mxu0
  %908 = vmatprep.mubr.bf16.mxu0 0
  %909 = vmatmul.mubr.bf16.gmra.mxu0 %v467
  %v910 = vpop.f32.mrf.mxu0
  %v911 = vadd.f32 %v622, %v910
  %v912 = vpop.f32.mrf.mxu0
  %v913 = vpop.f32.mrf.mxu0
  %v914 = vadd.f32 %v625, %v913
  %v915 = vpop.f32.mrf.mxu0
  %916 = vmatprep.mubr.bf16.mxu0 0
  %917 = vmatmul.mubr.bf16.gmra.mxu0 %v470
  %v918 = vpop.f32.mrf.mxu0
  %v919 = vadd.f32 %v630, %v918
  %v920 = vpop.f32.mrf.mxu0
  %v921 = vpop.f32.mrf.mxu0
  %v922 = vadd.f32 %v633, %v921
  %v923 = vpop.f32.mrf.mxu0
  %924 = vmatprep.mubr.bf16.mxu0 0
  %925 = vmatmul.mubr.bf16.gmra.mxu0 %v473
  %v926 = vpop.f32.mrf.mxu0
  %v927 = vadd.f32 %v638, %v926
  %v928 = vpop.f32.mrf.mxu0
  %v929 = vpop.f32.mrf.mxu0
  %v930 = vadd.f32 %v641, %v929
  %v931 = vpop.f32.mrf.mxu0
  %932 = vmatprep.mubr.bf16.mxu0 0
  %933 = vmatmul.mubr.bf16.gmra.mxu0 %v476
  %v934 = vpop.f32.mrf.mxu0
  %v935 = vadd.f32 %v646, %v934
  %v936 = vpop.f32.mrf.mxu0
  %v937 = vpop.f32.mrf.mxu0
  %v938 = vadd.f32 %v649, %v937
  %v939 = vpop.f32.mrf.mxu0
  %940 = vmatprep.mubr.bf16.mxu0 0
  %941 = vmatmul.mubr.bf16.gmra.mxu0 %v479
  %v942 = vpop.f32.mrf.mxu0
  %v943 = vadd.f32 %v654, %v942
  %v944 = vpop.f32.mrf.mxu0
  %v945 = vpop.f32.mrf.mxu0
  %v946 = vadd.f32 %v657, %v945
  %v947 = vpop.f32.mrf.mxu0
  %948 = vmatprep.mubr.bf16.mxu0 0
  %949 = vmatmul.mubr.bf16.gmra.mxu0 %v482
  %v950 = vpop.f32.mrf.mxu0
  %v951 = vadd.f32 %v662, %v950
  %v952 = vpop.f32.mrf.mxu0
  %v953 = vpop.f32.mrf.mxu0
  %v954 = vadd.f32 %v665, %v953
  %v955 = vpop.f32.mrf.mxu0
  %956 = vmatprep.mubr.bf16.mxu0 0
  %957 = vmatmul.mubr.bf16.gmra.mxu0 %v485
  %v958 = vpop.f32.mrf.mxu0
  %v959 = vadd.f32 %v670, %v958
  %v960 = vpop.f32.mrf.mxu0
  %v961 = vpop.f32.mrf.mxu0
  %v962 = vadd.f32 %v673, %v961
  %v963 = vpop.f32.mrf.mxu0
  %964 = vmatprep.mubr.bf16.mxu0 0
  %965 = vmatmul.mubr.bf16.gmra.mxu0 %v488
  %v966 = vpop.f32.mrf.mxu0
  %v967 = vadd.f32 %v678, %v966
  %v968 = vpop.f32.mrf.mxu0
  %v969 = vpop.f32.mrf.mxu0
  %v970 = vadd.f32 %v681, %v969
  %v971 = vpop.f32.mrf.mxu0
  %972 = vmatprep.mubr.bf16.mxu0 0
  %973 = vmatmul.mubr.bf16.gmra.mxu0 %v491
  %v974 = vpop.f32.mrf.mxu0
  %v975 = vadd.f32 %v686, %v974
  %v976 = vpop.f32.mrf.mxu0
  %v977 = vpop.f32.mrf.mxu0
  %v978 = vadd.f32 %v689, %v977
  %v979 = vpop.f32.mrf.mxu0
  %980 = vmatprep.mubr.bf16.mxu0 0
  %981 = vmatmul.mubr.bf16.gmra.mxu0 %v494
  %v982 = vpop.f32.mrf.mxu0
  %v983 = vadd.f32 %v694, %v982
  %v984 = vpop.f32.mrf.mxu0
  %v985 = vpop.f32.mrf.mxu0
  %v986 = vadd.f32 %v697, %v985
  %v987 = vpop.f32.mrf.mxu0
  %988 = vmatprep.mubr.bf16.mxu0 0
  %989 = vmatmul.mubr.bf16.gmra.mxu0 %v497
  %v990 = vpop.f32.mrf.mxu0
  %v991 = vadd.f32 %v702, %v990
  %v992 = vpop.f32.mrf.mxu0
  %v993 = vpop.f32.mrf.mxu0
  %v994 = vadd.f32 %v705, %v993
  %v995 = vpop.f32.mrf.mxu0
  %996 = vmatprep.mubr.bf16.mxu0 0
  %997 = vmatmul.mubr.bf16.gmra.mxu0 %v500
  %v998 = vpop.f32.mrf.mxu0
  %v999 = vadd.f32 %v710, %v998
  %v1000 = vpop.f32.mrf.mxu0
  %v1001 = vpop.f32.mrf.mxu0
  %v1002 = vadd.f32 %v713, %v1001
  %v1003 = vpop.f32.mrf.mxu0
  %1004 = vmatprep.mubr.bf16.mxu0 0
  %1005 = vmatmul.mubr.bf16.gmra.mxu0 %v503
  %v1006 = vpop.f32.mrf.mxu0
  %v1007 = vadd.f32 %v718, %v1006
  %v1008 = vpop.f32.mrf.mxu0
  %v1009 = vpop.f32.mrf.mxu0
  %v1010 = vadd.f32 %v721, %v1009
  %v1011 = vpop.f32.mrf.mxu0
  %1012 = vmatprep.mubr.bf16.mxu0 0
  %1013 = vmatmul.mubr.bf16.gmra.mxu0 %v506
  %v1014 = vpop.f32.mrf.mxu0
  %v1015 = vadd.f32 %v726, %v1014
  %v1016 = vpop.f32.mrf.mxu0
  %v1017 = vpop.f32.mrf.mxu0
  %v1018 = vadd.f32 %v729, %v1017
  %v1019 = vpop.f32.mrf.mxu0
  %1020 = vmatprep.mubr.bf16.mxu0 0
  %1021 = vmatmul.mubr.bf16.gmra.mxu0 %v509
  %v1022 = vpop.f32.mrf.mxu0
  %v1023 = vadd.f32 %v734, %v1022
  %v1024 = vpop.f32.mrf.mxu0
  %v1025 = vpop.f32.mrf.mxu0
  %v1026 = vadd.f32 %v737, %v1025
  %v1027 = vpop.f32.mrf.mxu0
  %1028 = vmatprep.mubr.bf16.mxu0 0
  %1029 = vmatmul.mubr.bf16.gmra.mxu0 %v512
  %v1030 = vpop.f32.mrf.mxu0
  %v1031 = vadd.f32 %v742, %v1030
  %v1032 = vpop.f32.mrf.mxu0
  %v1033 = vpop.f32.mrf.mxu0
  %v1034 = vadd.f32 %v745, %v1033
  %v1035 = vpop.f32.mrf.mxu0
  %1036 = vmatprep.mubr.bf16.mxu0 0
  %1037 = vmatmul.mubr.bf16.gmra.mxu0 %v515
  %v1038 = vpop.f32.mrf.mxu0
  %v1039 = vadd.f32 %v750, %v1038
  %v1040 = vpop.f32.mrf.mxu0
  %v1041 = vpop.f32.mrf.mxu0
  %v1042 = vadd.f32 %v753, %v1041
  %v1043 = vpop.f32.mrf.mxu0
  %1044 = vmatprep.mubr.bf16.mxu0 0
  %1045 = vmatmul.mubr.bf16.gmra.mxu0 %v518
  %v1046 = vpop.f32.mrf.mxu0
  %v1047 = vadd.f32 %v758, %v1046
  %v1048 = vpop.f32.mrf.mxu0
  %v1049 = vpop.f32.mrf.mxu0
  %v1050 = vadd.f32 %v761, %v1049
  %v1051 = vpop.f32.mrf.mxu0
  %1052 = vmatprep.mubr.bf16.mxu0 0
  %1053 = vmatmul.mubr.bf16.gmra.mxu0 %v521
  %v1054 = vpop.f32.mrf.mxu0
  %v1055 = vadd.f32 %v766, %v1054
  %v1056 = vpop.f32.mrf.mxu0
  %v1057 = vpop.f32.mrf.mxu0
  %v1058 = vadd.f32 %v769, %v1057
  %v1059 = vpop.f32.mrf.mxu0
  %1060 = vmatprep.mubr.bf16.mxu0 0
  %1061 = vmatmul.mubr.bf16.gmra.mxu0 %v524
  %v1062 = vpop.f32.mrf.mxu0
  %v1063 = vadd.f32 %v774, %v1062
  %v1064 = vpop.f32.mrf.mxu0
  %v1065 = vpop.f32.mrf.mxu0
  %v1066 = vadd.f32 %v777, %v1065
  %v1067 = vpop.f32.mrf.mxu0
  %1068 = vmatprep.mubr.bf16.mxu0 0
  %1069 = vmatmul.mubr.bf16.gmra.mxu0 %v527
  %v1070 = vpop.f32.mrf.mxu0
  %v1071 = vadd.f32 %v782, %v1070
  %v1072 = vpop.f32.mrf.mxu0
  %v1073 = vpop.f32.mrf.mxu0
  %v1074 = vadd.f32 %v785, %v1073
  %v1075 = vpop.f32.mrf.mxu0
  %1076 = vmatprep.mubr.bf16.mxu0 0
  %1077 = vmatmul.mubr.bf16.gmra.mxu0 %v530
  %v1078 = vpop.f32.mrf.mxu0
  %v1079 = vadd.f32 %v790, %v1078
  %v1080 = vpop.f32.mrf.mxu0
  %v1081 = vpop.f32.mrf.mxu0
  %v1082 = vadd.f32 %v793, %v1081
  %v1083 = vpop.f32.mrf.mxu0
  %1084 = vmatprep.mubr.bf16.mxu0 0
  %1085 = vmatmul.mubr.bf16.gmra.mxu0 %v533
  %v1086 = vpop.f32.mrf.mxu0
  %v1087 = vadd.f32 %v798, %v1086
  %v1088 = vpop.f32.mrf.mxu0
  %v1089 = vpop.f32.mrf.mxu0
  %v1090 = vadd.f32 %v801, %v1089
  %v1091 = vpop.f32.mrf.mxu0
  %1092 = vmatprep.mubr.bf16.mxu0 0
  %1093 = vmatmul.mubr.bf16.gmra.mxu0 %v536
  %v1094 = vpop.f32.mrf.mxu0
  %v1095 = vadd.f32 %v806, %v1094
  %v1096 = vpop.f32.mrf.mxu0
  %v1097 = vpop.f32.mrf.mxu0
  %v1098 = vadd.f32 %v809, %v1097
  %v1099 = vpop.f32.mrf.mxu0
  %1100 = vmatprep.mubr.bf16.mxu0 0
  %1101 = vmatmul.mubr.bf16.gmra.mxu0 %v539
  %v1102 = vpop.f32.mrf.mxu0
  %v1103 = vadd.f32 %v814, %v1102
  %v1104 = vpop.f32.mrf.mxu0
  %v1105 = vpop.f32.mrf.mxu0
  %v1106 = vadd.f32 %v817, %v1105
  %v1107 = vpop.f32.mrf.mxu0
  %1108 = vmatprep.mubr.bf16.mxu0 0
  %1109 = vmatmul.mubr.bf16.gmra.mxu0 %v542
  %v1110 = vpop.f32.mrf.mxu0
  %v1111 = vadd.f32 %v822, %v1110
  %v1112 = vpop.f32.mrf.mxu0
  %v1113 = vpop.f32.mrf.mxu0
  %v1114 = vadd.f32 %v825, %v1113
  %v1115 = vpop.f32.mrf.mxu0
  %1116 = vmatprep.mubr.bf16.mxu0 0
  %1117 = vmatmul.mubr.bf16.gmra.mxu0 %v545
  %v1118 = vpop.f32.mrf.mxu0
  %v1119 = vadd.f32 %v830, %v1118
  %v1120 = vpop.f32.mrf.mxu0
  %v1121 = vpop.f32.mrf.mxu0
  %v1122 = vadd.f32 %v833, %v1121
  %v1123 = vpop.f32.mrf.mxu0
  %1124 = vdwg.mxu0
  %v1125 = vld [vmem:[%s2] sm:$0x1]
  %v1127 = vlaneseq
  %v1128 = vshrl.u32 %v1127, 7
  %v1129 = vsub.s32 0, %v1128
  %v1130 = vrot.slane %v1125, %v1129
  %v1132 = vmul.f32 %v871, %v1130
  %v1133 = vmul.f32 %v874, %v1130
  %v1134 = vmul.f32 %v879, %v1130
  %v1135 = vmul.f32 %v882, %v1130
  %v1136 = vmul.f32 %v887, %v1130
  %v1137 = vmul.f32 %v890, %v1130
  %v1138 = vmul.f32 %v895, %v1130
  %v1139 = vmul.f32 %v898, %v1130
  %v1140 = vmul.f32 %v903, %v1130
  %v1141 = vmul.f32 %v906, %v1130
  %v1142 = vmul.f32 %v911, %v1130
  %v1143 = vmul.f32 %v914, %v1130
  %v1144 = vmul.f32 %v919, %v1130
  %v1145 = vmul.f32 %v922, %v1130
  %v1146 = vmul.f32 %v927, %v1130
  %v1147 = vmul.f32 %v930, %v1130
  %v1148 = vmul.f32 %v935, %v1130
  %v1149 = vmul.f32 %v938, %v1130
  %v1150 = vmul.f32 %v943, %v1130
  %v1151 = vmul.f32 %v946, %v1130
  %v1152 = vmul.f32 %v951, %v1130
  %v1153 = vmul.f32 %v954, %v1130
  %v1154 = vmul.f32 %v959, %v1130
  %v1155 = vmul.f32 %v962, %v1130
  %v1156 = vmul.f32 %v967, %v1130
  %v1157 = vmul.f32 %v970, %v1130
  %v1158 = vmul.f32 %v975, %v1130
  %v1159 = vmul.f32 %v978, %v1130
  %v1160 = vmul.f32 %v983, %v1130
  %v1161 = vmul.f32 %v986, %v1130
  %v1162 = vmul.f32 %v991, %v1130
  %v1163 = vmul.f32 %v994, %v1130
  %v1164 = vmul.f32 %v999, %v1130
  %v1165 = vmul.f32 %v1002, %v1130
  %v1166 = vmul.f32 %v1007, %v1130
  %v1167 = vmul.f32 %v1010, %v1130
  %v1168 = vmul.f32 %v1015, %v1130
  %v1169 = vmul.f32 %v1018, %v1130
  %v1170 = vmul.f32 %v1023, %v1130
  %v1171 = vmul.f32 %v1026, %v1130
  %v1172 = vmul.f32 %v1031, %v1130
  %v1173 = vmul.f32 %v1034, %v1130
  %v1174 = vmul.f32 %v1039, %v1130
  %v1175 = vmul.f32 %v1042, %v1130
  %v1176 = vmul.f32 %v1047, %v1130
  %v1177 = vmul.f32 %v1050, %v1130
  %v1178 = vmul.f32 %v1055, %v1130
  %v1179 = vmul.f32 %v1058, %v1130
  %v1180 = vmul.f32 %v1063, %v1130
  %v1181 = vmul.f32 %v1066, %v1130
  %v1182 = vmul.f32 %v1071, %v1130
  %v1183 = vmul.f32 %v1074, %v1130
  %v1184 = vmul.f32 %v1079, %v1130
  %v1185 = vmul.f32 %v1082, %v1130
  %v1186 = vmul.f32 %v1087, %v1130
  %v1187 = vmul.f32 %v1090, %v1130
  %v1188 = vmul.f32 %v1095, %v1130
  %v1189 = vmul.f32 %v1098, %v1130
  %v1190 = vmul.f32 %v1103, %v1130
  %v1191 = vmul.f32 %v1106, %v1130
  %v1192 = vmul.f32 %v1111, %v1130
  %v1193 = vmul.f32 %v1114, %v1130
  %v1194 = vmul.f32 %v1119, %v1130
  %v1195 = vmul.f32 %v1122, %v1130
  %v1196 = vld [vmem:[%s3] sm:$0x1]
  %v1198 = vlaneseq
  %v1199 = vshrl.u32 %v1198, 7
  %v1200 = vsub.s32 0, %v1199
  %v1201 = vrot.slane %v1196, %v1200
  %v1203 = vadd.f32 %v1132, %v1201
  %v1204 = vadd.f32 %v1133, %v1201
  %v1205 = vadd.f32 %v1134, %v1201
  %v1206 = vadd.f32 %v1135, %v1201
  %v1207 = vadd.f32 %v1136, %v1201
  %v1208 = vadd.f32 %v1137, %v1201
  %v1209 = vadd.f32 %v1138, %v1201
  %v1210 = vadd.f32 %v1139, %v1201
  %v1211 = vadd.f32 %v1140, %v1201
  %v1212 = vadd.f32 %v1141, %v1201
  %v1213 = vadd.f32 %v1142, %v1201
  %v1214 = vadd.f32 %v1143, %v1201
  %v1215 = vadd.f32 %v1144, %v1201
  %v1216 = vadd.f32 %v1145, %v1201
  %v1217 = vadd.f32 %v1146, %v1201
  %v1218 = vadd.f32 %v1147, %v1201
  %v1219 = vadd.f32 %v1148, %v1201
  %v1220 = vadd.f32 %v1149, %v1201
  %v1221 = vadd.f32 %v1150, %v1201
  %v1222 = vadd.f32 %v1151, %v1201
  %v1223 = vadd.f32 %v1152, %v1201
  %v1224 = vadd.f32 %v1153, %v1201
  %v1225 = vadd.f32 %v1154, %v1201
  %v1226 = vadd.f32 %v1155, %v1201
  %v1227 = vadd.f32 %v1156, %v1201
  %v1228 = vadd.f32 %v1157, %v1201
  %v1229 = vadd.f32 %v1158, %v1201
  %v1230 = vadd.f32 %v1159, %v1201
  %v1231 = vadd.f32 %v1160, %v1201
  %v1232 = vadd.f32 %v1161, %v1201
  %v1233 = vadd.f32 %v1162, %v1201
  %v1234 = vadd.f32 %v1163, %v1201
  %v1235 = vadd.f32 %v1164, %v1201
  %v1236 = vadd.f32 %v1165, %v1201
  %v1237 = vadd.f32 %v1166, %v1201
  %v1238 = vadd.f32 %v1167, %v1201
  %v1239 = vadd.f32 %v1168, %v1201
  %v1240 = vadd.f32 %v1169, %v1201
  %v1241 = vadd.f32 %v1170, %v1201
  %v1242 = vadd.f32 %v1171, %v1201
  %v1243 = vadd.f32 %v1172, %v1201
  %v1244 = vadd.f32 %v1173, %v1201
  %v1245 = vadd.f32 %v1174, %v1201
  %v1246 = vadd.f32 %v1175, %v1201
  %v1247 = vadd.f32 %v1176, %v1201
  %v1248 = vadd.f32 %v1177, %v1201
  %v1249 = vadd.f32 %v1178, %v1201
  %v1250 = vadd.f32 %v1179, %v1201
  %v1251 = vadd.f32 %v1180, %v1201
  %v1252 = vadd.f32 %v1181, %v1201
  %v1253 = vadd.f32 %v1182, %v1201
  %v1254 = vadd.f32 %v1183, %v1201
  %v1255 = vadd.f32 %v1184, %v1201
  %v1256 = vadd.f32 %v1185, %v1201
  %v1257 = vadd.f32 %v1186, %v1201
  %v1258 = vadd.f32 %v1187, %v1201
  %v1259 = vadd.f32 %v1188, %v1201
  %v1260 = vadd.f32 %v1189, %v1201
  %v1261 = vadd.f32 %v1190, %v1201
  %v1262 = vadd.f32 %v1191, %v1201
  %v1263 = vadd.f32 %v1192, %v1201
  %v1264 = vadd.f32 %v1193, %v1201
  %v1265 = vadd.f32 %v1194, %v1201
  %v1266 = vadd.f32 %v1195, %v1201
  %v1267 = vmax.f32 %v1203, 0.0
  %v1268 = vmax.f32 %v1204, 0.0
  %v1269 = vmax.f32 %v1205, 0.0
  %v1270 = vmax.f32 %v1206, 0.0
  %v1271 = vmax.f32 %v1207, 0.0
  %v1272 = vmax.f32 %v1208, 0.0
  %v1273 = vmax.f32 %v1209, 0.0
  %v1274 = vmax.f32 %v1210, 0.0
  %v1275 = vmax.f32 %v1211, 0.0
  %v1276 = vmax.f32 %v1212, 0.0
  %v1277 = vmax.f32 %v1213, 0.0
  %v1278 = vmax.f32 %v1214, 0.0
  %v1279 = vmax.f32 %v1215, 0.0
  %v1280 = vmax.f32 %v1216, 0.0
  %v1281 = vmax.f32 %v1217, 0.0
  %v1282 = vmax.f32 %v1218, 0.0
  %v1283 = vmax.f32 %v1219, 0.0
  %v1284 = vmax.f32 %v1220, 0.0
  %v1285 = vmax.f32 %v1221, 0.0
  %v1286 = vmax.f32 %v1222, 0.0
  %v1287 = vmax.f32 %v1223, 0.0
  %v1288 = vmax.f32 %v1224, 0.0
  %v1289 = vmax.f32 %v1225, 0.0
  %v1290 = vmax.f32 %v1226, 0.0
  %v1291 = vmax.f32 %v1227, 0.0
  %v1292 = vmax.f32 %v1228, 0.0
  %v1293 = vmax.f32 %v1229, 0.0
  %v1294 = vmax.f32 %v1230, 0.0
  %v1295 = vmax.f32 %v1231, 0.0
  %v1296 = vmax.f32 %v1232, 0.0
  %v1297 = vmax.f32 %v1233, 0.0
  %v1298 = vmax.f32 %v1234, 0.0
  %v1299 = vmax.f32 %v1235, 0.0
  %v1300 = vmax.f32 %v1236, 0.0
  %v1301 = vmax.f32 %v1237, 0.0
  %v1302 = vmax.f32 %v1238, 0.0
  %v1303 = vmax.f32 %v1239, 0.0
  %v1304 = vmax.f32 %v1240, 0.0
  %v1305 = vmax.f32 %v1241, 0.0
  %v1306 = vmax.f32 %v1242, 0.0
  %v1307 = vmax.f32 %v1243, 0.0
  %v1308 = vmax.f32 %v1244, 0.0
  %v1309 = vmax.f32 %v1245, 0.0
  %v1310 = vmax.f32 %v1246, 0.0
  %v1311 = vmax.f32 %v1247, 0.0
  %v1312 = vmax.f32 %v1248, 0.0
  %v1313 = vmax.f32 %v1249, 0.0
  %v1314 = vmax.f32 %v1250, 0.0
  %v1315 = vmax.f32 %v1251, 0.0
  %v1316 = vmax.f32 %v1252, 0.0
  %v1317 = vmax.f32 %v1253, 0.0
  %v1318 = vmax.f32 %v1254, 0.0
  %v1319 = vmax.f32 %v1255, 0.0
  %v1320 = vmax.f32 %v1256, 0.0
  %v1321 = vmax.f32 %v1257, 0.0
  %v1322 = vmax.f32 %v1258, 0.0
  %v1323 = vmax.f32 %v1259, 0.0
  %v1324 = vmax.f32 %v1260, 0.0
  %v1325 = vmax.f32 %v1261, 0.0
  %v1326 = vmax.f32 %v1262, 0.0
  %v1327 = vmax.f32 %v1263, 0.0
  %v1328 = vmax.f32 %v1264, 0.0
  %v1329 = vmax.f32 %v1265, 0.0
  %v1330 = vmax.f32 %v1266, 0.0
  %v1331 = vmax.f32 %v1267, %v1283
  %v1332 = vmax.f32 %v1268, %v1284
  %v1333 = vmax.f32 %v1269, %v1285
  %v1334 = vmax.f32 %v1270, %v1286
  %v1335 = vmax.f32 %v1271, %v1287
  %v1336 = vmax.f32 %v1272, %v1288
  %v1337 = vmax.f32 %v1273, %v1289
  %v1338 = vmax.f32 %v1274, %v1290
  %v1339 = vmax.f32 %v1275, %v1291
  %v1340 = vmax.f32 %v1276, %v1292
  %v1341 = vmax.f32 %v1277, %v1293
  %v1342 = vmax.f32 %v1278, %v1294
  %v1343 = vmax.f32 %v1279, %v1295
  %v1344 = vmax.f32 %v1280, %v1296
  %v1345 = vmax.f32 %v1281, %v1297
  %v1346 = vmax.f32 %v1282, %v1298
  %v1347 = vmax.f32 %v1299, %v1315
  %v1348 = vmax.f32 %v1300, %v1316
  %v1349 = vmax.f32 %v1301, %v1317
  %v1350 = vmax.f32 %v1302, %v1318
  %v1351 = vmax.f32 %v1303, %v1319
  %v1352 = vmax.f32 %v1304, %v1320
  %v1353 = vmax.f32 %v1305, %v1321
  %v1354 = vmax.f32 %v1306, %v1322
  %v1355 = vmax.f32 %v1307, %v1323
  %v1356 = vmax.f32 %v1308, %v1324
  %v1357 = vmax.f32 %v1309, %v1325
  %v1358 = vmax.f32 %v1310, %v1326
  %v1359 = vmax.f32 %v1311, %v1327
  %v1360 = vmax.f32 %v1312, %v1328
  %v1361 = vmax.f32 %v1313, %v1329
  %v1362 = vmax.f32 %v1314, %v1330
  %v1363 = vmax.f32 %v1331, %v1347
  %v1364 = vmax.f32 %v1332, %v1348
  %v1365 = vmax.f32 %v1333, %v1349
  %v1366 = vmax.f32 %v1334, %v1350
  %v1367 = vmax.f32 %v1335, %v1351
  %v1368 = vmax.f32 %v1336, %v1352
  %v1369 = vmax.f32 %v1337, %v1353
  %v1370 = vmax.f32 %v1338, %v1354
  %v1371 = vmax.f32 %v1339, %v1355
  %v1372 = vmax.f32 %v1340, %v1356
  %v1373 = vmax.f32 %v1341, %v1357
  %v1374 = vmax.f32 %v1342, %v1358
  %v1375 = vmax.f32 %v1343, %v1359
  %v1376 = vmax.f32 %v1344, %v1360
  %v1377 = vmax.f32 %v1345, %v1361
  %v1378 = vmax.f32 %v1346, %v1362
  %1379 = vst [vmem:[%s4] sm:$0xff] %v1363
  %1380 = vst [vmem:[%s4 + $0x8] sm:$0xff] %v1364
  %1381 = vst [vmem:[%s4 + $0x10] sm:$0xff] %v1365
  %1382 = vst [vmem:[%s4 + $0x18] sm:$0xff] %v1366
  %1383 = vst [vmem:[%s4 + $0x20] sm:$0xff] %v1367
  %1384 = vst [vmem:[%s4 + $0x28] sm:$0xff] %v1368
  %1385 = vst [vmem:[%s4 + $0x30] sm:$0xff] %v1369
  %1386 = vst [vmem:[%s4 + $0x38] sm:$0xff] %v1370
  %1387 = vst [vmem:[%s4 + $0x40] sm:$0xff] %v1371
  %1388 = vst [vmem:[%s4 + $0x48] sm:$0xff] %v1372
  %1389 = vst [vmem:[%s4 + $0x50] sm:$0xff] %v1373
  %1390 = vst [vmem:[%s4 + $0x58] sm:$0xff] %v1374
  %1391 = vst [vmem:[%s4 + $0x60] sm:$0xff] %v1375
  %1392 = vst [vmem:[%s4 + $0x68] sm:$0xff] %v1376
  %1393 = vst [vmem:[%s4 + $0x70] sm:$0xff] %v1377
  %1394 = vst [vmem:[%s4 + $0x78] sm:$0xff] %v1378
  // Predicated region
  $region18: #{cifar10_forward.4} parent=0 // pred_check
    _
  $region19: #{cifar10_forward.4} parent=0 // pred_check_branch
    %1396 = sbr.rel (0) target = $region21
  $region20: #{cifar10_forward.4} parent=0 // pred_region
    _
  $region21: #{cifar10_forward.4} parent=0 // pred_fallthru
    _
  // Predicated region
  $region22: #{cifar10_forward.4} parent=0 // pred_check
    _
  $region23: #{cifar10_forward.4} parent=0 // pred_check_branch
    %1398 = sbr.rel (0) target = $region25
  $region24: #{cifar10_forward.4} parent=0 // pred_region
    _
  $region25: #{cifar10_forward.4} parent=0 // pred_fallthru
    _

// kernel: cifar10_forward.5
$region0: #{cifar10_forward.5}
  #allocation0 [shape = 'u32[]', space=smem, size = 0x4, offset = 0x4, fixed_abs, tag = 'smem constant byte address 0x4 - core index']
  #allocation1 [shape = 'u32[144,128]{1,0:T(1,128)}', space=vmem, size = 0x12000, scoped, tag = 'internal scratch']
  %s0 = inlined_call_operand.vmem [shape: f32[2,8192], index: 0, kind: input, shape index: {}]
  %s1 = inlined_call_operand.vmem [shape: bf16[8192,128], index: 1, kind: input, shape index: {}]
  %s2 = inlined_call_operand.vmem [shape: f32[1,128], index: 2, kind: input, shape index: {}]
  %s3 = inlined_call_operand.vmem [shape: bf16[128,128], index: 3, kind: input, shape index: {}]
  %s4 = inlined_call_operand.vmem [shape: f32[1,128], index: 4, kind: input, shape index: {}]
  %s5 = inlined_call_operand.vmem [shape: bf16[128,128], index: 5, kind: input, shape index: {}]
  %s6 = inlined_call_operand.vmem [shape: f32[1,128], index: 6, kind: input, shape index: {}]
  %s7 = inlined_call_operand.vmem [shape: bf16[128,128], index: 7, kind: input, shape index: {}]
  %s8 = inlined_call_operand.vmem [shape: f32[1,128], index: 8, kind: input, shape index: {}]
  %s9 = inlined_call_operand.hbm [shape: f32[2,128], index: 9, kind: output, shape index: {}]
  %s10 = sld [smem:[#allocation0]]
  $region46: #{cifar10_forward.5} parent=0
    _
  %s12 = ssub.s32 1, %s10
  %s13 = scalar_select 0, %s12, %s10
  $region1: #{cifar10_forward.5} parent=0
    #allocation2 [shape = 'u8[1024]{0}', space=vmem, size = 0x400, scoped, tag = 'output window, operand 0, single buffered']
    #allocation3 [shape = 's32[1]{0}', space=sflag, size = 0x4, scoped, tag = 'scoped memory for cifar10_forward.5']
    %14 = vsyncpa [#allocation3], 0
    // Predicated region
    $region2: #{cifar10_forward.5} parent=1 // pred_check
      _
    $region3: #{cifar10_forward.5} parent=1 // pred_check_branch
      %16 = sbr.rel (0) target = $region5
    $region4: #{cifar10_forward.5} parent=1 // pred_region
      _
    $region5: #{cifar10_forward.5} parent=1 // pred_fallthru
      _
    // Predicated region
    $region6: #{cifar10_forward.5} parent=1 // pred_check
      _
    $region7: #{cifar10_forward.5} parent=1 // pred_check_branch
      %18 = sbr.rel (0) target = $region9
    $region8: #{cifar10_forward.5} parent=1 // pred_region
      _
    $region9: #{cifar10_forward.5} parent=1 // pred_fallthru
      _
    // Predicated region
    $region10: #{cifar10_forward.5} parent=1 // pred_check
      _
    $region11: #{cifar10_forward.5} parent=1 // pred_check_branch
      %20 = sbr.rel (0) target = $region13
    $region12: #{cifar10_forward.5} parent=1 // pred_region
      _
    $region13: #{cifar10_forward.5} parent=1 // pred_fallthru
      _
    // Predicated region
    $region14: #{cifar10_forward.5} parent=1 // pred_check
      _
    $region15: #{cifar10_forward.5} parent=1 // pred_check_branch
      %22 = sbr.rel (0) target = $region17
    $region16: #{cifar10_forward.5} parent=1 // pred_region
      _
    $region17: #{cifar10_forward.5} parent=1 // pred_fallthru
      _
    // Predicated region
    $region18: #{cifar10_forward.5} parent=1 // pred_check
      _
    $region19: #{cifar10_forward.5} parent=1 // pred_check_branch
      %24 = sbr.rel (0) target = $region21
    $region20: #{cifar10_forward.5} parent=1 // pred_region
      _
    $region21: #{cifar10_forward.5} parent=1 // pred_fallthru
      _
    // Predicated region
    $region22: #{cifar10_forward.5} parent=1 // pred_check
      _
    $region23: #{cifar10_forward.5} parent=1 // pred_check_branch
      %26 = sbr.rel (0) target = $region25
    $region24: #{cifar10_forward.5} parent=1 // pred_region
      _
    $region25: #{cifar10_forward.5} parent=1 // pred_fallthru
      _
    // Predicated region
    $region26: #{cifar10_forward.5} parent=1 // pred_check
      _
    $region27: #{cifar10_forward.5} parent=1 // pred_check_branch
      %28 = sbr.rel (0) target = $region29
    $region28: #{cifar10_forward.5} parent=1 // pred_region
      _
    $region29: #{cifar10_forward.5} parent=1 // pred_fallthru
      _
    // Predicated region
    $region30: #{cifar10_forward.5} parent=1 // pred_check
      _
    $region31: #{cifar10_forward.5} parent=1 // pred_check_branch
      %30 = sbr.rel (0) target = $region33
    $region32: #{cifar10_forward.5} parent=1 // pred_region
      _
    $region33: #{cifar10_forward.5} parent=1 // pred_fallthru
      _
    // Predicated region
    $region34: #{cifar10_forward.5} parent=1 // pred_check
      _
    $region35: #{cifar10_forward.5} parent=1 // pred_check_branch
      %32 = sbr.rel (0) target = $region37
    $region36: #{cifar10_forward.5} parent=1 // pred_region
      _
    $region37: #{cifar10_forward.5} parent=1 // pred_fallthru
      _
    %v34 = vld [vmem:[%s0] sm:$0xff]
    %v35 = vld [vmem:[%s0 + $0x8] sm:$0xff]
    %v36 = vld [vmem:[%s0 + $0x10] sm:$0xff]
    %v37 = vld [vmem:[%s0 + $0x18] sm:$0xff]
    %v38 = vld [vmem:[%s0 + $0x20] sm:$0xff]
    %v39 = vld [vmem:[%s0 + $0x28] sm:$0xff]
    %v40 = vld [vmem:[%s0 + $0x30] sm:$0xff]
    %v41 = vld [vmem:[%s0 + $0x38] sm:$0xff]
    %v42 = vld [vmem:[%s0 + $0x40] sm:$0xff]
    %v43 = vld [vmem:[%s0 + $0x48] sm:$0xff]
    %v44 = vld [vmem:[%s0 + $0x50] sm:$0xff]
    %v45 = vld [vmem:[%s0 + $0x58] sm:$0xff]
    %v46 = vld [vmem:[%s0 + $0x60] sm:$0xff]
    %v47 = vld [vmem:[%s0 + $0x68] sm:$0xff]
    %v48 = vld [vmem:[%s0 + $0x70] sm:$0xff]
    %v49 = vld [vmem:[%s0 + $0x78] sm:$0xff]
    %v66 = vcombine.high %v34, %v34
    %v68 = vunpack.c.l.s4 1983009808
    %v69 = vunpack.c.0.s8 %v68
    %v70 = vlaneseq
    %v71 = vshrl.u32 %v70, 7
    %v72 = vsub.s32 %v69, %v71
    %v73 = vrot.slane %v34, %v72
    %v75 = vunpack.c.l.s4 1983009808
    %v76 = vunpack.c.0.s8 %v75
    %v77 = vlaneseq
    %v78 = vshrl.u32 %v77, 7
    %v79 = vsub.s32 %v76, %v78
    %v80 = vrot.slane %v66, %v79
    %v81 = vcombine.high %v73, %v73
    %v82 = vcombine.high %v80, %v80
    %v83 = vcombine.high %v35, %v35
    %v85 = vunpack.c.l.s4 1983009808
    %v86 = vunpack.c.0.s8 %v85
    %v87 = vlaneseq
    %v88 = vshrl.u32 %v87, 7
    %v89 = vsub.s32 %v86, %v88
    %v90 = vrot.slane %v35, %v89
    %v92 = vunpack.c.l.s4 1983009808
    %v93 = vunpack.c.0.s8 %v92
    %v94 = vlaneseq
    %v95 = vshrl.u32 %v94, 7
    %v96 = vsub.s32 %v93, %v95
    %v97 = vrot.slane %v83, %v96
    %v98 = vcombine.high %v90, %v90
    %v99 = vcombine.high %v97, %v97
    %v100 = vcombine.high %v36, %v36
    %v102 = vunpack.c.l.s4 1983009808
    %v103 = vunpack.c.0.s8 %v102
    %v104 = vlaneseq
    %v105 = vshrl.u32 %v104, 7
    %v106 = vsub.s32 %v103, %v105
    %v107 = vrot.slane %v36, %v106
    %v109 = vunpack.c.l.s4 1983009808
    %v110 = vunpack.c.0.s8 %v109
    %v111 = vlaneseq
    %v112 = vshrl.u32 %v111, 7
    %v113 = vsub.s32 %v110, %v112
    %v114 = vrot.slane %v100, %v113
    %v115 = vcombine.high %v107, %v107
    %v116 = vcombine.high %v114, %v114
    %v117 = vcombine.high %v37, %v37
    %v119 = vunpack.c.l.s4 1983009808
    %v120 = vunpack.c.0.s8 %v119
    %v121 = vlaneseq
    %v122 = vshrl.u32 %v121, 7
    %v123 = vsub.s32 %v120, %v122
    %v124 = vrot.slane %v37, %v123
    %v126 = vunpack.c.l.s4 1983009808
    %v127 = vunpack.c.0.s8 %v126
    %v128 = vlaneseq
    %v129 = vshrl.u32 %v128, 7
    %v130 = vsub.s32 %v127, %v129
    %v131 = vrot.slane %v117, %v130
    %v132 = vcombine.high %v124, %v124
    %v133 = vcombine.high %v131, %v131
    %v134 = vcombine.high %v38, %v38
    %v136 = vunpack.c.l.s4 1983009808
    %v137 = vunpack.c.0.s8 %v136
    %v138 = vlaneseq
    %v139 = vshrl.u32 %v138, 7
    %v140 = vsub.s32 %v137, %v139
    %v141 = vrot.slane %v38, %v140
    %v143 = vunpack.c.l.s4 1983009808
    %v144 = vunpack.c.0.s8 %v143
    %v145 = vlaneseq
    %v146 = vshrl.u32 %v145, 7
    %v147 = vsub.s32 %v144, %v146
    %v148 = vrot.slane %v134, %v147
    %v149 = vcombine.high %v141, %v141
    %v150 = vcombine.high %v148, %v148
    %v151 = vcombine.high %v39, %v39
    %v153 = vunpack.c.l.s4 1983009808
    %v154 = vunpack.c.0.s8 %v153
    %v155 = vlaneseq
    %v156 = vshrl.u32 %v155, 7
    %v157 = vsub.s32 %v154, %v156
    %v158 = vrot.slane %v39, %v157
    %v160 = vunpack.c.l.s4 1983009808
    %v161 = vunpack.c.0.s8 %v160
    %v162 = vlaneseq
    %v163 = vshrl.u32 %v162, 7
    %v164 = vsub.s32 %v161, %v163
    %v165 = vrot.slane %v151, %v164
    %v166 = vcombine.high %v158, %v158
    %v167 = vcombine.high %v165, %v165
    %v168 = vcombine.high %v40, %v40
    %v170 = vunpack.c.l.s4 1983009808
    %v171 = vunpack.c.0.s8 %v170
    %v172 = vlaneseq
    %v173 = vshrl.u32 %v172, 7
    %v174 = vsub.s32 %v171, %v173
    %v175 = vrot.slane %v40, %v174
    %v177 = vunpack.c.l.s4 1983009808
    %v178 = vunpack.c.0.s8 %v177
    %v179 = vlaneseq
    %v180 = vshrl.u32 %v179, 7
    %v181 = vsub.s32 %v178, %v180
    %v182 = vrot.slane %v168, %v181
    %v183 = vcombine.high %v175, %v175
    %v184 = vcombine.high %v182, %v182
    %v185 = vcombine.high %v41, %v41
    %v187 = vunpack.c.l.s4 1983009808
    %v188 = vunpack.c.0.s8 %v187
    %v189 = vlaneseq
    %v190 = vshrl.u32 %v189, 7
    %v191 = vsub.s32 %v188, %v190
    %v192 = vrot.slane %v41, %v191
    %v194 = vunpack.c.l.s4 1983009808
    %v195 = vunpack.c.0.s8 %v194
    %v196 = vlaneseq
    %v197 = vshrl.u32 %v196, 7
    %v198 = vsub.s32 %v195, %v197
    %v199 = vrot.slane %v185, %v198
    %v200 = vcombine.high %v192, %v192
    %v201 = vcombine.high %v199, %v199
    %v202 = vcombine.high %v42, %v42
    %v204 = vunpack.c.l.s4 1983009808
    %v205 = vunpack.c.0.s8 %v204
    %v206 = vlaneseq
    %v207 = vshrl.u32 %v206, 7
    %v208 = vsub.s32 %v205, %v207
    %v209 = vrot.slane %v42, %v208
    %v211 = vunpack.c.l.s4 1983009808
    %v212 = vunpack.c.0.s8 %v211
    %v213 = vlaneseq
    %v214 = vshrl.u32 %v213, 7
    %v215 = vsub.s32 %v212, %v214
    %v216 = vrot.slane %v202, %v215
    %v217 = vcombine.high %v209, %v209
    %v218 = vcombine.high %v216, %v216
    %v219 = vcombine.high %v43, %v43
    %v221 = vunpack.c.l.s4 1983009808
    %v222 = vunpack.c.0.s8 %v221
    %v223 = vlaneseq
    %v224 = vshrl.u32 %v223, 7
    %v225 = vsub.s32 %v222, %v224
    %v226 = vrot.slane %v43, %v225
    %v228 = vunpack.c.l.s4 1983009808
    %v229 = vunpack.c.0.s8 %v228
    %v230 = vlaneseq
    %v231 = vshrl.u32 %v230, 7
    %v232 = vsub.s32 %v229, %v231
    %v233 = vrot.slane %v219, %v232
    %v234 = vcombine.high %v226, %v226
    %v235 = vcombine.high %v233, %v233
    %v236 = vcombine.high %v44, %v44
    %v238 = vunpack.c.l.s4 1983009808
    %v239 = vunpack.c.0.s8 %v238
    %v240 = vlaneseq
    %v241 = vshrl.u32 %v240, 7
    %v242 = vsub.s32 %v239, %v241
    %v243 = vrot.slane %v44, %v242
    %v245 = vunpack.c.l.s4 1983009808
    %v246 = vunpack.c.0.s8 %v245
    %v247 = vlaneseq
    %v248 = vshrl.u32 %v247, 7
    %v249 = vsub.s32 %v246, %v248
    %v250 = vrot.slane %v236, %v249
    %v251 = vcombine.high %v243, %v243
    %v252 = vcombine.high %v250, %v250
    %v253 = vcombine.high %v45, %v45
    %v255 = vunpack.c.l.s4 1983009808
    %v256 = vunpack.c.0.s8 %v255
    %v257 = vlaneseq
    %v258 = vshrl.u32 %v257, 7
    %v259 = vsub.s32 %v256, %v258
    %v260 = vrot.slane %v45, %v259
    %v262 = vunpack.c.l.s4 1983009808
    %v263 = vunpack.c.0.s8 %v262
    %v264 = vlaneseq
    %v265 = vshrl.u32 %v264, 7
    %v266 = vsub.s32 %v263, %v265
    %v267 = vrot.slane %v253, %v266
    %v268 = vcombine.high %v260, %v260
    %v269 = vcombine.high %v267, %v267
    %v270 = vcombine.high %v46, %v46
    %v272 = vunpack.c.l.s4 1983009808
    %v273 = vunpack.c.0.s8 %v272
    %v274 = vlaneseq
    %v275 = vshrl.u32 %v274, 7
    %v276 = vsub.s32 %v273, %v275
    %v277 = vrot.slane %v46, %v276
    %v279 = vunpack.c.l.s4 1983009808
    %v280 = vunpack.c.0.s8 %v279
    %v281 = vlaneseq
    %v282 = vshrl.u32 %v281, 7
    %v283 = vsub.s32 %v280, %v282
    %v284 = vrot.slane %v270, %v283
    %v285 = vcombine.high %v277, %v277
    %v286 = vcombine.high %v284, %v284
    %v287 = vcombine.high %v47, %v47
    %v289 = vunpack.c.l.s4 1983009808
    %v290 = vunpack.c.0.s8 %v289
    %v291 = vlaneseq
    %v292 = vshrl.u32 %v291, 7
    %v293 = vsub.s32 %v290, %v292
    %v294 = vrot.slane %v47, %v293
    %v296 = vunpack.c.l.s4 1983009808
    %v297 = vunpack.c.0.s8 %v296
    %v298 = vlaneseq
    %v299 = vshrl.u32 %v298, 7
    %v300 = vsub.s32 %v297, %v299
    %v301 = vrot.slane %v287, %v300
    %v302 = vcombine.high %v294, %v294
    %v303 = vcombine.high %v301, %v301
    %v304 = vcombine.high %v48, %v48
    %v306 = vunpack.c.l.s4 1983009808
    %v307 = vunpack.c.0.s8 %v306
    %v308 = vlaneseq
    %v309 = vshrl.u32 %v308, 7
    %v310 = vsub.s32 %v307, %v309
    %v311 = vrot.slane %v48, %v310
    %v313 = vunpack.c.l.s4 1983009808
    %v314 = vunpack.c.0.s8 %v313
    %v315 = vlaneseq
    %v316 = vshrl.u32 %v315, 7
    %v317 = vsub.s32 %v314, %v316
    %v318 = vrot.slane %v304, %v317
    %v319 = vcombine.high %v311, %v311
    %v320 = vcombine.high %v318, %v318
    %v321 = vcombine.high %v49, %v49
    %v323 = vunpack.c.l.s4 1983009808
    %v324 = vunpack.c.0.s8 %v323
    %v325 = vlaneseq
    %v326 = vshrl.u32 %v325, 7
    %v327 = vsub.s32 %v324, %v326
    %v328 = vrot.slane %v49, %v327
    %v330 = vunpack.c.l.s4 1983009808
    %v331 = vunpack.c.0.s8 %v330
    %v332 = vlaneseq
    %v333 = vshrl.u32 %v332, 7
    %v334 = vsub.s32 %v331, %v333
    %v335 = vrot.slane %v321, %v334
    %v336 = vcombine.high %v328, %v328
    %v337 = vcombine.high %v335, %v335
    %v402 = vpack.c.bf16 %v73, %v73
    %v403 = vpack.c.bf16 %v81, %v81
    %v404 = vpack.c.bf16 %v80, %v80
    %v405 = vpack.c.bf16 %v82, %v82
    %v406 = vpack.c.bf16 %v90, %v90
    %v407 = vpack.c.bf16 %v98, %v98
    %v408 = vpack.c.bf16 %v97, %v97
    %v409 = vpack.c.bf16 %v99, %v99
    %v410 = vpack.c.bf16 %v107, %v107
    %v411 = vpack.c.bf16 %v115, %v115
    %v412 = vpack.c.bf16 %v114, %v114
    %v413 = vpack.c.bf16 %v116, %v116
    %v414 = vpack.c.bf16 %v124, %v124
    %v415 = vpack.c.bf16 %v132, %v132
    %v416 = vpack.c.bf16 %v131, %v131
    %v417 = vpack.c.bf16 %v133, %v133
    %v418 = vpack.c.bf16 %v141, %v141
    %v419 = vpack.c.bf16 %v149, %v149
    %v420 = vpack.c.bf16 %v148, %v148
    %v421 = vpack.c.bf16 %v150, %v150
    %v422 = vpack.c.bf16 %v158, %v158
    %v423 = vpack.c.bf16 %v166, %v166
    %v424 = vpack.c.bf16 %v165, %v165
    %v425 = vpack.c.bf16 %v167, %v167
    %v426 = vpack.c.bf16 %v175, %v175
    %v427 = vpack.c.bf16 %v183, %v183
    %v428 = vpack.c.bf16 %v182, %v182
    %v429 = vpack.c.bf16 %v184, %v184
    %v430 = vpack.c.bf16 %v192, %v192
    %v431 = vpack.c.bf16 %v200, %v200
    %v432 = vpack.c.bf16 %v199, %v199
    %v433 = vpack.c.bf16 %v201, %v201
    %v434 = vpack.c.bf16 %v209, %v209
    %v435 = vpack.c.bf16 %v217, %v217
    %v436 = vpack.c.bf16 %v216, %v216
    %v437 = vpack.c.bf16 %v218, %v218
    %v438 = vpack.c.bf16 %v226, %v226
    %v439 = vpack.c.bf16 %v234, %v234
    %v440 = vpack.c.bf16 %v233, %v233
    %v441 = vpack.c.bf16 %v235, %v235
    %v442 = vpack.c.bf16 %v243, %v243
    %v443 = vpack.c.bf16 %v251, %v251
    %v444 = vpack.c.bf16 %v250, %v250
    %v445 = vpack.c.bf16 %v252, %v252
    %v446 = vpack.c.bf16 %v260, %v260
    %v447 = vpack.c.bf16 %v268, %v268
    %v448 = vpack.c.bf16 %v267, %v267
    %v449 = vpack.c.bf16 %v269, %v269
    %v450 = vpack.c.bf16 %v277, %v277
    %v451 = vpack.c.bf16 %v285, %v285
    %v452 = vpack.c.bf16 %v284, %v284
    %v453 = vpack.c.bf16 %v286, %v286
    %v454 = vpack.c.bf16 %v294, %v294
    %v455 = vpack.c.bf16 %v302, %v302
    %v456 = vpack.c.bf16 %v301, %v301
    %v457 = vpack.c.bf16 %v303, %v303
    %v458 = vpack.c.bf16 %v311, %v311
    %v459 = vpack.c.bf16 %v319, %v319
    %v460 = vpack.c.bf16 %v318, %v318
    %v461 = vpack.c.bf16 %v320, %v320
    %v462 = vpack.c.bf16 %v328, %v328
    %v463 = vpack.c.bf16 %v336, %v336
    %v464 = vpack.c.bf16 %v335, %v335
    %v465 = vpack.c.bf16 %v337, %v337
    %v466 = vld [vmem:[%s1] sm:$0xf]
    %v467 = vld [vmem:[%s1 + $0x4] sm:$0xf]
    %v468 = vld [vmem:[%s1 + $0x8] sm:$0xf]
    %v469 = vld [vmem:[%s1 + $0xc] sm:$0xf]
    %v470 = vld [vmem:[%s1 + $0x10] sm:$0xf]
    %v471 = vld [vmem:[%s1 + $0x14] sm:$0xf]
    %v472 = vld [vmem:[%s1 + $0x18] sm:$0xf]
    %v473 = vld [vmem:[%s1 + $0x1c] sm:$0xf]
    %v474 = vld [vmem:[%s1 + $0x20] sm:$0xf]
    %v475 = vld [vmem:[%s1 + $0x24] sm:$0xf]
    %v476 = vld [vmem:[%s1 + $0x28] sm:$0xf]
    %v477 = vld [vmem:[%s1 + $0x2c] sm:$0xf]
    %v478 = vld [vmem:[%s1 + $0x30] sm:$0xf]
    %v479 = vld [vmem:[%s1 + $0x34] sm:$0xf]
    %v480 = vld [vmem:[%s1 + $0x38] sm:$0xf]
    %v481 = vld [vmem:[%s1 + $0x3c] sm:$0xf]
    %v482 = vld [vmem:[%s1 + $0x40] sm:$0xf]
    %v483 = vld [vmem:[%s1 + $0x44] sm:$0xf]
    %v484 = vld [vmem:[%s1 + $0x48] sm:$0xf]
    %v485 = vld [vmem:[%s1 + $0x4c] sm:$0xf]
    %v486 = vld [vmem:[%s1 + $0x50] sm:$0xf]
    %v487 = vld [vmem:[%s1 + $0x54] sm:$0xf]
    %v488 = vld [vmem:[%s1 + $0x58] sm:$0xf]
    %v489 = vld [vmem:[%s1 + $0x5c] sm:$0xf]
    %v490 = vld [vmem:[%s1 + $0x60] sm:$0xf]
    %v491 = vld [vmem:[%s1 + $0x64] sm:$0xf]
    %v492 = vld [vmem:[%s1 + $0x68] sm:$0xf]
    %v493 = vld [vmem:[%s1 + $0x6c] sm:$0xf]
    %v494 = vld [vmem:[%s1 + $0x70] sm:$0xf]
    %v495 = vld [vmem:[%s1 + $0x74] sm:$0xf]
    %v496 = vld [vmem:[%s1 + $0x78] sm:$0xf]
    %v497 = vld [vmem:[%s1 + $0x7c] sm:$0xf]
    %v498 = vld [vmem:[%s1 + $0x80] sm:$0xf]
    %v499 = vld [vmem:[%s1 + $0x84] sm:$0xf]
    %v500 = vld [vmem:[%s1 + $0x88] sm:$0xf]
    %v501 = vld [vmem:[%s1 + $0x8c] sm:$0xf]
    %v502 = vld [vmem:[%s1 + $0x90] sm:$0xf]
    %v503 = vld [vmem:[%s1 + $0x94] sm:$0xf]
    %v504 = vld [vmem:[%s1 + $0x98] sm:$0xf]
    %v505 = vld [vmem:[%s1 + $0x9c] sm:$0xf]
    %v506 = vld [vmem:[%s1 + $0xa0] sm:$0xf]
    %v507 = vld [vmem:[%s1 + $0xa4] sm:$0xf]
    %v508 = vld [vmem:[%s1 + $0xa8] sm:$0xf]
    %v509 = vld [vmem:[%s1 + $0xac] sm:$0xf]
    %v510 = vld [vmem:[%s1 + $0xb0] sm:$0xf]
    %v511 = vld [vmem:[%s1 + $0xb4] sm:$0xf]
    %v512 = vld [vmem:[%s1 + $0xb8] sm:$0xf]
    %v513 = vld [vmem:[%s1 + $0xbc] sm:$0xf]
    %v514 = vld [vmem:[%s1 + $0xc0] sm:$0xf]
    %v515 = vld [vmem:[%s1 + $0xc4] sm:$0xf]
    %v516 = vld [vmem:[%s1 + $0xc8] sm:$0xf]
    %v517 = vld [vmem:[%s1 + $0xcc] sm:$0xf]
    %v518 = vld [vmem:[%s1 + $0xd0] sm:$0xf]
    %v519 = vld [vmem:[%s1 + $0xd4] sm:$0xf]
    %v520 = vld [vmem:[%s1 + $0xd8] sm:$0xf]
    %v521 = vld [vmem:[%s1 + $0xdc] sm:$0xf]
    %v522 = vld [vmem:[%s1 + $0xe0] sm:$0xf]
    %v523 = vld [vmem:[%s1 + $0xe4] sm:$0xf]
    %v524 = vld [vmem:[%s1 + $0xe8] sm:$0xf]
    %v525 = vld [vmem:[%s1 + $0xec] sm:$0xf]
    %v526 = vld [vmem:[%s1 + $0xf0] sm:$0xf]
    %v527 = vld [vmem:[%s1 + $0xf4] sm:$0xf]
    %v528 = vld [vmem:[%s1 + $0xf8] sm:$0xf]
    %v529 = vld [vmem:[%s1 + $0xfc] sm:$0xf]
    %v530 = vld [vmem:[%s1 + $0x100] sm:$0xf]
    %v531 = vld [vmem:[%s1 + $0x104] sm:$0xf]
    %v532 = vld [vmem:[%s1 + $0x108] sm:$0xf]
    %v533 = vld [vmem:[%s1 + $0x10c] sm:$0xf]
    %v534 = vld [vmem:[%s1 + $0x110] sm:$0xf]
    %v535 = vld [vmem:[%s1 + $0x114] sm:$0xf]
    %v536 = vld [vmem:[%s1 + $0x118] sm:$0xf]
    %v537 = vld [vmem:[%s1 + $0x11c] sm:$0xf]
    %v538 = vld [vmem:[%s1 + $0x120] sm:$0xf]
    %v539 = vld [vmem:[%s1 + $0x124] sm:$0xf]
    %v540 = vld [vmem:[%s1 + $0x128] sm:$0xf]
    %v541 = vld [vmem:[%s1 + $0x12c] sm:$0xf]
    %v542 = vld [vmem:[%s1 + $0x130] sm:$0xf]
    %v543 = vld [vmem:[%s1 + $0x134] sm:$0xf]
    %v544 = vld [vmem:[%s1 + $0x138] sm:$0xf]
    %v545 = vld [vmem:[%s1 + $0x13c] sm:$0xf]
    %v546 = vld [vmem:[%s1 + $0x140] sm:$0xf]
    %v547 = vld [vmem:[%s1 + $0x144] sm:$0xf]
    %v548 = vld [vmem:[%s1 + $0x148] sm:$0xf]
    %v549 = vld [vmem:[%s1 + $0x14c] sm:$0xf]
    %v550 = vld [vmem:[%s1 + $0x150] sm:$0xf]
    %v551 = vld [vmem:[%s1 + $0x154] sm:$0xf]
    %v552 = vld [vmem:[%s1 + $0x158] sm:$0xf]
    %v553 = vld [vmem:[%s1 + $0x15c] sm:$0xf]
    %v554 = vld [vmem:[%s1 + $0x160] sm:$0xf]
    %v555 = vld [vmem:[%s1 + $0x164] sm:$0xf]
    %v556 = vld [vmem:[%s1 + $0x168] sm:$0xf]
    %v557 = vld [vmem:[%s1 + $0x16c] sm:$0xf]
    %v558 = vld [vmem:[%s1 + $0x170] sm:$0xf]
    %v559 = vld [vmem:[%s1 + $0x174] sm:$0xf]
    %v560 = vld [vmem:[%s1 + $0x178] sm:$0xf]
    %v561 = vld [vmem:[%s1 + $0x17c] sm:$0xf]
    %v562 = vld [vmem:[%s1 + $0x180] sm:$0xf]
    %v563 = vld [vmem:[%s1 + $0x184] sm:$0xf]
    %v564 = vld [vmem:[%s1 + $0x188] sm:$0xf]
    %v565 = vld [vmem:[%s1 + $0x18c] sm:$0xf]
    %v566 = vld [vmem:[%s1 + $0x190] sm:$0xf]
    %v567 = vld [vmem:[%s1 + $0x194] sm:$0xf]
    %v568 = vld [vmem:[%s1 + $0x198] sm:$0xf]
    %v569 = vld [vmem:[%s1 + $0x19c] sm:$0xf]
    %v570 = vld [vmem:[%s1 + $0x1a0] sm:$0xf]
    %v571 = vld [vmem:[%s1 + $0x1a4] sm:$0xf]
    %v572 = vld [vmem:[%s1 + $0x1a8] sm:$0xf]
    %v573 = vld [vmem:[%s1 + $0x1ac] sm:$0xf]
    %v574 = vld [vmem:[%s1 + $0x1b0] sm:$0xf]
    %v575 = vld [vmem:[%s1 + $0x1b4] sm:$0xf]
    %v576 = vld [vmem:[%s1 + $0x1b8] sm:$0xf]
    %v577 = vld [vmem:[%s1 + $0x1bc] sm:$0xf]
    %v578 = vld [vmem:[%s1 + $0x1c0] sm:$0xf]
    %v579 = vld [vmem:[%s1 + $0x1c4] sm:$0xf]
    %v580 = vld [vmem:[%s1 + $0x1c8] sm:$0xf]
    %v581 = vld [vmem:[%s1 + $0x1cc] sm:$0xf]
    %v582 = vld [vmem:[%s1 + $0x1d0] sm:$0xf]
    %v583 = vld [vmem:[%s1 + $0x1d4] sm:$0xf]
    %v584 = vld [vmem:[%s1 + $0x1d8] sm:$0xf]
    %v585 = vld [vmem:[%s1 + $0x1dc] sm:$0xf]
    %v586 = vld [vmem:[%s1 + $0x1e0] sm:$0xf]
    %v587 = vld [vmem:[%s1 + $0x1e4] sm:$0xf]
    %v588 = vld [vmem:[%s1 + $0x1e8] sm:$0xf]
    %v589 = vld [vmem:[%s1 + $0x1ec] sm:$0xf]
    %v590 = vld [vmem:[%s1 + $0x1f0] sm:$0xf]
    %v591 = vld [vmem:[%s1 + $0x1f4] sm:$0xf]
    %v592 = vld [vmem:[%s1 + $0x1f8] sm:$0xf]
    %v593 = vld [vmem:[%s1 + $0x1fc] sm:$0xf]
    %v594 = vld [vmem:[%s1 + $0x200] sm:$0xf]
    %v595 = vld [vmem:[%s1 + $0x204] sm:$0xf]
    %v596 = vld [vmem:[%s1 + $0x208] sm:$0xf]
    %v597 = vld [vmem:[%s1 + $0x20c] sm:$0xf]
    %v598 = vld [vmem:[%s1 + $0x210] sm:$0xf]
    %v599 = vld [vmem:[%s1 + $0x214] sm:$0xf]
    %v600 = vld [vmem:[%s1 + $0x218] sm:$0xf]
    %v601 = vld [vmem:[%s1 + $0x21c] sm:$0xf]
    %v602 = vld [vmem:[%s1 + $0x220] sm:$0xf]
    %v603 = vld [vmem:[%s1 + $0x224] sm:$0xf]
    %v604 = vld [vmem:[%s1 + $0x228] sm:$0xf]
    %v605 = vld [vmem:[%s1 + $0x22c] sm:$0xf]
    %v606 = vld [vmem:[%s1 + $0x230] sm:$0xf]
    %v607 = vld [vmem:[%s1 + $0x234] sm:$0xf]
    %v608 = vld [vmem:[%s1 + $0x238] sm:$0xf]
    %v609 = vld [vmem:[%s1 + $0x23c] sm:$0xf]
    %v610 = vld [vmem:[%s1 + $0x240] sm:$0xf]
    %v611 = vld [vmem:[%s1 + $0x244] sm:$0xf]
    %v612 = vld [vmem:[%s1 + $0x248] sm:$0xf]
    %v613 = vld [vmem:[%s1 + $0x24c] sm:$0xf]
    %v614 = vld [vmem:[%s1 + $0x250] sm:$0xf]
    %v615 = vld [vmem:[%s1 + $0x254] sm:$0xf]
    %v616 = vld [vmem:[%s1 + $0x258] sm:$0xf]
    %v617 = vld [vmem:[%s1 + $0x25c] sm:$0xf]
    %v618 = vld [vmem:[%s1 + $0x260] sm:$0xf]
    %v619 = vld [vmem:[%s1 + $0x264] sm:$0xf]
    %v620 = vld [vmem:[%s1 + $0x268] sm:$0xf]
    %v621 = vld [vmem:[%s1 + $0x26c] sm:$0xf]
    %v622 = vld [vmem:[%s1 + $0x270] sm:$0xf]
    %v623 = vld [vmem:[%s1 + $0x274] sm:$0xf]
    %v624 = vld [vmem:[%s1 + $0x278] sm:$0xf]
    %v625 = vld [vmem:[%s1 + $0x27c] sm:$0xf]
    %v626 = vld [vmem:[%s1 + $0x280] sm:$0xf]
    %v627 = vld [vmem:[%s1 + $0x284] sm:$0xf]
    %v628 = vld [vmem:[%s1 + $0x288] sm:$0xf]
    %v629 = vld [vmem:[%s1 + $0x28c] sm:$0xf]
    %v630 = vld [vmem:[%s1 + $0x290] sm:$0xf]
    %v631 = vld [vmem:[%s1 + $0x294] sm:$0xf]
    %v632 = vld [vmem:[%s1 + $0x298] sm:$0xf]
    %v633 = vld [vmem:[%s1 + $0x29c] sm:$0xf]
    %v634 = vld [vmem:[%s1 + $0x2a0] sm:$0xf]
    %v635 = vld [vmem:[%s1 + $0x2a4] sm:$0xf]
    %v636 = vld [vmem:[%s1 + $0x2a8] sm:$0xf]
    %v637 = vld [vmem:[%s1 + $0x2ac] sm:$0xf]
    %v638 = vld [vmem:[%s1 + $0x2b0] sm:$0xf]
    %v639 = vld [vmem:[%s1 + $0x2b4] sm:$0xf]
    %v640 = vld [vmem:[%s1 + $0x2b8] sm:$0xf]
    %v641 = vld [vmem:[%s1 + $0x2bc] sm:$0xf]
    %v642 = vld [vmem:[%s1 + $0x2c0] sm:$0xf]
    %v643 = vld [vmem:[%s1 + $0x2c4] sm:$0xf]
    %v644 = vld [vmem:[%s1 + $0x2c8] sm:$0xf]
    %v645 = vld [vmem:[%s1 + $0x2cc] sm:$0xf]
    %v646 = vld [vmem:[%s1 + $0x2d0] sm:$0xf]
    %v647 = vld [vmem:[%s1 + $0x2d4] sm:$0xf]
    %v648 = vld [vmem:[%s1 + $0x2d8] sm:$0xf]
    %v649 = vld [vmem:[%s1 + $0x2dc] sm:$0xf]
    %v650 = vld [vmem:[%s1 + $0x2e0] sm:$0xf]
    %v651 = vld [vmem:[%s1 + $0x2e4] sm:$0xf]
    %v652 = vld [vmem:[%s1 + $0x2e8] sm:$0xf]
    %v653 = vld [vmem:[%s1 + $0x2ec] sm:$0xf]
    %v654 = vld [vmem:[%s1 + $0x2f0] sm:$0xf]
    %v655 = vld [vmem:[%s1 + $0x2f4] sm:$0xf]
    %v656 = vld [vmem:[%s1 + $0x2f8] sm:$0xf]
    %v657 = vld [vmem:[%s1 + $0x2fc] sm:$0xf]
    %v658 = vld [vmem:[%s1 + $0x300] sm:$0xf]
    %v659 = vld [vmem:[%s1 + $0x304] sm:$0xf]
    %v660 = vld [vmem:[%s1 + $0x308] sm:$0xf]
    %v661 = vld [vmem:[%s1 + $0x30c] sm:$0xf]
    %v662 = vld [vmem:[%s1 + $0x310] sm:$0xf]
    %v663 = vld [vmem:[%s1 + $0x314] sm:$0xf]
    %v664 = vld [vmem:[%s1 + $0x318] sm:$0xf]
    %v665 = vld [vmem:[%s1 + $0x31c] sm:$0xf]
    %v666 = vld [vmem:[%s1 + $0x320] sm:$0xf]
    %v667 = vld [vmem:[%s1 + $0x324] sm:$0xf]
    %v668 = vld [vmem:[%s1 + $0x328] sm:$0xf]
    %v669 = vld [vmem:[%s1 + $0x32c] sm:$0xf]
    %v670 = vld [vmem:[%s1 + $0x330] sm:$0xf]
    %v671 = vld [vmem:[%s1 + $0x334] sm:$0xf]
    %v672 = vld [vmem:[%s1 + $0x338] sm:$0xf]
    %v673 = vld [vmem:[%s1 + $0x33c] sm:$0xf]
    %v674 = vld [vmem:[%s1 + $0x340] sm:$0xf]
    %v675 = vld [vmem:[%s1 + $0x344] sm:$0xf]
    %v676 = vld [vmem:[%s1 + $0x348] sm:$0xf]
    %v677 = vld [vmem:[%s1 + $0x34c] sm:$0xf]
    %v678 = vld [vmem:[%s1 + $0x350] sm:$0xf]
    %v679 = vld [vmem:[%s1 + $0x354] sm:$0xf]
    %v680 = vld [vmem:[%s1 + $0x358] sm:$0xf]
    %v681 = vld [vmem:[%s1 + $0x35c] sm:$0xf]
    %v682 = vld [vmem:[%s1 + $0x360] sm:$0xf]
    %v683 = vld [vmem:[%s1 + $0x364] sm:$0xf]
    %v684 = vld [vmem:[%s1 + $0x368] sm:$0xf]
    %v685 = vld [vmem:[%s1 + $0x36c] sm:$0xf]
    %v686 = vld [vmem:[%s1 + $0x370] sm:$0xf]
    %v687 = vld [vmem:[%s1 + $0x374] sm:$0xf]
    %v688 = vld [vmem:[%s1 + $0x378] sm:$0xf]
    %v689 = vld [vmem:[%s1 + $0x37c] sm:$0xf]
    %v690 = vld [vmem:[%s1 + $0x380] sm:$0xf]
    %v691 = vld [vmem:[%s1 + $0x384] sm:$0xf]
    %v692 = vld [vmem:[%s1 + $0x388] sm:$0xf]
    %v693 = vld [vmem:[%s1 + $0x38c] sm:$0xf]
    %v694 = vld [vmem:[%s1 + $0x390] sm:$0xf]
    %v695 = vld [vmem:[%s1 + $0x394] sm:$0xf]
    %v696 = vld [vmem:[%s1 + $0x398] sm:$0xf]
    %v697 = vld [vmem:[%s1 + $0x39c] sm:$0xf]
    %v698 = vld [vmem:[%s1 + $0x3a0] sm:$0xf]
    %v699 = vld [vmem:[%s1 + $0x3a4] sm:$0xf]
    %v700 = vld [vmem:[%s1 + $0x3a8] sm:$0xf]
    %v701 = vld [vmem:[%s1 + $0x3ac] sm:$0xf]
    %v702 = vld [vmem:[%s1 + $0x3b0] sm:$0xf]
    %v703 = vld [vmem:[%s1 + $0x3b4] sm:$0xf]
    %v704 = vld [vmem:[%s1 + $0x3b8] sm:$0xf]
    %v705 = vld [vmem:[%s1 + $0x3bc] sm:$0xf]
    %v706 = vld [vmem:[%s1 + $0x3c0] sm:$0xf]
    %v707 = vld [vmem:[%s1 + $0x3c4] sm:$0xf]
    %v708 = vld [vmem:[%s1 + $0x3c8] sm:$0xf]
    %v709 = vld [vmem:[%s1 + $0x3cc] sm:$0xf]
    %v710 = vld [vmem:[%s1 + $0x3d0] sm:$0xf]
    %v711 = vld [vmem:[%s1 + $0x3d4] sm:$0xf]
    %v712 = vld [vmem:[%s1 + $0x3d8] sm:$0xf]
    %v713 = vld [vmem:[%s1 + $0x3dc] sm:$0xf]
    %v714 = vld [vmem:[%s1 + $0x3e0] sm:$0xf]
    %v715 = vld [vmem:[%s1 + $0x3e4] sm:$0xf]
    %v716 = vld [vmem:[%s1 + $0x3e8] sm:$0xf]
    %v717 = vld [vmem:[%s1 + $0x3ec] sm:$0xf]
    %v718 = vld [vmem:[%s1 + $0x3f0] sm:$0xf]
    %v719 = vld [vmem:[%s1 + $0x3f4] sm:$0xf]
    %v720 = vld [vmem:[%s1 + $0x3f8] sm:$0xf]
    %v721 = vld [vmem:[%s1 + $0x3fc] sm:$0xf]
    %v722 = vld [vmem:[%s1 + $0x400] sm:$0xf]
    %v723 = vld [vmem:[%s1 + $0x404] sm:$0xf]
    %v724 = vld [vmem:[%s1 + $0x408] sm:$0xf]
    %v725 = vld [vmem:[%s1 + $0x40c] sm:$0xf]
    %v726 = vld [vmem:[%s1 + $0x410] sm:$0xf]
    %v727 = vld [vmem:[%s1 + $0x414] sm:$0xf]
    %v728 = vld [vmem:[%s1 + $0x418] sm:$0xf]
    %v729 = vld [vmem:[%s1 + $0x41c] sm:$0xf]
    %v730 = vld [vmem:[%s1 + $0x420] sm:$0xf]
    %v731 = vld [vmem:[%s1 + $0x424] sm:$0xf]
    %v732 = vld [vmem:[%s1 + $0x428] sm:$0xf]
    %v733 = vld [vmem:[%s1 + $0x42c] sm:$0xf]
    %v734 = vld [vmem:[%s1 + $0x430] sm:$0xf]
    %v735 = vld [vmem:[%s1 + $0x434] sm:$0xf]
    %v736 = vld [vmem:[%s1 + $0x438] sm:$0xf]
    %v737 = vld [vmem:[%s1 + $0x43c] sm:$0xf]
    %v738 = vld [vmem:[%s1 + $0x440] sm:$0xf]
    %v739 = vld [vmem:[%s1 + $0x444] sm:$0xf]
    %v740 = vld [vmem:[%s1 + $0x448] sm:$0xf]
    %v741 = vld [vmem:[%s1 + $0x44c] sm:$0xf]
    %v742 = vld [vmem:[%s1 + $0x450] sm:$0xf]
    %v743 = vld [vmem:[%s1 + $0x454] sm:$0xf]
    %v744 = vld [vmem:[%s1 + $0x458] sm:$0xf]
    %v745 = vld [vmem:[%s1 + $0x45c] sm:$0xf]
    %v746 = vld [vmem:[%s1 + $0x460] sm:$0xf]
    %v747 = vld [vmem:[%s1 + $0x464] sm:$0xf]
    %v748 = vld [vmem:[%s1 + $0x468] sm:$0xf]
    %v749 = vld [vmem:[%s1 + $0x46c] sm:$0xf]
    %v750 = vld [vmem:[%s1 + $0x470] sm:$0xf]
    %v751 = vld [vmem:[%s1 + $0x474] sm:$0xf]
    %v752 = vld [vmem:[%s1 + $0x478] sm:$0xf]
    %v753 = vld [vmem:[%s1 + $0x47c] sm:$0xf]
    %v754 = vld [vmem:[%s1 + $0x480] sm:$0xf]
    %v755 = vld [vmem:[%s1 + $0x484] sm:$0xf]
    %v756 = vld [vmem:[%s1 + $0x488] sm:$0xf]
    %v757 = vld [vmem:[%s1 + $0x48c] sm:$0xf]
    %v758 = vld [vmem:[%s1 + $0x490] sm:$0xf]
    %v759 = vld [vmem:[%s1 + $0x494] sm:$0xf]
    %v760 = vld [vmem:[%s1 + $0x498] sm:$0xf]
    %v761 = vld [vmem:[%s1 + $0x49c] sm:$0xf]
    %v762 = vld [vmem:[%s1 + $0x4a0] sm:$0xf]
    %v763 = vld [vmem:[%s1 + $0x4a4] sm:$0xf]
    %v764 = vld [vmem:[%s1 + $0x4a8] sm:$0xf]
    %v765 = vld [vmem:[%s1 + $0x4ac] sm:$0xf]
    %v766 = vld [vmem:[%s1 + $0x4b0] sm:$0xf]
    %v767 = vld [vmem:[%s1 + $0x4b4] sm:$0xf]
    %v768 = vld [vmem:[%s1 + $0x4b8] sm:$0xf]
    %v769 = vld [vmem:[%s1 + $0x4bc] sm:$0xf]
    %v770 = vld [vmem:[%s1 + $0x4c0] sm:$0xf]
    %v771 = vld [vmem:[%s1 + $0x4c4] sm:$0xf]
    %v772 = vld [vmem:[%s1 + $0x4c8] sm:$0xf]
    %v773 = vld [vmem:[%s1 + $0x4cc] sm:$0xf]
    %v774 = vld [vmem:[%s1 + $0x4d0] sm:$0xf]
    %v775 = vld [vmem:[%s1 + $0x4d4] sm:$0xf]
    %v776 = vld [vmem:[%s1 + $0x4d8] sm:$0xf]
    %v777 = vld [vmem:[%s1 + $0x4dc] sm:$0xf]
    %v778 = vld [vmem:[%s1 + $0x4e0] sm:$0xf]
    %v779 = vld [vmem:[%s1 + $0x4e4] sm:$0xf]
    %v780 = vld [vmem:[%s1 + $0x4e8] sm:$0xf]
    %v781 = vld [vmem:[%s1 + $0x4ec] sm:$0xf]
    %v782 = vld [vmem:[%s1 + $0x4f0] sm:$0xf]
    %v783 = vld [vmem:[%s1 + $0x4f4] sm:$0xf]
    %v784 = vld [vmem:[%s1 + $0x4f8] sm:$0xf]
    %v785 = vld [vmem:[%s1 + $0x4fc] sm:$0xf]
    %v786 = vld [vmem:[%s1 + $0x500] sm:$0xf]
    %v787 = vld [vmem:[%s1 + $0x504] sm:$0xf]
    %v788 = vld [vmem:[%s1 + $0x508] sm:$0xf]
    %v789 = vld [vmem:[%s1 + $0x50c] sm:$0xf]
    %v790 = vld [vmem:[%s1 + $0x510] sm:$0xf]
    %v791 = vld [vmem:[%s1 + $0x514] sm:$0xf]
    %v792 = vld [vmem:[%s1 + $0x518] sm:$0xf]
    %v793 = vld [vmem:[%s1 + $0x51c] sm:$0xf]
    %v794 = vld [vmem:[%s1 + $0x520] sm:$0xf]
    %v795 = vld [vmem:[%s1 + $0x524] sm:$0xf]
    %v796 = vld [vmem:[%s1 + $0x528] sm:$0xf]
    %v797 = vld [vmem:[%s1 + $0x52c] sm:$0xf]
    %v798 = vld [vmem:[%s1 + $0x530] sm:$0xf]
    %v799 = vld [vmem:[%s1 + $0x534] sm:$0xf]
    %v800 = vld [vmem:[%s1 + $0x538] sm:$0xf]
    %v801 = vld [vmem:[%s1 + $0x53c] sm:$0xf]
    %v802 = vld [vmem:[%s1 + $0x540] sm:$0xf]
    %v803 = vld [vmem:[%s1 + $0x544] sm:$0xf]
    %v804 = vld [vmem:[%s1 + $0x548] sm:$0xf]
    %v805 = vld [vmem:[%s1 + $0x54c] sm:$0xf]
    %v806 = vld [vmem:[%s1 + $0x550] sm:$0xf]
    %v807 = vld [vmem:[%s1 + $0x554] sm:$0xf]
    %v808 = vld [vmem:[%s1 + $0x558] sm:$0xf]
    %v809 = vld [vmem:[%s1 + $0x55c] sm:$0xf]
    %v810 = vld [vmem:[%s1 + $0x560] sm:$0xf]
    %v811 = vld [vmem:[%s1 + $0x564] sm:$0xf]
    %v812 = vld [vmem:[%s1 + $0x568] sm:$0xf]
    %v813 = vld [vmem:[%s1 + $0x56c] sm:$0xf]
    %v814 = vld [vmem:[%s1 + $0x570] sm:$0xf]
    %v815 = vld [vmem:[%s1 + $0x574] sm:$0xf]
    %v816 = vld [vmem:[%s1 + $0x578] sm:$0xf]
    %v817 = vld [vmem:[%s1 + $0x57c] sm:$0xf]
    %v818 = vld [vmem:[%s1 + $0x580] sm:$0xf]
    %v819 = vld [vmem:[%s1 + $0x584] sm:$0xf]
    %v820 = vld [vmem:[%s1 + $0x588] sm:$0xf]
    %v821 = vld [vmem:[%s1 + $0x58c] sm:$0xf]
    %v822 = vld [vmem:[%s1 + $0x590] sm:$0xf]
    %v823 = vld [vmem:[%s1 + $0x594] sm:$0xf]
    %v824 = vld [vmem:[%s1 + $0x598] sm:$0xf]
    %v825 = vld [vmem:[%s1 + $0x59c] sm:$0xf]
    %v826 = vld [vmem:[%s1 + $0x5a0] sm:$0xf]
    %v827 = vld [vmem:[%s1 + $0x5a4] sm:$0xf]
    %v828 = vld [vmem:[%s1 + $0x5a8] sm:$0xf]
    %v829 = vld [vmem:[%s1 + $0x5ac] sm:$0xf]
    %v830 = vld [vmem:[%s1 + $0x5b0] sm:$0xf]
    %v831 = vld [vmem:[%s1 + $0x5b4] sm:$0xf]
    %v832 = vld [vmem:[%s1 + $0x5b8] sm:$0xf]
    %v833 = vld [vmem:[%s1 + $0x5bc] sm:$0xf]
    %v834 = vld [vmem:[%s1 + $0x5c0] sm:$0xf]
    %v835 = vld [vmem:[%s1 + $0x5c4] sm:$0xf]
    %v836 = vld [vmem:[%s1 + $0x5c8] sm:$0xf]
    %v837 = vld [vmem:[%s1 + $0x5cc] sm:$0xf]
    %v838 = vld [vmem:[%s1 + $0x5d0] sm:$0xf]
    %v839 = vld [vmem:[%s1 + $0x5d4] sm:$0xf]
    %v840 = vld [vmem:[%s1 + $0x5d8] sm:$0xf]
    %v841 = vld [vmem:[%s1 + $0x5dc] sm:$0xf]
    %v842 = vld [vmem:[%s1 + $0x5e0] sm:$0xf]
    %v843 = vld [vmem:[%s1 + $0x5e4] sm:$0xf]
    %v844 = vld [vmem:[%s1 + $0x5e8] sm:$0xf]
    %v845 = vld [vmem:[%s1 + $0x5ec] sm:$0xf]
    %v846 = vld [vmem:[%s1 + $0x5f0] sm:$0xf]
    %v847 = vld [vmem:[%s1 + $0x5f4] sm:$0xf]
    %v848 = vld [vmem:[%s1 + $0x5f8] sm:$0xf]
    %v849 = vld [vmem:[%s1 + $0x5fc] sm:$0xf]
    %v850 = vld [vmem:[%s1 + $0x600] sm:$0xf]
    %v851 = vld [vmem:[%s1 + $0x604] sm:$0xf]
    %v852 = vld [vmem:[%s1 + $0x608] sm:$0xf]
    %v853 = vld [vmem:[%s1 + $0x60c] sm:$0xf]
    %v854 = vld [vmem:[%s1 + $0x610] sm:$0xf]
    %v855 = vld [vmem:[%s1 + $0x614] sm:$0xf]
    %v856 = vld [vmem:[%s1 + $0x618] sm:$0xf]
    %v857 = vld [vmem:[%s1 + $0x61c] sm:$0xf]
    %v858 = vld [vmem:[%s1 + $0x620] sm:$0xf]
    %v859 = vld [vmem:[%s1 + $0x624] sm:$0xf]
    %v860 = vld [vmem:[%s1 + $0x628] sm:$0xf]
    %v861 = vld [vmem:[%s1 + $0x62c] sm:$0xf]
    %v862 = vld [vmem:[%s1 + $0x630] sm:$0xf]
    %v863 = vld [vmem:[%s1 + $0x634] sm:$0xf]
    %v864 = vld [vmem:[%s1 + $0x638] sm:$0xf]
    %v865 = vld [vmem:[%s1 + $0x63c] sm:$0xf]
    %v866 = vld [vmem:[%s1 + $0x640] sm:$0xf]
    %v867 = vld [vmem:[%s1 + $0x644] sm:$0xf]
    %v868 = vld [vmem:[%s1 + $0x648] sm:$0xf]
    %v869 = vld [vmem:[%s1 + $0x64c] sm:$0xf]
    %v870 = vld [vmem:[%s1 + $0x650] sm:$0xf]
    %v871 = vld [vmem:[%s1 + $0x654] sm:$0xf]
    %v872 = vld [vmem:[%s1 + $0x658] sm:$0xf]
    %v873 = vld [vmem:[%s1 + $0x65c] sm:$0xf]
    %v874 = vld [vmem:[%s1 + $0x660] sm:$0xf]
    %v875 = vld [vmem:[%s1 + $0x664] sm:$0xf]
    %v876 = vld [vmem:[%s1 + $0x668] sm:$0xf]
    %v877 = vld [vmem:[%s1 + $0x66c] sm:$0xf]
    %v878 = vld [vmem:[%s1 + $0x670] sm:$0xf]
    %v879 = vld [vmem:[%s1 + $0x674] sm:$0xf]
    %v880 = vld [vmem:[%s1 + $0x678] sm:$0xf]
    %v881 = vld [vmem:[%s1 + $0x67c] sm:$0xf]
    %v882 = vld [vmem:[%s1 + $0x680] sm:$0xf]
    %v883 = vld [vmem:[%s1 + $0x684] sm:$0xf]
    %v884 = vld [vmem:[%s1 + $0x688] sm:$0xf]
    %v885 = vld [vmem:[%s1 + $0x68c] sm:$0xf]
    %v886 = vld [vmem:[%s1 + $0x690] sm:$0xf]
    %v887 = vld [vmem:[%s1 + $0x694] sm:$0xf]
    %v888 = vld [vmem:[%s1 + $0x698] sm:$0xf]
    %v889 = vld [vmem:[%s1 + $0x69c] sm:$0xf]
    %v890 = vld [vmem:[%s1 + $0x6a0] sm:$0xf]
    %v891 = vld [vmem:[%s1 + $0x6a4] sm:$0xf]
    %v892 = vld [vmem:[%s1 + $0x6a8] sm:$0xf]
    %v893 = vld [vmem:[%s1 + $0x6ac] sm:$0xf]
    %v894 = vld [vmem:[%s1 + $0x6b0] sm:$0xf]
    %v895 = vld [vmem:[%s1 + $0x6b4] sm:$0xf]
    %v896 = vld [vmem:[%s1 + $0x6b8] sm:$0xf]
    %v897 = vld [vmem:[%s1 + $0x6bc] sm:$0xf]
    %v898 = vld [vmem:[%s1 + $0x6c0] sm:$0xf]
    %v899 = vld [vmem:[%s1 + $0x6c4] sm:$0xf]
    %v900 = vld [vmem:[%s1 + $0x6c8] sm:$0xf]
    %v901 = vld [vmem:[%s1 + $0x6cc] sm:$0xf]
    %v902 = vld [vmem:[%s1 + $0x6d0] sm:$0xf]
    %v903 = vld [vmem:[%s1 + $0x6d4] sm:$0xf]
    %v904 = vld [vmem:[%s1 + $0x6d8] sm:$0xf]
    %v905 = vld [vmem:[%s1 + $0x6dc] sm:$0xf]
    %v906 = vld [vmem:[%s1 + $0x6e0] sm:$0xf]
    %v907 = vld [vmem:[%s1 + $0x6e4] sm:$0xf]
    %v908 = vld [vmem:[%s1 + $0x6e8] sm:$0xf]
    %v909 = vld [vmem:[%s1 + $0x6ec] sm:$0xf]
    %v910 = vld [vmem:[%s1 + $0x6f0] sm:$0xf]
    %v911 = vld [vmem:[%s1 + $0x6f4] sm:$0xf]
    %v912 = vld [vmem:[%s1 + $0x6f8] sm:$0xf]
    %v913 = vld [vmem:[%s1 + $0x6fc] sm:$0xf]
    %v914 = vld [vmem:[%s1 + $0x700] sm:$0xf]
    %v915 = vld [vmem:[%s1 + $0x704] sm:$0xf]
    %v916 = vld [vmem:[%s1 + $0x708] sm:$0xf]
    %v917 = vld [vmem:[%s1 + $0x70c] sm:$0xf]
    %v918 = vld [vmem:[%s1 + $0x710] sm:$0xf]
    %v919 = vld [vmem:[%s1 + $0x714] sm:$0xf]
    %v920 = vld [vmem:[%s1 + $0x718] sm:$0xf]
    %v921 = vld [vmem:[%s1 + $0x71c] sm:$0xf]
    %v922 = vld [vmem:[%s1 + $0x720] sm:$0xf]
    %v923 = vld [vmem:[%s1 + $0x724] sm:$0xf]
    %v924 = vld [vmem:[%s1 + $0x728] sm:$0xf]
    %v925 = vld [vmem:[%s1 + $0x72c] sm:$0xf]
    %v926 = vld [vmem:[%s1 + $0x730] sm:$0xf]
    %v927 = vld [vmem:[%s1 + $0x734] sm:$0xf]
    %v928 = vld [vmem:[%s1 + $0x738] sm:$0xf]
    %v929 = vld [vmem:[%s1 + $0x73c] sm:$0xf]
    %v930 = vld [vmem:[%s1 + $0x740] sm:$0xf]
    %v931 = vld [vmem:[%s1 + $0x744] sm:$0xf]
    %v932 = vld [vmem:[%s1 + $0x748] sm:$0xf]
    %v933 = vld [vmem:[%s1 + $0x74c] sm:$0xf]
    %v934 = vld [vmem:[%s1 + $0x750] sm:$0xf]
    %v935 = vld [vmem:[%s1 + $0x754] sm:$0xf]
    %v936 = vld [vmem:[%s1 + $0x758] sm:$0xf]
    %v937 = vld [vmem:[%s1 + $0x75c] sm:$0xf]
    %v938 = vld [vmem:[%s1 + $0x760] sm:$0xf]
    %v939 = vld [vmem:[%s1 + $0x764] sm:$0xf]
    %v940 = vld [vmem:[%s1 + $0x768] sm:$0xf]
    %v941 = vld [vmem:[%s1 + $0x76c] sm:$0xf]
    %v942 = vld [vmem:[%s1 + $0x770] sm:$0xf]
    %v943 = vld [vmem:[%s1 + $0x774] sm:$0xf]
    %v944 = vld [vmem:[%s1 + $0x778] sm:$0xf]
    %v945 = vld [vmem:[%s1 + $0x77c] sm:$0xf]
    %v946 = vld [vmem:[%s1 + $0x780] sm:$0xf]
    %v947 = vld [vmem:[%s1 + $0x784] sm:$0xf]
    %v948 = vld [vmem:[%s1 + $0x788] sm:$0xf]
    %v949 = vld [vmem:[%s1 + $0x78c] sm:$0xf]
    %v950 = vld [vmem:[%s1 + $0x790] sm:$0xf]
    %v951 = vld [vmem:[%s1 + $0x794] sm:$0xf]
    %v952 = vld [vmem:[%s1 + $0x798] sm:$0xf]
    %v953 = vld [vmem:[%s1 + $0x79c] sm:$0xf]
    %v954 = vld [vmem:[%s1 + $0x7a0] sm:$0xf]
    %v955 = vld [vmem:[%s1 + $0x7a4] sm:$0xf]
    %v956 = vld [vmem:[%s1 + $0x7a8] sm:$0xf]
    %v957 = vld [vmem:[%s1 + $0x7ac] sm:$0xf]
    %v958 = vld [vmem:[%s1 + $0x7b0] sm:$0xf]
    %v959 = vld [vmem:[%s1 + $0x7b4] sm:$0xf]
    %v960 = vld [vmem:[%s1 + $0x7b8] sm:$0xf]
    %v961 = vld [vmem:[%s1 + $0x7bc] sm:$0xf]
    %v962 = vld [vmem:[%s1 + $0x7c0] sm:$0xf]
    %v963 = vld [vmem:[%s1 + $0x7c4] sm:$0xf]
    %v964 = vld [vmem:[%s1 + $0x7c8] sm:$0xf]
    %v965 = vld [vmem:[%s1 + $0x7cc] sm:$0xf]
    %v966 = vld [vmem:[%s1 + $0x7d0] sm:$0xf]
    %v967 = vld [vmem:[%s1 + $0x7d4] sm:$0xf]
    %v968 = vld [vmem:[%s1 + $0x7d8] sm:$0xf]
    %v969 = vld [vmem:[%s1 + $0x7dc] sm:$0xf]
    %v970 = vld [vmem:[%s1 + $0x7e0] sm:$0xf]
    %v971 = vld [vmem:[%s1 + $0x7e4] sm:$0xf]
    %v972 = vld [vmem:[%s1 + $0x7e8] sm:$0xf]
    %v973 = vld [vmem:[%s1 + $0x7ec] sm:$0xf]
    %v974 = vld [vmem:[%s1 + $0x7f0] sm:$0xf]
    %v975 = vld [vmem:[%s1 + $0x7f4] sm:$0xf]
    %v976 = vld [vmem:[%s1 + $0x7f8] sm:$0xf]
    %v977 = vld [vmem:[%s1 + $0x7fc] sm:$0xf]
    %v978 = vld [vmem:[%s1 + $0x800] sm:$0xf]
    %v979 = vld [vmem:[%s1 + $0x804] sm:$0xf]
    %v980 = vld [vmem:[%s1 + $0x808] sm:$0xf]
    %v981 = vld [vmem:[%s1 + $0x80c] sm:$0xf]
    %v982 = vld [vmem:[%s1 + $0x810] sm:$0xf]
    %v983 = vld [vmem:[%s1 + $0x814] sm:$0xf]
    %v984 = vld [vmem:[%s1 + $0x818] sm:$0xf]
    %v985 = vld [vmem:[%s1 + $0x81c] sm:$0xf]
    %v986 = vld [vmem:[%s1 + $0x820] sm:$0xf]
    %v987 = vld [vmem:[%s1 + $0x824] sm:$0xf]
    %v988 = vld [vmem:[%s1 + $0x828] sm:$0xf]
    %v989 = vld [vmem:[%s1 + $0x82c] sm:$0xf]
    %v990 = vld [vmem:[%s1 + $0x830] sm:$0xf]
    %v991 = vld [vmem:[%s1 + $0x834] sm:$0xf]
    %v992 = vld [vmem:[%s1 + $0x838] sm:$0xf]
    %v993 = vld [vmem:[%s1 + $0x83c] sm:$0xf]
    %v994 = vld [vmem:[%s1 + $0x840] sm:$0xf]
    %v995 = vld [vmem:[%s1 + $0x844] sm:$0xf]
    %v996 = vld [vmem:[%s1 + $0x848] sm:$0xf]
    %v997 = vld [vmem:[%s1 + $0x84c] sm:$0xf]
    %v998 = vld [vmem:[%s1 + $0x850] sm:$0xf]
    %v999 = vld [vmem:[%s1 + $0x854] sm:$0xf]
    %v1000 = vld [vmem:[%s1 + $0x858] sm:$0xf]
    %v1001 = vld [vmem:[%s1 + $0x85c] sm:$0xf]
    %v1002 = vld [vmem:[%s1 + $0x860] sm:$0xf]
    %v1003 = vld [vmem:[%s1 + $0x864] sm:$0xf]
    %v1004 = vld [vmem:[%s1 + $0x868] sm:$0xf]
    %v1005 = vld [vmem:[%s1 + $0x86c] sm:$0xf]
    %v1006 = vld [vmem:[%s1 + $0x870] sm:$0xf]
    %v1007 = vld [vmem:[%s1 + $0x874] sm:$0xf]
    %v1008 = vld [vmem:[%s1 + $0x878] sm:$0xf]
    %v1009 = vld [vmem:[%s1 + $0x87c] sm:$0xf]
    %v1010 = vld [vmem:[%s1 + $0x880] sm:$0xf]
    %v1011 = vld [vmem:[%s1 + $0x884] sm:$0xf]
    %v1012 = vld [vmem:[%s1 + $0x888] sm:$0xf]
    %v1013 = vld [vmem:[%s1 + $0x88c] sm:$0xf]
    %v1014 = vld [vmem:[%s1 + $0x890] sm:$0xf]
    %v1015 = vld [vmem:[%s1 + $0x894] sm:$0xf]
    %v1016 = vld [vmem:[%s1 + $0x898] sm:$0xf]
    %v1017 = vld [vmem:[%s1 + $0x89c] sm:$0xf]
    %v1018 = vld [vmem:[%s1 + $0x8a0] sm:$0xf]
    %v1019 = vld [vmem:[%s1 + $0x8a4] sm:$0xf]
    %v1020 = vld [vmem:[%s1 + $0x8a8] sm:$0xf]
    %v1021 = vld [vmem:[%s1 + $0x8ac] sm:$0xf]
    %v1022 = vld [vmem:[%s1 + $0x8b0] sm:$0xf]
    %v1023 = vld [vmem:[%s1 + $0x8b4] sm:$0xf]
    %v1024 = vld [vmem:[%s1 + $0x8b8] sm:$0xf]
    %v1025 = vld [vmem:[%s1 + $0x8bc] sm:$0xf]
    %v1026 = vld [vmem:[%s1 + $0x8c0] sm:$0xf]
    %v1027 = vld [vmem:[%s1 + $0x8c4] sm:$0xf]
    %v1028 = vld [vmem:[%s1 + $0x8c8] sm:$0xf]
    %v1029 = vld [vmem:[%s1 + $0x8cc] sm:$0xf]
    %v1030 = vld [vmem:[%s1 + $0x8d0] sm:$0xf]
    %v1031 = vld [vmem:[%s1 + $0x8d4] sm:$0xf]
    %v1032 = vld [vmem:[%s1 + $0x8d8] sm:$0xf]
    %v1033 = vld [vmem:[%s1 + $0x8dc] sm:$0xf]
    %v1034 = vld [vmem:[%s1 + $0x8e0] sm:$0xf]
    %v1035 = vld [vmem:[%s1 + $0x8e4] sm:$0xf]
    %v1036 = vld [vmem:[%s1 + $0x8e8] sm:$0xf]
    %v1037 = vld [vmem:[%s1 + $0x8ec] sm:$0xf]
    %v1038 = vld [vmem:[%s1 + $0x8f0] sm:$0xf]
    %v1039 = vld [vmem:[%s1 + $0x8f4] sm:$0xf]
    %v1040 = vld [vmem:[%s1 + $0x8f8] sm:$0xf]
    %v1041 = vld [vmem:[%s1 + $0x8fc] sm:$0xf]
    %v1042 = vld [vmem:[%s1 + $0x900] sm:$0xf]
    %v1043 = vld [vmem:[%s1 + $0x904] sm:$0xf]
    %v1044 = vld [vmem:[%s1 + $0x908] sm:$0xf]
    %v1045 = vld [vmem:[%s1 + $0x90c] sm:$0xf]
    %v1046 = vld [vmem:[%s1 + $0x910] sm:$0xf]
    %v1047 = vld [vmem:[%s1 + $0x914] sm:$0xf]
    %v1048 = vld [vmem:[%s1 + $0x918] sm:$0xf]
    %v1049 = vld [vmem:[%s1 + $0x91c] sm:$0xf]
    %v1050 = vld [vmem:[%s1 + $0x920] sm:$0xf]
    %v1051 = vld [vmem:[%s1 + $0x924] sm:$0xf]
    %v1052 = vld [vmem:[%s1 + $0x928] sm:$0xf]
    %v1053 = vld [vmem:[%s1 + $0x92c] sm:$0xf]
    %v1054 = vld [vmem:[%s1 + $0x930] sm:$0xf]
    %v1055 = vld [vmem:[%s1 + $0x934] sm:$0xf]
    %v1056 = vld [vmem:[%s1 + $0x938] sm:$0xf]
    %v1057 = vld [vmem:[%s1 + $0x93c] sm:$0xf]
    %v1058 = vld [vmem:[%s1 + $0x940] sm:$0xf]
    %v1059 = vld [vmem:[%s1 + $0x944] sm:$0xf]
    %v1060 = vld [vmem:[%s1 + $0x948] sm:$0xf]
    %v1061 = vld [vmem:[%s1 + $0x94c] sm:$0xf]
    %v1062 = vld [vmem:[%s1 + $0x950] sm:$0xf]
    %v1063 = vld [vmem:[%s1 + $0x954] sm:$0xf]
    %v1064 = vld [vmem:[%s1 + $0x958] sm:$0xf]
    %v1065 = vld [vmem:[%s1 + $0x95c] sm:$0xf]
    %v1066 = vld [vmem:[%s1 + $0x960] sm:$0xf]
    %v1067 = vld [vmem:[%s1 + $0x964] sm:$0xf]
    %v1068 = vld [vmem:[%s1 + $0x968] sm:$0xf]
    %v1069 = vld [vmem:[%s1 + $0x96c] sm:$0xf]
    %v1070 = vld [vmem:[%s1 + $0x970] sm:$0xf]
    %v1071 = vld [vmem:[%s1 + $0x974] sm:$0xf]
    %v1072 = vld [vmem:[%s1 + $0x978] sm:$0xf]
    %v1073 = vld [vmem:[%s1 + $0x97c] sm:$0xf]
    %v1074 = vld [vmem:[%s1 + $0x980] sm:$0xf]
    %v1075 = vld [vmem:[%s1 + $0x984] sm:$0xf]
    %v1076 = vld [vmem:[%s1 + $0x988] sm:$0xf]
    %v1077 = vld [vmem:[%s1 + $0x98c] sm:$0xf]
    %v1078 = vld [vmem:[%s1 + $0x990] sm:$0xf]
    %v1079 = vld [vmem:[%s1 + $0x994] sm:$0xf]
    %v1080 = vld [vmem:[%s1 + $0x998] sm:$0xf]
    %v1081 = vld [vmem:[%s1 + $0x99c] sm:$0xf]
    %v1082 = vld [vmem:[%s1 + $0x9a0] sm:$0xf]
    %v1083 = vld [vmem:[%s1 + $0x9a4] sm:$0xf]
    %v1084 = vld [vmem:[%s1 + $0x9a8] sm:$0xf]
    %v1085 = vld [vmem:[%s1 + $0x9ac] sm:$0xf]
    %v1086 = vld [vmem:[%s1 + $0x9b0] sm:$0xf]
    %v1087 = vld [vmem:[%s1 + $0x9b4] sm:$0xf]
    %v1088 = vld [vmem:[%s1 + $0x9b8] sm:$0xf]
    %v1089 = vld [vmem:[%s1 + $0x9bc] sm:$0xf]
    %v1090 = vld [vmem:[%s1 + $0x9c0] sm:$0xf]
    %v1091 = vld [vmem:[%s1 + $0x9c4] sm:$0xf]
    %v1092 = vld [vmem:[%s1 + $0x9c8] sm:$0xf]
    %v1093 = vld [vmem:[%s1 + $0x9cc] sm:$0xf]
    %v1094 = vld [vmem:[%s1 + $0x9d0] sm:$0xf]
    %v1095 = vld [vmem:[%s1 + $0x9d4] sm:$0xf]
    %v1096 = vld [vmem:[%s1 + $0x9d8] sm:$0xf]
    %v1097 = vld [vmem:[%s1 + $0x9dc] sm:$0xf]
    %v1098 = vld [vmem:[%s1 + $0x9e0] sm:$0xf]
    %v1099 = vld [vmem:[%s1 + $0x9e4] sm:$0xf]
    %v1100 = vld [vmem:[%s1 + $0x9e8] sm:$0xf]
    %v1101 = vld [vmem:[%s1 + $0x9ec] sm:$0xf]
    %v1102 = vld [vmem:[%s1 + $0x9f0] sm:$0xf]
    %v1103 = vld [vmem:[%s1 + $0x9f4] sm:$0xf]
    %v1104 = vld [vmem:[%s1 + $0x9f8] sm:$0xf]
    %v1105 = vld [vmem:[%s1 + $0x9fc] sm:$0xf]
    %v1106 = vld [vmem:[%s1 + $0xa00] sm:$0xf]
    %v1107 = vld [vmem:[%s1 + $0xa04] sm:$0xf]
    %v1108 = vld [vmem:[%s1 + $0xa08] sm:$0xf]
    %v1109 = vld [vmem:[%s1 + $0xa0c] sm:$0xf]
    %v1110 = vld [vmem:[%s1 + $0xa10] sm:$0xf]
    %v1111 = vld [vmem:[%s1 + $0xa14] sm:$0xf]
    %v1112 = vld [vmem:[%s1 + $0xa18] sm:$0xf]
    %v1113 = vld [vmem:[%s1 + $0xa1c] sm:$0xf]
    %v1114 = vld [vmem:[%s1 + $0xa20] sm:$0xf]
    %v1115 = vld [vmem:[%s1 + $0xa24] sm:$0xf]
    %v1116 = vld [vmem:[%s1 + $0xa28] sm:$0xf]
    %v1117 = vld [vmem:[%s1 + $0xa2c] sm:$0xf]
    %v1118 = vld [vmem:[%s1 + $0xa30] sm:$0xf]
    %v1119 = vld [vmem:[%s1 + $0xa34] sm:$0xf]
    %v1120 = vld [vmem:[%s1 + $0xa38] sm:$0xf]
    %v1121 = vld [vmem:[%s1 + $0xa3c] sm:$0xf]
    %v1122 = vld [vmem:[%s1 + $0xa40] sm:$0xf]
    %v1123 = vld [vmem:[%s1 + $0xa44] sm:$0xf]
    %v1124 = vld [vmem:[%s1 + $0xa48] sm:$0xf]
    %v1125 = vld [vmem:[%s1 + $0xa4c] sm:$0xf]
    %v1126 = vld [vmem:[%s1 + $0xa50] sm:$0xf]
    %v1127 = vld [vmem:[%s1 + $0xa54] sm:$0xf]
    %v1128 = vld [vmem:[%s1 + $0xa58] sm:$0xf]
    %v1129 = vld [vmem:[%s1 + $0xa5c] sm:$0xf]
    %v1130 = vld [vmem:[%s1 + $0xa60] sm:$0xf]
    %v1131 = vld [vmem:[%s1 + $0xa64] sm:$0xf]
    %v1132 = vld [vmem:[%s1 + $0xa68] sm:$0xf]
    %v1133 = vld [vmem:[%s1 + $0xa6c] sm:$0xf]
    %v1134 = vld [vmem:[%s1 + $0xa70] sm:$0xf]
    %v1135 = vld [vmem:[%s1 + $0xa74] sm:$0xf]
    %v1136 = vld [vmem:[%s1 + $0xa78] sm:$0xf]
    %v1137 = vld [vmem:[%s1 + $0xa7c] sm:$0xf]
    %v1138 = vld [vmem:[%s1 + $0xa80] sm:$0xf]
    %v1139 = vld [vmem:[%s1 + $0xa84] sm:$0xf]
    %v1140 = vld [vmem:[%s1 + $0xa88] sm:$0xf]
    %v1141 = vld [vmem:[%s1 + $0xa8c] sm:$0xf]
    %v1142 = vld [vmem:[%s1 + $0xa90] sm:$0xf]
    %v1143 = vld [vmem:[%s1 + $0xa94] sm:$0xf]
    %v1144 = vld [vmem:[%s1 + $0xa98] sm:$0xf]
    %v1145 = vld [vmem:[%s1 + $0xa9c] sm:$0xf]
    %v1146 = vld [vmem:[%s1 + $0xaa0] sm:$0xf]
    %v1147 = vld [vmem:[%s1 + $0xaa4] sm:$0xf]
    %v1148 = vld [vmem:[%s1 + $0xaa8] sm:$0xf]
    %v1149 = vld [vmem:[%s1 + $0xaac] sm:$0xf]
    %v1150 = vld [vmem:[%s1 + $0xab0] sm:$0xf]
    %v1151 = vld [vmem:[%s1 + $0xab4] sm:$0xf]
    %v1152 = vld [vmem:[%s1 + $0xab8] sm:$0xf]
    %v1153 = vld [vmem:[%s1 + $0xabc] sm:$0xf]
    %v1154 = vld [vmem:[%s1 + $0xac0] sm:$0xf]
    %v1155 = vld [vmem:[%s1 + $0xac4] sm:$0xf]
    %v1156 = vld [vmem:[%s1 + $0xac8] sm:$0xf]
    %v1157 = vld [vmem:[%s1 + $0xacc] sm:$0xf]
    %v1158 = vld [vmem:[%s1 + $0xad0] sm:$0xf]
    %v1159 = vld [vmem:[%s1 + $0xad4] sm:$0xf]
    %v1160 = vld [vmem:[%s1 + $0xad8] sm:$0xf]
    %v1161 = vld [vmem:[%s1 + $0xadc] sm:$0xf]
    %v1162 = vld [vmem:[%s1 + $0xae0] sm:$0xf]
    %v1163 = vld [vmem:[%s1 + $0xae4] sm:$0xf]
    %v1164 = vld [vmem:[%s1 + $0xae8] sm:$0xf]
    %v1165 = vld [vmem:[%s1 + $0xaec] sm:$0xf]
    %v1166 = vld [vmem:[%s1 + $0xaf0] sm:$0xf]
    %v1167 = vld [vmem:[%s1 + $0xaf4] sm:$0xf]
    %v1168 = vld [vmem:[%s1 + $0xaf8] sm:$0xf]
    %v1169 = vld [vmem:[%s1 + $0xafc] sm:$0xf]
    %v1170 = vld [vmem:[%s1 + $0xb00] sm:$0xf]
    %v1171 = vld [vmem:[%s1 + $0xb04] sm:$0xf]
    %v1172 = vld [vmem:[%s1 + $0xb08] sm:$0xf]
    %v1173 = vld [vmem:[%s1 + $0xb0c] sm:$0xf]
    %v1174 = vld [vmem:[%s1 + $0xb10] sm:$0xf]
    %v1175 = vld [vmem:[%s1 + $0xb14] sm:$0xf]
    %v1176 = vld [vmem:[%s1 + $0xb18] sm:$0xf]
    %v1177 = vld [vmem:[%s1 + $0xb1c] sm:$0xf]
    %v1178 = vld [vmem:[%s1 + $0xb20] sm:$0xf]
    %v1179 = vld [vmem:[%s1 + $0xb24] sm:$0xf]
    %v1180 = vld [vmem:[%s1 + $0xb28] sm:$0xf]
    %v1181 = vld [vmem:[%s1 + $0xb2c] sm:$0xf]
    %v1182 = vld [vmem:[%s1 + $0xb30] sm:$0xf]
    %v1183 = vld [vmem:[%s1 + $0xb34] sm:$0xf]
    %v1184 = vld [vmem:[%s1 + $0xb38] sm:$0xf]
    %v1185 = vld [vmem:[%s1 + $0xb3c] sm:$0xf]
    %v1186 = vld [vmem:[%s1 + $0xb40] sm:$0xf]
    %v1187 = vld [vmem:[%s1 + $0xb44] sm:$0xf]
    %v1188 = vld [vmem:[%s1 + $0xb48] sm:$0xf]
    %v1189 = vld [vmem:[%s1 + $0xb4c] sm:$0xf]
    %v1190 = vld [vmem:[%s1 + $0xb50] sm:$0xf]
    %v1191 = vld [vmem:[%s1 + $0xb54] sm:$0xf]
    %v1192 = vld [vmem:[%s1 + $0xb58] sm:$0xf]
    %v1193 = vld [vmem:[%s1 + $0xb5c] sm:$0xf]
    %v1194 = vld [vmem:[%s1 + $0xb60] sm:$0xf]
    %v1195 = vld [vmem:[%s1 + $0xb64] sm:$0xf]
    %v1196 = vld [vmem:[%s1 + $0xb68] sm:$0xf]
    %v1197 = vld [vmem:[%s1 + $0xb6c] sm:$0xf]
    %v1198 = vld [vmem:[%s1 + $0xb70] sm:$0xf]
    %v1199 = vld [vmem:[%s1 + $0xb74] sm:$0xf]
    %v1200 = vld [vmem:[%s1 + $0xb78] sm:$0xf]
    %v1201 = vld [vmem:[%s1 + $0xb7c] sm:$0xf]
    %v1202 = vld [vmem:[%s1 + $0xb80] sm:$0xf]
    %v1203 = vld [vmem:[%s1 + $0xb84] sm:$0xf]
    %v1204 = vld [vmem:[%s1 + $0xb88] sm:$0xf]
    %v1205 = vld [vmem:[%s1 + $0xb8c] sm:$0xf]
    %v1206 = vld [vmem:[%s1 + $0xb90] sm:$0xf]
    %v1207 = vld [vmem:[%s1 + $0xb94] sm:$0xf]
    %v1208 = vld [vmem:[%s1 + $0xb98] sm:$0xf]
    %v1209 = vld [vmem:[%s1 + $0xb9c] sm:$0xf]
    %v1210 = vld [vmem:[%s1 + $0xba0] sm:$0xf]
    %v1211 = vld [vmem:[%s1 + $0xba4] sm:$0xf]
    %v1212 = vld [vmem:[%s1 + $0xba8] sm:$0xf]
    %v1213 = vld [vmem:[%s1 + $0xbac] sm:$0xf]
    %v1214 = vld [vmem:[%s1 + $0xbb0] sm:$0xf]
    %v1215 = vld [vmem:[%s1 + $0xbb4] sm:$0xf]
    %v1216 = vld [vmem:[%s1 + $0xbb8] sm:$0xf]
    %v1217 = vld [vmem:[%s1 + $0xbbc] sm:$0xf]
    %v1218 = vld [vmem:[%s1 + $0xbc0] sm:$0xf]
    %v1219 = vld [vmem:[%s1 + $0xbc4] sm:$0xf]
    %v1220 = vld [vmem:[%s1 + $0xbc8] sm:$0xf]
    %v1221 = vld [vmem:[%s1 + $0xbcc] sm:$0xf]
    %v1222 = vld [vmem:[%s1 + $0xbd0] sm:$0xf]
    %v1223 = vld [vmem:[%s1 + $0xbd4] sm:$0xf]
    %v1224 = vld [vmem:[%s1 + $0xbd8] sm:$0xf]
    %v1225 = vld [vmem:[%s1 + $0xbdc] sm:$0xf]
    %v1226 = vld [vmem:[%s1 + $0xbe0] sm:$0xf]
    %v1227 = vld [vmem:[%s1 + $0xbe4] sm:$0xf]
    %v1228 = vld [vmem:[%s1 + $0xbe8] sm:$0xf]
    %v1229 = vld [vmem:[%s1 + $0xbec] sm:$0xf]
    %v1230 = vld [vmem:[%s1 + $0xbf0] sm:$0xf]
    %v1231 = vld [vmem:[%s1 + $0xbf4] sm:$0xf]
    %v1232 = vld [vmem:[%s1 + $0xbf8] sm:$0xf]
    %v1233 = vld [vmem:[%s1 + $0xbfc] sm:$0xf]
    %v1234 = vld [vmem:[%s1 + $0xc00] sm:$0xf]
    %v1235 = vld [vmem:[%s1 + $0xc04] sm:$0xf]
    %v1236 = vld [vmem:[%s1 + $0xc08] sm:$0xf]
    %v1237 = vld [vmem:[%s1 + $0xc0c] sm:$0xf]
    %v1238 = vld [vmem:[%s1 + $0xc10] sm:$0xf]
    %v1239 = vld [vmem:[%s1 + $0xc14] sm:$0xf]
    %v1240 = vld [vmem:[%s1 + $0xc18] sm:$0xf]
    %v1241 = vld [vmem:[%s1 + $0xc1c] sm:$0xf]
    %v1242 = vld [vmem:[%s1 + $0xc20] sm:$0xf]
    %v1243 = vld [vmem:[%s1 + $0xc24] sm:$0xf]
    %v1244 = vld [vmem:[%s1 + $0xc28] sm:$0xf]
    %v1245 = vld [vmem:[%s1 + $0xc2c] sm:$0xf]
    %v1246 = vld [vmem:[%s1 + $0xc30] sm:$0xf]
    %v1247 = vld [vmem:[%s1 + $0xc34] sm:$0xf]
    %v1248 = vld [vmem:[%s1 + $0xc38] sm:$0xf]
    %v1249 = vld [vmem:[%s1 + $0xc3c] sm:$0xf]
    %v1250 = vld [vmem:[%s1 + $0xc40] sm:$0xf]
    %v1251 = vld [vmem:[%s1 + $0xc44] sm:$0xf]
    %v1252 = vld [vmem:[%s1 + $0xc48] sm:$0xf]
    %v1253 = vld [vmem:[%s1 + $0xc4c] sm:$0xf]
    %v1254 = vld [vmem:[%s1 + $0xc50] sm:$0xf]
    %v1255 = vld [vmem:[%s1 + $0xc54] sm:$0xf]
    %v1256 = vld [vmem:[%s1 + $0xc58] sm:$0xf]
    %v1257 = vld [vmem:[%s1 + $0xc5c] sm:$0xf]
    %v1258 = vld [vmem:[%s1 + $0xc60] sm:$0xf]
    %v1259 = vld [vmem:[%s1 + $0xc64] sm:$0xf]
    %v1260 = vld [vmem:[%s1 + $0xc68] sm:$0xf]
    %v1261 = vld [vmem:[%s1 + $0xc6c] sm:$0xf]
    %v1262 = vld [vmem:[%s1 + $0xc70] sm:$0xf]
    %v1263 = vld [vmem:[%s1 + $0xc74] sm:$0xf]
    %v1264 = vld [vmem:[%s1 + $0xc78] sm:$0xf]
    %v1265 = vld [vmem:[%s1 + $0xc7c] sm:$0xf]
    %v1266 = vld [vmem:[%s1 + $0xc80] sm:$0xf]
    %v1267 = vld [vmem:[%s1 + $0xc84] sm:$0xf]
    %v1268 = vld [vmem:[%s1 + $0xc88] sm:$0xf]
    %v1269 = vld [vmem:[%s1 + $0xc8c] sm:$0xf]
    %v1270 = vld [vmem:[%s1 + $0xc90] sm:$0xf]
    %v1271 = vld [vmem:[%s1 + $0xc94] sm:$0xf]
    %v1272 = vld [vmem:[%s1 + $0xc98] sm:$0xf]
    %v1273 = vld [vmem:[%s1 + $0xc9c] sm:$0xf]
    %v1274 = vld [vmem:[%s1 + $0xca0] sm:$0xf]
    %v1275 = vld [vmem:[%s1 + $0xca4] sm:$0xf]
    %v1276 = vld [vmem:[%s1 + $0xca8] sm:$0xf]
    %v1277 = vld [vmem:[%s1 + $0xcac] sm:$0xf]
    %v1278 = vld [vmem:[%s1 + $0xcb0] sm:$0xf]
    %v1279 = vld [vmem:[%s1 + $0xcb4] sm:$0xf]
    %v1280 = vld [vmem:[%s1 + $0xcb8] sm:$0xf]
    %v1281 = vld [vmem:[%s1 + $0xcbc] sm:$0xf]
    %v1282 = vld [vmem:[%s1 + $0xcc0] sm:$0xf]
    %v1283 = vld [vmem:[%s1 + $0xcc4] sm:$0xf]
    %v1284 = vld [vmem:[%s1 + $0xcc8] sm:$0xf]
    %v1285 = vld [vmem:[%s1 + $0xccc] sm:$0xf]
    %v1286 = vld [vmem:[%s1 + $0xcd0] sm:$0xf]
    %v1287 = vld [vmem:[%s1 + $0xcd4] sm:$0xf]
    %v1288 = vld [vmem:[%s1 + $0xcd8] sm:$0xf]
    %v1289 = vld [vmem:[%s1 + $0xcdc] sm:$0xf]
    %v1290 = vld [vmem:[%s1 + $0xce0] sm:$0xf]
    %v1291 = vld [vmem:[%s1 + $0xce4] sm:$0xf]
    %v1292 = vld [vmem:[%s1 + $0xce8] sm:$0xf]
    %v1293 = vld [vmem:[%s1 + $0xcec] sm:$0xf]
    %v1294 = vld [vmem:[%s1 + $0xcf0] sm:$0xf]
    %v1295 = vld [vmem:[%s1 + $0xcf4] sm:$0xf]
    %v1296 = vld [vmem:[%s1 + $0xcf8] sm:$0xf]
    %v1297 = vld [vmem:[%s1 + $0xcfc] sm:$0xf]
    %v1298 = vld [vmem:[%s1 + $0xd00] sm:$0xf]
    %v1299 = vld [vmem:[%s1 + $0xd04] sm:$0xf]
    %v1300 = vld [vmem:[%s1 + $0xd08] sm:$0xf]
    %v1301 = vld [vmem:[%s1 + $0xd0c] sm:$0xf]
    %v1302 = vld [vmem:[%s1 + $0xd10] sm:$0xf]
    %v1303 = vld [vmem:[%s1 + $0xd14] sm:$0xf]
    %v1304 = vld [vmem:[%s1 + $0xd18] sm:$0xf]
    %v1305 = vld [vmem:[%s1 + $0xd1c] sm:$0xf]
    %v1306 = vld [vmem:[%s1 + $0xd20] sm:$0xf]
    %v1307 = vld [vmem:[%s1 + $0xd24] sm:$0xf]
    %v1308 = vld [vmem:[%s1 + $0xd28] sm:$0xf]
    %v1309 = vld [vmem:[%s1 + $0xd2c] sm:$0xf]
    %v1310 = vld [vmem:[%s1 + $0xd30] sm:$0xf]
    %v1311 = vld [vmem:[%s1 + $0xd34] sm:$0xf]
    %v1312 = vld [vmem:[%s1 + $0xd38] sm:$0xf]
    %v1313 = vld [vmem:[%s1 + $0xd3c] sm:$0xf]
    %v1314 = vld [vmem:[%s1 + $0xd40] sm:$0xf]
    %v1315 = vld [vmem:[%s1 + $0xd44] sm:$0xf]
    %v1316 = vld [vmem:[%s1 + $0xd48] sm:$0xf]
    %v1317 = vld [vmem:[%s1 + $0xd4c] sm:$0xf]
    %v1318 = vld [vmem:[%s1 + $0xd50] sm:$0xf]
    %v1319 = vld [vmem:[%s1 + $0xd54] sm:$0xf]
    %v1320 = vld [vmem:[%s1 + $0xd58] sm:$0xf]
    %v1321 = vld [vmem:[%s1 + $0xd5c] sm:$0xf]
    %v1322 = vld [vmem:[%s1 + $0xd60] sm:$0xf]
    %v1323 = vld [vmem:[%s1 + $0xd64] sm:$0xf]
    %v1324 = vld [vmem:[%s1 + $0xd68] sm:$0xf]
    %v1325 = vld [vmem:[%s1 + $0xd6c] sm:$0xf]
    %v1326 = vld [vmem:[%s1 + $0xd70] sm:$0xf]
    %v1327 = vld [vmem:[%s1 + $0xd74] sm:$0xf]
    %v1328 = vld [vmem:[%s1 + $0xd78] sm:$0xf]
    %v1329 = vld [vmem:[%s1 + $0xd7c] sm:$0xf]
    %v1330 = vld [vmem:[%s1 + $0xd80] sm:$0xf]
    %v1331 = vld [vmem:[%s1 + $0xd84] sm:$0xf]
    %v1332 = vld [vmem:[%s1 + $0xd88] sm:$0xf]
    %v1333 = vld [vmem:[%s1 + $0xd8c] sm:$0xf]
    %v1334 = vld [vmem:[%s1 + $0xd90] sm:$0xf]
    %v1335 = vld [vmem:[%s1 + $0xd94] sm:$0xf]
    %v1336 = vld [vmem:[%s1 + $0xd98] sm:$0xf]
    %v1337 = vld [vmem:[%s1 + $0xd9c] sm:$0xf]
    %v1338 = vld [vmem:[%s1 + $0xda0] sm:$0xf]
    %v1339 = vld [vmem:[%s1 + $0xda4] sm:$0xf]
    %v1340 = vld [vmem:[%s1 + $0xda8] sm:$0xf]
    %v1341 = vld [vmem:[%s1 + $0xdac] sm:$0xf]
    %v1342 = vld [vmem:[%s1 + $0xdb0] sm:$0xf]
    %v1343 = vld [vmem:[%s1 + $0xdb4] sm:$0xf]
    %v1344 = vld [vmem:[%s1 + $0xdb8] sm:$0xf]
    %v1345 = vld [vmem:[%s1 + $0xdbc] sm:$0xf]
    %v1346 = vld [vmem:[%s1 + $0xdc0] sm:$0xf]
    %v1347 = vld [vmem:[%s1 + $0xdc4] sm:$0xf]
    %v1348 = vld [vmem:[%s1 + $0xdc8] sm:$0xf]
    %v1349 = vld [vmem:[%s1 + $0xdcc] sm:$0xf]
    %v1350 = vld [vmem:[%s1 + $0xdd0] sm:$0xf]
    %v1351 = vld [vmem:[%s1 + $0xdd4] sm:$0xf]
    %v1352 = vld [vmem:[%s1 + $0xdd8] sm:$0xf]
    %v1353 = vld [vmem:[%s1 + $0xddc] sm:$0xf]
    %v1354 = vld [vmem:[%s1 + $0xde0] sm:$0xf]
    %v1355 = vld [vmem:[%s1 + $0xde4] sm:$0xf]
    %v1356 = vld [vmem:[%s1 + $0xde8] sm:$0xf]
    %v1357 = vld [vmem:[%s1 + $0xdec] sm:$0xf]
    %v1358 = vld [vmem:[%s1 + $0xdf0] sm:$0xf]
    %v1359 = vld [vmem:[%s1 + $0xdf4] sm:$0xf]
    %v1360 = vld [vmem:[%s1 + $0xdf8] sm:$0xf]
    %v1361 = vld [vmem:[%s1 + $0xdfc] sm:$0xf]
    %v1362 = vld [vmem:[%s1 + $0xe00] sm:$0xf]
    %v1363 = vld [vmem:[%s1 + $0xe04] sm:$0xf]
    %v1364 = vld [vmem:[%s1 + $0xe08] sm:$0xf]
    %v1365 = vld [vmem:[%s1 + $0xe0c] sm:$0xf]
    %v1366 = vld [vmem:[%s1 + $0xe10] sm:$0xf]
    %v1367 = vld [vmem:[%s1 + $0xe14] sm:$0xf]
    %v1368 = vld [vmem:[%s1 + $0xe18] sm:$0xf]
    %v1369 = vld [vmem:[%s1 + $0xe1c] sm:$0xf]
    %v1370 = vld [vmem:[%s1 + $0xe20] sm:$0xf]
    %v1371 = vld [vmem:[%s1 + $0xe24] sm:$0xf]
    %v1372 = vld [vmem:[%s1 + $0xe28] sm:$0xf]
    %v1373 = vld [vmem:[%s1 + $0xe2c] sm:$0xf]
    %v1374 = vld [vmem:[%s1 + $0xe30] sm:$0xf]
    %v1375 = vld [vmem:[%s1 + $0xe34] sm:$0xf]
    %v1376 = vld [vmem:[%s1 + $0xe38] sm:$0xf]
    %v1377 = vld [vmem:[%s1 + $0xe3c] sm:$0xf]
    %v1378 = vld [vmem:[%s1 + $0xe40] sm:$0xf]
    %v1379 = vld [vmem:[%s1 + $0xe44] sm:$0xf]
    %v1380 = vld [vmem:[%s1 + $0xe48] sm:$0xf]
    %v1381 = vld [vmem:[%s1 + $0xe4c] sm:$0xf]
    %v1382 = vld [vmem:[%s1 + $0xe50] sm:$0xf]
    %v1383 = vld [vmem:[%s1 + $0xe54] sm:$0xf]
    %v1384 = vld [vmem:[%s1 + $0xe58] sm:$0xf]
    %v1385 = vld [vmem:[%s1 + $0xe5c] sm:$0xf]
    %v1386 = vld [vmem:[%s1 + $0xe60] sm:$0xf]
    %v1387 = vld [vmem:[%s1 + $0xe64] sm:$0xf]
    %v1388 = vld [vmem:[%s1 + $0xe68] sm:$0xf]
    %v1389 = vld [vmem:[%s1 + $0xe6c] sm:$0xf]
    %v1390 = vld [vmem:[%s1 + $0xe70] sm:$0xf]
    %v1391 = vld [vmem:[%s1 + $0xe74] sm:$0xf]
    %v1392 = vld [vmem:[%s1 + $0xe78] sm:$0xf]
    %v1393 = vld [vmem:[%s1 + $0xe7c] sm:$0xf]
    %v1394 = vld [vmem:[%s1 + $0xe80] sm:$0xf]
    %v1395 = vld [vmem:[%s1 + $0xe84] sm:$0xf]
    %v1396 = vld [vmem:[%s1 + $0xe88] sm:$0xf]
    %v1397 = vld [vmem:[%s1 + $0xe8c] sm:$0xf]
    %v1398 = vld [vmem:[%s1 + $0xe90] sm:$0xf]
    %v1399 = vld [vmem:[%s1 + $0xe94] sm:$0xf]
    %v1400 = vld [vmem:[%s1 + $0xe98] sm:$0xf]
    %v1401 = vld [vmem:[%s1 + $0xe9c] sm:$0xf]
    %v1402 = vld [vmem:[%s1 + $0xea0] sm:$0xf]
    %v1403 = vld [vmem:[%s1 + $0xea4] sm:$0xf]
    %v1404 = vld [vmem:[%s1 + $0xea8] sm:$0xf]
    %v1405 = vld [vmem:[%s1 + $0xeac] sm:$0xf]
    %v1406 = vld [vmem:[%s1 + $0xeb0] sm:$0xf]
    %v1407 = vld [vmem:[%s1 + $0xeb4] sm:$0xf]
    %v1408 = vld [vmem:[%s1 + $0xeb8] sm:$0xf]
    %v1409 = vld [vmem:[%s1 + $0xebc] sm:$0xf]
    %v1410 = vld [vmem:[%s1 + $0xec0] sm:$0xf]
    %v1411 = vld [vmem:[%s1 + $0xec4] sm:$0xf]
    %v1412 = vld [vmem:[%s1 + $0xec8] sm:$0xf]
    %v1413 = vld [vmem:[%s1 + $0xecc] sm:$0xf]
    %v1414 = vld [vmem:[%s1 + $0xed0] sm:$0xf]
    %v1415 = vld [vmem:[%s1 + $0xed4] sm:$0xf]
    %v1416 = vld [vmem:[%s1 + $0xed8] sm:$0xf]
    %v1417 = vld [vmem:[%s1 + $0xedc] sm:$0xf]
    %v1418 = vld [vmem:[%s1 + $0xee0] sm:$0xf]
    %v1419 = vld [vmem:[%s1 + $0xee4] sm:$0xf]
    %v1420 = vld [vmem:[%s1 + $0xee8] sm:$0xf]
    %v1421 = vld [vmem:[%s1 + $0xeec] sm:$0xf]
    %v1422 = vld [vmem:[%s1 + $0xef0] sm:$0xf]
    %v1423 = vld [vmem:[%s1 + $0xef4] sm:$0xf]
    %v1424 = vld [vmem:[%s1 + $0xef8] sm:$0xf]
    %v1425 = vld [vmem:[%s1 + $0xefc] sm:$0xf]
    %v1426 = vld [vmem:[%s1 + $0xf00] sm:$0xf]
    %v1427 = vld [vmem:[%s1 + $0xf04] sm:$0xf]
    %v1428 = vld [vmem:[%s1 + $0xf08] sm:$0xf]
    %v1429 = vld [vmem:[%s1 + $0xf0c] sm:$0xf]
    %v1430 = vld [vmem:[%s1 + $0xf10] sm:$0xf]
    %v1431 = vld [vmem:[%s1 + $0xf14] sm:$0xf]
    %v1432 = vld [vmem:[%s1 + $0xf18] sm:$0xf]
    %v1433 = vld [vmem:[%s1 + $0xf1c] sm:$0xf]
    %v1434 = vld [vmem:[%s1 + $0xf20] sm:$0xf]
    %v1435 = vld [vmem:[%s1 + $0xf24] sm:$0xf]
    %v1436 = vld [vmem:[%s1 + $0xf28] sm:$0xf]
    %v1437 = vld [vmem:[%s1 + $0xf2c] sm:$0xf]
    %v1438 = vld [vmem:[%s1 + $0xf30] sm:$0xf]
    %v1439 = vld [vmem:[%s1 + $0xf34] sm:$0xf]
    %v1440 = vld [vmem:[%s1 + $0xf38] sm:$0xf]
    %v1441 = vld [vmem:[%s1 + $0xf3c] sm:$0xf]
    %v1442 = vld [vmem:[%s1 + $0xf40] sm:$0xf]
    %v1443 = vld [vmem:[%s1 + $0xf44] sm:$0xf]
    %v1444 = vld [vmem:[%s1 + $0xf48] sm:$0xf]
    %v1445 = vld [vmem:[%s1 + $0xf4c] sm:$0xf]
    %v1446 = vld [vmem:[%s1 + $0xf50] sm:$0xf]
    %v1447 = vld [vmem:[%s1 + $0xf54] sm:$0xf]
    %v1448 = vld [vmem:[%s1 + $0xf58] sm:$0xf]
    %v1449 = vld [vmem:[%s1 + $0xf5c] sm:$0xf]
    %v1450 = vld [vmem:[%s1 + $0xf60] sm:$0xf]
    %v1451 = vld [vmem:[%s1 + $0xf64] sm:$0xf]
    %v1452 = vld [vmem:[%s1 + $0xf68] sm:$0xf]
    %v1453 = vld [vmem:[%s1 + $0xf6c] sm:$0xf]
    %v1454 = vld [vmem:[%s1 + $0xf70] sm:$0xf]
    %v1455 = vld [vmem:[%s1 + $0xf74] sm:$0xf]
    %v1456 = vld [vmem:[%s1 + $0xf78] sm:$0xf]
    %v1457 = vld [vmem:[%s1 + $0xf7c] sm:$0xf]
    %v1458 = vld [vmem:[%s1 + $0xf80] sm:$0xf]
    %v1459 = vld [vmem:[%s1 + $0xf84] sm:$0xf]
    %v1460 = vld [vmem:[%s1 + $0xf88] sm:$0xf]
    %v1461 = vld [vmem:[%s1 + $0xf8c] sm:$0xf]
    %v1462 = vld [vmem:[%s1 + $0xf90] sm:$0xf]
    %v1463 = vld [vmem:[%s1 + $0xf94] sm:$0xf]
    %v1464 = vld [vmem:[%s1 + $0xf98] sm:$0xf]
    %v1465 = vld [vmem:[%s1 + $0xf9c] sm:$0xf]
    %v1466 = vld [vmem:[%s1 + $0xfa0] sm:$0xf]
    %v1467 = vld [vmem:[%s1 + $0xfa4] sm:$0xf]
    %v1468 = vld [vmem:[%s1 + $0xfa8] sm:$0xf]
    %v1469 = vld [vmem:[%s1 + $0xfac] sm:$0xf]
    %v1470 = vld [vmem:[%s1 + $0xfb0] sm:$0xf]
    %v1471 = vld [vmem:[%s1 + $0xfb4] sm:$0xf]
    %v1472 = vld [vmem:[%s1 + $0xfb8] sm:$0xf]
    %v1473 = vld [vmem:[%s1 + $0xfbc] sm:$0xf]
    %v1474 = vld [vmem:[%s1 + $0xfc0] sm:$0xf]
    %v1475 = vld [vmem:[%s1 + $0xfc4] sm:$0xf]
    %v1476 = vld [vmem:[%s1 + $0xfc8] sm:$0xf]
    %v1477 = vld [vmem:[%s1 + $0xfcc] sm:$0xf]
    %v1478 = vld [vmem:[%s1 + $0xfd0] sm:$0xf]
    %v1479 = vld [vmem:[%s1 + $0xfd4] sm:$0xf]
    %v1480 = vld [vmem:[%s1 + $0xfd8] sm:$0xf]
    %v1481 = vld [vmem:[%s1 + $0xfdc] sm:$0xf]
    %v1482 = vld [vmem:[%s1 + $0xfe0] sm:$0xf]
    %v1483 = vld [vmem:[%s1 + $0xfe4] sm:$0xf]
    %v1484 = vld [vmem:[%s1 + $0xfe8] sm:$0xf]
    %v1485 = vld [vmem:[%s1 + $0xfec] sm:$0xf]
    %v1486 = vld [vmem:[%s1 + $0xff0] sm:$0xf]
    %v1487 = vld [vmem:[%s1 + $0xff4] sm:$0xf]
    %v1488 = vld [vmem:[%s1 + $0xff8] sm:$0xf]
    %v1489 = vld [vmem:[%s1 + $0xffc] sm:$0xf]
    %v1490 = vld [vmem:[%s2] sm:$0x1]
    %v1492 = vlaneseq
    %v1493 = vshrl.u32 %v1492, 7
    %v1494 = vsub.s32 0, %v1493
    %v1495 = vrot.slane %v1490, %v1494
    %v2521 = vunpack.c.l.b16 %v466
    %v2522 = vunpack.c.l.b16 %v467
    %v2523 = vunpack.c.l.b16 %v468
    %v2524 = vunpack.c.l.b16 %v469
    %v2525 = vunpack.c.l.b16 %v470
    %v2526 = vunpack.c.l.b16 %v471
    %v2527 = vunpack.c.l.b16 %v472
    %v2528 = vunpack.c.l.b16 %v473
    %v2529 = vunpack.c.l.b16 %v474
    %v2530 = vunpack.c.l.b16 %v475
    %v2531 = vunpack.c.l.b16 %v476
    %v2532 = vunpack.c.l.b16 %v477
    %v2533 = vunpack.c.l.b16 %v478
    %v2534 = vunpack.c.l.b16 %v479
    %v2535 = vunpack.c.l.b16 %v480
    %v2536 = vunpack.c.l.b16 %v481
    %v2537 = vunpack.c.l.b16 %v482
    %v2538 = vunpack.c.l.b16 %v483
    %v2539 = vunpack.c.l.b16 %v484
    %v2540 = vunpack.c.l.b16 %v485
    %v2541 = vunpack.c.l.b16 %v486
    %v2542 = vunpack.c.l.b16 %v487
    %v2543 = vunpack.c.l.b16 %v488
    %v2544 = vunpack.c.l.b16 %v489
    %v2545 = vunpack.c.l.b16 %v490
    %v2546 = vunpack.c.l.b16 %v491
    %v2547 = vunpack.c.l.b16 %v492
    %v2548 = vunpack.c.l.b16 %v493
    %v2549 = vunpack.c.l.b16 %v494
    %v2550 = vunpack.c.l.b16 %v495
    %v2551 = vunpack.c.l.b16 %v496
    %v2552 = vunpack.c.l.b16 %v497
    %v2553 = vunpack.c.l.b16 %v498
    %v2554 = vunpack.c.l.b16 %v499
    %v2555 = vunpack.c.l.b16 %v500
    %v2556 = vunpack.c.l.b16 %v501
    %v2557 = vunpack.c.l.b16 %v502
    %v2558 = vunpack.c.l.b16 %v503
    %v2559 = vunpack.c.l.b16 %v504
    %v2560 = vunpack.c.l.b16 %v505
    %v2561 = vunpack.c.l.b16 %v506
    %v2562 = vunpack.c.l.b16 %v507
    %v2563 = vunpack.c.l.b16 %v508
    %v2564 = vunpack.c.l.b16 %v509
    %v2565 = vunpack.c.l.b16 %v510
    %v2566 = vunpack.c.l.b16 %v511
    %v2567 = vunpack.c.l.b16 %v512
    %v2568 = vunpack.c.l.b16 %v513
    %v2569 = vunpack.c.l.b16 %v514
    %v2570 = vunpack.c.l.b16 %v515
    %v2571 = vunpack.c.l.b16 %v516
    %v2572 = vunpack.c.l.b16 %v517
    %v2573 = vunpack.c.l.b16 %v518
    %v2574 = vunpack.c.l.b16 %v519
    %v2575 = vunpack.c.l.b16 %v520
    %v2576 = vunpack.c.l.b16 %v521
    %v2577 = vunpack.c.l.b16 %v522
    %v2578 = vunpack.c.l.b16 %v523
    %v2579 = vunpack.c.l.b16 %v524
    %v2580 = vunpack.c.l.b16 %v525
    %v2581 = vunpack.c.l.b16 %v526
    %v2582 = vunpack.c.l.b16 %v527
    %v2583 = vunpack.c.l.b16 %v528
    %v2584 = vunpack.c.l.b16 %v529
    %v2585 = vunpack.c.l.b16 %v530
    %v2586 = vunpack.c.l.b16 %v531
    %v2587 = vunpack.c.l.b16 %v532
    %v2588 = vunpack.c.l.b16 %v533
    %v2589 = vunpack.c.l.b16 %v534
    %v2590 = vunpack.c.l.b16 %v535
    %v2591 = vunpack.c.l.b16 %v536
    %v2592 = vunpack.c.l.b16 %v537
    %v2593 = vunpack.c.l.b16 %v538
    %v2594 = vunpack.c.l.b16 %v539
    %v2595 = vunpack.c.l.b16 %v540
    %v2596 = vunpack.c.l.b16 %v541
    %v2597 = vunpack.c.l.b16 %v542
    %v2598 = vunpack.c.l.b16 %v543
    %v2599 = vunpack.c.l.b16 %v544
    %v2600 = vunpack.c.l.b16 %v545
    %v2601 = vunpack.c.l.b16 %v546
    %v2602 = vunpack.c.l.b16 %v547
    %v2603 = vunpack.c.l.b16 %v548
    %v2604 = vunpack.c.l.b16 %v549
    %v2605 = vunpack.c.l.b16 %v550
    %v2606 = vunpack.c.l.b16 %v551
    %v2607 = vunpack.c.l.b16 %v552
    %v2608 = vunpack.c.l.b16 %v553
    %v2609 = vunpack.c.l.b16 %v554
    %v2610 = vunpack.c.l.b16 %v555
    %v2611 = vunpack.c.l.b16 %v556
    %v2612 = vunpack.c.l.b16 %v557
    %v2613 = vunpack.c.l.b16 %v558
    %v2614 = vunpack.c.l.b16 %v559
    %v2615 = vunpack.c.l.b16 %v560
    %v2616 = vunpack.c.l.b16 %v561
    %v2617 = vunpack.c.l.b16 %v562
    %v2618 = vunpack.c.l.b16 %v563
    %v2619 = vunpack.c.l.b16 %v564
    %v2620 = vunpack.c.l.b16 %v565
    %v2621 = vunpack.c.l.b16 %v566
    %v2622 = vunpack.c.l.b16 %v567
    %v2623 = vunpack.c.l.b16 %v568
    %v2624 = vunpack.c.l.b16 %v569
    %v2625 = vunpack.c.l.b16 %v570
    %v2626 = vunpack.c.l.b16 %v571
    %v2627 = vunpack.c.l.b16 %v572
    %v2628 = vunpack.c.l.b16 %v573
    %v2629 = vunpack.c.l.b16 %v574
    %v2630 = vunpack.c.l.b16 %v575
    %v2631 = vunpack.c.l.b16 %v576
    %v2632 = vunpack.c.l.b16 %v577
    %v2633 = vunpack.c.l.b16 %v578
    %v2634 = vunpack.c.l.b16 %v579
    %v2635 = vunpack.c.l.b16 %v580
    %v2636 = vunpack.c.l.b16 %v581
    %v2637 = vunpack.c.l.b16 %v582
    %v2638 = vunpack.c.l.b16 %v583
    %v2639 = vunpack.c.l.b16 %v584
    %v2640 = vunpack.c.l.b16 %v585
    %v2641 = vunpack.c.l.b16 %v586
    %v2642 = vunpack.c.l.b16 %v587
    %v2643 = vunpack.c.l.b16 %v588
    %v2644 = vunpack.c.l.b16 %v589
    %v2645 = vunpack.c.l.b16 %v590
    %v2646 = vunpack.c.l.b16 %v591
    %v2647 = vunpack.c.l.b16 %v592
    %v2648 = vunpack.c.l.b16 %v593
    %v2649 = vunpack.c.l.b16 %v594
    %v2650 = vunpack.c.l.b16 %v595
    %v2651 = vunpack.c.l.b16 %v596
    %v2652 = vunpack.c.l.b16 %v597
    %v2653 = vunpack.c.l.b16 %v598
    %v2654 = vunpack.c.l.b16 %v599
    %v2655 = vunpack.c.l.b16 %v600
    %v2656 = vunpack.c.l.b16 %v601
    %v2657 = vunpack.c.l.b16 %v602
    %v2658 = vunpack.c.l.b16 %v603
    %v2659 = vunpack.c.l.b16 %v604
    %v2660 = vunpack.c.l.b16 %v605
    %v2661 = vunpack.c.l.b16 %v606
    %v2662 = vunpack.c.l.b16 %v607
    %v2663 = vunpack.c.l.b16 %v608
    %v2664 = vunpack.c.l.b16 %v609
    %v2665 = vunpack.c.l.b16 %v610
    %v2666 = vunpack.c.l.b16 %v611
    %v2667 = vunpack.c.l.b16 %v612
    %v2668 = vunpack.c.l.b16 %v613
    %v2669 = vunpack.c.l.b16 %v614
    %v2670 = vunpack.c.l.b16 %v615
    %v2671 = vunpack.c.l.b16 %v616
    %v2672 = vunpack.c.l.b16 %v617
    %v2673 = vunpack.c.l.b16 %v618
    %v2674 = vunpack.c.l.b16 %v619
    %v2675 = vunpack.c.l.b16 %v620
    %v2676 = vunpack.c.l.b16 %v621
    %v2677 = vunpack.c.l.b16 %v622
    %v2678 = vunpack.c.l.b16 %v623
    %v2679 = vunpack.c.l.b16 %v624
    %v2680 = vunpack.c.l.b16 %v625
    %v2681 = vunpack.c.l.b16 %v626
    %v2682 = vunpack.c.l.b16 %v627
    %v2683 = vunpack.c.l.b16 %v628
    %v2684 = vunpack.c.l.b16 %v629
    %v2685 = vunpack.c.l.b16 %v630
    %v2686 = vunpack.c.l.b16 %v631
    %v2687 = vunpack.c.l.b16 %v632
    %v2688 = vunpack.c.l.b16 %v633
    %v2689 = vunpack.c.l.b16 %v634
    %v2690 = vunpack.c.l.b16 %v635
    %v2691 = vunpack.c.l.b16 %v636
    %v2692 = vunpack.c.l.b16 %v637
    %v2693 = vunpack.c.l.b16 %v638
    %v2694 = vunpack.c.l.b16 %v639
    %v2695 = vunpack.c.l.b16 %v640
    %v2696 = vunpack.c.l.b16 %v641
    %v2697 = vunpack.c.l.b16 %v642
    %v2698 = vunpack.c.l.b16 %v643
    %v2699 = vunpack.c.l.b16 %v644
    %v2700 = vunpack.c.l.b16 %v645
    %v2701 = vunpack.c.l.b16 %v646
    %v2702 = vunpack.c.l.b16 %v647
    %v2703 = vunpack.c.l.b16 %v648
    %v2704 = vunpack.c.l.b16 %v649
    %v2705 = vunpack.c.l.b16 %v650
    %v2706 = vunpack.c.l.b16 %v651
    %v2707 = vunpack.c.l.b16 %v652
    %v2708 = vunpack.c.l.b16 %v653
    %v2709 = vunpack.c.l.b16 %v654
    %v2710 = vunpack.c.l.b16 %v655
    %v2711 = vunpack.c.l.b16 %v656
    %v2712 = vunpack.c.l.b16 %v657
    %v2713 = vunpack.c.l.b16 %v658
    %v2714 = vunpack.c.l.b16 %v659
    %v2715 = vunpack.c.l.b16 %v660
    %v2716 = vunpack.c.l.b16 %v661
    %v2717 = vunpack.c.l.b16 %v662
    %v2718 = vunpack.c.l.b16 %v663
    %v2719 = vunpack.c.l.b16 %v664
    %v2720 = vunpack.c.l.b16 %v665
    %v2721 = vunpack.c.l.b16 %v666
    %v2722 = vunpack.c.l.b16 %v667
    %v2723 = vunpack.c.l.b16 %v668
    %v2724 = vunpack.c.l.b16 %v669
    %v2725 = vunpack.c.l.b16 %v670
    %v2726 = vunpack.c.l.b16 %v671
    %v2727 = vunpack.c.l.b16 %v672
    %v2728 = vunpack.c.l.b16 %v673
    %v2729 = vunpack.c.l.b16 %v674
    %v2730 = vunpack.c.l.b16 %v675
    %v2731 = vunpack.c.l.b16 %v676
    %v2732 = vunpack.c.l.b16 %v677
    %v2733 = vunpack.c.l.b16 %v678
    %v2734 = vunpack.c.l.b16 %v679
    %v2735 = vunpack.c.l.b16 %v680
    %v2736 = vunpack.c.l.b16 %v681
    %v2737 = vunpack.c.l.b16 %v682
    %v2738 = vunpack.c.l.b16 %v683
    %v2739 = vunpack.c.l.b16 %v684
    %v2740 = vunpack.c.l.b16 %v685
    %v2741 = vunpack.c.l.b16 %v686
    %v2742 = vunpack.c.l.b16 %v687
    %v2743 = vunpack.c.l.b16 %v688
    %v2744 = vunpack.c.l.b16 %v689
    %v2745 = vunpack.c.l.b16 %v690
    %v2746 = vunpack.c.l.b16 %v691
    %v2747 = vunpack.c.l.b16 %v692
    %v2748 = vunpack.c.l.b16 %v693
    %v2749 = vunpack.c.l.b16 %v694
    %v2750 = vunpack.c.l.b16 %v695
    %v2751 = vunpack.c.l.b16 %v696
    %v2752 = vunpack.c.l.b16 %v697
    %v2753 = vunpack.c.l.b16 %v698
    %v2754 = vunpack.c.l.b16 %v699
    %v2755 = vunpack.c.l.b16 %v700
    %v2756 = vunpack.c.l.b16 %v701
    %v2757 = vunpack.c.l.b16 %v702
    %v2758 = vunpack.c.l.b16 %v703
    %v2759 = vunpack.c.l.b16 %v704
    %v2760 = vunpack.c.l.b16 %v705
    %v2761 = vunpack.c.l.b16 %v706
    %v2762 = vunpack.c.l.b16 %v707
    %v2763 = vunpack.c.l.b16 %v708
    %v2764 = vunpack.c.l.b16 %v709
    %v2765 = vunpack.c.l.b16 %v710
    %v2766 = vunpack.c.l.b16 %v711
    %v2767 = vunpack.c.l.b16 %v712
    %v2768 = vunpack.c.l.b16 %v713
    %v2769 = vunpack.c.l.b16 %v714
    %v2770 = vunpack.c.l.b16 %v715
    %v2771 = vunpack.c.l.b16 %v716
    %v2772 = vunpack.c.l.b16 %v717
    %v2773 = vunpack.c.l.b16 %v718
    %v2774 = vunpack.c.l.b16 %v719
    %v2775 = vunpack.c.l.b16 %v720
    %v2776 = vunpack.c.l.b16 %v721
    %v2777 = vunpack.c.l.b16 %v722
    %v2778 = vunpack.c.l.b16 %v723
    %v2779 = vunpack.c.l.b16 %v724
    %v2780 = vunpack.c.l.b16 %v725
    %v2781 = vunpack.c.l.b16 %v726
    %v2782 = vunpack.c.l.b16 %v727
    %v2783 = vunpack.c.l.b16 %v728
    %v2784 = vunpack.c.l.b16 %v729
    %v2785 = vunpack.c.l.b16 %v730
    %v2786 = vunpack.c.l.b16 %v731
    %v2787 = vunpack.c.l.b16 %v732
    %v2788 = vunpack.c.l.b16 %v733
    %v2789 = vunpack.c.l.b16 %v734
    %v2790 = vunpack.c.l.b16 %v735
    %v2791 = vunpack.c.l.b16 %v736
    %v2792 = vunpack.c.l.b16 %v737
    %v2793 = vunpack.c.l.b16 %v738
    %v2794 = vunpack.c.l.b16 %v739
    %v2795 = vunpack.c.l.b16 %v740
    %v2796 = vunpack.c.l.b16 %v741
    %v2797 = vunpack.c.l.b16 %v742
    %v2798 = vunpack.c.l.b16 %v743
    %v2799 = vunpack.c.l.b16 %v744
    %v2800 = vunpack.c.l.b16 %v745
    %v2801 = vunpack.c.l.b16 %v746
    %v2802 = vunpack.c.l.b16 %v747
    %v2803 = vunpack.c.l.b16 %v748
    %v2804 = vunpack.c.l.b16 %v749
    %v2805 = vunpack.c.l.b16 %v750
    %v2806 = vunpack.c.l.b16 %v751
    %v2807 = vunpack.c.l.b16 %v752
    %v2808 = vunpack.c.l.b16 %v753
    %v2809 = vunpack.c.l.b16 %v754
    %v2810 = vunpack.c.l.b16 %v755
    %v2811 = vunpack.c.l.b16 %v756
    %v2812 = vunpack.c.l.b16 %v757
    %v2813 = vunpack.c.l.b16 %v758
    %v2814 = vunpack.c.l.b16 %v759
    %v2815 = vunpack.c.l.b16 %v760
    %v2816 = vunpack.c.l.b16 %v761
    %v2817 = vunpack.c.l.b16 %v762
    %v2818 = vunpack.c.l.b16 %v763
    %v2819 = vunpack.c.l.b16 %v764
    %v2820 = vunpack.c.l.b16 %v765
    %v2821 = vunpack.c.l.b16 %v766
    %v2822 = vunpack.c.l.b16 %v767
    %v2823 = vunpack.c.l.b16 %v768
    %v2824 = vunpack.c.l.b16 %v769
    %v2825 = vunpack.c.l.b16 %v770
    %v2826 = vunpack.c.l.b16 %v771
    %v2827 = vunpack.c.l.b16 %v772
    %v2828 = vunpack.c.l.b16 %v773
    %v2829 = vunpack.c.l.b16 %v774
    %v2830 = vunpack.c.l.b16 %v775
    %v2831 = vunpack.c.l.b16 %v776
    %v2832 = vunpack.c.l.b16 %v777
    %v2833 = vunpack.c.l.b16 %v778
    %v2834 = vunpack.c.l.b16 %v779
    %v2835 = vunpack.c.l.b16 %v780
    %v2836 = vunpack.c.l.b16 %v781
    %v2837 = vunpack.c.l.b16 %v782
    %v2838 = vunpack.c.l.b16 %v783
    %v2839 = vunpack.c.l.b16 %v784
    %v2840 = vunpack.c.l.b16 %v785
    %v2841 = vunpack.c.l.b16 %v786
    %v2842 = vunpack.c.l.b16 %v787
    %v2843 = vunpack.c.l.b16 %v788
    %v2844 = vunpack.c.l.b16 %v789
    %v2845 = vunpack.c.l.b16 %v790
    %v2846 = vunpack.c.l.b16 %v791
    %v2847 = vunpack.c.l.b16 %v792
    %v2848 = vunpack.c.l.b16 %v793
    %v2849 = vunpack.c.l.b16 %v794
    %v2850 = vunpack.c.l.b16 %v795
    %v2851 = vunpack.c.l.b16 %v796
    %v2852 = vunpack.c.l.b16 %v797
    %v2853 = vunpack.c.l.b16 %v798
    %v2854 = vunpack.c.l.b16 %v799
    %v2855 = vunpack.c.l.b16 %v800
    %v2856 = vunpack.c.l.b16 %v801
    %v2857 = vunpack.c.l.b16 %v802
    %v2858 = vunpack.c.l.b16 %v803
    %v2859 = vunpack.c.l.b16 %v804
    %v2860 = vunpack.c.l.b16 %v805
    %v2861 = vunpack.c.l.b16 %v806
    %v2862 = vunpack.c.l.b16 %v807
    %v2863 = vunpack.c.l.b16 %v808
    %v2864 = vunpack.c.l.b16 %v809
    %v2865 = vunpack.c.l.b16 %v810
    %v2866 = vunpack.c.l.b16 %v811
    %v2867 = vunpack.c.l.b16 %v812
    %v2868 = vunpack.c.l.b16 %v813
    %v2869 = vunpack.c.l.b16 %v814
    %v2870 = vunpack.c.l.b16 %v815
    %v2871 = vunpack.c.l.b16 %v816
    %v2872 = vunpack.c.l.b16 %v817
    %v2873 = vunpack.c.l.b16 %v818
    %v2874 = vunpack.c.l.b16 %v819
    %v2875 = vunpack.c.l.b16 %v820
    %v2876 = vunpack.c.l.b16 %v821
    %v2877 = vunpack.c.l.b16 %v822
    %v2878 = vunpack.c.l.b16 %v823
    %v2879 = vunpack.c.l.b16 %v824
    %v2880 = vunpack.c.l.b16 %v825
    %v2881 = vunpack.c.l.b16 %v826
    %v2882 = vunpack.c.l.b16 %v827
    %v2883 = vunpack.c.l.b16 %v828
    %v2884 = vunpack.c.l.b16 %v829
    %v2885 = vunpack.c.l.b16 %v830
    %v2886 = vunpack.c.l.b16 %v831
    %v2887 = vunpack.c.l.b16 %v832
    %v2888 = vunpack.c.l.b16 %v833
    %v2889 = vunpack.c.l.b16 %v834
    %v2890 = vunpack.c.l.b16 %v835
    %v2891 = vunpack.c.l.b16 %v836
    %v2892 = vunpack.c.l.b16 %v837
    %v2893 = vunpack.c.l.b16 %v838
    %v2894 = vunpack.c.l.b16 %v839
    %v2895 = vunpack.c.l.b16 %v840
    %v2896 = vunpack.c.l.b16 %v841
    %v2897 = vunpack.c.l.b16 %v842
    %v2898 = vunpack.c.l.b16 %v843
    %v2899 = vunpack.c.l.b16 %v844
    %v2900 = vunpack.c.l.b16 %v845
    %v2901 = vunpack.c.l.b16 %v846
    %v2902 = vunpack.c.l.b16 %v847
    %v2903 = vunpack.c.l.b16 %v848
    %v2904 = vunpack.c.l.b16 %v849
    %v2905 = vunpack.c.l.b16 %v850
    %v2906 = vunpack.c.l.b16 %v851
    %v2907 = vunpack.c.l.b16 %v852
    %v2908 = vunpack.c.l.b16 %v853
    %v2909 = vunpack.c.l.b16 %v854
    %v2910 = vunpack.c.l.b16 %v855
    %v2911 = vunpack.c.l.b16 %v856
    %v2912 = vunpack.c.l.b16 %v857
    %v2913 = vunpack.c.l.b16 %v858
    %v2914 = vunpack.c.l.b16 %v859
    %v2915 = vunpack.c.l.b16 %v860
    %v2916 = vunpack.c.l.b16 %v861
    %v2917 = vunpack.c.l.b16 %v862
    %v2918 = vunpack.c.l.b16 %v863
    %v2919 = vunpack.c.l.b16 %v864
    %v2920 = vunpack.c.l.b16 %v865
    %v2921 = vunpack.c.l.b16 %v866
    %v2922 = vunpack.c.l.b16 %v867
    %v2923 = vunpack.c.l.b16 %v868
    %v2924 = vunpack.c.l.b16 %v869
    %v2925 = vunpack.c.l.b16 %v870
    %v2926 = vunpack.c.l.b16 %v871
    %v2927 = vunpack.c.l.b16 %v872
    %v2928 = vunpack.c.l.b16 %v873
    %v2929 = vunpack.c.l.b16 %v874
    %v2930 = vunpack.c.l.b16 %v875
    %v2931 = vunpack.c.l.b16 %v876
    %v2932 = vunpack.c.l.b16 %v877
    %v2933 = vunpack.c.l.b16 %v878
    %v2934 = vunpack.c.l.b16 %v879
    %v2935 = vunpack.c.l.b16 %v880
    %v2936 = vunpack.c.l.b16 %v881
    %v2937 = vunpack.c.l.b16 %v882
    %v2938 = vunpack.c.l.b16 %v883
    %v2939 = vunpack.c.l.b16 %v884
    %v2940 = vunpack.c.l.b16 %v885
    %v2941 = vunpack.c.l.b16 %v886
    %v2942 = vunpack.c.l.b16 %v887
    %v2943 = vunpack.c.l.b16 %v888
    %v2944 = vunpack.c.l.b16 %v889
    %v2945 = vunpack.c.l.b16 %v890
    %v2946 = vunpack.c.l.b16 %v891
    %v2947 = vunpack.c.l.b16 %v892
    %v2948 = vunpack.c.l.b16 %v893
    %v2949 = vunpack.c.l.b16 %v894
    %v2950 = vunpack.c.l.b16 %v895
    %v2951 = vunpack.c.l.b16 %v896
    %v2952 = vunpack.c.l.b16 %v897
    %v2953 = vunpack.c.l.b16 %v898
    %v2954 = vunpack.c.l.b16 %v899
    %v2955 = vunpack.c.l.b16 %v900
    %v2956 = vunpack.c.l.b16 %v901
    %v2957 = vunpack.c.l.b16 %v902
    %v2958 = vunpack.c.l.b16 %v903
    %v2959 = vunpack.c.l.b16 %v904
    %v2960 = vunpack.c.l.b16 %v905
    %v2961 = vunpack.c.l.b16 %v906
    %v2962 = vunpack.c.l.b16 %v907
    %v2963 = vunpack.c.l.b16 %v908
    %v2964 = vunpack.c.l.b16 %v909
    %v2965 = vunpack.c.l.b16 %v910
    %v2966 = vunpack.c.l.b16 %v911
    %v2967 = vunpack.c.l.b16 %v912
    %v2968 = vunpack.c.l.b16 %v913
    %v2969 = vunpack.c.l.b16 %v914
    %v2970 = vunpack.c.l.b16 %v915
    %v2971 = vunpack.c.l.b16 %v916
    %v2972 = vunpack.c.l.b16 %v917
    %v2973 = vunpack.c.l.b16 %v918
    %v2974 = vunpack.c.l.b16 %v919
    %v2975 = vunpack.c.l.b16 %v920
    %v2976 = vunpack.c.l.b16 %v921
    %v2977 = vunpack.c.l.b16 %v922
    %v2978 = vunpack.c.l.b16 %v923
    %v2979 = vunpack.c.l.b16 %v924
    %v2980 = vunpack.c.l.b16 %v925
    %v2981 = vunpack.c.l.b16 %v926
    %v2982 = vunpack.c.l.b16 %v927
    %v2983 = vunpack.c.l.b16 %v928
    %v2984 = vunpack.c.l.b16 %v929
    %v2985 = vunpack.c.l.b16 %v930
    %v2986 = vunpack.c.l.b16 %v931
    %v2987 = vunpack.c.l.b16 %v932
    %v2988 = vunpack.c.l.b16 %v933
    %v2989 = vunpack.c.l.b16 %v934
    %v2990 = vunpack.c.l.b16 %v935
    %v2991 = vunpack.c.l.b16 %v936
    %v2992 = vunpack.c.l.b16 %v937
    %v2993 = vunpack.c.l.b16 %v938
    %v2994 = vunpack.c.l.b16 %v939
    %v2995 = vunpack.c.l.b16 %v940
    %v2996 = vunpack.c.l.b16 %v941
    %v2997 = vunpack.c.l.b16 %v942
    %v2998 = vunpack.c.l.b16 %v943
    %v2999 = vunpack.c.l.b16 %v944
    %v3000 = vunpack.c.l.b16 %v945
    %v3001 = vunpack.c.l.b16 %v946
    %v3002 = vunpack.c.l.b16 %v947
    %v3003 = vunpack.c.l.b16 %v948
    %v3004 = vunpack.c.l.b16 %v949
    %v3005 = vunpack.c.l.b16 %v950
    %v3006 = vunpack.c.l.b16 %v951
    %v3007 = vunpack.c.l.b16 %v952
    %v3008 = vunpack.c.l.b16 %v953
    %v3009 = vunpack.c.l.b16 %v954
    %v3010 = vunpack.c.l.b16 %v955
    %v3011 = vunpack.c.l.b16 %v956
    %v3012 = vunpack.c.l.b16 %v957
    %v3013 = vunpack.c.l.b16 %v958
    %v3014 = vunpack.c.l.b16 %v959
    %v3015 = vunpack.c.l.b16 %v960
    %v3016 = vunpack.c.l.b16 %v961
    %v3017 = vunpack.c.l.b16 %v962
    %v3018 = vunpack.c.l.b16 %v963
    %v3019 = vunpack.c.l.b16 %v964
    %v3020 = vunpack.c.l.b16 %v965
    %v3021 = vunpack.c.l.b16 %v966
    %v3022 = vunpack.c.l.b16 %v967
    %v3023 = vunpack.c.l.b16 %v968
    %v3024 = vunpack.c.l.b16 %v969
    %v3025 = vunpack.c.l.b16 %v970
    %v3026 = vunpack.c.l.b16 %v971
    %v3027 = vunpack.c.l.b16 %v972
    %v3028 = vunpack.c.l.b16 %v973
    %v3029 = vunpack.c.l.b16 %v974
    %v3030 = vunpack.c.l.b16 %v975
    %v3031 = vunpack.c.l.b16 %v976
    %v3032 = vunpack.c.l.b16 %v977
    %v3033 = vunpack.c.l.b16 %v978
    %v3034 = vunpack.c.l.b16 %v979
    %v3035 = vunpack.c.l.b16 %v980
    %v3036 = vunpack.c.l.b16 %v981
    %v3037 = vunpack.c.l.b16 %v982
    %v3038 = vunpack.c.l.b16 %v983
    %v3039 = vunpack.c.l.b16 %v984
    %v3040 = vunpack.c.l.b16 %v985
    %v3041 = vunpack.c.l.b16 %v986
    %v3042 = vunpack.c.l.b16 %v987
    %v3043 = vunpack.c.l.b16 %v988
    %v3044 = vunpack.c.l.b16 %v989
    %v3045 = vunpack.c.l.b16 %v990
    %v3046 = vunpack.c.l.b16 %v991
    %v3047 = vunpack.c.l.b16 %v992
    %v3048 = vunpack.c.l.b16 %v993
    %v3049 = vunpack.c.l.b16 %v994
    %v3050 = vunpack.c.l.b16 %v995
    %v3051 = vunpack.c.l.b16 %v996
    %v3052 = vunpack.c.l.b16 %v997
    %v3053 = vunpack.c.l.b16 %v998
    %v3054 = vunpack.c.l.b16 %v999
    %v3055 = vunpack.c.l.b16 %v1000
    %v3056 = vunpack.c.l.b16 %v1001
    %v3057 = vunpack.c.l.b16 %v1002
    %v3058 = vunpack.c.l.b16 %v1003
    %v3059 = vunpack.c.l.b16 %v1004
    %v3060 = vunpack.c.l.b16 %v1005
    %v3061 = vunpack.c.l.b16 %v1006
    %v3062 = vunpack.c.l.b16 %v1007
    %v3063 = vunpack.c.l.b16 %v1008
    %v3064 = vunpack.c.l.b16 %v1009
    %v3065 = vunpack.c.l.b16 %v1010
    %v3066 = vunpack.c.l.b16 %v1011
    %v3067 = vunpack.c.l.b16 %v1012
    %v3068 = vunpack.c.l.b16 %v1013
    %v3069 = vunpack.c.l.b16 %v1014
    %v3070 = vunpack.c.l.b16 %v1015
    %v3071 = vunpack.c.l.b16 %v1016
    %v3072 = vunpack.c.l.b16 %v1017
    %v3073 = vunpack.c.l.b16 %v1018
    %v3074 = vunpack.c.l.b16 %v1019
    %v3075 = vunpack.c.l.b16 %v1020
    %v3076 = vunpack.c.l.b16 %v1021
    %v3077 = vunpack.c.l.b16 %v1022
    %v3078 = vunpack.c.l.b16 %v1023
    %v3079 = vunpack.c.l.b16 %v1024
    %v3080 = vunpack.c.l.b16 %v1025
    %v3081 = vunpack.c.l.b16 %v1026
    %v3082 = vunpack.c.l.b16 %v1027
    %v3083 = vunpack.c.l.b16 %v1028
    %v3084 = vunpack.c.l.b16 %v1029
    %v3085 = vunpack.c.l.b16 %v1030
    %v3086 = vunpack.c.l.b16 %v1031
    %v3087 = vunpack.c.l.b16 %v1032
    %v3088 = vunpack.c.l.b16 %v1033
    %v3089 = vunpack.c.l.b16 %v1034
    %v3090 = vunpack.c.l.b16 %v1035
    %v3091 = vunpack.c.l.b16 %v1036
    %v3092 = vunpack.c.l.b16 %v1037
    %v3093 = vunpack.c.l.b16 %v1038
    %v3094 = vunpack.c.l.b16 %v1039
    %v3095 = vunpack.c.l.b16 %v1040
    %v3096 = vunpack.c.l.b16 %v1041
    %v3097 = vunpack.c.l.b16 %v1042
    %v3098 = vunpack.c.l.b16 %v1043
    %v3099 = vunpack.c.l.b16 %v1044
    %v3100 = vunpack.c.l.b16 %v1045
    %v3101 = vunpack.c.l.b16 %v1046
    %v3102 = vunpack.c.l.b16 %v1047
    %v3103 = vunpack.c.l.b16 %v1048
    %v3104 = vunpack.c.l.b16 %v1049
    %v3105 = vunpack.c.l.b16 %v1050
    %v3106 = vunpack.c.l.b16 %v1051
    %v3107 = vunpack.c.l.b16 %v1052
    %v3108 = vunpack.c.l.b16 %v1053
    %v3109 = vunpack.c.l.b16 %v1054
    %v3110 = vunpack.c.l.b16 %v1055
    %v3111 = vunpack.c.l.b16 %v1056
    %v3112 = vunpack.c.l.b16 %v1057
    %v3113 = vunpack.c.l.b16 %v1058
    %v3114 = vunpack.c.l.b16 %v1059
    %v3115 = vunpack.c.l.b16 %v1060
    %v3116 = vunpack.c.l.b16 %v1061
    %v3117 = vunpack.c.l.b16 %v1062
    %v3118 = vunpack.c.l.b16 %v1063
    %v3119 = vunpack.c.l.b16 %v1064
    %v3120 = vunpack.c.l.b16 %v1065
    %v3121 = vunpack.c.l.b16 %v1066
    %v3122 = vunpack.c.l.b16 %v1067
    %v3123 = vunpack.c.l.b16 %v1068
    %v3124 = vunpack.c.l.b16 %v1069
    %v3125 = vunpack.c.l.b16 %v1070
    %v3126 = vunpack.c.l.b16 %v1071
    %v3127 = vunpack.c.l.b16 %v1072
    %v3128 = vunpack.c.l.b16 %v1073
    %v3129 = vunpack.c.l.b16 %v1074
    %v3130 = vunpack.c.l.b16 %v1075
    %v3131 = vunpack.c.l.b16 %v1076
    %v3132 = vunpack.c.l.b16 %v1077
    %v3133 = vunpack.c.l.b16 %v1078
    %v3134 = vunpack.c.l.b16 %v1079
    %v3135 = vunpack.c.l.b16 %v1080
    %v3136 = vunpack.c.l.b16 %v1081
    %v3137 = vunpack.c.l.b16 %v1082
    %v3138 = vunpack.c.l.b16 %v1083
    %v3139 = vunpack.c.l.b16 %v1084
    %v3140 = vunpack.c.l.b16 %v1085
    %v3141 = vunpack.c.l.b16 %v1086
    %v3142 = vunpack.c.l.b16 %v1087
    %v3143 = vunpack.c.l.b16 %v1088
    %v3144 = vunpack.c.l.b16 %v1089
    %v3145 = vunpack.c.l.b16 %v1090
    %v3146 = vunpack.c.l.b16 %v1091
    %v3147 = vunpack.c.l.b16 %v1092
    %v3148 = vunpack.c.l.b16 %v1093
    %v3149 = vunpack.c.l.b16 %v1094
    %v3150 = vunpack.c.l.b16 %v1095
    %v3151 = vunpack.c.l.b16 %v1096
    %v3152 = vunpack.c.l.b16 %v1097
    %v3153 = vunpack.c.l.b16 %v1098
    %v3154 = vunpack.c.l.b16 %v1099
    %v3155 = vunpack.c.l.b16 %v1100
    %v3156 = vunpack.c.l.b16 %v1101
    %v3157 = vunpack.c.l.b16 %v1102
    %v3158 = vunpack.c.l.b16 %v1103
    %v3159 = vunpack.c.l.b16 %v1104
    %v3160 = vunpack.c.l.b16 %v1105
    %v3161 = vunpack.c.l.b16 %v1106
    %v3162 = vunpack.c.l.b16 %v1107
    %v3163 = vunpack.c.l.b16 %v1108
    %v3164 = vunpack.c.l.b16 %v1109
    %v3165 = vunpack.c.l.b16 %v1110
    %v3166 = vunpack.c.l.b16 %v1111
    %v3167 = vunpack.c.l.b16 %v1112
    %v3168 = vunpack.c.l.b16 %v1113
    %v3169 = vunpack.c.l.b16 %v1114
    %v3170 = vunpack.c.l.b16 %v1115
    %v3171 = vunpack.c.l.b16 %v1116
    %v3172 = vunpack.c.l.b16 %v1117
    %v3173 = vunpack.c.l.b16 %v1118
    %v3174 = vunpack.c.l.b16 %v1119
    %v3175 = vunpack.c.l.b16 %v1120
    %v3176 = vunpack.c.l.b16 %v1121
    %v3177 = vunpack.c.l.b16 %v1122
    %v3178 = vunpack.c.l.b16 %v1123
    %v3179 = vunpack.c.l.b16 %v1124
    %v3180 = vunpack.c.l.b16 %v1125
    %v3181 = vunpack.c.l.b16 %v1126
    %v3182 = vunpack.c.l.b16 %v1127
    %v3183 = vunpack.c.l.b16 %v1128
    %v3184 = vunpack.c.l.b16 %v1129
    %v3185 = vunpack.c.l.b16 %v1130
    %v3186 = vunpack.c.l.b16 %v1131
    %v3187 = vunpack.c.l.b16 %v1132
    %v3188 = vunpack.c.l.b16 %v1133
    %v3189 = vunpack.c.l.b16 %v1134
    %v3190 = vunpack.c.l.b16 %v1135
    %v3191 = vunpack.c.l.b16 %v1136
    %v3192 = vunpack.c.l.b16 %v1137
    %v3193 = vunpack.c.l.b16 %v1138
    %v3194 = vunpack.c.l.b16 %v1139
    %v3195 = vunpack.c.l.b16 %v1140
    %v3196 = vunpack.c.l.b16 %v1141
    %v3197 = vunpack.c.l.b16 %v1142
    %v3198 = vunpack.c.l.b16 %v1143
    %v3199 = vunpack.c.l.b16 %v1144
    %v3200 = vunpack.c.l.b16 %v1145
    %v3201 = vunpack.c.l.b16 %v1146
    %v3202 = vunpack.c.l.b16 %v1147
    %v3203 = vunpack.c.l.b16 %v1148
    %v3204 = vunpack.c.l.b16 %v1149
    %v3205 = vunpack.c.l.b16 %v1150
    %v3206 = vunpack.c.l.b16 %v1151
    %v3207 = vunpack.c.l.b16 %v1152
    %v3208 = vunpack.c.l.b16 %v1153
    %v3209 = vunpack.c.l.b16 %v1154
    %v3210 = vunpack.c.l.b16 %v1155
    %v3211 = vunpack.c.l.b16 %v1156
    %v3212 = vunpack.c.l.b16 %v1157
    %v3213 = vunpack.c.l.b16 %v1158
    %v3214 = vunpack.c.l.b16 %v1159
    %v3215 = vunpack.c.l.b16 %v1160
    %v3216 = vunpack.c.l.b16 %v1161
    %v3217 = vunpack.c.l.b16 %v1162
    %v3218 = vunpack.c.l.b16 %v1163
    %v3219 = vunpack.c.l.b16 %v1164
    %v3220 = vunpack.c.l.b16 %v1165
    %v3221 = vunpack.c.l.b16 %v1166
    %v3222 = vunpack.c.l.b16 %v1167
    %v3223 = vunpack.c.l.b16 %v1168
    %v3224 = vunpack.c.l.b16 %v1169
    %v3225 = vunpack.c.l.b16 %v1170
    %v3226 = vunpack.c.l.b16 %v1171
    %v3227 = vunpack.c.l.b16 %v1172
    %v3228 = vunpack.c.l.b16 %v1173
    %v3229 = vunpack.c.l.b16 %v1174
    %v3230 = vunpack.c.l.b16 %v1175
    %v3231 = vunpack.c.l.b16 %v1176
    %v3232 = vunpack.c.l.b16 %v1177
    %v3233 = vunpack.c.l.b16 %v1178
    %v3234 = vunpack.c.l.b16 %v1179
    %v3235 = vunpack.c.l.b16 %v1180
    %v3236 = vunpack.c.l.b16 %v1181
    %v3237 = vunpack.c.l.b16 %v1182
    %v3238 = vunpack.c.l.b16 %v1183
    %v3239 = vunpack.c.l.b16 %v1184
    %v3240 = vunpack.c.l.b16 %v1185
    %v3241 = vunpack.c.l.b16 %v1186
    %v3242 = vunpack.c.l.b16 %v1187
    %v3243 = vunpack.c.l.b16 %v1188
    %v3244 = vunpack.c.l.b16 %v1189
    %v3245 = vunpack.c.l.b16 %v1190
    %v3246 = vunpack.c.l.b16 %v1191
    %v3247 = vunpack.c.l.b16 %v1192
    %v3248 = vunpack.c.l.b16 %v1193
    %v3249 = vunpack.c.l.b16 %v1194
    %v3250 = vunpack.c.l.b16 %v1195
    %v3251 = vunpack.c.l.b16 %v1196
    %v3252 = vunpack.c.l.b16 %v1197
    %v3253 = vunpack.c.l.b16 %v1198
    %v3254 = vunpack.c.l.b16 %v1199
    %v3255 = vunpack.c.l.b16 %v1200
    %v3256 = vunpack.c.l.b16 %v1201
    %v3257 = vunpack.c.l.b16 %v1202
    %v3258 = vunpack.c.l.b16 %v1203
    %v3259 = vunpack.c.l.b16 %v1204
    %v3260 = vunpack.c.l.b16 %v1205
    %v3261 = vunpack.c.l.b16 %v1206
    %v3262 = vunpack.c.l.b16 %v1207
    %v3263 = vunpack.c.l.b16 %v1208
    %v3264 = vunpack.c.l.b16 %v1209
    %v3265 = vunpack.c.l.b16 %v1210
    %v3266 = vunpack.c.l.b16 %v1211
    %v3267 = vunpack.c.l.b16 %v1212
    %v3268 = vunpack.c.l.b16 %v1213
    %v3269 = vunpack.c.l.b16 %v1214
    %v3270 = vunpack.c.l.b16 %v1215
    %v3271 = vunpack.c.l.b16 %v1216
    %v3272 = vunpack.c.l.b16 %v1217
    %v3273 = vunpack.c.l.b16 %v1218
    %v3274 = vunpack.c.l.b16 %v1219
    %v3275 = vunpack.c.l.b16 %v1220
    %v3276 = vunpack.c.l.b16 %v1221
    %v3277 = vunpack.c.l.b16 %v1222
    %v3278 = vunpack.c.l.b16 %v1223
    %v3279 = vunpack.c.l.b16 %v1224
    %v3280 = vunpack.c.l.b16 %v1225
    %v3281 = vunpack.c.l.b16 %v1226
    %v3282 = vunpack.c.l.b16 %v1227
    %v3283 = vunpack.c.l.b16 %v1228
    %v3284 = vunpack.c.l.b16 %v1229
    %v3285 = vunpack.c.l.b16 %v1230
    %v3286 = vunpack.c.l.b16 %v1231
    %v3287 = vunpack.c.l.b16 %v1232
    %v3288 = vunpack.c.l.b16 %v1233
    %v3289 = vunpack.c.l.b16 %v1234
    %v3290 = vunpack.c.l.b16 %v1235
    %v3291 = vunpack.c.l.b16 %v1236
    %v3292 = vunpack.c.l.b16 %v1237
    %v3293 = vunpack.c.l.b16 %v1238
    %v3294 = vunpack.c.l.b16 %v1239
    %v3295 = vunpack.c.l.b16 %v1240
    %v3296 = vunpack.c.l.b16 %v1241
    %v3297 = vunpack.c.l.b16 %v1242
    %v3298 = vunpack.c.l.b16 %v1243
    %v3299 = vunpack.c.l.b16 %v1244
    %v3300 = vunpack.c.l.b16 %v1245
    %v3301 = vunpack.c.l.b16 %v1246
    %v3302 = vunpack.c.l.b16 %v1247
    %v3303 = vunpack.c.l.b16 %v1248
    %v3304 = vunpack.c.l.b16 %v1249
    %v3305 = vunpack.c.l.b16 %v1250
    %v3306 = vunpack.c.l.b16 %v1251
    %v3307 = vunpack.c.l.b16 %v1252
    %v3308 = vunpack.c.l.b16 %v1253
    %v3309 = vunpack.c.l.b16 %v1254
    %v3310 = vunpack.c.l.b16 %v1255
    %v3311 = vunpack.c.l.b16 %v1256
    %v3312 = vunpack.c.l.b16 %v1257
    %v3313 = vunpack.c.l.b16 %v1258
    %v3314 = vunpack.c.l.b16 %v1259
    %v3315 = vunpack.c.l.b16 %v1260
    %v3316 = vunpack.c.l.b16 %v1261
    %v3317 = vunpack.c.l.b16 %v1262
    %v3318 = vunpack.c.l.b16 %v1263
    %v3319 = vunpack.c.l.b16 %v1264
    %v3320 = vunpack.c.l.b16 %v1265
    %v3321 = vunpack.c.l.b16 %v1266
    %v3322 = vunpack.c.l.b16 %v1267
    %v3323 = vunpack.c.l.b16 %v1268
    %v3324 = vunpack.c.l.b16 %v1269
    %v3325 = vunpack.c.l.b16 %v1270
    %v3326 = vunpack.c.l.b16 %v1271
    %v3327 = vunpack.c.l.b16 %v1272
    %v3328 = vunpack.c.l.b16 %v1273
    %v3329 = vunpack.c.l.b16 %v1274
    %v3330 = vunpack.c.l.b16 %v1275
    %v3331 = vunpack.c.l.b16 %v1276
    %v3332 = vunpack.c.l.b16 %v1277
    %v3333 = vunpack.c.l.b16 %v1278
    %v3334 = vunpack.c.l.b16 %v1279
    %v3335 = vunpack.c.l.b16 %v1280
    %v3336 = vunpack.c.l.b16 %v1281
    %v3337 = vunpack.c.l.b16 %v1282
    %v3338 = vunpack.c.l.b16 %v1283
    %v3339 = vunpack.c.l.b16 %v1284
    %v3340 = vunpack.c.l.b16 %v1285
    %v3341 = vunpack.c.l.b16 %v1286
    %v3342 = vunpack.c.l.b16 %v1287
    %v3343 = vunpack.c.l.b16 %v1288
    %v3344 = vunpack.c.l.b16 %v1289
    %v3345 = vunpack.c.l.b16 %v1290
    %v3346 = vunpack.c.l.b16 %v1291
    %v3347 = vunpack.c.l.b16 %v1292
    %v3348 = vunpack.c.l.b16 %v1293
    %v3349 = vunpack.c.l.b16 %v1294
    %v3350 = vunpack.c.l.b16 %v1295
    %v3351 = vunpack.c.l.b16 %v1296
    %v3352 = vunpack.c.l.b16 %v1297
    %v3353 = vunpack.c.l.b16 %v1298
    %v3354 = vunpack.c.l.b16 %v1299
    %v3355 = vunpack.c.l.b16 %v1300
    %v3356 = vunpack.c.l.b16 %v1301
    %v3357 = vunpack.c.l.b16 %v1302
    %v3358 = vunpack.c.l.b16 %v1303
    %v3359 = vunpack.c.l.b16 %v1304
    %v3360 = vunpack.c.l.b16 %v1305
    %v3361 = vunpack.c.l.b16 %v1306
    %v3362 = vunpack.c.l.b16 %v1307
    %v3363 = vunpack.c.l.b16 %v1308
    %v3364 = vunpack.c.l.b16 %v1309
    %v3365 = vunpack.c.l.b16 %v1310
    %v3366 = vunpack.c.l.b16 %v1311
    %v3367 = vunpack.c.l.b16 %v1312
    %v3368 = vunpack.c.l.b16 %v1313
    %v3369 = vunpack.c.l.b16 %v1314
    %v3370 = vunpack.c.l.b16 %v1315
    %v3371 = vunpack.c.l.b16 %v1316
    %v3372 = vunpack.c.l.b16 %v1317
    %v3373 = vunpack.c.l.b16 %v1318
    %v3374 = vunpack.c.l.b16 %v1319
    %v3375 = vunpack.c.l.b16 %v1320
    %v3376 = vunpack.c.l.b16 %v1321
    %v3377 = vunpack.c.l.b16 %v1322
    %v3378 = vunpack.c.l.b16 %v1323
    %v3379 = vunpack.c.l.b16 %v1324
    %v3380 = vunpack.c.l.b16 %v1325
    %v3381 = vunpack.c.l.b16 %v1326
    %v3382 = vunpack.c.l.b16 %v1327
    %v3383 = vunpack.c.l.b16 %v1328
    %v3384 = vunpack.c.l.b16 %v1329
    %v3385 = vunpack.c.l.b16 %v1330
    %v3386 = vunpack.c.l.b16 %v1331
    %v3387 = vunpack.c.l.b16 %v1332
    %v3388 = vunpack.c.l.b16 %v1333
    %v3389 = vunpack.c.l.b16 %v1334
    %v3390 = vunpack.c.l.b16 %v1335
    %v3391 = vunpack.c.l.b16 %v1336
    %v3392 = vunpack.c.l.b16 %v1337
    %v3393 = vunpack.c.l.b16 %v1338
    %v3394 = vunpack.c.l.b16 %v1339
    %v3395 = vunpack.c.l.b16 %v1340
    %v3396 = vunpack.c.l.b16 %v1341
    %v3397 = vunpack.c.l.b16 %v1342
    %v3398 = vunpack.c.l.b16 %v1343
    %v3399 = vunpack.c.l.b16 %v1344
    %v3400 = vunpack.c.l.b16 %v1345
    %v3401 = vunpack.c.l.b16 %v1346
    %v3402 = vunpack.c.l.b16 %v1347
    %v3403 = vunpack.c.l.b16 %v1348
    %v3404 = vunpack.c.l.b16 %v1349
    %v3405 = vunpack.c.l.b16 %v1350
    %v3406 = vunpack.c.l.b16 %v1351
    %v3407 = vunpack.c.l.b16 %v1352
    %v3408 = vunpack.c.l.b16 %v1353
    %v3409 = vunpack.c.l.b16 %v1354
    %v3410 = vunpack.c.l.b16 %v1355
    %v3411 = vunpack.c.l.b16 %v1356
    %v3412 = vunpack.c.l.b16 %v1357
    %v3413 = vunpack.c.l.b16 %v1358
    %v3414 = vunpack.c.l.b16 %v1359
    %v3415 = vunpack.c.l.b16 %v1360
    %v3416 = vunpack.c.l.b16 %v1361
    %v3417 = vunpack.c.l.b16 %v1362
    %v3418 = vunpack.c.l.b16 %v1363
    %v3419 = vunpack.c.l.b16 %v1364
    %v3420 = vunpack.c.l.b16 %v1365
    %v3421 = vunpack.c.l.b16 %v1366
    %v3422 = vunpack.c.l.b16 %v1367
    %v3423 = vunpack.c.l.b16 %v1368
    %v3424 = vunpack.c.l.b16 %v1369
    %v3425 = vunpack.c.l.b16 %v1370
    %v3426 = vunpack.c.l.b16 %v1371
    %v3427 = vunpack.c.l.b16 %v1372
    %v3428 = vunpack.c.l.b16 %v1373
    %v3429 = vunpack.c.l.b16 %v1374
    %v3430 = vunpack.c.l.b16 %v1375
    %v3431 = vunpack.c.l.b16 %v1376
    %v3432 = vunpack.c.l.b16 %v1377
    %v3433 = vunpack.c.l.b16 %v1378
    %v3434 = vunpack.c.l.b16 %v1379
    %v3435 = vunpack.c.l.b16 %v1380
    %v3436 = vunpack.c.l.b16 %v1381
    %v3437 = vunpack.c.l.b16 %v1382
    %v3438 = vunpack.c.l.b16 %v1383
    %v3439 = vunpack.c.l.b16 %v1384
    %v3440 = vunpack.c.l.b16 %v1385
    %v3441 = vunpack.c.l.b16 %v1386
    %v3442 = vunpack.c.l.b16 %v1387
    %v3443 = vunpack.c.l.b16 %v1388
    %v3444 = vunpack.c.l.b16 %v1389
    %v3445 = vunpack.c.l.b16 %v1390
    %v3446 = vunpack.c.l.b16 %v1391
    %v3447 = vunpack.c.l.b16 %v1392
    %v3448 = vunpack.c.l.b16 %v1393
    %v3449 = vunpack.c.l.b16 %v1394
    %v3450 = vunpack.c.l.b16 %v1395
    %v3451 = vunpack.c.l.b16 %v1396
    %v3452 = vunpack.c.l.b16 %v1397
    %v3453 = vunpack.c.l.b16 %v1398
    %v3454 = vunpack.c.l.b16 %v1399
    %v3455 = vunpack.c.l.b16 %v1400
    %v3456 = vunpack.c.l.b16 %v1401
    %v3457 = vunpack.c.l.b16 %v1402
    %v3458 = vunpack.c.l.b16 %v1403
    %v3459 = vunpack.c.l.b16 %v1404
    %v3460 = vunpack.c.l.b16 %v1405
    %v3461 = vunpack.c.l.b16 %v1406
    %v3462 = vunpack.c.l.b16 %v1407
    %v3463 = vunpack.c.l.b16 %v1408
    %v3464 = vunpack.c.l.b16 %v1409
    %v3465 = vunpack.c.l.b16 %v1410
    %v3466 = vunpack.c.l.b16 %v1411
    %v3467 = vunpack.c.l.b16 %v1412
    %v3468 = vunpack.c.l.b16 %v1413
    %v3469 = vunpack.c.l.b16 %v1414
    %v3470 = vunpack.c.l.b16 %v1415
    %v3471 = vunpack.c.l.b16 %v1416
    %v3472 = vunpack.c.l.b16 %v1417
    %v3473 = vunpack.c.l.b16 %v1418
    %v3474 = vunpack.c.l.b16 %v1419
    %v3475 = vunpack.c.l.b16 %v1420
    %v3476 = vunpack.c.l.b16 %v1421
    %v3477 = vunpack.c.l.b16 %v1422
    %v3478 = vunpack.c.l.b16 %v1423
    %v3479 = vunpack.c.l.b16 %v1424
    %v3480 = vunpack.c.l.b16 %v1425
    %v3481 = vunpack.c.l.b16 %v1426
    %v3482 = vunpack.c.l.b16 %v1427
    %v3483 = vunpack.c.l.b16 %v1428
    %v3484 = vunpack.c.l.b16 %v1429
    %v3485 = vunpack.c.l.b16 %v1430
    %v3486 = vunpack.c.l.b16 %v1431
    %v3487 = vunpack.c.l.b16 %v1432
    %v3488 = vunpack.c.l.b16 %v1433
    %v3489 = vunpack.c.l.b16 %v1434
    %v3490 = vunpack.c.l.b16 %v1435
    %v3491 = vunpack.c.l.b16 %v1436
    %v3492 = vunpack.c.l.b16 %v1437
    %v3493 = vunpack.c.l.b16 %v1438
    %v3494 = vunpack.c.l.b16 %v1439
    %v3495 = vunpack.c.l.b16 %v1440
    %v3496 = vunpack.c.l.b16 %v1441
    %v3497 = vunpack.c.l.b16 %v1442
    %v3498 = vunpack.c.l.b16 %v1443
    %v3499 = vunpack.c.l.b16 %v1444
    %v3500 = vunpack.c.l.b16 %v1445
    %v3501 = vunpack.c.l.b16 %v1446
    %v3502 = vunpack.c.l.b16 %v1447
    %v3503 = vunpack.c.l.b16 %v1448
    %v3504 = vunpack.c.l.b16 %v1449
    %v3505 = vunpack.c.l.b16 %v1450
    %v3506 = vunpack.c.l.b16 %v1451
    %v3507 = vunpack.c.l.b16 %v1452
    %v3508 = vunpack.c.l.b16 %v1453
    %v3509 = vunpack.c.l.b16 %v1454
    %v3510 = vunpack.c.l.b16 %v1455
    %v3511 = vunpack.c.l.b16 %v1456
    %v3512 = vunpack.c.l.b16 %v1457
    %v3513 = vunpack.c.l.b16 %v1458
    %v3514 = vunpack.c.l.b16 %v1459
    %v3515 = vunpack.c.l.b16 %v1460
    %v3516 = vunpack.c.l.b16 %v1461
    %v3517 = vunpack.c.l.b16 %v1462
    %v3518 = vunpack.c.l.b16 %v1463
    %v3519 = vunpack.c.l.b16 %v1464
    %v3520 = vunpack.c.l.b16 %v1465
    %v3521 = vunpack.c.l.b16 %v1466
    %v3522 = vunpack.c.l.b16 %v1467
    %v3523 = vunpack.c.l.b16 %v1468
    %v3524 = vunpack.c.l.b16 %v1469
    %v3525 = vunpack.c.l.b16 %v1470
    %v3526 = vunpack.c.l.b16 %v1471
    %v3527 = vunpack.c.l.b16 %v1472
    %v3528 = vunpack.c.l.b16 %v1473
    %v3529 = vunpack.c.l.b16 %v1474
    %v3530 = vunpack.c.l.b16 %v1475
    %v3531 = vunpack.c.l.b16 %v1476
    %v3532 = vunpack.c.l.b16 %v1477
    %v3533 = vunpack.c.l.b16 %v1478
    %v3534 = vunpack.c.l.b16 %v1479
    %v3535 = vunpack.c.l.b16 %v1480
    %v3536 = vunpack.c.l.b16 %v1481
    %v3537 = vunpack.c.l.b16 %v1482
    %v3538 = vunpack.c.l.b16 %v1483
    %v3539 = vunpack.c.l.b16 %v1484
    %v3540 = vunpack.c.l.b16 %v1485
    %v3541 = vunpack.c.l.b16 %v1486
    %v3542 = vunpack.c.l.b16 %v1487
    %v3543 = vunpack.c.l.b16 %v1488
    %v3544 = vunpack.c.l.b16 %v1489
    %v3545 = vpack.c.b16 %v2522, %v2521
    %v3546 = vpack.c.b16 %v2524, %v2523
    %v3547 = vpack.c.b16 %v2526, %v2525
    %v3548 = vpack.c.b16 %v2528, %v2527
    %v3549 = vpack.c.b16 %v2530, %v2529
    %v3550 = vpack.c.b16 %v2532, %v2531
    %v3551 = vpack.c.b16 %v2534, %v2533
    %v3552 = vpack.c.b16 %v2536, %v2535
    %v3553 = vpack.c.b16 %v2538, %v2537
    %v3554 = vpack.c.b16 %v2540, %v2539
    %v3555 = vpack.c.b16 %v2542, %v2541
    %v3556 = vpack.c.b16 %v2544, %v2543
    %v3557 = vpack.c.b16 %v2546, %v2545
    %v3558 = vpack.c.b16 %v2548, %v2547
    %v3559 = vpack.c.b16 %v2550, %v2549
    %v3560 = vpack.c.b16 %v2552, %v2551
    %v3561 = vpack.c.b16 %v2554, %v2553
    %v3562 = vpack.c.b16 %v2556, %v2555
    %v3563 = vpack.c.b16 %v2558, %v2557
    %v3564 = vpack.c.b16 %v2560, %v2559
    %v3565 = vpack.c.b16 %v2562, %v2561
    %v3566 = vpack.c.b16 %v2564, %v2563
    %v3567 = vpack.c.b16 %v2566, %v2565
    %v3568 = vpack.c.b16 %v2568, %v2567
    %v3569 = vpack.c.b16 %v2570, %v2569
    %v3570 = vpack.c.b16 %v2572, %v2571
    %v3571 = vpack.c.b16 %v2574, %v2573
    %v3572 = vpack.c.b16 %v2576, %v2575
    %v3573 = vpack.c.b16 %v2578, %v2577
    %v3574 = vpack.c.b16 %v2580, %v2579
    %v3575 = vpack.c.b16 %v2582, %v2581
    %v3576 = vpack.c.b16 %v2584, %v2583
    %v3577 = vpack.c.b16 %v2586, %v2585
    %v3578 = vpack.c.b16 %v2588, %v2587
    %v3579 = vpack.c.b16 %v2590, %v2589
    %v3580 = vpack.c.b16 %v2592, %v2591
    %v3581 = vpack.c.b16 %v2594, %v2593
    %v3582 = vpack.c.b16 %v2596, %v2595
    %v3583 = vpack.c.b16 %v2598, %v2597
    %v3584 = vpack.c.b16 %v2600, %v2599
    %v3585 = vpack.c.b16 %v2602, %v2601
    %v3586 = vpack.c.b16 %v2604, %v2603
    %v3587 = vpack.c.b16 %v2606, %v2605
    %v3588 = vpack.c.b16 %v2608, %v2607
    %v3589 = vpack.c.b16 %v2610, %v2609
    %v3590 = vpack.c.b16 %v2612, %v2611
    %v3591 = vpack.c.b16 %v2614, %v2613
    %v3592 = vpack.c.b16 %v2616, %v2615
    %v3593 = vpack.c.b16 %v2618, %v2617
    %v3594 = vpack.c.b16 %v2620, %v2619
    %v3595 = vpack.c.b16 %v2622, %v2621
    %v3596 = vpack.c.b16 %v2624, %v2623
    %v3597 = vpack.c.b16 %v2626, %v2625
    %v3598 = vpack.c.b16 %v2628, %v2627
    %v3599 = vpack.c.b16 %v2630, %v2629
    %v3600 = vpack.c.b16 %v2632, %v2631
    %v3601 = vpack.c.b16 %v2634, %v2633
    %v3602 = vpack.c.b16 %v2636, %v2635
    %v3603 = vpack.c.b16 %v2638, %v2637
    %v3604 = vpack.c.b16 %v2640, %v2639
    %v3605 = vpack.c.b16 %v2642, %v2641
    %v3606 = vpack.c.b16 %v2644, %v2643
    %v3607 = vpack.c.b16 %v2646, %v2645
    %v3608 = vpack.c.b16 %v2648, %v2647
    %v3609 = vpack.c.b16 %v2650, %v2649
    %v3610 = vpack.c.b16 %v2652, %v2651
    %v3611 = vpack.c.b16 %v2654, %v2653
    %v3612 = vpack.c.b16 %v2656, %v2655
    %v3613 = vpack.c.b16 %v2658, %v2657
    %v3614 = vpack.c.b16 %v2660, %v2659
    %v3615 = vpack.c.b16 %v2662, %v2661
    %v3616 = vpack.c.b16 %v2664, %v2663
    %v3617 = vpack.c.b16 %v2666, %v2665
    %v3618 = vpack.c.b16 %v2668, %v2667
    %v3619 = vpack.c.b16 %v2670, %v2669
    %v3620 = vpack.c.b16 %v2672, %v2671
    %v3621 = vpack.c.b16 %v2674, %v2673
    %v3622 = vpack.c.b16 %v2676, %v2675
    %v3623 = vpack.c.b16 %v2678, %v2677
    %v3624 = vpack.c.b16 %v2680, %v2679
    %v3625 = vpack.c.b16 %v2682, %v2681
    %v3626 = vpack.c.b16 %v2684, %v2683
    %v3627 = vpack.c.b16 %v2686, %v2685
    %v3628 = vpack.c.b16 %v2688, %v2687
    %v3629 = vpack.c.b16 %v2690, %v2689
    %v3630 = vpack.c.b16 %v2692, %v2691
    %v3631 = vpack.c.b16 %v2694, %v2693
    %v3632 = vpack.c.b16 %v2696, %v2695
    %v3633 = vpack.c.b16 %v2698, %v2697
    %v3634 = vpack.c.b16 %v2700, %v2699
    %v3635 = vpack.c.b16 %v2702, %v2701
    %v3636 = vpack.c.b16 %v2704, %v2703
    %v3637 = vpack.c.b16 %v2706, %v2705
    %v3638 = vpack.c.b16 %v2708, %v2707
    %v3639 = vpack.c.b16 %v2710, %v2709
    %v3640 = vpack.c.b16 %v2712, %v2711
    %v3641 = vpack.c.b16 %v2714, %v2713
    %v3642 = vpack.c.b16 %v2716, %v2715
    %v3643 = vpack.c.b16 %v2718, %v2717
    %v3644 = vpack.c.b16 %v2720, %v2719
    %v3645 = vpack.c.b16 %v2722, %v2721
    %v3646 = vpack.c.b16 %v2724, %v2723
    %v3647 = vpack.c.b16 %v2726, %v2725
    %v3648 = vpack.c.b16 %v2728, %v2727
    %v3649 = vpack.c.b16 %v2730, %v2729
    %v3650 = vpack.c.b16 %v2732, %v2731
    %v3651 = vpack.c.b16 %v2734, %v2733
    %v3652 = vpack.c.b16 %v2736, %v2735
    %v3653 = vpack.c.b16 %v2738, %v2737
    %v3654 = vpack.c.b16 %v2740, %v2739
    %v3655 = vpack.c.b16 %v2742, %v2741
    %v3656 = vpack.c.b16 %v2744, %v2743
    %v3657 = vpack.c.b16 %v2746, %v2745
    %v3658 = vpack.c.b16 %v2748, %v2747
    %v3659 = vpack.c.b16 %v2750, %v2749
    %v3660 = vpack.c.b16 %v2752, %v2751
    %v3661 = vpack.c.b16 %v2754, %v2753
    %v3662 = vpack.c.b16 %v2756, %v2755
    %v3663 = vpack.c.b16 %v2758, %v2757
    %v3664 = vpack.c.b16 %v2760, %v2759
    %v3665 = vpack.c.b16 %v2762, %v2761
    %v3666 = vpack.c.b16 %v2764, %v2763
    %v3667 = vpack.c.b16 %v2766, %v2765
    %v3668 = vpack.c.b16 %v2768, %v2767
    %v3669 = vpack.c.b16 %v2770, %v2769
    %v3670 = vpack.c.b16 %v2772, %v2771
    %v3671 = vpack.c.b16 %v2774, %v2773
    %v3672 = vpack.c.b16 %v2776, %v2775
    %v3673 = vpack.c.b16 %v2778, %v2777
    %v3674 = vpack.c.b16 %v2780, %v2779
    %v3675 = vpack.c.b16 %v2782, %v2781
    %v3676 = vpack.c.b16 %v2784, %v2783
    %v3677 = vpack.c.b16 %v2786, %v2785
    %v3678 = vpack.c.b16 %v2788, %v2787
    %v3679 = vpack.c.b16 %v2790, %v2789
    %v3680 = vpack.c.b16 %v2792, %v2791
    %v3681 = vpack.c.b16 %v2794, %v2793
    %v3682 = vpack.c.b16 %v2796, %v2795
    %v3683 = vpack.c.b16 %v2798, %v2797
    %v3684 = vpack.c.b16 %v2800, %v2799
    %v3685 = vpack.c.b16 %v2802, %v2801
    %v3686 = vpack.c.b16 %v2804, %v2803
    %v3687 = vpack.c.b16 %v2806, %v2805
    %v3688 = vpack.c.b16 %v2808, %v2807
    %v3689 = vpack.c.b16 %v2810, %v2809
    %v3690 = vpack.c.b16 %v2812, %v2811
    %v3691 = vpack.c.b16 %v2814, %v2813
    %v3692 = vpack.c.b16 %v2816, %v2815
    %v3693 = vpack.c.b16 %v2818, %v2817
    %v3694 = vpack.c.b16 %v2820, %v2819
    %v3695 = vpack.c.b16 %v2822, %v2821
    %v3696 = vpack.c.b16 %v2824, %v2823
    %v3697 = vpack.c.b16 %v2826, %v2825
    %v3698 = vpack.c.b16 %v2828, %v2827
    %v3699 = vpack.c.b16 %v2830, %v2829
    %v3700 = vpack.c.b16 %v2832, %v2831
    %v3701 = vpack.c.b16 %v2834, %v2833
    %v3702 = vpack.c.b16 %v2836, %v2835
    %v3703 = vpack.c.b16 %v2838, %v2837
    %v3704 = vpack.c.b16 %v2840, %v2839
    %v3705 = vpack.c.b16 %v2842, %v2841
    %v3706 = vpack.c.b16 %v2844, %v2843
    %v3707 = vpack.c.b16 %v2846, %v2845
    %v3708 = vpack.c.b16 %v2848, %v2847
    %v3709 = vpack.c.b16 %v2850, %v2849
    %v3710 = vpack.c.b16 %v2852, %v2851
    %v3711 = vpack.c.b16 %v2854, %v2853
    %v3712 = vpack.c.b16 %v2856, %v2855
    %v3713 = vpack.c.b16 %v2858, %v2857
    %v3714 = vpack.c.b16 %v2860, %v2859
    %v3715 = vpack.c.b16 %v2862, %v2861
    %v3716 = vpack.c.b16 %v2864, %v2863
    %v3717 = vpack.c.b16 %v2866, %v2865
    %v3718 = vpack.c.b16 %v2868, %v2867
    %v3719 = vpack.c.b16 %v2870, %v2869
    %v3720 = vpack.c.b16 %v2872, %v2871
    %v3721 = vpack.c.b16 %v2874, %v2873
    %v3722 = vpack.c.b16 %v2876, %v2875
    %v3723 = vpack.c.b16 %v2878, %v2877
    %v3724 = vpack.c.b16 %v2880, %v2879
    %v3725 = vpack.c.b16 %v2882, %v2881
    %v3726 = vpack.c.b16 %v2884, %v2883
    %v3727 = vpack.c.b16 %v2886, %v2885
    %v3728 = vpack.c.b16 %v2888, %v2887
    %v3729 = vpack.c.b16 %v2890, %v2889
    %v3730 = vpack.c.b16 %v2892, %v2891
    %v3731 = vpack.c.b16 %v2894, %v2893
    %v3732 = vpack.c.b16 %v2896, %v2895
    %v3733 = vpack.c.b16 %v2898, %v2897
    %v3734 = vpack.c.b16 %v2900, %v2899
    %v3735 = vpack.c.b16 %v2902, %v2901
    %v3736 = vpack.c.b16 %v2904, %v2903
    %v3737 = vpack.c.b16 %v2906, %v2905
    %v3738 = vpack.c.b16 %v2908, %v2907
    %v3739 = vpack.c.b16 %v2910, %v2909
    %v3740 = vpack.c.b16 %v2912, %v2911
    %v3741 = vpack.c.b16 %v2914, %v2913
    %v3742 = vpack.c.b16 %v2916, %v2915
    %v3743 = vpack.c.b16 %v2918, %v2917
    %v3744 = vpack.c.b16 %v2920, %v2919
    %v3745 = vpack.c.b16 %v2922, %v2921
    %v3746 = vpack.c.b16 %v2924, %v2923
    %v3747 = vpack.c.b16 %v2926, %v2925
    %v3748 = vpack.c.b16 %v2928, %v2927
    %v3749 = vpack.c.b16 %v2930, %v2929
    %v3750 = vpack.c.b16 %v2932, %v2931
    %v3751 = vpack.c.b16 %v2934, %v2933
    %v3752 = vpack.c.b16 %v2936, %v2935
    %v3753 = vpack.c.b16 %v2938, %v2937
    %v3754 = vpack.c.b16 %v2940, %v2939
    %v3755 = vpack.c.b16 %v2942, %v2941
    %v3756 = vpack.c.b16 %v2944, %v2943
    %v3757 = vpack.c.b16 %v2946, %v2945
    %v3758 = vpack.c.b16 %v2948, %v2947
    %v3759 = vpack.c.b16 %v2950, %v2949
    %v3760 = vpack.c.b16 %v2952, %v2951
    %v3761 = vpack.c.b16 %v2954, %v2953
    %v3762 = vpack.c.b16 %v2956, %v2955
    %v3763 = vpack.c.b16 %v2958, %v2957
    %v3764 = vpack.c.b16 %v2960, %v2959
    %v3765 = vpack.c.b16 %v2962, %v2961
    %v3766 = vpack.c.b16 %v2964, %v2963
    %v3767 = vpack.c.b16 %v2966, %v2965
    %v3768 = vpack.c.b16 %v2968, %v2967
    %v3769 = vpack.c.b16 %v2970, %v2969
    %v3770 = vpack.c.b16 %v2972, %v2971
    %v3771 = vpack.c.b16 %v2974, %v2973
    %v3772 = vpack.c.b16 %v2976, %v2975
    %v3773 = vpack.c.b16 %v2978, %v2977
    %v3774 = vpack.c.b16 %v2980, %v2979
    %v3775 = vpack.c.b16 %v2982, %v2981
    %v3776 = vpack.c.b16 %v2984, %v2983
    %v3777 = vpack.c.b16 %v2986, %v2985
    %v3778 = vpack.c.b16 %v2988, %v2987
    %v3779 = vpack.c.b16 %v2990, %v2989
    %v3780 = vpack.c.b16 %v2992, %v2991
    %v3781 = vpack.c.b16 %v2994, %v2993
    %v3782 = vpack.c.b16 %v2996, %v2995
    %v3783 = vpack.c.b16 %v2998, %v2997
    %v3784 = vpack.c.b16 %v3000, %v2999
    %v3785 = vpack.c.b16 %v3002, %v3001
    %v3786 = vpack.c.b16 %v3004, %v3003
    %v3787 = vpack.c.b16 %v3006, %v3005
    %v3788 = vpack.c.b16 %v3008, %v3007
    %v3789 = vpack.c.b16 %v3010, %v3009
    %v3790 = vpack.c.b16 %v3012, %v3011
    %v3791 = vpack.c.b16 %v3014, %v3013
    %v3792 = vpack.c.b16 %v3016, %v3015
    %v3793 = vpack.c.b16 %v3018, %v3017
    %v3794 = vpack.c.b16 %v3020, %v3019
    %v3795 = vpack.c.b16 %v3022, %v3021
    %v3796 = vpack.c.b16 %v3024, %v3023
    %v3797 = vpack.c.b16 %v3026, %v3025
    %v3798 = vpack.c.b16 %v3028, %v3027
    %v3799 = vpack.c.b16 %v3030, %v3029
    %v3800 = vpack.c.b16 %v3032, %v3031
    %v3801 = vpack.c.b16 %v3034, %v3033
    %v3802 = vpack.c.b16 %v3036, %v3035
    %v3803 = vpack.c.b16 %v3038, %v3037
    %v3804 = vpack.c.b16 %v3040, %v3039
    %v3805 = vpack.c.b16 %v3042, %v3041
    %v3806 = vpack.c.b16 %v3044, %v3043
    %v3807 = vpack.c.b16 %v3046, %v3045
    %v3808 = vpack.c.b16 %v3048, %v3047
    %v3809 = vpack.c.b16 %v3050, %v3049
    %v3810 = vpack.c.b16 %v3052, %v3051
    %v3811 = vpack.c.b16 %v3054, %v3053
    %v3812 = vpack.c.b16 %v3056, %v3055
    %v3813 = vpack.c.b16 %v3058, %v3057
    %v3814 = vpack.c.b16 %v3060, %v3059
    %v3815 = vpack.c.b16 %v3062, %v3061
    %v3816 = vpack.c.b16 %v3064, %v3063
    %v3817 = vpack.c.b16 %v3066, %v3065
    %v3818 = vpack.c.b16 %v3068, %v3067
    %v3819 = vpack.c.b16 %v3070, %v3069
    %v3820 = vpack.c.b16 %v3072, %v3071
    %v3821 = vpack.c.b16 %v3074, %v3073
    %v3822 = vpack.c.b16 %v3076, %v3075
    %v3823 = vpack.c.b16 %v3078, %v3077
    %v3824 = vpack.c.b16 %v3080, %v3079
    %v3825 = vpack.c.b16 %v3082, %v3081
    %v3826 = vpack.c.b16 %v3084, %v3083
    %v3827 = vpack.c.b16 %v3086, %v3085
    %v3828 = vpack.c.b16 %v3088, %v3087
    %v3829 = vpack.c.b16 %v3090, %v3089
    %v3830 = vpack.c.b16 %v3092, %v3091
    %v3831 = vpack.c.b16 %v3094, %v3093
    %v3832 = vpack.c.b16 %v3096, %v3095
    %v3833 = vpack.c.b16 %v3098, %v3097
    %v3834 = vpack.c.b16 %v3100, %v3099
    %v3835 = vpack.c.b16 %v3102, %v3101
    %v3836 = vpack.c.b16 %v3104, %v3103
    %v3837 = vpack.c.b16 %v3106, %v3105
    %v3838 = vpack.c.b16 %v3108, %v3107
    %v3839 = vpack.c.b16 %v3110, %v3109
    %v3840 = vpack.c.b16 %v3112, %v3111
    %v3841 = vpack.c.b16 %v3114, %v3113
    %v3842 = vpack.c.b16 %v3116, %v3115
    %v3843 = vpack.c.b16 %v3118, %v3117
    %v3844 = vpack.c.b16 %v3120, %v3119
    %v3845 = vpack.c.b16 %v3122, %v3121
    %v3846 = vpack.c.b16 %v3124, %v3123
    %v3847 = vpack.c.b16 %v3126, %v3125
    %v3848 = vpack.c.b16 %v3128, %v3127
    %v3849 = vpack.c.b16 %v3130, %v3129
    %v3850 = vpack.c.b16 %v3132, %v3131
    %v3851 = vpack.c.b16 %v3134, %v3133
    %v3852 = vpack.c.b16 %v3136, %v3135
    %v3853 = vpack.c.b16 %v3138, %v3137
    %v3854 = vpack.c.b16 %v3140, %v3139
    %v3855 = vpack.c.b16 %v3142, %v3141
    %v3856 = vpack.c.b16 %v3144, %v3143
    %v3857 = vpack.c.b16 %v3146, %v3145
    %v3858 = vpack.c.b16 %v3148, %v3147
    %v3859 = vpack.c.b16 %v3150, %v3149
    %v3860 = vpack.c.b16 %v3152, %v3151
    %v3861 = vpack.c.b16 %v3154, %v3153
    %v3862 = vpack.c.b16 %v3156, %v3155
    %v3863 = vpack.c.b16 %v3158, %v3157
    %v3864 = vpack.c.b16 %v3160, %v3159
    %v3865 = vpack.c.b16 %v3162, %v3161
    %v3866 = vpack.c.b16 %v3164, %v3163
    %v3867 = vpack.c.b16 %v3166, %v3165
    %v3868 = vpack.c.b16 %v3168, %v3167
    %v3869 = vpack.c.b16 %v3170, %v3169
    %v3870 = vpack.c.b16 %v3172, %v3171
    %v3871 = vpack.c.b16 %v3174, %v3173
    %v3872 = vpack.c.b16 %v3176, %v3175
    %v3873 = vpack.c.b16 %v3178, %v3177
    %v3874 = vpack.c.b16 %v3180, %v3179
    %v3875 = vpack.c.b16 %v3182, %v3181
    %v3876 = vpack.c.b16 %v3184, %v3183
    %v3877 = vpack.c.b16 %v3186, %v3185
    %v3878 = vpack.c.b16 %v3188, %v3187
    %v3879 = vpack.c.b16 %v3190, %v3189
    %v3880 = vpack.c.b16 %v3192, %v3191
    %v3881 = vpack.c.b16 %v3194, %v3193
    %v3882 = vpack.c.b16 %v3196, %v3195
    %v3883 = vpack.c.b16 %v3198, %v3197
    %v3884 = vpack.c.b16 %v3200, %v3199
    %v3885 = vpack.c.b16 %v3202, %v3201
    %v3886 = vpack.c.b16 %v3204, %v3203
    %v3887 = vpack.c.b16 %v3206, %v3205
    %v3888 = vpack.c.b16 %v3208, %v3207
    %v3889 = vpack.c.b16 %v3210, %v3209
    %v3890 = vpack.c.b16 %v3212, %v3211
    %v3891 = vpack.c.b16 %v3214, %v3213
    %v3892 = vpack.c.b16 %v3216, %v3215
    %v3893 = vpack.c.b16 %v3218, %v3217
    %v3894 = vpack.c.b16 %v3220, %v3219
    %v3895 = vpack.c.b16 %v3222, %v3221
    %v3896 = vpack.c.b16 %v3224, %v3223
    %v3897 = vpack.c.b16 %v3226, %v3225
    %v3898 = vpack.c.b16 %v3228, %v3227
    %v3899 = vpack.c.b16 %v3230, %v3229
    %v3900 = vpack.c.b16 %v3232, %v3231
    %v3901 = vpack.c.b16 %v3234, %v3233
    %v3902 = vpack.c.b16 %v3236, %v3235
    %v3903 = vpack.c.b16 %v3238, %v3237
    %v3904 = vpack.c.b16 %v3240, %v3239
    %v3905 = vpack.c.b16 %v3242, %v3241
    %v3906 = vpack.c.b16 %v3244, %v3243
    %v3907 = vpack.c.b16 %v3246, %v3245
    %v3908 = vpack.c.b16 %v3248, %v3247
    %v3909 = vpack.c.b16 %v3250, %v3249
    %v3910 = vpack.c.b16 %v3252, %v3251
    %v3911 = vpack.c.b16 %v3254, %v3253
    %v3912 = vpack.c.b16 %v3256, %v3255
    %v3913 = vpack.c.b16 %v3258, %v3257
    %v3914 = vpack.c.b16 %v3260, %v3259
    %v3915 = vpack.c.b16 %v3262, %v3261
    %v3916 = vpack.c.b16 %v3264, %v3263
    %v3917 = vpack.c.b16 %v3266, %v3265
    %v3918 = vpack.c.b16 %v3268, %v3267
    %v3919 = vpack.c.b16 %v3270, %v3269
    %v3920 = vpack.c.b16 %v3272, %v3271
    %v3921 = vpack.c.b16 %v3274, %v3273
    %v3922 = vpack.c.b16 %v3276, %v3275
    %v3923 = vpack.c.b16 %v3278, %v3277
    %v3924 = vpack.c.b16 %v3280, %v3279
    %v3925 = vpack.c.b16 %v3282, %v3281
    %v3926 = vpack.c.b16 %v3284, %v3283
    %v3927 = vpack.c.b16 %v3286, %v3285
    %v3928 = vpack.c.b16 %v3288, %v3287
    %v3929 = vpack.c.b16 %v3290, %v3289
    %v3930 = vpack.c.b16 %v3292, %v3291
    %v3931 = vpack.c.b16 %v3294, %v3293
    %v3932 = vpack.c.b16 %v3296, %v3295
    %v3933 = vpack.c.b16 %v3298, %v3297
    %v3934 = vpack.c.b16 %v3300, %v3299
    %v3935 = vpack.c.b16 %v3302, %v3301
    %v3936 = vpack.c.b16 %v3304, %v3303
    %v3937 = vpack.c.b16 %v3306, %v3305
    %v3938 = vpack.c.b16 %v3308, %v3307
    %v3939 = vpack.c.b16 %v3310, %v3309
    %v3940 = vpack.c.b16 %v3312, %v3311
    %v3941 = vpack.c.b16 %v3314, %v3313
    %v3942 = vpack.c.b16 %v3316, %v3315
    %v3943 = vpack.c.b16 %v3318, %v3317
    %v3944 = vpack.c.b16 %v3320, %v3319
    %v3945 = vpack.c.b16 %v3322, %v3321
    %v3946 = vpack.c.b16 %v3324, %v3323
    %v3947 = vpack.c.b16 %v3326, %v3325
    %v3948 = vpack.c.b16 %v3328, %v3327
    %v3949 = vpack.c.b16 %v3330, %v3329
    %v3950 = vpack.c.b16 %v3332, %v3331
    %v3951 = vpack.c.b16 %v3334, %v3333
    %v3952 = vpack.c.b16 %v3336, %v3335
    %v3953 = vpack.c.b16 %v3338, %v3337
    %v3954 = vpack.c.b16 %v3340, %v3339
    %v3955 = vpack.c.b16 %v3342, %v3341
    %v3956 = vpack.c.b16 %v3344, %v3343
    %v3957 = vpack.c.b16 %v3346, %v3345
    %v3958 = vpack.c.b16 %v3348, %v3347
    %v3959 = vpack.c.b16 %v3350, %v3349
    %v3960 = vpack.c.b16 %v3352, %v3351
    %v3961 = vpack.c.b16 %v3354, %v3353
    %v3962 = vpack.c.b16 %v3356, %v3355
    %v3963 = vpack.c.b16 %v3358, %v3357
    %v3964 = vpack.c.b16 %v3360, %v3359
    %v3965 = vpack.c.b16 %v3362, %v3361
    %v3966 = vpack.c.b16 %v3364, %v3363
    %v3967 = vpack.c.b16 %v3366, %v3365
    %v3968 = vpack.c.b16 %v3368, %v3367
    %v3969 = vpack.c.b16 %v3370, %v3369
    %v3970 = vpack.c.b16 %v3372, %v3371
    %v3971 = vpack.c.b16 %v3374, %v3373
    %v3972 = vpack.c.b16 %v3376, %v3375
    %v3973 = vpack.c.b16 %v3378, %v3377
    %v3974 = vpack.c.b16 %v3380, %v3379
    %v3975 = vpack.c.b16 %v3382, %v3381
    %v3976 = vpack.c.b16 %v3384, %v3383
    %v3977 = vpack.c.b16 %v3386, %v3385
    %v3978 = vpack.c.b16 %v3388, %v3387
    %v3979 = vpack.c.b16 %v3390, %v3389
    %v3980 = vpack.c.b16 %v3392, %v3391
    %v3981 = vpack.c.b16 %v3394, %v3393
    %v3982 = vpack.c.b16 %v3396, %v3395
    %v3983 = vpack.c.b16 %v3398, %v3397
    %v3984 = vpack.c.b16 %v3400, %v3399
    %v3985 = vpack.c.b16 %v3402, %v3401
    %v3986 = vpack.c.b16 %v3404, %v3403
    %v3987 = vpack.c.b16 %v3406, %v3405
    %v3988 = vpack.c.b16 %v3408, %v3407
    %v3989 = vpack.c.b16 %v3410, %v3409
    %v3990 = vpack.c.b16 %v3412, %v3411
    %v3991 = vpack.c.b16 %v3414, %v3413
    %v3992 = vpack.c.b16 %v3416, %v3415
    %v3993 = vpack.c.b16 %v3418, %v3417
    %v3994 = vpack.c.b16 %v3420, %v3419
    %v3995 = vpack.c.b16 %v3422, %v3421
    %v3996 = vpack.c.b16 %v3424, %v3423
    %v3997 = vpack.c.b16 %v3426, %v3425
    %v3998 = vpack.c.b16 %v3428, %v3427
    %v3999 = vpack.c.b16 %v3430, %v3429
    %v4000 = vpack.c.b16 %v3432, %v3431
    %v4001 = vpack.c.b16 %v3434, %v3433
    %v4002 = vpack.c.b16 %v3436, %v3435
    %v4003 = vpack.c.b16 %v3438, %v3437
    %v4004 = vpack.c.b16 %v3440, %v3439
    %v4005 = vpack.c.b16 %v3442, %v3441
    %v4006 = vpack.c.b16 %v3444, %v3443
    %v4007 = vpack.c.b16 %v3446, %v3445
    %v4008 = vpack.c.b16 %v3448, %v3447
    %v4009 = vpack.c.b16 %v3450, %v3449
    %v4010 = vpack.c.b16 %v3452, %v3451
    %v4011 = vpack.c.b16 %v3454, %v3453
    %v4012 = vpack.c.b16 %v3456, %v3455
    %v4013 = vpack.c.b16 %v3458, %v3457
    %v4014 = vpack.c.b16 %v3460, %v3459
    %v4015 = vpack.c.b16 %v3462, %v3461
    %v4016 = vpack.c.b16 %v3464, %v3463
    %v4017 = vpack.c.b16 %v3466, %v3465
    %v4018 = vpack.c.b16 %v3468, %v3467
    %v4019 = vpack.c.b16 %v3470, %v3469
    %v4020 = vpack.c.b16 %v3472, %v3471
    %v4021 = vpack.c.b16 %v3474, %v3473
    %v4022 = vpack.c.b16 %v3476, %v3475
    %v4023 = vpack.c.b16 %v3478, %v3477
    %v4024 = vpack.c.b16 %v3480, %v3479
    %v4025 = vpack.c.b16 %v3482, %v3481
    %v4026 = vpack.c.b16 %v3484, %v3483
    %v4027 = vpack.c.b16 %v3486, %v3485
    %v4028 = vpack.c.b16 %v3488, %v3487
    %v4029 = vpack.c.b16 %v3490, %v3489
    %v4030 = vpack.c.b16 %v3492, %v3491
    %v4031 = vpack.c.b16 %v3494, %v3493
    %v4032 = vpack.c.b16 %v3496, %v3495
    %v4033 = vpack.c.b16 %v3498, %v3497
    %v4034 = vpack.c.b16 %v3500, %v3499
    %v4035 = vpack.c.b16 %v3502, %v3501
    %v4036 = vpack.c.b16 %v3504, %v3503
    %v4037 = vpack.c.b16 %v3506, %v3505
    %v4038 = vpack.c.b16 %v3508, %v3507
    %v4039 = vpack.c.b16 %v3510, %v3509
    %v4040 = vpack.c.b16 %v3512, %v3511
    %v4041 = vpack.c.b16 %v3514, %v3513
    %v4042 = vpack.c.b16 %v3516, %v3515
    %v4043 = vpack.c.b16 %v3518, %v3517
    %v4044 = vpack.c.b16 %v3520, %v3519
    %v4045 = vpack.c.b16 %v3522, %v3521
    %v4046 = vpack.c.b16 %v3524, %v3523
    %v4047 = vpack.c.b16 %v3526, %v3525
    %v4048 = vpack.c.b16 %v3528, %v3527
    %v4049 = vpack.c.b16 %v3530, %v3529
    %v4050 = vpack.c.b16 %v3532, %v3531
    %v4051 = vpack.c.b16 %v3534, %v3533
    %v4052 = vpack.c.b16 %v3536, %v3535
    %v4053 = vpack.c.b16 %v3538, %v3537
    %v4054 = vpack.c.b16 %v3540, %v3539
    %v4055 = vpack.c.b16 %v3542, %v3541
    %v4056 = vpack.c.b16 %v3544, %v3543
    %4569 = vmatprep.subr.bf16.mxu0 0
    %4570 = vmatpush1.bf16.msra.mxu0 %v3552
    %4571 = vmatprep.subr.bf16.mxu0 0
    %4572 = vmatpush1.bf16.msra.mxu0 %v3551
    %4573 = vmatprep.subr.bf16.mxu0 0
    %4574 = vmatpush1.bf16.msra.mxu0 %v3550
    %4575 = vmatprep.subr.bf16.mxu0 0
    %4576 = vmatpush1.bf16.msra.mxu0 %v3549
    %4577 = vmatprep.subr.bf16.mxu0 0
    %4578 = vmatpush1.bf16.msra.mxu0 %v3548
    %4579 = vmatprep.subr.bf16.mxu0 0
    %4580 = vmatpush1.bf16.msra.mxu0 %v3547
    %4581 = vmatprep.subr.bf16.mxu0 0
    %4582 = vmatpush1.bf16.msra.mxu0 %v3546
    %4583 = vmatprep.subr.bf16.mxu0 0
    %4584 = vmatpush1.bf16.msra.mxu0 %v3545
    %4585 = vmatprep.subr.bf16.mxu0 0
    %4586 = vmatpush2.bf16.msra.mxu0 %v3560
    %4587 = vmatprep.subr.bf16.mxu0 0
    %4588 = vmatpush2.bf16.msra.mxu0 %v3559
    %4589 = vmatprep.subr.bf16.mxu0 0
    %4590 = vmatpush2.bf16.msra.mxu0 %v3558
    %4591 = vmatprep.subr.bf16.mxu0 0
    %4592 = vmatpush2.bf16.msra.mxu0 %v3557
    %4593 = vmatprep.subr.bf16.mxu0 0
    %4594 = vmatpush2.bf16.msra.mxu0 %v3556
    %4595 = vmatprep.subr.bf16.mxu0 0
    %4596 = vmatpush2.bf16.msra.mxu0 %v3555
    %4597 = vmatprep.subr.bf16.mxu0 0
    %4598 = vmatpush2.bf16.msra.mxu0 %v3554
    %4599 = vmatprep.subr.bf16.mxu0 0
    %4600 = vmatpush2.bf16.msra.mxu0 %v3553
    %4601 = vmatprep.mubr.bf16.mxu0 %v403
    %4602 = vmatmul.mubr.bf16.gmra.mxu0 %v402
    %v4603 = vpop.f32.mrf.mxu0
    %v4604 = vadd.f32 %v1495, %v4603
    %v4605 = vpop.f32.mrf.mxu0
    %v4606 = vpop.f32.mrf.mxu0
    %v4607 = vpop.f32.mrf.mxu0
    %4608 = vdwg.mxu0
    %4609 = vmatprep.subr.bf16.mxu0 0
    %4610 = vmatpush1.bf16.msra.mxu0 %v3568
    %4611 = vmatprep.subr.bf16.mxu0 0
    %4612 = vmatpush1.bf16.msra.mxu0 %v3567
    %4613 = vmatprep.subr.bf16.mxu0 0
    %4614 = vmatpush1.bf16.msra.mxu0 %v3566
    %4615 = vmatprep.subr.bf16.mxu0 0
    %4616 = vmatpush1.bf16.msra.mxu0 %v3565
    %4617 = vmatprep.subr.bf16.mxu0 0
    %4618 = vmatpush1.bf16.msra.mxu0 %v3564
    %4619 = vmatprep.subr.bf16.mxu0 0
    %4620 = vmatpush1.bf16.msra.mxu0 %v3563
    %4621 = vmatprep.subr.bf16.mxu0 0
    %4622 = vmatpush1.bf16.msra.mxu0 %v3562
    %4623 = vmatprep.subr.bf16.mxu0 0
    %4624 = vmatpush1.bf16.msra.mxu0 %v3561
    %4625 = vmatprep.subr.bf16.mxu0 0
    %4626 = vmatpush2.bf16.msra.mxu0 %v3576
    %4627 = vmatprep.subr.bf16.mxu0 0
    %4628 = vmatpush2.bf16.msra.mxu0 %v3575
    %4629 = vmatprep.subr.bf16.mxu0 0
    %4630 = vmatpush2.bf16.msra.mxu0 %v3574
    %4631 = vmatprep.subr.bf16.mxu0 0
    %4632 = vmatpush2.bf16.msra.mxu0 %v3573
    %4633 = vmatprep.subr.bf16.mxu0 0
    %4634 = vmatpush2.bf16.msra.mxu0 %v3572
    %4635 = vmatprep.subr.bf16.mxu0 0
    %4636 = vmatpush2.bf16.msra.mxu0 %v3571
    %4637 = vmatprep.subr.bf16.mxu0 0
    %4638 = vmatpush2.bf16.msra.mxu0 %v3570
    %4639 = vmatprep.subr.bf16.mxu0 0
    %4640 = vmatpush2.bf16.msra.mxu0 %v3569
    %4641 = vmatprep.mubr.bf16.mxu0 %v405
    %4642 = vmatmul.mubr.bf16.gmra.mxu0 %v404
    %v4643 = vpop.f32.mrf.mxu0
    %v4644 = vadd.f32 %v4604, %v4643
    %v4645 = vpop.f32.mrf.mxu0
    %v4646 = vpop.f32.mrf.mxu0
    %v4647 = vpop.f32.mrf.mxu0
    %4648 = vdwg.mxu0
    %4649 = vmatprep.subr.bf16.mxu0 0
    %4650 = vmatpush1.bf16.msra.mxu0 %v3584
    %4651 = vmatprep.subr.bf16.mxu0 0
    %4652 = vmatpush1.bf16.msra.mxu0 %v3583
    %4653 = vmatprep.subr.bf16.mxu0 0
    %4654 = vmatpush1.bf16.msra.mxu0 %v3582
    %4655 = vmatprep.subr.bf16.mxu0 0
    %4656 = vmatpush1.bf16.msra.mxu0 %v3581
    %4657 = vmatprep.subr.bf16.mxu0 0
    %4658 = vmatpush1.bf16.msra.mxu0 %v3580
    %4659 = vmatprep.subr.bf16.mxu0 0
    %4660 = vmatpush1.bf16.msra.mxu0 %v3579
    %4661 = vmatprep.subr.bf16.mxu0 0
    %4662 = vmatpush1.bf16.msra.mxu0 %v3578
    %4663 = vmatprep.subr.bf16.mxu0 0
    %4664 = vmatpush1.bf16.msra.mxu0 %v3577
    %4665 = vmatprep.subr.bf16.mxu0 0
    %4666 = vmatpush2.bf16.msra.mxu0 %v3592
    %4667 = vmatprep.subr.bf16.mxu0 0
    %4668 = vmatpush2.bf16.msra.mxu0 %v3591
    %4669 = vmatprep.subr.bf16.mxu0 0
    %4670 = vmatpush2.bf16.msra.mxu0 %v3590
    %4671 = vmatprep.subr.bf16.mxu0 0
    %4672 = vmatpush2.bf16.msra.mxu0 %v3589
    %4673 = vmatprep.subr.bf16.mxu0 0
    %4674 = vmatpush2.bf16.msra.mxu0 %v3588
    %4675 = vmatprep.subr.bf16.mxu0 0
    %4676 = vmatpush2.bf16.msra.mxu0 %v3587
    %4677 = vmatprep.subr.bf16.mxu0 0
    %4678 = vmatpush2.bf16.msra.mxu0 %v3586
    %4679 = vmatprep.subr.bf16.mxu0 0
    %4680 = vmatpush2.bf16.msra.mxu0 %v3585
    %4681 = vmatprep.mubr.bf16.mxu0 %v407
    %4682 = vmatmul.mubr.bf16.gmra.mxu0 %v406
    %v4683 = vpop.f32.mrf.mxu0
    %v4684 = vadd.f32 %v4644, %v4683
    %v4685 = vpop.f32.mrf.mxu0
    %v4686 = vpop.f32.mrf.mxu0
    %v4687 = vpop.f32.mrf.mxu0
    %4688 = vdwg.mxu0
    %4689 = vmatprep.subr.bf16.mxu0 0
    %4690 = vmatpush1.bf16.msra.mxu0 %v3600
    %4691 = vmatprep.subr.bf16.mxu0 0
    %4692 = vmatpush1.bf16.msra.mxu0 %v3599
    %4693 = vmatprep.subr.bf16.mxu0 0
    %4694 = vmatpush1.bf16.msra.mxu0 %v3598
    %4695 = vmatprep.subr.bf16.mxu0 0
    %4696 = vmatpush1.bf16.msra.mxu0 %v3597
    %4697 = vmatprep.subr.bf16.mxu0 0
    %4698 = vmatpush1.bf16.msra.mxu0 %v3596
    %4699 = vmatprep.subr.bf16.mxu0 0
    %4700 = vmatpush1.bf16.msra.mxu0 %v3595
    %4701 = vmatprep.subr.bf16.mxu0 0
    %4702 = vmatpush1.bf16.msra.mxu0 %v3594
    %4703 = vmatprep.subr.bf16.mxu0 0
    %4704 = vmatpush1.bf16.msra.mxu0 %v3593
    %4705 = vmatprep.subr.bf16.mxu0 0
    %4706 = vmatpush2.bf16.msra.mxu0 %v3608
    %4707 = vmatprep.subr.bf16.mxu0 0
    %4708 = vmatpush2.bf16.msra.mxu0 %v3607
    %4709 = vmatprep.subr.bf16.mxu0 0
    %4710 = vmatpush2.bf16.msra.mxu0 %v3606
    %4711 = vmatprep.subr.bf16.mxu0 0
    %4712 = vmatpush2.bf16.msra.mxu0 %v3605
    %4713 = vmatprep.subr.bf16.mxu0 0
    %4714 = vmatpush2.bf16.msra.mxu0 %v3604
    %4715 = vmatprep.subr.bf16.mxu0 0
    %4716 = vmatpush2.bf16.msra.mxu0 %v3603
    %4717 = vmatprep.subr.bf16.mxu0 0
    %4718 = vmatpush2.bf16.msra.mxu0 %v3602
    %4719 = vmatprep.subr.bf16.mxu0 0
    %4720 = vmatpush2.bf16.msra.mxu0 %v3601
    %4721 = vmatprep.mubr.bf16.mxu0 %v409
    %4722 = vmatmul.mubr.bf16.gmra.mxu0 %v408
    %v4723 = vpop.f32.mrf.mxu0
    %v4724 = vadd.f32 %v4684, %v4723
    %v4725 = vpop.f32.mrf.mxu0
    %v4726 = vpop.f32.mrf.mxu0
    %v4727 = vpop.f32.mrf.mxu0
    %4728 = vdwg.mxu0
    %4729 = vmatprep.subr.bf16.mxu0 0
    %4730 = vmatpush1.bf16.msra.mxu0 %v3616
    %4731 = vmatprep.subr.bf16.mxu0 0
    %4732 = vmatpush1.bf16.msra.mxu0 %v3615
    %4733 = vmatprep.subr.bf16.mxu0 0
    %4734 = vmatpush1.bf16.msra.mxu0 %v3614
    %4735 = vmatprep.subr.bf16.mxu0 0
    %4736 = vmatpush1.bf16.msra.mxu0 %v3613
    %4737 = vmatprep.subr.bf16.mxu0 0
    %4738 = vmatpush1.bf16.msra.mxu0 %v3612
    %4739 = vmatprep.subr.bf16.mxu0 0
    %4740 = vmatpush1.bf16.msra.mxu0 %v3611
    %4741 = vmatprep.subr.bf16.mxu0 0
    %4742 = vmatpush1.bf16.msra.mxu0 %v3610
    %4743 = vmatprep.subr.bf16.mxu0 0
    %4744 = vmatpush1.bf16.msra.mxu0 %v3609
    %4745 = vmatprep.subr.bf16.mxu0 0
    %4746 = vmatpush2.bf16.msra.mxu0 %v3624
    %4747 = vmatprep.subr.bf16.mxu0 0
    %4748 = vmatpush2.bf16.msra.mxu0 %v3623
    %4749 = vmatprep.subr.bf16.mxu0 0
    %4750 = vmatpush2.bf16.msra.mxu0 %v3622
    %4751 = vmatprep.subr.bf16.mxu0 0
    %4752 = vmatpush2.bf16.msra.mxu0 %v3621
    %4753 = vmatprep.subr.bf16.mxu0 0
    %4754 = vmatpush2.bf16.msra.mxu0 %v3620
    %4755 = vmatprep.subr.bf16.mxu0 0
    %4756 = vmatpush2.bf16.msra.mxu0 %v3619
    %4757 = vmatprep.subr.bf16.mxu0 0
    %4758 = vmatpush2.bf16.msra.mxu0 %v3618
    %4759 = vmatprep.subr.bf16.mxu0 0
    %4760 = vmatpush2.bf16.msra.mxu0 %v3617
    %4761 = vmatprep.mubr.bf16.mxu0 %v411
    %4762 = vmatmul.mubr.bf16.gmra.mxu0 %v410
    %v4763 = vpop.f32.mrf.mxu0
    %v4764 = vadd.f32 %v4724, %v4763
    %v4765 = vpop.f32.mrf.mxu0
    %v4766 = vpop.f32.mrf.mxu0
    %v4767 = vpop.f32.mrf.mxu0
    %4768 = vdwg.mxu0
    %4769 = vmatprep.subr.bf16.mxu0 0
    %4770 = vmatpush1.bf16.msra.mxu0 %v3632
    %4771 = vmatprep.subr.bf16.mxu0 0
    %4772 = vmatpush1.bf16.msra.mxu0 %v3631
    %4773 = vmatprep.subr.bf16.mxu0 0
    %4774 = vmatpush1.bf16.msra.mxu0 %v3630
    %4775 = vmatprep.subr.bf16.mxu0 0
    %4776 = vmatpush1.bf16.msra.mxu0 %v3629
    %4777 = vmatprep.subr.bf16.mxu0 0
    %4778 = vmatpush1.bf16.msra.mxu0 %v3628
    %4779 = vmatprep.subr.bf16.mxu0 0
    %4780 = vmatpush1.bf16.msra.mxu0 %v3627
    %4781 = vmatprep.subr.bf16.mxu0 0
    %4782 = vmatpush1.bf16.msra.mxu0 %v3626
    %4783 = vmatprep.subr.bf16.mxu0 0
    %4784 = vmatpush1.bf16.msra.mxu0 %v3625
    %4785 = vmatprep.subr.bf16.mxu0 0
    %4786 = vmatpush2.bf16.msra.mxu0 %v3640
    %4787 = vmatprep.subr.bf16.mxu0 0
    %4788 = vmatpush2.bf16.msra.mxu0 %v3639
    %4789 = vmatprep.subr.bf16.mxu0 0
    %4790 = vmatpush2.bf16.msra.mxu0 %v3638
    %4791 = vmatprep.subr.bf16.mxu0 0
    %4792 = vmatpush2.bf16.msra.mxu0 %v3637
    %4793 = vmatprep.subr.bf16.mxu0 0
    %4794 = vmatpush2.bf16.msra.mxu0 %v3636
    %4795 = vmatprep.subr.bf16.mxu0 0
    %4796 = vmatpush2.bf16.msra.mxu0 %v3635
    %4797 = vmatprep.subr.bf16.mxu0 0
    %4798 = vmatpush2.bf16.msra.mxu0 %v3634
    %4799 = vmatprep.subr.bf16.mxu0 0
    %4800 = vmatpush2.bf16.msra.mxu0 %v3633
    %4801 = vmatprep.mubr.bf16.mxu0 %v413
    %4802 = vmatmul.mubr.bf16.gmra.mxu0 %v412
    %v4803 = vpop.f32.mrf.mxu0
    %v4804 = vadd.f32 %v4764, %v4803
    %v4805 = vpop.f32.mrf.mxu0
    %v4806 = vpop.f32.mrf.mxu0
    %v4807 = vpop.f32.mrf.mxu0
    %4808 = vdwg.mxu0
    %4809 = vmatprep.subr.bf16.mxu0 0
    %4810 = vmatpush1.bf16.msra.mxu0 %v3648
    %4811 = vmatprep.subr.bf16.mxu0 0
    %4812 = vmatpush1.bf16.msra.mxu0 %v3647
    %4813 = vmatprep.subr.bf16.mxu0 0
    %4814 = vmatpush1.bf16.msra.mxu0 %v3646
    %4815 = vmatprep.subr.bf16.mxu0 0
    %4816 = vmatpush1.bf16.msra.mxu0 %v3645
    %4817 = vmatprep.subr.bf16.mxu0 0
    %4818 = vmatpush1.bf16.msra.mxu0 %v3644
    %4819 = vmatprep.subr.bf16.mxu0 0
    %4820 = vmatpush1.bf16.msra.mxu0 %v3643
    %4821 = vmatprep.subr.bf16.mxu0 0
    %4822 = vmatpush1.bf16.msra.mxu0 %v3642
    %4823 = vmatprep.subr.bf16.mxu0 0
    %4824 = vmatpush1.bf16.msra.mxu0 %v3641
    %4825 = vmatprep.subr.bf16.mxu0 0
    %4826 = vmatpush2.bf16.msra.mxu0 %v3656
    %4827 = vmatprep.subr.bf16.mxu0 0
    %4828 = vmatpush2.bf16.msra.mxu0 %v3655
    %4829 = vmatprep.subr.bf16.mxu0 0
    %4830 = vmatpush2.bf16.msra.mxu0 %v3654
    %4831 = vmatprep.subr.bf16.mxu0 0
    %4832 = vmatpush2.bf16.msra.mxu0 %v3653
    %4833 = vmatprep.subr.bf16.mxu0 0
    %4834 = vmatpush2.bf16.msra.mxu0 %v3652
    %4835 = vmatprep.subr.bf16.mxu0 0
    %4836 = vmatpush2.bf16.msra.mxu0 %v3651
    %4837 = vmatprep.subr.bf16.mxu0 0
    %4838 = vmatpush2.bf16.msra.mxu0 %v3650
    %4839 = vmatprep.subr.bf16.mxu0 0
    %4840 = vmatpush2.bf16.msra.mxu0 %v3649
    %4841 = vmatprep.mubr.bf16.mxu0 %v415
    %4842 = vmatmul.mubr.bf16.gmra.mxu0 %v414
    %v4843 = vpop.f32.mrf.mxu0
    %v4844 = vadd.f32 %v4804, %v4843
    %v4845 = vpop.f32.mrf.mxu0
    %v4846 = vpop.f32.mrf.mxu0
    %v4847 = vpop.f32.mrf.mxu0
    %4848 = vdwg.mxu0
    %4849 = vmatprep.subr.bf16.mxu0 0
    %4850 = vmatpush1.bf16.msra.mxu0 %v3664
    %4851 = vmatprep.subr.bf16.mxu0 0
    %4852 = vmatpush1.bf16.msra.mxu0 %v3663
    %4853 = vmatprep.subr.bf16.mxu0 0
    %4854 = vmatpush1.bf16.msra.mxu0 %v3662
    %4855 = vmatprep.subr.bf16.mxu0 0
    %4856 = vmatpush1.bf16.msra.mxu0 %v3661
    %4857 = vmatprep.subr.bf16.mxu0 0
    %4858 = vmatpush1.bf16.msra.mxu0 %v3660
    %4859 = vmatprep.subr.bf16.mxu0 0
    %4860 = vmatpush1.bf16.msra.mxu0 %v3659
    %4861 = vmatprep.subr.bf16.mxu0 0
    %4862 = vmatpush1.bf16.msra.mxu0 %v3658
    %4863 = vmatprep.subr.bf16.mxu0 0
    %4864 = vmatpush1.bf16.msra.mxu0 %v3657
    %4865 = vmatprep.subr.bf16.mxu0 0
    %4866 = vmatpush2.bf16.msra.mxu0 %v3672
    %4867 = vmatprep.subr.bf16.mxu0 0
    %4868 = vmatpush2.bf16.msra.mxu0 %v3671
    %4869 = vmatprep.subr.bf16.mxu0 0
    %4870 = vmatpush2.bf16.msra.mxu0 %v3670
    %4871 = vmatprep.subr.bf16.mxu0 0
    %4872 = vmatpush2.bf16.msra.mxu0 %v3669
    %4873 = vmatprep.subr.bf16.mxu0 0
    %4874 = vmatpush2.bf16.msra.mxu0 %v3668
    %4875 = vmatprep.subr.bf16.mxu0 0
    %4876 = vmatpush2.bf16.msra.mxu0 %v3667
    %4877 = vmatprep.subr.bf16.mxu0 0
    %4878 = vmatpush2.bf16.msra.mxu0 %v3666
    %4879 = vmatprep.subr.bf16.mxu0 0
    %4880 = vmatpush2.bf16.msra.mxu0 %v3665
    %4881 = vmatprep.mubr.bf16.mxu0 %v417
    %4882 = vmatmul.mubr.bf16.gmra.mxu0 %v416
    %v4883 = vpop.f32.mrf.mxu0
    %v4884 = vadd.f32 %v4844, %v4883
    %v4885 = vpop.f32.mrf.mxu0
    %v4886 = vpop.f32.mrf.mxu0
    %v4887 = vpop.f32.mrf.mxu0
    %4888 = vdwg.mxu0
    %4889 = vmatprep.subr.bf16.mxu0 0
    %4890 = vmatpush1.bf16.msra.mxu0 %v3680
    %4891 = vmatprep.subr.bf16.mxu0 0
    %4892 = vmatpush1.bf16.msra.mxu0 %v3679
    %4893 = vmatprep.subr.bf16.mxu0 0
    %4894 = vmatpush1.bf16.msra.mxu0 %v3678
    %4895 = vmatprep.subr.bf16.mxu0 0
    %4896 = vmatpush1.bf16.msra.mxu0 %v3677
    %4897 = vmatprep.subr.bf16.mxu0 0
    %4898 = vmatpush1.bf16.msra.mxu0 %v3676
    %4899 = vmatprep.subr.bf16.mxu0 0
    %4900 = vmatpush1.bf16.msra.mxu0 %v3675
    %4901 = vmatprep.subr.bf16.mxu0 0
    %4902 = vmatpush1.bf16.msra.mxu0 %v3674
    %4903 = vmatprep.subr.bf16.mxu0 0
    %4904 = vmatpush1.bf16.msra.mxu0 %v3673
    %4905 = vmatprep.subr.bf16.mxu0 0
    %4906 = vmatpush2.bf16.msra.mxu0 %v3688
    %4907 = vmatprep.subr.bf16.mxu0 0
    %4908 = vmatpush2.bf16.msra.mxu0 %v3687
    %4909 = vmatprep.subr.bf16.mxu0 0
    %4910 = vmatpush2.bf16.msra.mxu0 %v3686
    %4911 = vmatprep.subr.bf16.mxu0 0
    %4912 = vmatpush2.bf16.msra.mxu0 %v3685
    %4913 = vmatprep.subr.bf16.mxu0 0
    %4914 = vmatpush2.bf16.msra.mxu0 %v3684
    %4915 = vmatprep.subr.bf16.mxu0 0
    %4916 = vmatpush2.bf16.msra.mxu0 %v3683
    %4917 = vmatprep.subr.bf16.mxu0 0
    %4918 = vmatpush2.bf16.msra.mxu0 %v3682
    %4919 = vmatprep.subr.bf16.mxu0 0
    %4920 = vmatpush2.bf16.msra.mxu0 %v3681
    %4921 = vmatprep.mubr.bf16.mxu0 %v419
    %4922 = vmatmul.mubr.bf16.gmra.mxu0 %v418
    %v4923 = vpop.f32.mrf.mxu0
    %v4924 = vadd.f32 %v4884, %v4923
    %v4925 = vpop.f32.mrf.mxu0
    %v4926 = vpop.f32.mrf.mxu0
    %v4927 = vpop.f32.mrf.mxu0
    %4928 = vdwg.mxu0
    %4929 = vmatprep.subr.bf16.mxu0 0
    %4930 = vmatpush1.bf16.msra.mxu0 %v3696
    %4931 = vmatprep.subr.bf16.mxu0 0
    %4932 = vmatpush1.bf16.msra.mxu0 %v3695
    %4933 = vmatprep.subr.bf16.mxu0 0
    %4934 = vmatpush1.bf16.msra.mxu0 %v3694
    %4935 = vmatprep.subr.bf16.mxu0 0
    %4936 = vmatpush1.bf16.msra.mxu0 %v3693
    %4937 = vmatprep.subr.bf16.mxu0 0
    %4938 = vmatpush1.bf16.msra.mxu0 %v3692
    %4939 = vmatprep.subr.bf16.mxu0 0
    %4940 = vmatpush1.bf16.msra.mxu0 %v3691
    %4941 = vmatprep.subr.bf16.mxu0 0
    %4942 = vmatpush1.bf16.msra.mxu0 %v3690
    %4943 = vmatprep.subr.bf16.mxu0 0
    %4944 = vmatpush1.bf16.msra.mxu0 %v3689
    %4945 = vmatprep.subr.bf16.mxu0 0
    %4946 = vmatpush2.bf16.msra.mxu0 %v3704
    %4947 = vmatprep.subr.bf16.mxu0 0
    %4948 = vmatpush2.bf16.msra.mxu0 %v3703
    %4949 = vmatprep.subr.bf16.mxu0 0
    %4950 = vmatpush2.bf16.msra.mxu0 %v3702
    %4951 = vmatprep.subr.bf16.mxu0 0
    %4952 = vmatpush2.bf16.msra.mxu0 %v3701
    %4953 = vmatprep.subr.bf16.mxu0 0
    %4954 = vmatpush2.bf16.msra.mxu0 %v3700
    %4955 = vmatprep.subr.bf16.mxu0 0
    %4956 = vmatpush2.bf16.msra.mxu0 %v3699
    %4957 = vmatprep.subr.bf16.mxu0 0
    %4958 = vmatpush2.bf16.msra.mxu0 %v3698
    %4959 = vmatprep.subr.bf16.mxu0 0
    %4960 = vmatpush2.bf16.msra.mxu0 %v3697
    %4961 = vmatprep.mubr.bf16.mxu0 %v421
    %4962 = vmatmul.mubr.bf16.gmra.mxu0 %v420
    %v4963 = vpop.f32.mrf.mxu0
    %v4964 = vadd.f32 %v4924, %v4963
    %v4965 = vpop.f32.mrf.mxu0
    %v4966 = vpop.f32.mrf.mxu0
    %v4967 = vpop.f32.mrf.mxu0
    %4968 = vdwg.mxu0
    %4969 = vmatprep.subr.bf16.mxu0 0
    %4970 = vmatpush1.bf16.msra.mxu0 %v3712
    %4971 = vmatprep.subr.bf16.mxu0 0
    %4972 = vmatpush1.bf16.msra.mxu0 %v3711
    %4973 = vmatprep.subr.bf16.mxu0 0
    %4974 = vmatpush1.bf16.msra.mxu0 %v3710
    %4975 = vmatprep.subr.bf16.mxu0 0
    %4976 = vmatpush1.bf16.msra.mxu0 %v3709
    %4977 = vmatprep.subr.bf16.mxu0 0
    %4978 = vmatpush1.bf16.msra.mxu0 %v3708
    %4979 = vmatprep.subr.bf16.mxu0 0
    %4980 = vmatpush1.bf16.msra.mxu0 %v3707
    %4981 = vmatprep.subr.bf16.mxu0 0
    %4982 = vmatpush1.bf16.msra.mxu0 %v3706
    %4983 = vmatprep.subr.bf16.mxu0 0
    %4984 = vmatpush1.bf16.msra.mxu0 %v3705
    %4985 = vmatprep.subr.bf16.mxu0 0
    %4986 = vmatpush2.bf16.msra.mxu0 %v3720
    %4987 = vmatprep.subr.bf16.mxu0 0
    %4988 = vmatpush2.bf16.msra.mxu0 %v3719
    %4989 = vmatprep.subr.bf16.mxu0 0
    %4990 = vmatpush2.bf16.msra.mxu0 %v3718
    %4991 = vmatprep.subr.bf16.mxu0 0
    %4992 = vmatpush2.bf16.msra.mxu0 %v3717
    %4993 = vmatprep.subr.bf16.mxu0 0
    %4994 = vmatpush2.bf16.msra.mxu0 %v3716
    %4995 = vmatprep.subr.bf16.mxu0 0
    %4996 = vmatpush2.bf16.msra.mxu0 %v3715
    %4997 = vmatprep.subr.bf16.mxu0 0
    %4998 = vmatpush2.bf16.msra.mxu0 %v3714
    %4999 = vmatprep.subr.bf16.mxu0 0
    %5000 = vmatpush2.bf16.msra.mxu0 %v3713
    %5001 = vmatprep.mubr.bf16.mxu0 %v423
    %5002 = vmatmul.mubr.bf16.gmra.mxu0 %v422
    %v5003 = vpop.f32.mrf.mxu0
    %v5004 = vadd.f32 %v4964, %v5003
    %v5005 = vpop.f32.mrf.mxu0
    %v5006 = vpop.f32.mrf.mxu0
    %v5007 = vpop.f32.mrf.mxu0
    %5008 = vdwg.mxu0
    %5009 = vmatprep.subr.bf16.mxu0 0
    %5010 = vmatpush1.bf16.msra.mxu0 %v3728
    %5011 = vmatprep.subr.bf16.mxu0 0
    %5012 = vmatpush1.bf16.msra.mxu0 %v3727
    %5013 = vmatprep.subr.bf16.mxu0 0
    %5014 = vmatpush1.bf16.msra.mxu0 %v3726
    %5015 = vmatprep.subr.bf16.mxu0 0
    %5016 = vmatpush1.bf16.msra.mxu0 %v3725
    %5017 = vmatprep.subr.bf16.mxu0 0
    %5018 = vmatpush1.bf16.msra.mxu0 %v3724
    %5019 = vmatprep.subr.bf16.mxu0 0
    %5020 = vmatpush1.bf16.msra.mxu0 %v3723
    %5021 = vmatprep.subr.bf16.mxu0 0
    %5022 = vmatpush1.bf16.msra.mxu0 %v3722
    %5023 = vmatprep.subr.bf16.mxu0 0
    %5024 = vmatpush1.bf16.msra.mxu0 %v3721
    %5025 = vmatprep.subr.bf16.mxu0 0
    %5026 = vmatpush2.bf16.msra.mxu0 %v3736
    %5027 = vmatprep.subr.bf16.mxu0 0
    %5028 = vmatpush2.bf16.msra.mxu0 %v3735
    %5029 = vmatprep.subr.bf16.mxu0 0
    %5030 = vmatpush2.bf16.msra.mxu0 %v3734
    %5031 = vmatprep.subr.bf16.mxu0 0
    %5032 = vmatpush2.bf16.msra.mxu0 %v3733
    %5033 = vmatprep.subr.bf16.mxu0 0
    %5034 = vmatpush2.bf16.msra.mxu0 %v3732
    %5035 = vmatprep.subr.bf16.mxu0 0
    %5036 = vmatpush2.bf16.msra.mxu0 %v3731
    %5037 = vmatprep.subr.bf16.mxu0 0
    %5038 = vmatpush2.bf16.msra.mxu0 %v3730
    %5039 = vmatprep.subr.bf16.mxu0 0
    %5040 = vmatpush2.bf16.msra.mxu0 %v3729
    %5041 = vmatprep.mubr.bf16.mxu0 %v425
    %5042 = vmatmul.mubr.bf16.gmra.mxu0 %v424
    %v5043 = vpop.f32.mrf.mxu0
    %v5044 = vadd.f32 %v5004, %v5043
    %v5045 = vpop.f32.mrf.mxu0
    %v5046 = vpop.f32.mrf.mxu0
    %v5047 = vpop.f32.mrf.mxu0
    %5048 = vdwg.mxu0
    %5049 = vmatprep.subr.bf16.mxu0 0
    %5050 = vmatpush1.bf16.msra.mxu0 %v3744
    %5051 = vmatprep.subr.bf16.mxu0 0
    %5052 = vmatpush1.bf16.msra.mxu0 %v3743
    %5053 = vmatprep.subr.bf16.mxu0 0
    %5054 = vmatpush1.bf16.msra.mxu0 %v3742
    %5055 = vmatprep.subr.bf16.mxu0 0
    %5056 = vmatpush1.bf16.msra.mxu0 %v3741
    %5057 = vmatprep.subr.bf16.mxu0 0
    %5058 = vmatpush1.bf16.msra.mxu0 %v3740
    %5059 = vmatprep.subr.bf16.mxu0 0
    %5060 = vmatpush1.bf16.msra.mxu0 %v3739
    %5061 = vmatprep.subr.bf16.mxu0 0
    %5062 = vmatpush1.bf16.msra.mxu0 %v3738
    %5063 = vmatprep.subr.bf16.mxu0 0
    %5064 = vmatpush1.bf16.msra.mxu0 %v3737
    %5065 = vmatprep.subr.bf16.mxu0 0
    %5066 = vmatpush2.bf16.msra.mxu0 %v3752
    %5067 = vmatprep.subr.bf16.mxu0 0
    %5068 = vmatpush2.bf16.msra.mxu0 %v3751
    %5069 = vmatprep.subr.bf16.mxu0 0
    %5070 = vmatpush2.bf16.msra.mxu0 %v3750
    %5071 = vmatprep.subr.bf16.mxu0 0
    %5072 = vmatpush2.bf16.msra.mxu0 %v3749
    %5073 = vmatprep.subr.bf16.mxu0 0
    %5074 = vmatpush2.bf16.msra.mxu0 %v3748
    %5075 = vmatprep.subr.bf16.mxu0 0
    %5076 = vmatpush2.bf16.msra.mxu0 %v3747
    %5077 = vmatprep.subr.bf16.mxu0 0
    %5078 = vmatpush2.bf16.msra.mxu0 %v3746
    %5079 = vmatprep.subr.bf16.mxu0 0
    %5080 = vmatpush2.bf16.msra.mxu0 %v3745
    %5081 = vmatprep.mubr.bf16.mxu0 %v427
    %5082 = vmatmul.mubr.bf16.gmra.mxu0 %v426
    %v5083 = vpop.f32.mrf.mxu0
    %v5084 = vadd.f32 %v5044, %v5083
    %v5085 = vpop.f32.mrf.mxu0
    %v5086 = vpop.f32.mrf.mxu0
    %v5087 = vpop.f32.mrf.mxu0
    %5088 = vdwg.mxu0
    %5089 = vmatprep.subr.bf16.mxu0 0
    %5090 = vmatpush1.bf16.msra.mxu0 %v3760
    %5091 = vmatprep.subr.bf16.mxu0 0
    %5092 = vmatpush1.bf16.msra.mxu0 %v3759
    %5093 = vmatprep.subr.bf16.mxu0 0
    %5094 = vmatpush1.bf16.msra.mxu0 %v3758
    %5095 = vmatprep.subr.bf16.mxu0 0
    %5096 = vmatpush1.bf16.msra.mxu0 %v3757
    %5097 = vmatprep.subr.bf16.mxu0 0
    %5098 = vmatpush1.bf16.msra.mxu0 %v3756
    %5099 = vmatprep.subr.bf16.mxu0 0
    %5100 = vmatpush1.bf16.msra.mxu0 %v3755
    %5101 = vmatprep.subr.bf16.mxu0 0
    %5102 = vmatpush1.bf16.msra.mxu0 %v3754
    %5103 = vmatprep.subr.bf16.mxu0 0
    %5104 = vmatpush1.bf16.msra.mxu0 %v3753
    %5105 = vmatprep.subr.bf16.mxu0 0
    %5106 = vmatpush2.bf16.msra.mxu0 %v3768
    %5107 = vmatprep.subr.bf16.mxu0 0
    %5108 = vmatpush2.bf16.msra.mxu0 %v3767
    %5109 = vmatprep.subr.bf16.mxu0 0
    %5110 = vmatpush2.bf16.msra.mxu0 %v3766
    %5111 = vmatprep.subr.bf16.mxu0 0
    %5112 = vmatpush2.bf16.msra.mxu0 %v3765
    %5113 = vmatprep.subr.bf16.mxu0 0
    %5114 = vmatpush2.bf16.msra.mxu0 %v3764
    %5115 = vmatprep.subr.bf16.mxu0 0
    %5116 = vmatpush2.bf16.msra.mxu0 %v3763
    %5117 = vmatprep.subr.bf16.mxu0 0
    %5118 = vmatpush2.bf16.msra.mxu0 %v3762
    %5119 = vmatprep.subr.bf16.mxu0 0
    %5120 = vmatpush2.bf16.msra.mxu0 %v3761
    %5121 = vmatprep.mubr.bf16.mxu0 %v429
    %5122 = vmatmul.mubr.bf16.gmra.mxu0 %v428
    %v5123 = vpop.f32.mrf.mxu0
    %v5124 = vadd.f32 %v5084, %v5123
    %v5125 = vpop.f32.mrf.mxu0
    %v5126 = vpop.f32.mrf.mxu0
    %v5127 = vpop.f32.mrf.mxu0
    %5128 = vdwg.mxu0
    %5129 = vmatprep.subr.bf16.mxu0 0
    %5130 = vmatpush1.bf16.msra.mxu0 %v3776
    %5131 = vmatprep.subr.bf16.mxu0 0
    %5132 = vmatpush1.bf16.msra.mxu0 %v3775
    %5133 = vmatprep.subr.bf16.mxu0 0
    %5134 = vmatpush1.bf16.msra.mxu0 %v3774
    %5135 = vmatprep.subr.bf16.mxu0 0
    %5136 = vmatpush1.bf16.msra.mxu0 %v3773
    %5137 = vmatprep.subr.bf16.mxu0 0
    %5138 = vmatpush1.bf16.msra.mxu0 %v3772
    %5139 = vmatprep.subr.bf16.mxu0 0
    %5140 = vmatpush1.bf16.msra.mxu0 %v3771
    %5141 = vmatprep.subr.bf16.mxu0 0
    %5142 = vmatpush1.bf16.msra.mxu0 %v3770
    %5143 = vmatprep.subr.bf16.mxu0 0
    %5144 = vmatpush1.bf16.msra.mxu0 %v3769
    %5145 = vmatprep.subr.bf16.mxu0 0
    %5146 = vmatpush2.bf16.msra.mxu0 %v3784
    %5147 = vmatprep.subr.bf16.mxu0 0
    %5148 = vmatpush2.bf16.msra.mxu0 %v3783
    %5149 = vmatprep.subr.bf16.mxu0 0
    %5150 = vmatpush2.bf16.msra.mxu0 %v3782
    %5151 = vmatprep.subr.bf16.mxu0 0
    %5152 = vmatpush2.bf16.msra.mxu0 %v3781
    %5153 = vmatprep.subr.bf16.mxu0 0
    %5154 = vmatpush2.bf16.msra.mxu0 %v3780
    %5155 = vmatprep.subr.bf16.mxu0 0
    %5156 = vmatpush2.bf16.msra.mxu0 %v3779
    %5157 = vmatprep.subr.bf16.mxu0 0
    %5158 = vmatpush2.bf16.msra.mxu0 %v3778
    %5159 = vmatprep.subr.bf16.mxu0 0
    %5160 = vmatpush2.bf16.msra.mxu0 %v3777
    %5161 = vmatprep.mubr.bf16.mxu0 %v431
    %5162 = vmatmul.mubr.bf16.gmra.mxu0 %v430
    %v5163 = vpop.f32.mrf.mxu0
    %v5164 = vadd.f32 %v5124, %v5163
    %v5165 = vpop.f32.mrf.mxu0
    %v5166 = vpop.f32.mrf.mxu0
    %v5167 = vpop.f32.mrf.mxu0
    %5168 = vdwg.mxu0
    %5169 = vmatprep.subr.bf16.mxu0 0
    %5170 = vmatpush1.bf16.msra.mxu0 %v3792
    %5171 = vmatprep.subr.bf16.mxu0 0
    %5172 = vmatpush1.bf16.msra.mxu0 %v3791
    %5173 = vmatprep.subr.bf16.mxu0 0
    %5174 = vmatpush1.bf16.msra.mxu0 %v3790
    %5175 = vmatprep.subr.bf16.mxu0 0
    %5176 = vmatpush1.bf16.msra.mxu0 %v3789
    %5177 = vmatprep.subr.bf16.mxu0 0
    %5178 = vmatpush1.bf16.msra.mxu0 %v3788
    %5179 = vmatprep.subr.bf16.mxu0 0
    %5180 = vmatpush1.bf16.msra.mxu0 %v3787
    %5181 = vmatprep.subr.bf16.mxu0 0
    %5182 = vmatpush1.bf16.msra.mxu0 %v3786
    %5183 = vmatprep.subr.bf16.mxu0 0
    %5184 = vmatpush1.bf16.msra.mxu0 %v3785
    %5185 = vmatprep.subr.bf16.mxu0 0
    %5186 = vmatpush2.bf16.msra.mxu0 %v3800
    %5187 = vmatprep.subr.bf16.mxu0 0
    %5188 = vmatpush2.bf16.msra.mxu0 %v3799
    %5189 = vmatprep.subr.bf16.mxu0 0
    %5190 = vmatpush2.bf16.msra.mxu0 %v3798
    %5191 = vmatprep.subr.bf16.mxu0 0
    %5192 = vmatpush2.bf16.msra.mxu0 %v3797
    %5193 = vmatprep.subr.bf16.mxu0 0
    %5194 = vmatpush2.bf16.msra.mxu0 %v3796
    %5195 = vmatprep.subr.bf16.mxu0 0
    %5196 = vmatpush2.bf16.msra.mxu0 %v3795
    %5197 = vmatprep.subr.bf16.mxu0 0
    %5198 = vmatpush2.bf16.msra.mxu0 %v3794
    %5199 = vmatprep.subr.bf16.mxu0 0
    %5200 = vmatpush2.bf16.msra.mxu0 %v3793
    %5201 = vmatprep.mubr.bf16.mxu0 %v433
    %5202 = vmatmul.mubr.bf16.gmra.mxu0 %v432
    %v5203 = vpop.f32.mrf.mxu0
    %v5204 = vadd.f32 %v5164, %v5203
    %v5205 = vpop.f32.mrf.mxu0
    %v5206 = vpop.f32.mrf.mxu0
    %v5207 = vpop.f32.mrf.mxu0
    %5208 = vdwg.mxu0
    %5209 = vmatprep.subr.bf16.mxu0 0
    %5210 = vmatpush1.bf16.msra.mxu0 %v3808
    %5211 = vmatprep.subr.bf16.mxu0 0
    %5212 = vmatpush1.bf16.msra.mxu0 %v3807
    %5213 = vmatprep.subr.bf16.mxu0 0
    %5214 = vmatpush1.bf16.msra.mxu0 %v3806
    %5215 = vmatprep.subr.bf16.mxu0 0
    %5216 = vmatpush1.bf16.msra.mxu0 %v3805
    %5217 = vmatprep.subr.bf16.mxu0 0
    %5218 = vmatpush1.bf16.msra.mxu0 %v3804
    %5219 = vmatprep.subr.bf16.mxu0 0
    %5220 = vmatpush1.bf16.msra.mxu0 %v3803
    %5221 = vmatprep.subr.bf16.mxu0 0
    %5222 = vmatpush1.bf16.msra.mxu0 %v3802
    %5223 = vmatprep.subr.bf16.mxu0 0
    %5224 = vmatpush1.bf16.msra.mxu0 %v3801
    %5225 = vmatprep.subr.bf16.mxu0 0
    %5226 = vmatpush2.bf16.msra.mxu0 %v3816
    %5227 = vmatprep.subr.bf16.mxu0 0
    %5228 = vmatpush2.bf16.msra.mxu0 %v3815
    %5229 = vmatprep.subr.bf16.mxu0 0
    %5230 = vmatpush2.bf16.msra.mxu0 %v3814
    %5231 = vmatprep.subr.bf16.mxu0 0
    %5232 = vmatpush2.bf16.msra.mxu0 %v3813
    %5233 = vmatprep.subr.bf16.mxu0 0
    %5234 = vmatpush2.bf16.msra.mxu0 %v3812
    %5235 = vmatprep.subr.bf16.mxu0 0
    %5236 = vmatpush2.bf16.msra.mxu0 %v3811
    %5237 = vmatprep.subr.bf16.mxu0 0
    %5238 = vmatpush2.bf16.msra.mxu0 %v3810
    %5239 = vmatprep.subr.bf16.mxu0 0
    %5240 = vmatpush2.bf16.msra.mxu0 %v3809
    %5241 = vmatprep.mubr.bf16.mxu0 %v435
    %5242 = vmatmul.mubr.bf16.gmra.mxu0 %v434
    %v5243 = vpop.f32.mrf.mxu0
    %v5244 = vadd.f32 %v5204, %v5243
    %v5245 = vpop.f32.mrf.mxu0
    %v5246 = vpop.f32.mrf.mxu0
    %v5247 = vpop.f32.mrf.mxu0
    %5248 = vdwg.mxu0
    %5249 = vmatprep.subr.bf16.mxu0 0
    %5250 = vmatpush1.bf16.msra.mxu0 %v3824
    %5251 = vmatprep.subr.bf16.mxu0 0
    %5252 = vmatpush1.bf16.msra.mxu0 %v3823
    %5253 = vmatprep.subr.bf16.mxu0 0
    %5254 = vmatpush1.bf16.msra.mxu0 %v3822
    %5255 = vmatprep.subr.bf16.mxu0 0
    %5256 = vmatpush1.bf16.msra.mxu0 %v3821
    %5257 = vmatprep.subr.bf16.mxu0 0
    %5258 = vmatpush1.bf16.msra.mxu0 %v3820
    %5259 = vmatprep.subr.bf16.mxu0 0
    %5260 = vmatpush1.bf16.msra.mxu0 %v3819
    %5261 = vmatprep.subr.bf16.mxu0 0
    %5262 = vmatpush1.bf16.msra.mxu0 %v3818
    %5263 = vmatprep.subr.bf16.mxu0 0
    %5264 = vmatpush1.bf16.msra.mxu0 %v3817
    %5265 = vmatprep.subr.bf16.mxu0 0
    %5266 = vmatpush2.bf16.msra.mxu0 %v3832
    %5267 = vmatprep.subr.bf16.mxu0 0
    %5268 = vmatpush2.bf16.msra.mxu0 %v3831
    %5269 = vmatprep.subr.bf16.mxu0 0
    %5270 = vmatpush2.bf16.msra.mxu0 %v3830
    %5271 = vmatprep.subr.bf16.mxu0 0
    %5272 = vmatpush2.bf16.msra.mxu0 %v3829
    %5273 = vmatprep.subr.bf16.mxu0 0
    %5274 = vmatpush2.bf16.msra.mxu0 %v3828
    %5275 = vmatprep.subr.bf16.mxu0 0
    %5276 = vmatpush2.bf16.msra.mxu0 %v3827
    %5277 = vmatprep.subr.bf16.mxu0 0
    %5278 = vmatpush2.bf16.msra.mxu0 %v3826
    %5279 = vmatprep.subr.bf16.mxu0 0
    %5280 = vmatpush2.bf16.msra.mxu0 %v3825
    %5281 = vmatprep.mubr.bf16.mxu0 %v437
    %5282 = vmatmul.mubr.bf16.gmra.mxu0 %v436
    %v5283 = vpop.f32.mrf.mxu0
    %v5284 = vadd.f32 %v5244, %v5283
    %v5285 = vpop.f32.mrf.mxu0
    %v5286 = vpop.f32.mrf.mxu0
    %v5287 = vpop.f32.mrf.mxu0
    %5288 = vdwg.mxu0
    %5289 = vmatprep.subr.bf16.mxu0 0
    %5290 = vmatpush1.bf16.msra.mxu0 %v3840
    %5291 = vmatprep.subr.bf16.mxu0 0
    %5292 = vmatpush1.bf16.msra.mxu0 %v3839
    %5293 = vmatprep.subr.bf16.mxu0 0
    %5294 = vmatpush1.bf16.msra.mxu0 %v3838
    %5295 = vmatprep.subr.bf16.mxu0 0
    %5296 = vmatpush1.bf16.msra.mxu0 %v3837
    %5297 = vmatprep.subr.bf16.mxu0 0
    %5298 = vmatpush1.bf16.msra.mxu0 %v3836
    %5299 = vmatprep.subr.bf16.mxu0 0
    %5300 = vmatpush1.bf16.msra.mxu0 %v3835
    %5301 = vmatprep.subr.bf16.mxu0 0
    %5302 = vmatpush1.bf16.msra.mxu0 %v3834
    %5303 = vmatprep.subr.bf16.mxu0 0
    %5304 = vmatpush1.bf16.msra.mxu0 %v3833
    %5305 = vmatprep.subr.bf16.mxu0 0
    %5306 = vmatpush2.bf16.msra.mxu0 %v3848
    %5307 = vmatprep.subr.bf16.mxu0 0
    %5308 = vmatpush2.bf16.msra.mxu0 %v3847
    %5309 = vmatprep.subr.bf16.mxu0 0
    %5310 = vmatpush2.bf16.msra.mxu0 %v3846
    %5311 = vmatprep.subr.bf16.mxu0 0
    %5312 = vmatpush2.bf16.msra.mxu0 %v3845
    %5313 = vmatprep.subr.bf16.mxu0 0
    %5314 = vmatpush2.bf16.msra.mxu0 %v3844
    %5315 = vmatprep.subr.bf16.mxu0 0
    %5316 = vmatpush2.bf16.msra.mxu0 %v3843
    %5317 = vmatprep.subr.bf16.mxu0 0
    %5318 = vmatpush2.bf16.msra.mxu0 %v3842
    %5319 = vmatprep.subr.bf16.mxu0 0
    %5320 = vmatpush2.bf16.msra.mxu0 %v3841
    %5321 = vmatprep.mubr.bf16.mxu0 %v439
    %5322 = vmatmul.mubr.bf16.gmra.mxu0 %v438
    %v5323 = vpop.f32.mrf.mxu0
    %v5324 = vadd.f32 %v5284, %v5323
    %v5325 = vpop.f32.mrf.mxu0
    %v5326 = vpop.f32.mrf.mxu0
    %v5327 = vpop.f32.mrf.mxu0
    %5328 = vdwg.mxu0
    %5329 = vmatprep.subr.bf16.mxu0 0
    %5330 = vmatpush1.bf16.msra.mxu0 %v3856
    %5331 = vmatprep.subr.bf16.mxu0 0
    %5332 = vmatpush1.bf16.msra.mxu0 %v3855
    %5333 = vmatprep.subr.bf16.mxu0 0
    %5334 = vmatpush1.bf16.msra.mxu0 %v3854
    %5335 = vmatprep.subr.bf16.mxu0 0
    %5336 = vmatpush1.bf16.msra.mxu0 %v3853
    %5337 = vmatprep.subr.bf16.mxu0 0
    %5338 = vmatpush1.bf16.msra.mxu0 %v3852
    %5339 = vmatprep.subr.bf16.mxu0 0
    %5340 = vmatpush1.bf16.msra.mxu0 %v3851
    %5341 = vmatprep.subr.bf16.mxu0 0
    %5342 = vmatpush1.bf16.msra.mxu0 %v3850
    %5343 = vmatprep.subr.bf16.mxu0 0
    %5344 = vmatpush1.bf16.msra.mxu0 %v3849
    %5345 = vmatprep.subr.bf16.mxu0 0
    %5346 = vmatpush2.bf16.msra.mxu0 %v3864
    %5347 = vmatprep.subr.bf16.mxu0 0
    %5348 = vmatpush2.bf16.msra.mxu0 %v3863
    %5349 = vmatprep.subr.bf16.mxu0 0
    %5350 = vmatpush2.bf16.msra.mxu0 %v3862
    %5351 = vmatprep.subr.bf16.mxu0 0
    %5352 = vmatpush2.bf16.msra.mxu0 %v3861
    %5353 = vmatprep.subr.bf16.mxu0 0
    %5354 = vmatpush2.bf16.msra.mxu0 %v3860
    %5355 = vmatprep.subr.bf16.mxu0 0
    %5356 = vmatpush2.bf16.msra.mxu0 %v3859
    %5357 = vmatprep.subr.bf16.mxu0 0
    %5358 = vmatpush2.bf16.msra.mxu0 %v3858
    %5359 = vmatprep.subr.bf16.mxu0 0
    %5360 = vmatpush2.bf16.msra.mxu0 %v3857
    %5361 = vmatprep.mubr.bf16.mxu0 %v441
    %5362 = vmatmul.mubr.bf16.gmra.mxu0 %v440
    %v5363 = vpop.f32.mrf.mxu0
    %v5364 = vadd.f32 %v5324, %v5363
    %v5365 = vpop.f32.mrf.mxu0
    %v5366 = vpop.f32.mrf.mxu0
    %v5367 = vpop.f32.mrf.mxu0
    %5368 = vdwg.mxu0
    %5369 = vmatprep.subr.bf16.mxu0 0
    %5370 = vmatpush1.bf16.msra.mxu0 %v3872
    %5371 = vmatprep.subr.bf16.mxu0 0
    %5372 = vmatpush1.bf16.msra.mxu0 %v3871
    %5373 = vmatprep.subr.bf16.mxu0 0
    %5374 = vmatpush1.bf16.msra.mxu0 %v3870
    %5375 = vmatprep.subr.bf16.mxu0 0
    %5376 = vmatpush1.bf16.msra.mxu0 %v3869
    %5377 = vmatprep.subr.bf16.mxu0 0
    %5378 = vmatpush1.bf16.msra.mxu0 %v3868
    %5379 = vmatprep.subr.bf16.mxu0 0
    %5380 = vmatpush1.bf16.msra.mxu0 %v3867
    %5381 = vmatprep.subr.bf16.mxu0 0
    %5382 = vmatpush1.bf16.msra.mxu0 %v3866
    %5383 = vmatprep.subr.bf16.mxu0 0
    %5384 = vmatpush1.bf16.msra.mxu0 %v3865
    %5385 = vmatprep.subr.bf16.mxu0 0
    %5386 = vmatpush2.bf16.msra.mxu0 %v3880
    %5387 = vmatprep.subr.bf16.mxu0 0
    %5388 = vmatpush2.bf16.msra.mxu0 %v3879
    %5389 = vmatprep.subr.bf16.mxu0 0
    %5390 = vmatpush2.bf16.msra.mxu0 %v3878
    %5391 = vmatprep.subr.bf16.mxu0 0
    %5392 = vmatpush2.bf16.msra.mxu0 %v3877
    %5393 = vmatprep.subr.bf16.mxu0 0
    %5394 = vmatpush2.bf16.msra.mxu0 %v3876
    %5395 = vmatprep.subr.bf16.mxu0 0
    %5396 = vmatpush2.bf16.msra.mxu0 %v3875
    %5397 = vmatprep.subr.bf16.mxu0 0
    %5398 = vmatpush2.bf16.msra.mxu0 %v3874
    %5399 = vmatprep.subr.bf16.mxu0 0
    %5400 = vmatpush2.bf16.msra.mxu0 %v3873
    %5401 = vmatprep.mubr.bf16.mxu0 %v443
    %5402 = vmatmul.mubr.bf16.gmra.mxu0 %v442
    %v5403 = vpop.f32.mrf.mxu0
    %v5404 = vadd.f32 %v5364, %v5403
    %v5405 = vpop.f32.mrf.mxu0
    %v5406 = vpop.f32.mrf.mxu0
    %v5407 = vpop.f32.mrf.mxu0
    %5408 = vdwg.mxu0
    %5409 = vmatprep.subr.bf16.mxu0 0
    %5410 = vmatpush1.bf16.msra.mxu0 %v3888
    %5411 = vmatprep.subr.bf16.mxu0 0
    %5412 = vmatpush1.bf16.msra.mxu0 %v3887
    %5413 = vmatprep.subr.bf16.mxu0 0
    %5414 = vmatpush1.bf16.msra.mxu0 %v3886
    %5415 = vmatprep.subr.bf16.mxu0 0
    %5416 = vmatpush1.bf16.msra.mxu0 %v3885
    %5417 = vmatprep.subr.bf16.mxu0 0
    %5418 = vmatpush1.bf16.msra.mxu0 %v3884
    %5419 = vmatprep.subr.bf16.mxu0 0
    %5420 = vmatpush1.bf16.msra.mxu0 %v3883
    %5421 = vmatprep.subr.bf16.mxu0 0
    %5422 = vmatpush1.bf16.msra.mxu0 %v3882
    %5423 = vmatprep.subr.bf16.mxu0 0
    %5424 = vmatpush1.bf16.msra.mxu0 %v3881
    %5425 = vmatprep.subr.bf16.mxu0 0
    %5426 = vmatpush2.bf16.msra.mxu0 %v3896
    %5427 = vmatprep.subr.bf16.mxu0 0
    %5428 = vmatpush2.bf16.msra.mxu0 %v3895
    %5429 = vmatprep.subr.bf16.mxu0 0
    %5430 = vmatpush2.bf16.msra.mxu0 %v3894
    %5431 = vmatprep.subr.bf16.mxu0 0
    %5432 = vmatpush2.bf16.msra.mxu0 %v3893
    %5433 = vmatprep.subr.bf16.mxu0 0
    %5434 = vmatpush2.bf16.msra.mxu0 %v3892
    %5435 = vmatprep.subr.bf16.mxu0 0
    %5436 = vmatpush2.bf16.msra.mxu0 %v3891
    %5437 = vmatprep.subr.bf16.mxu0 0
    %5438 = vmatpush2.bf16.msra.mxu0 %v3890
    %5439 = vmatprep.subr.bf16.mxu0 0
    %5440 = vmatpush2.bf16.msra.mxu0 %v3889
    %5441 = vmatprep.mubr.bf16.mxu0 %v445
    %5442 = vmatmul.mubr.bf16.gmra.mxu0 %v444
    %v5443 = vpop.f32.mrf.mxu0
    %v5444 = vadd.f32 %v5404, %v5443
    %v5445 = vpop.f32.mrf.mxu0
    %v5446 = vpop.f32.mrf.mxu0
    %v5447 = vpop.f32.mrf.mxu0
    %5448 = vdwg.mxu0
    %5449 = vmatprep.subr.bf16.mxu0 0
    %5450 = vmatpush1.bf16.msra.mxu0 %v3904
    %5451 = vmatprep.subr.bf16.mxu0 0
    %5452 = vmatpush1.bf16.msra.mxu0 %v3903
    %5453 = vmatprep.subr.bf16.mxu0 0
    %5454 = vmatpush1.bf16.msra.mxu0 %v3902
    %5455 = vmatprep.subr.bf16.mxu0 0
    %5456 = vmatpush1.bf16.msra.mxu0 %v3901
    %5457 = vmatprep.subr.bf16.mxu0 0
    %5458 = vmatpush1.bf16.msra.mxu0 %v3900
    %5459 = vmatprep.subr.bf16.mxu0 0
    %5460 = vmatpush1.bf16.msra.mxu0 %v3899
    %5461 = vmatprep.subr.bf16.mxu0 0
    %5462 = vmatpush1.bf16.msra.mxu0 %v3898
    %5463 = vmatprep.subr.bf16.mxu0 0
    %5464 = vmatpush1.bf16.msra.mxu0 %v3897
    %5465 = vmatprep.subr.bf16.mxu0 0
    %5466 = vmatpush2.bf16.msra.mxu0 %v3912
    %5467 = vmatprep.subr.bf16.mxu0 0
    %5468 = vmatpush2.bf16.msra.mxu0 %v3911
    %5469 = vmatprep.subr.bf16.mxu0 0
    %5470 = vmatpush2.bf16.msra.mxu0 %v3910
    %5471 = vmatprep.subr.bf16.mxu0 0
    %5472 = vmatpush2.bf16.msra.mxu0 %v3909
    %5473 = vmatprep.subr.bf16.mxu0 0
    %5474 = vmatpush2.bf16.msra.mxu0 %v3908
    %5475 = vmatprep.subr.bf16.mxu0 0
    %5476 = vmatpush2.bf16.msra.mxu0 %v3907
    %5477 = vmatprep.subr.bf16.mxu0 0
    %5478 = vmatpush2.bf16.msra.mxu0 %v3906
    %5479 = vmatprep.subr.bf16.mxu0 0
    %5480 = vmatpush2.bf16.msra.mxu0 %v3905
    %5481 = vmatprep.mubr.bf16.mxu0 %v447
    %5482 = vmatmul.mubr.bf16.gmra.mxu0 %v446
    %v5483 = vpop.f32.mrf.mxu0
    %v5484 = vadd.f32 %v5444, %v5483
    %v5485 = vpop.f32.mrf.mxu0
    %v5486 = vpop.f32.mrf.mxu0
    %v5487 = vpop.f32.mrf.mxu0
    %5488 = vdwg.mxu0
    %5489 = vmatprep.subr.bf16.mxu0 0
    %5490 = vmatpush1.bf16.msra.mxu0 %v3920
    %5491 = vmatprep.subr.bf16.mxu0 0
    %5492 = vmatpush1.bf16.msra.mxu0 %v3919
    %5493 = vmatprep.subr.bf16.mxu0 0
    %5494 = vmatpush1.bf16.msra.mxu0 %v3918
    %5495 = vmatprep.subr.bf16.mxu0 0
    %5496 = vmatpush1.bf16.msra.mxu0 %v3917
    %5497 = vmatprep.subr.bf16.mxu0 0
    %5498 = vmatpush1.bf16.msra.mxu0 %v3916
    %5499 = vmatprep.subr.bf16.mxu0 0
    %5500 = vmatpush1.bf16.msra.mxu0 %v3915
    %5501 = vmatprep.subr.bf16.mxu0 0
    %5502 = vmatpush1.bf16.msra.mxu0 %v3914
    %5503 = vmatprep.subr.bf16.mxu0 0
    %5504 = vmatpush1.bf16.msra.mxu0 %v3913
    %5505 = vmatprep.subr.bf16.mxu0 0
    %5506 = vmatpush2.bf16.msra.mxu0 %v3928
    %5507 = vmatprep.subr.bf16.mxu0 0
    %5508 = vmatpush2.bf16.msra.mxu0 %v3927
    %5509 = vmatprep.subr.bf16.mxu0 0
    %5510 = vmatpush2.bf16.msra.mxu0 %v3926
    %5511 = vmatprep.subr.bf16.mxu0 0
    %5512 = vmatpush2.bf16.msra.mxu0 %v3925
    %5513 = vmatprep.subr.bf16.mxu0 0
    %5514 = vmatpush2.bf16.msra.mxu0 %v3924
    %5515 = vmatprep.subr.bf16.mxu0 0
    %5516 = vmatpush2.bf16.msra.mxu0 %v3923
    %5517 = vmatprep.subr.bf16.mxu0 0
    %5518 = vmatpush2.bf16.msra.mxu0 %v3922
    %5519 = vmatprep.subr.bf16.mxu0 0
    %5520 = vmatpush2.bf16.msra.mxu0 %v3921
    %5521 = vmatprep.mubr.bf16.mxu0 %v449
    %5522 = vmatmul.mubr.bf16.gmra.mxu0 %v448
    %v5523 = vpop.f32.mrf.mxu0
    %v5524 = vadd.f32 %v5484, %v5523
    %v5525 = vpop.f32.mrf.mxu0
    %v5526 = vpop.f32.mrf.mxu0
    %v5527 = vpop.f32.mrf.mxu0
    %5528 = vdwg.mxu0
    %5529 = vmatprep.subr.bf16.mxu0 0
    %5530 = vmatpush1.bf16.msra.mxu0 %v3936
    %5531 = vmatprep.subr.bf16.mxu0 0
    %5532 = vmatpush1.bf16.msra.mxu0 %v3935
    %5533 = vmatprep.subr.bf16.mxu0 0
    %5534 = vmatpush1.bf16.msra.mxu0 %v3934
    %5535 = vmatprep.subr.bf16.mxu0 0
    %5536 = vmatpush1.bf16.msra.mxu0 %v3933
    %5537 = vmatprep.subr.bf16.mxu0 0
    %5538 = vmatpush1.bf16.msra.mxu0 %v3932
    %5539 = vmatprep.subr.bf16.mxu0 0
    %5540 = vmatpush1.bf16.msra.mxu0 %v3931
    %5541 = vmatprep.subr.bf16.mxu0 0
    %5542 = vmatpush1.bf16.msra.mxu0 %v3930
    %5543 = vmatprep.subr.bf16.mxu0 0
    %5544 = vmatpush1.bf16.msra.mxu0 %v3929
    %5545 = vmatprep.subr.bf16.mxu0 0
    %5546 = vmatpush2.bf16.msra.mxu0 %v3944
    %5547 = vmatprep.subr.bf16.mxu0 0
    %5548 = vmatpush2.bf16.msra.mxu0 %v3943
    %5549 = vmatprep.subr.bf16.mxu0 0
    %5550 = vmatpush2.bf16.msra.mxu0 %v3942
    %5551 = vmatprep.subr.bf16.mxu0 0
    %5552 = vmatpush2.bf16.msra.mxu0 %v3941
    %5553 = vmatprep.subr.bf16.mxu0 0
    %5554 = vmatpush2.bf16.msra.mxu0 %v3940
    %5555 = vmatprep.subr.bf16.mxu0 0
    %5556 = vmatpush2.bf16.msra.mxu0 %v3939
    %5557 = vmatprep.subr.bf16.mxu0 0
    %5558 = vmatpush2.bf16.msra.mxu0 %v3938
    %5559 = vmatprep.subr.bf16.mxu0 0
    %5560 = vmatpush2.bf16.msra.mxu0 %v3937
    %5561 = vmatprep.mubr.bf16.mxu0 %v451
    %5562 = vmatmul.mubr.bf16.gmra.mxu0 %v450
    %v5563 = vpop.f32.mrf.mxu0
    %v5564 = vadd.f32 %v5524, %v5563
    %v5565 = vpop.f32.mrf.mxu0
    %v5566 = vpop.f32.mrf.mxu0
    %v5567 = vpop.f32.mrf.mxu0
    %5568 = vdwg.mxu0
    %5569 = vmatprep.subr.bf16.mxu0 0
    %5570 = vmatpush1.bf16.msra.mxu0 %v3952
    %5571 = vmatprep.subr.bf16.mxu0 0
    %5572 = vmatpush1.bf16.msra.mxu0 %v3951
    %5573 = vmatprep.subr.bf16.mxu0 0
    %5574 = vmatpush1.bf16.msra.mxu0 %v3950
    %5575 = vmatprep.subr.bf16.mxu0 0
    %5576 = vmatpush1.bf16.msra.mxu0 %v3949
    %5577 = vmatprep.subr.bf16.mxu0 0
    %5578 = vmatpush1.bf16.msra.mxu0 %v3948
    %5579 = vmatprep.subr.bf16.mxu0 0
    %5580 = vmatpush1.bf16.msra.mxu0 %v3947
    %5581 = vmatprep.subr.bf16.mxu0 0
    %5582 = vmatpush1.bf16.msra.mxu0 %v3946
    %5583 = vmatprep.subr.bf16.mxu0 0
    %5584 = vmatpush1.bf16.msra.mxu0 %v3945
    %5585 = vmatprep.subr.bf16.mxu0 0
    %5586 = vmatpush2.bf16.msra.mxu0 %v3960
    %5587 = vmatprep.subr.bf16.mxu0 0
    %5588 = vmatpush2.bf16.msra.mxu0 %v3959
    %5589 = vmatprep.subr.bf16.mxu0 0
    %5590 = vmatpush2.bf16.msra.mxu0 %v3958
    %5591 = vmatprep.subr.bf16.mxu0 0
    %5592 = vmatpush2.bf16.msra.mxu0 %v3957
    %5593 = vmatprep.subr.bf16.mxu0 0
    %5594 = vmatpush2.bf16.msra.mxu0 %v3956
    %5595 = vmatprep.subr.bf16.mxu0 0
    %5596 = vmatpush2.bf16.msra.mxu0 %v3955
    %5597 = vmatprep.subr.bf16.mxu0 0
    %5598 = vmatpush2.bf16.msra.mxu0 %v3954
    %5599 = vmatprep.subr.bf16.mxu0 0
    %5600 = vmatpush2.bf16.msra.mxu0 %v3953
    %5601 = vmatprep.mubr.bf16.mxu0 %v453
    %5602 = vmatmul.mubr.bf16.gmra.mxu0 %v452
    %v5603 = vpop.f32.mrf.mxu0
    %v5604 = vadd.f32 %v5564, %v5603
    %v5605 = vpop.f32.mrf.mxu0
    %v5606 = vpop.f32.mrf.mxu0
    %v5607 = vpop.f32.mrf.mxu0
    %5608 = vdwg.mxu0
    %5609 = vmatprep.subr.bf16.mxu0 0
    %5610 = vmatpush1.bf16.msra.mxu0 %v3968
    %5611 = vmatprep.subr.bf16.mxu0 0
    %5612 = vmatpush1.bf16.msra.mxu0 %v3967
    %5613 = vmatprep.subr.bf16.mxu0 0
    %5614 = vmatpush1.bf16.msra.mxu0 %v3966
    %5615 = vmatprep.subr.bf16.mxu0 0
    %5616 = vmatpush1.bf16.msra.mxu0 %v3965
    %5617 = vmatprep.subr.bf16.mxu0 0
    %5618 = vmatpush1.bf16.msra.mxu0 %v3964
    %5619 = vmatprep.subr.bf16.mxu0 0
    %5620 = vmatpush1.bf16.msra.mxu0 %v3963
    %5621 = vmatprep.subr.bf16.mxu0 0
    %5622 = vmatpush1.bf16.msra.mxu0 %v3962
    %5623 = vmatprep.subr.bf16.mxu0 0
    %5624 = vmatpush1.bf16.msra.mxu0 %v3961
    %5625 = vmatprep.subr.bf16.mxu0 0
    %5626 = vmatpush2.bf16.msra.mxu0 %v3976
    %5627 = vmatprep.subr.bf16.mxu0 0
    %5628 = vmatpush2.bf16.msra.mxu0 %v3975
    %5629 = vmatprep.subr.bf16.mxu0 0
    %5630 = vmatpush2.bf16.msra.mxu0 %v3974
    %5631 = vmatprep.subr.bf16.mxu0 0
    %5632 = vmatpush2.bf16.msra.mxu0 %v3973
    %5633 = vmatprep.subr.bf16.mxu0 0
    %5634 = vmatpush2.bf16.msra.mxu0 %v3972
    %5635 = vmatprep.subr.bf16.mxu0 0
    %5636 = vmatpush2.bf16.msra.mxu0 %v3971
    %5637 = vmatprep.subr.bf16.mxu0 0
    %5638 = vmatpush2.bf16.msra.mxu0 %v3970
    %5639 = vmatprep.subr.bf16.mxu0 0
    %5640 = vmatpush2.bf16.msra.mxu0 %v3969
    %5641 = vmatprep.mubr.bf16.mxu0 %v455
    %5642 = vmatmul.mubr.bf16.gmra.mxu0 %v454
    %v5643 = vpop.f32.mrf.mxu0
    %v5644 = vadd.f32 %v5604, %v5643
    %v5645 = vpop.f32.mrf.mxu0
    %v5646 = vpop.f32.mrf.mxu0
    %v5647 = vpop.f32.mrf.mxu0
    %5648 = vdwg.mxu0
    %5649 = vmatprep.subr.bf16.mxu0 0
    %5650 = vmatpush1.bf16.msra.mxu0 %v3984
    %5651 = vmatprep.subr.bf16.mxu0 0
    %5652 = vmatpush1.bf16.msra.mxu0 %v3983
    %5653 = vmatprep.subr.bf16.mxu0 0
    %5654 = vmatpush1.bf16.msra.mxu0 %v3982
    %5655 = vmatprep.subr.bf16.mxu0 0
    %5656 = vmatpush1.bf16.msra.mxu0 %v3981
    %5657 = vmatprep.subr.bf16.mxu0 0
    %5658 = vmatpush1.bf16.msra.mxu0 %v3980
    %5659 = vmatprep.subr.bf16.mxu0 0
    %5660 = vmatpush1.bf16.msra.mxu0 %v3979
    %5661 = vmatprep.subr.bf16.mxu0 0
    %5662 = vmatpush1.bf16.msra.mxu0 %v3978
    %5663 = vmatprep.subr.bf16.mxu0 0
    %5664 = vmatpush1.bf16.msra.mxu0 %v3977
    %5665 = vmatprep.subr.bf16.mxu0 0
    %5666 = vmatpush2.bf16.msra.mxu0 %v3992
    %5667 = vmatprep.subr.bf16.mxu0 0
    %5668 = vmatpush2.bf16.msra.mxu0 %v3991
    %5669 = vmatprep.subr.bf16.mxu0 0
    %5670 = vmatpush2.bf16.msra.mxu0 %v3990
    %5671 = vmatprep.subr.bf16.mxu0 0
    %5672 = vmatpush2.bf16.msra.mxu0 %v3989
    %5673 = vmatprep.subr.bf16.mxu0 0
    %5674 = vmatpush2.bf16.msra.mxu0 %v3988
    %5675 = vmatprep.subr.bf16.mxu0 0
    %5676 = vmatpush2.bf16.msra.mxu0 %v3987
    %5677 = vmatprep.subr.bf16.mxu0 0
    %5678 = vmatpush2.bf16.msra.mxu0 %v3986
    %5679 = vmatprep.subr.bf16.mxu0 0
    %5680 = vmatpush2.bf16.msra.mxu0 %v3985
    %5681 = vmatprep.mubr.bf16.mxu0 %v457
    %5682 = vmatmul.mubr.bf16.gmra.mxu0 %v456
    %v5683 = vpop.f32.mrf.mxu0
    %v5684 = vadd.f32 %v5644, %v5683
    %v5685 = vpop.f32.mrf.mxu0
    %v5686 = vpop.f32.mrf.mxu0
    %v5687 = vpop.f32.mrf.mxu0
    %5688 = vdwg.mxu0
    %5689 = vmatprep.subr.bf16.mxu0 0
    %5690 = vmatpush1.bf16.msra.mxu0 %v4000
    %5691 = vmatprep.subr.bf16.mxu0 0
    %5692 = vmatpush1.bf16.msra.mxu0 %v3999
    %5693 = vmatprep.subr.bf16.mxu0 0
    %5694 = vmatpush1.bf16.msra.mxu0 %v3998
    %5695 = vmatprep.subr.bf16.mxu0 0
    %5696 = vmatpush1.bf16.msra.mxu0 %v3997
    %5697 = vmatprep.subr.bf16.mxu0 0
    %5698 = vmatpush1.bf16.msra.mxu0 %v3996
    %5699 = vmatprep.subr.bf16.mxu0 0
    %5700 = vmatpush1.bf16.msra.mxu0 %v3995
    %5701 = vmatprep.subr.bf16.mxu0 0
    %5702 = vmatpush1.bf16.msra.mxu0 %v3994
    %5703 = vmatprep.subr.bf16.mxu0 0
    %5704 = vmatpush1.bf16.msra.mxu0 %v3993
    %5705 = vmatprep.subr.bf16.mxu0 0
    %5706 = vmatpush2.bf16.msra.mxu0 %v4008
    %5707 = vmatprep.subr.bf16.mxu0 0
    %5708 = vmatpush2.bf16.msra.mxu0 %v4007
    %5709 = vmatprep.subr.bf16.mxu0 0
    %5710 = vmatpush2.bf16.msra.mxu0 %v4006
    %5711 = vmatprep.subr.bf16.mxu0 0
    %5712 = vmatpush2.bf16.msra.mxu0 %v4005
    %5713 = vmatprep.subr.bf16.mxu0 0
    %5714 = vmatpush2.bf16.msra.mxu0 %v4004
    %5715 = vmatprep.subr.bf16.mxu0 0
    %5716 = vmatpush2.bf16.msra.mxu0 %v4003
    %5717 = vmatprep.subr.bf16.mxu0 0
    %5718 = vmatpush2.bf16.msra.mxu0 %v4002
    %5719 = vmatprep.subr.bf16.mxu0 0
    %5720 = vmatpush2.bf16.msra.mxu0 %v4001
    %5721 = vmatprep.mubr.bf16.mxu0 %v459
    %5722 = vmatmul.mubr.bf16.gmra.mxu0 %v458
    %v5723 = vpop.f32.mrf.mxu0
    %v5724 = vadd.f32 %v5684, %v5723
    %v5725 = vpop.f32.mrf.mxu0
    %v5726 = vpop.f32.mrf.mxu0
    %v5727 = vpop.f32.mrf.mxu0
    %5728 = vdwg.mxu0
    %5729 = vmatprep.subr.bf16.mxu0 0
    %5730 = vmatpush1.bf16.msra.mxu0 %v4016
    %5731 = vmatprep.subr.bf16.mxu0 0
    %5732 = vmatpush1.bf16.msra.mxu0 %v4015
    %5733 = vmatprep.subr.bf16.mxu0 0
    %5734 = vmatpush1.bf16.msra.mxu0 %v4014
    %5735 = vmatprep.subr.bf16.mxu0 0
    %5736 = vmatpush1.bf16.msra.mxu0 %v4013
    %5737 = vmatprep.subr.bf16.mxu0 0
    %5738 = vmatpush1.bf16.msra.mxu0 %v4012
    %5739 = vmatprep.subr.bf16.mxu0 0
    %5740 = vmatpush1.bf16.msra.mxu0 %v4011
    %5741 = vmatprep.subr.bf16.mxu0 0
    %5742 = vmatpush1.bf16.msra.mxu0 %v4010
    %5743 = vmatprep.subr.bf16.mxu0 0
    %5744 = vmatpush1.bf16.msra.mxu0 %v4009
    %5745 = vmatprep.subr.bf16.mxu0 0
    %5746 = vmatpush2.bf16.msra.mxu0 %v4024
    %5747 = vmatprep.subr.bf16.mxu0 0
    %5748 = vmatpush2.bf16.msra.mxu0 %v4023
    %5749 = vmatprep.subr.bf16.mxu0 0
    %5750 = vmatpush2.bf16.msra.mxu0 %v4022
    %5751 = vmatprep.subr.bf16.mxu0 0
    %5752 = vmatpush2.bf16.msra.mxu0 %v4021
    %5753 = vmatprep.subr.bf16.mxu0 0
    %5754 = vmatpush2.bf16.msra.mxu0 %v4020
    %5755 = vmatprep.subr.bf16.mxu0 0
    %5756 = vmatpush2.bf16.msra.mxu0 %v4019
    %5757 = vmatprep.subr.bf16.mxu0 0
    %5758 = vmatpush2.bf16.msra.mxu0 %v4018
    %5759 = vmatprep.subr.bf16.mxu0 0
    %5760 = vmatpush2.bf16.msra.mxu0 %v4017
    %5761 = vmatprep.mubr.bf16.mxu0 %v461
    %5762 = vmatmul.mubr.bf16.gmra.mxu0 %v460
    %v5763 = vpop.f32.mrf.mxu0
    %v5764 = vadd.f32 %v5724, %v5763
    %v5765 = vpop.f32.mrf.mxu0
    %v5766 = vpop.f32.mrf.mxu0
    %v5767 = vpop.f32.mrf.mxu0
    %5768 = vdwg.mxu0
    %5769 = vmatprep.subr.bf16.mxu0 0
    %5770 = vmatpush1.bf16.msra.mxu0 %v4032
    %5771 = vmatprep.subr.bf16.mxu0 0
    %5772 = vmatpush1.bf16.msra.mxu0 %v4031
    %5773 = vmatprep.subr.bf16.mxu0 0
    %5774 = vmatpush1.bf16.msra.mxu0 %v4030
    %5775 = vmatprep.subr.bf16.mxu0 0
    %5776 = vmatpush1.bf16.msra.mxu0 %v4029
    %5777 = vmatprep.subr.bf16.mxu0 0
    %5778 = vmatpush1.bf16.msra.mxu0 %v4028
    %5779 = vmatprep.subr.bf16.mxu0 0
    %5780 = vmatpush1.bf16.msra.mxu0 %v4027
    %5781 = vmatprep.subr.bf16.mxu0 0
    %5782 = vmatpush1.bf16.msra.mxu0 %v4026
    %5783 = vmatprep.subr.bf16.mxu0 0
    %5784 = vmatpush1.bf16.msra.mxu0 %v4025
    %5785 = vmatprep.subr.bf16.mxu0 0
    %5786 = vmatpush2.bf16.msra.mxu0 %v4040
    %5787 = vmatprep.subr.bf16.mxu0 0
    %5788 = vmatpush2.bf16.msra.mxu0 %v4039
    %5789 = vmatprep.subr.bf16.mxu0 0
    %5790 = vmatpush2.bf16.msra.mxu0 %v4038
    %5791 = vmatprep.subr.bf16.mxu0 0
    %5792 = vmatpush2.bf16.msra.mxu0 %v4037
    %5793 = vmatprep.subr.bf16.mxu0 0
    %5794 = vmatpush2.bf16.msra.mxu0 %v4036
    %5795 = vmatprep.subr.bf16.mxu0 0
    %5796 = vmatpush2.bf16.msra.mxu0 %v4035
    %5797 = vmatprep.subr.bf16.mxu0 0
    %5798 = vmatpush2.bf16.msra.mxu0 %v4034
    %5799 = vmatprep.subr.bf16.mxu0 0
    %5800 = vmatpush2.bf16.msra.mxu0 %v4033
    %5801 = vmatprep.mubr.bf16.mxu0 %v463
    %5802 = vmatmul.mubr.bf16.gmra.mxu0 %v462
    %v5803 = vpop.f32.mrf.mxu0
    %v5804 = vadd.f32 %v5764, %v5803
    %v5805 = vpop.f32.mrf.mxu0
    %v5806 = vpop.f32.mrf.mxu0
    %v5807 = vpop.f32.mrf.mxu0
    %5808 = vdwg.mxu0
    %5809 = vmatprep.subr.bf16.mxu0 0
    %5810 = vmatpush1.bf16.msra.mxu0 %v4048
    %5811 = vmatprep.subr.bf16.mxu0 0
    %5812 = vmatpush1.bf16.msra.mxu0 %v4047
    %5813 = vmatprep.subr.bf16.mxu0 0
    %5814 = vmatpush1.bf16.msra.mxu0 %v4046
    %5815 = vmatprep.subr.bf16.mxu0 0
    %5816 = vmatpush1.bf16.msra.mxu0 %v4045
    %5817 = vmatprep.subr.bf16.mxu0 0
    %5818 = vmatpush1.bf16.msra.mxu0 %v4044
    %5819 = vmatprep.subr.bf16.mxu0 0
    %5820 = vmatpush1.bf16.msra.mxu0 %v4043
    %5821 = vmatprep.subr.bf16.mxu0 0
    %5822 = vmatpush1.bf16.msra.mxu0 %v4042
    %5823 = vmatprep.subr.bf16.mxu0 0
    %5824 = vmatpush1.bf16.msra.mxu0 %v4041
    %5825 = vmatprep.subr.bf16.mxu0 0
    %5826 = vmatpush2.bf16.msra.mxu0 %v4056
    %5827 = vmatprep.subr.bf16.mxu0 0
    %5828 = vmatpush2.bf16.msra.mxu0 %v4055
    %5829 = vmatprep.subr.bf16.mxu0 0
    %5830 = vmatpush2.bf16.msra.mxu0 %v4054
    %5831 = vmatprep.subr.bf16.mxu0 0
    %5832 = vmatpush2.bf16.msra.mxu0 %v4053
    %5833 = vmatprep.subr.bf16.mxu0 0
    %5834 = vmatpush2.bf16.msra.mxu0 %v4052
    %5835 = vmatprep.subr.bf16.mxu0 0
    %5836 = vmatpush2.bf16.msra.mxu0 %v4051
    %5837 = vmatprep.subr.bf16.mxu0 0
    %5838 = vmatpush2.bf16.msra.mxu0 %v4050
    %5839 = vmatprep.subr.bf16.mxu0 0
    %5840 = vmatpush2.bf16.msra.mxu0 %v4049
    %5841 = vmatprep.mubr.bf16.mxu0 %v465
    %5842 = vmatmul.mubr.bf16.gmra.mxu0 %v464
    %v5843 = vpop.f32.mrf.mxu0
    %v5844 = vadd.f32 %v5804, %v5843
    %v5845 = vpop.f32.mrf.mxu0
    %v5846 = vpop.f32.mrf.mxu0
    %v5847 = vpop.f32.mrf.mxu0
    %5848 = vdwg.mxu0
    %v5849 = vmax.f32 %v5844, 0.0
    %v5850 = vpack.c.bf16 %v5849, %v5849
    %v5851 = vld [vmem:[%s3] sm:$0xf]
    %v5852 = vld [vmem:[%s3 + $0x4] sm:$0xf]
    %v5853 = vld [vmem:[%s3 + $0x8] sm:$0xf]
    %v5854 = vld [vmem:[%s3 + $0xc] sm:$0xf]
    %v5855 = vld [vmem:[%s3 + $0x10] sm:$0xf]
    %v5856 = vld [vmem:[%s3 + $0x14] sm:$0xf]
    %v5857 = vld [vmem:[%s3 + $0x18] sm:$0xf]
    %v5858 = vld [vmem:[%s3 + $0x1c] sm:$0xf]
    %v5859 = vld [vmem:[%s3 + $0x20] sm:$0xf]
    %v5860 = vld [vmem:[%s3 + $0x24] sm:$0xf]
    %v5861 = vld [vmem:[%s3 + $0x28] sm:$0xf]
    %v5862 = vld [vmem:[%s3 + $0x2c] sm:$0xf]
    %v5863 = vld [vmem:[%s3 + $0x30] sm:$0xf]
    %v5864 = vld [vmem:[%s3 + $0x34] sm:$0xf]
    %v5865 = vld [vmem:[%s3 + $0x38] sm:$0xf]
    %v5866 = vld [vmem:[%s3 + $0x3c] sm:$0xf]
    %v5867 = vld [vmem:[%s4] sm:$0x1]
    %v5869 = vlaneseq
    %v5870 = vshrl.u32 %v5869, 7
    %v5871 = vsub.s32 0, %v5870
    %v5872 = vrot.slane %v5867, %v5871
    %v5890 = vunpack.c.l.b16 %v5851
    %v5891 = vunpack.c.l.b16 %v5852
    %v5892 = vunpack.c.l.b16 %v5853
    %v5893 = vunpack.c.l.b16 %v5854
    %v5894 = vunpack.c.l.b16 %v5855
    %v5895 = vunpack.c.l.b16 %v5856
    %v5896 = vunpack.c.l.b16 %v5857
    %v5897 = vunpack.c.l.b16 %v5858
    %v5898 = vunpack.c.l.b16 %v5859
    %v5899 = vunpack.c.l.b16 %v5860
    %v5900 = vunpack.c.l.b16 %v5861
    %v5901 = vunpack.c.l.b16 %v5862
    %v5902 = vunpack.c.l.b16 %v5863
    %v5903 = vunpack.c.l.b16 %v5864
    %v5904 = vunpack.c.l.b16 %v5865
    %v5905 = vunpack.c.l.b16 %v5866
    %v5906 = vpack.c.b16 %v5891, %v5890
    %v5907 = vpack.c.b16 %v5893, %v5892
    %v5908 = vpack.c.b16 %v5895, %v5894
    %v5909 = vpack.c.b16 %v5897, %v5896
    %v5910 = vpack.c.b16 %v5899, %v5898
    %v5911 = vpack.c.b16 %v5901, %v5900
    %v5912 = vpack.c.b16 %v5903, %v5902
    %v5913 = vpack.c.b16 %v5905, %v5904
    %5922 = vmatprep.subr.bf16.mxu0 0
    %5923 = vmatpush1.bf16.msra.mxu0 %v5913
    %5924 = vmatprep.subr.bf16.mxu0 0
    %5925 = vmatpush1.bf16.msra.mxu0 %v5912
    %5926 = vmatprep.subr.bf16.mxu0 0
    %5927 = vmatpush1.bf16.msra.mxu0 %v5911
    %5928 = vmatprep.subr.bf16.mxu0 0
    %5929 = vmatpush1.bf16.msra.mxu0 %v5910
    %5930 = vmatprep.subr.bf16.mxu0 0
    %5931 = vmatpush1.bf16.msra.mxu0 %v5909
    %5932 = vmatprep.subr.bf16.mxu0 0
    %5933 = vmatpush1.bf16.msra.mxu0 %v5908
    %5934 = vmatprep.subr.bf16.mxu0 0
    %5935 = vmatpush1.bf16.msra.mxu0 %v5907
    %5936 = vmatprep.subr.bf16.mxu0 0
    %5937 = vmatpush1.bf16.msra.mxu0 %v5906
    %5938 = vmatprep.subr.bf16.mxu0 0
    %5939 = vmatpush2.bf16.msra.mxu0 0
    %5940 = vmatprep.subr.bf16.mxu0 0
    %5941 = vmatpush2.bf16.msra.mxu0 0
    %5942 = vmatprep.subr.bf16.mxu0 0
    %5943 = vmatpush2.bf16.msra.mxu0 0
    %5944 = vmatprep.subr.bf16.mxu0 0
    %5945 = vmatpush2.bf16.msra.mxu0 0
    %5946 = vmatprep.subr.bf16.mxu0 0
    %5947 = vmatpush2.bf16.msra.mxu0 0
    %5948 = vmatprep.subr.bf16.mxu0 0
    %5949 = vmatpush2.bf16.msra.mxu0 0
    %5950 = vmatprep.subr.bf16.mxu0 0
    %5951 = vmatpush2.bf16.msra.mxu0 0
    %5952 = vmatprep.subr.bf16.mxu0 0
    %5953 = vmatpush2.bf16.msra.mxu0 0
    %5954 = vmatprep.mubr.bf16.mxu0 0
    %5955 = vmatmul.mubr.bf16.gmra.mxu0 %v5850
    %v5956 = vpop.f32.mrf.mxu0
    %v5957 = vadd.f32 %v5872, %v5956
    %v5958 = vpop.f32.mrf.mxu0
    %v5959 = vpop.f32.mrf.mxu0
    %v5960 = vpop.f32.mrf.mxu0
    %5961 = vdwg.mxu0
    %v5962 = vmax.f32 %v5957, 0.0
    %v5963 = vpack.c.bf16 %v5962, %v5962
    %v5964 = vld [vmem:[%s5] sm:$0xf]
    %v5965 = vld [vmem:[%s5 + $0x4] sm:$0xf]
    %v5966 = vld [vmem:[%s5 + $0x8] sm:$0xf]
    %v5967 = vld [vmem:[%s5 + $0xc] sm:$0xf]
    %v5968 = vld [vmem:[%s5 + $0x10] sm:$0xf]
    %v5969 = vld [vmem:[%s5 + $0x14] sm:$0xf]
    %v5970 = vld [vmem:[%s5 + $0x18] sm:$0xf]
    %v5971 = vld [vmem:[%s5 + $0x1c] sm:$0xf]
    %v5972 = vld [vmem:[%s5 + $0x20] sm:$0xf]
    %v5973 = vld [vmem:[%s5 + $0x24] sm:$0xf]
    %v5974 = vld [vmem:[%s5 + $0x28] sm:$0xf]
    %v5975 = vld [vmem:[%s5 + $0x2c] sm:$0xf]
    %v5976 = vld [vmem:[%s5 + $0x30] sm:$0xf]
    %v5977 = vld [vmem:[%s5 + $0x34] sm:$0xf]
    %v5978 = vld [vmem:[%s5 + $0x38] sm:$0xf]
    %v5979 = vld [vmem:[%s5 + $0x3c] sm:$0xf]
    %v5980 = vld [vmem:[%s6] sm:$0x1]
    %v5982 = vlaneseq
    %v5983 = vshrl.u32 %v5982, 7
    %v5984 = vsub.s32 0, %v5983
    %v5985 = vrot.slane %v5980, %v5984
    %v6003 = vunpack.c.l.b16 %v5964
    %v6004 = vunpack.c.l.b16 %v5965
    %v6005 = vunpack.c.l.b16 %v5966
    %v6006 = vunpack.c.l.b16 %v5967
    %v6007 = vunpack.c.l.b16 %v5968
    %v6008 = vunpack.c.l.b16 %v5969
    %v6009 = vunpack.c.l.b16 %v5970
    %v6010 = vunpack.c.l.b16 %v5971
    %v6011 = vunpack.c.l.b16 %v5972
    %v6012 = vunpack.c.l.b16 %v5973
    %v6013 = vunpack.c.l.b16 %v5974
    %v6014 = vunpack.c.l.b16 %v5975
    %v6015 = vunpack.c.l.b16 %v5976
    %v6016 = vunpack.c.l.b16 %v5977
    %v6017 = vunpack.c.l.b16 %v5978
    %v6018 = vunpack.c.l.b16 %v5979
    %v6019 = vpack.c.b16 %v6004, %v6003
    %v6020 = vpack.c.b16 %v6006, %v6005
    %v6021 = vpack.c.b16 %v6008, %v6007
    %v6022 = vpack.c.b16 %v6010, %v6009
    %v6023 = vpack.c.b16 %v6012, %v6011
    %v6024 = vpack.c.b16 %v6014, %v6013
    %v6025 = vpack.c.b16 %v6016, %v6015
    %v6026 = vpack.c.b16 %v6018, %v6017
    %6035 = vmatprep.subr.bf16.mxu0 0
    %6036 = vmatpush1.bf16.msra.mxu0 %v6026
    %6037 = vmatprep.subr.bf16.mxu0 0
    %6038 = vmatpush1.bf16.msra.mxu0 %v6025
    %6039 = vmatprep.subr.bf16.mxu0 0
    %6040 = vmatpush1.bf16.msra.mxu0 %v6024
    %6041 = vmatprep.subr.bf16.mxu0 0
    %6042 = vmatpush1.bf16.msra.mxu0 %v6023
    %6043 = vmatprep.subr.bf16.mxu0 0
    %6044 = vmatpush1.bf16.msra.mxu0 %v6022
    %6045 = vmatprep.subr.bf16.mxu0 0
    %6046 = vmatpush1.bf16.msra.mxu0 %v6021
    %6047 = vmatprep.subr.bf16.mxu0 0
    %6048 = vmatpush1.bf16.msra.mxu0 %v6020
    %6049 = vmatprep.subr.bf16.mxu0 0
    %6050 = vmatpush1.bf16.msra.mxu0 %v6019
    %6051 = vmatprep.subr.bf16.mxu0 0
    %6052 = vmatpush2.bf16.msra.mxu0 0
    %6053 = vmatprep.subr.bf16.mxu0 0
    %6054 = vmatpush2.bf16.msra.mxu0 0
    %6055 = vmatprep.subr.bf16.mxu0 0
    %6056 = vmatpush2.bf16.msra.mxu0 0
    %6057 = vmatprep.subr.bf16.mxu0 0
    %6058 = vmatpush2.bf16.msra.mxu0 0
    %6059 = vmatprep.subr.bf16.mxu0 0
    %6060 = vmatpush2.bf16.msra.mxu0 0
    %6061 = vmatprep.subr.bf16.mxu0 0
    %6062 = vmatpush2.bf16.msra.mxu0 0
    %6063 = vmatprep.subr.bf16.mxu0 0
    %6064 = vmatpush2.bf16.msra.mxu0 0
    %6065 = vmatprep.subr.bf16.mxu0 0
    %6066 = vmatpush2.bf16.msra.mxu0 0
    %6067 = vmatprep.mubr.bf16.mxu0 0
    %6068 = vmatmul.mubr.bf16.gmra.mxu0 %v5963
    %v6069 = vpop.f32.mrf.mxu0
    %v6070 = vadd.f32 %v5985, %v6069
    %v6071 = vpop.f32.mrf.mxu0
    %v6072 = vpop.f32.mrf.mxu0
    %v6073 = vpop.f32.mrf.mxu0
    %6074 = vdwg.mxu0
    %v6075 = vmax.f32 %v6070, 0.0
    %v6076 = vpack.c.bf16 %v6075, %v6075
    %v6077 = vld [vmem:[%s7] sm:$0xf]
    %v6078 = vld [vmem:[%s7 + $0x4] sm:$0xf]
    %v6079 = vld [vmem:[%s7 + $0x8] sm:$0xf]
    %v6080 = vld [vmem:[%s7 + $0xc] sm:$0xf]
    %v6081 = vld [vmem:[%s7 + $0x10] sm:$0xf]
    %v6082 = vld [vmem:[%s7 + $0x14] sm:$0xf]
    %v6083 = vld [vmem:[%s7 + $0x18] sm:$0xf]
    %v6084 = vld [vmem:[%s7 + $0x1c] sm:$0xf]
    %v6085 = vld [vmem:[%s7 + $0x20] sm:$0xf]
    %v6086 = vld [vmem:[%s7 + $0x24] sm:$0xf]
    %v6087 = vld [vmem:[%s7 + $0x28] sm:$0xf]
    %v6088 = vld [vmem:[%s7 + $0x2c] sm:$0xf]
    %v6089 = vld [vmem:[%s7 + $0x30] sm:$0xf]
    %v6090 = vld [vmem:[%s7 + $0x34] sm:$0xf]
    %v6091 = vld [vmem:[%s7 + $0x38] sm:$0xf]
    %v6092 = vld [vmem:[%s7 + $0x3c] sm:$0xf]
    %v6093 = vld [vmem:[%s8] sm:$0x1]
    %v6095 = vlaneseq
    %v6096 = vshrl.u32 %v6095, 7
    %v6097 = vsub.s32 0, %v6096
    %v6098 = vrot.slane %v6093, %v6097
    %v6116 = vunpack.c.l.b16 %v6077
    %v6117 = vunpack.c.l.b16 %v6078
    %v6118 = vunpack.c.l.b16 %v6079
    %v6119 = vunpack.c.l.b16 %v6080
    %v6120 = vunpack.c.l.b16 %v6081
    %v6121 = vunpack.c.l.b16 %v6082
    %v6122 = vunpack.c.l.b16 %v6083
    %v6123 = vunpack.c.l.b16 %v6084
    %v6124 = vunpack.c.l.b16 %v6085
    %v6125 = vunpack.c.l.b16 %v6086
    %v6126 = vunpack.c.l.b16 %v6087
    %v6127 = vunpack.c.l.b16 %v6088
    %v6128 = vunpack.c.l.b16 %v6089
    %v6129 = vunpack.c.l.b16 %v6090
    %v6130 = vunpack.c.l.b16 %v6091
    %v6131 = vunpack.c.l.b16 %v6092
    %v6132 = vpack.c.b16 %v6117, %v6116
    %v6133 = vpack.c.b16 %v6119, %v6118
    %v6134 = vpack.c.b16 %v6121, %v6120
    %v6135 = vpack.c.b16 %v6123, %v6122
    %v6136 = vpack.c.b16 %v6125, %v6124
    %v6137 = vpack.c.b16 %v6127, %v6126
    %v6138 = vpack.c.b16 %v6129, %v6128
    %v6139 = vpack.c.b16 %v6131, %v6130
    %6148 = vmatprep.subr.bf16.mxu0 0
    %6149 = vmatpush1.bf16.msra.mxu0 %v6139
    %6150 = vmatprep.subr.bf16.mxu0 0
    %6151 = vmatpush1.bf16.msra.mxu0 %v6138
    %6152 = vmatprep.subr.bf16.mxu0 0
    %6153 = vmatpush1.bf16.msra.mxu0 %v6137
    %6154 = vmatprep.subr.bf16.mxu0 0
    %6155 = vmatpush1.bf16.msra.mxu0 %v6136
    %6156 = vmatprep.subr.bf16.mxu0 0
    %6157 = vmatpush1.bf16.msra.mxu0 %v6135
    %6158 = vmatprep.subr.bf16.mxu0 0
    %6159 = vmatpush1.bf16.msra.mxu0 %v6134
    %6160 = vmatprep.subr.bf16.mxu0 0
    %6161 = vmatpush1.bf16.msra.mxu0 %v6133
    %6162 = vmatprep.subr.bf16.mxu0 0
    %6163 = vmatpush1.bf16.msra.mxu0 %v6132
    %6164 = vmatprep.subr.bf16.mxu0 0
    %6165 = vmatpush2.bf16.msra.mxu0 0
    %6166 = vmatprep.subr.bf16.mxu0 0
    %6167 = vmatpush2.bf16.msra.mxu0 0
    %6168 = vmatprep.subr.bf16.mxu0 0
    %6169 = vmatpush2.bf16.msra.mxu0 0
    %6170 = vmatprep.subr.bf16.mxu0 0
    %6171 = vmatpush2.bf16.msra.mxu0 0
    %6172 = vmatprep.subr.bf16.mxu0 0
    %6173 = vmatpush2.bf16.msra.mxu0 0
    %6174 = vmatprep.subr.bf16.mxu0 0
    %6175 = vmatpush2.bf16.msra.mxu0 0
    %6176 = vmatprep.subr.bf16.mxu0 0
    %6177 = vmatpush2.bf16.msra.mxu0 0
    %6178 = vmatprep.subr.bf16.mxu0 0
    %6179 = vmatpush2.bf16.msra.mxu0 0
    %6180 = vmatprep.mubr.bf16.mxu0 0
    %6181 = vmatmul.mubr.bf16.gmra.mxu0 %v6076
    %v6182 = vpop.f32.mrf.mxu0
    %v6183 = vadd.f32 %v6098, %v6182
    %v6184 = vpop.f32.mrf.mxu0
    %v6185 = vpop.f32.mrf.mxu0
    %v6186 = vpop.f32.mrf.mxu0
    %6187 = vdwg.mxu0
    %6188 = vst [vmem:[#allocation2] sm:$0x3] %v6183
    // Predicated region
    $region38: #{cifar10_forward.5} parent=1 // pred_check
      _
    $region39: #{cifar10_forward.5} parent=1 // pred_check_branch
      %6190 = sbr.rel (0) target = $region41
    $region40: #{cifar10_forward.5} parent=1 // pred_region
      %s6192 = ssub.s32 32, 32
      %6193 = vsyncadd [#allocation3], %s6192
      %s6195 = sshll.u32 [#allocation2], 4
      %s6196 = int_to_ptr.vmem [resolvable:$true] %s6195
      %6198 = dma.vmem_to_hbm [thread:$0]  %s6196, 32, %s9, [#allocation3]
    $region41: #{cifar10_forward.5} parent=1 // pred_fallthru
      _
    // Predicated region
    $region42: #{cifar10_forward.5} parent=1 // pred_check
      _
    $region43: #{cifar10_forward.5} parent=1 // pred_check_branch
      %6200 = sbr.rel (0) target = $region45
    $region44: #{cifar10_forward.5} parent=1 // pred_region
      %6201 = dma.done [#allocation3], 32
    $region45: #{cifar10_forward.5} parent=1 // pred_fallthru
      _
    %6202 = vsyncpa [#allocation3], 1

</llo_original>
